<compile_context>
chip_gen: v5e
topology: v5e:2x2
jax: 0.10.0
libtpu: 0.0.40
codegen_flags: <defaults>
</compile_context>

<pallas_src>
import functools

import jax
import jax.numpy as jnp
from jax.experimental import pallas as pl
from jax.experimental.pallas import tpu as pltpu

LANE = 128


def _round_up(n, m):
    return ((n + m - 1) // m) * m


# ----------------------------- Pallas kernels ------------------------------ #

def conv3x3_bias_relu_kernel(x_ref, w_ref, b_ref, o_ref, acc_ref, *, H, W):
    """Fused 3x3 'same' conv + bias + ReLU for one image.

    x_ref  : [1, H+2, W+2, Cin]  bf16  (spatially zero-padded input)
    w_ref  : [9, Cin, Cout]      bf16  (tap-major conv weights)
    b_ref  : [1, Cout]           f32
    o_ref  : [1, H*W, Cout]      bf16  (flattened spatial, lane-dense channels)
    acc_ref: [H*W, Cout]         f32 VMEM accumulator scratch
    """
    acc_ref[...] = jnp.zeros_like(acc_ref)
    cin = x_ref.shape[-1]
    for di in range(3):
        for dj in range(3):
            tap = x_ref[0, di:di + H, dj:dj + W, :]          # [H, W, Cin] bf16
            tap2d = tap.reshape(H * W, cin)                   # [H*W, Cin]
            acc_ref[...] += jnp.dot(tap2d, w_ref[di * 3 + dj],
                                    preferred_element_type=jnp.float32)
    y = jnp.maximum(acc_ref[...] + b_ref[...], 0.0)           # f32 epilogue (once)
    o_ref[0] = y.astype(o_ref.dtype)


def conv3x3_gap_head_kernel(x_ref, w_ref, b_ref, wh_ref, bh_ref, o_ref, acc_ref,
                            *, H, W):
    """Fused 3x3 conv + bias + ReLU + global-avg-pool + linear head for one image.

    x_ref  : [1, H+2, W+2, Cin]  bf16
    w_ref  : [9, Cin, Feat]      bf16
    b_ref  : [1, Feat]           f32
    wh_ref : [Feat, Ncls]        f32   (head weight, class dim padded to 128)
    bh_ref : [1, Ncls]           f32
    o_ref  : [1, 1, Ncls]        f32   (padded logits for this batch element)
    acc_ref: [H*W, Feat]         f32 VMEM accumulator scratch
    """
    acc_ref[...] = jnp.zeros_like(acc_ref)
    cin = x_ref.shape[-1]
    for di in range(3):
        for dj in range(3):
            tap2d = x_ref[0, di:di + H, dj:dj + W, :].reshape(H * W, cin)
            acc_ref[...] += jnp.dot(tap2d, w_ref[di * 3 + dj],
                                    preferred_element_type=jnp.float32)
    y = jnp.maximum(acc_ref[...] + b_ref[...], 0.0)           # [H*W, Feat] f32
    # global average pool: sum over the (sublane) spatial axis, scale by static 1/S
    pooled = jnp.sum(y, axis=0, keepdims=True) * (1.0 / (H * W))   # [1, Feat] f32
    logits = jnp.dot(pooled, wh_ref[...],
                     preferred_element_type=jnp.float32) + bh_ref[...]
    o_ref[0] = logits.astype(o_ref.dtype)


# ----------------------------- Pallas wrappers ------------------------------ #

def conv3x3_bias_relu(xp, w9, b, *, H, W):
    """xp:[B,H+2,W+2,Cin] bf16, w9:[9,Cin,Cout] bf16, b:[1,Cout] f32 -> [B,H*W,Cout] bf16."""
    B, Hp, Wp, Cin = xp.shape
    Cout = w9.shape[-1]
    kernel = functools.partial(conv3x3_bias_relu_kernel, H=H, W=W)
    return pl.pallas_call(
        kernel,
        out_shape=jax.ShapeDtypeStruct((B, H * W, Cout), jnp.bfloat16),
        grid_spec=pltpu.PrefetchScalarGridSpec(
            num_scalar_prefetch=0,
            grid=(B,),
            in_specs=[
                pl.BlockSpec((1, Hp, Wp, Cin), lambda b: (b, 0, 0, 0)),
                pl.BlockSpec((9, Cin, Cout), lambda b: (0, 0, 0)),   # resident weights
                pl.BlockSpec((1, Cout), lambda b: (0, 0)),
            ],
            out_specs=pl.BlockSpec((1, H * W, Cout), lambda b: (b, 0, 0)),
            scratch_shapes=[pltpu.VMEM((H * W, Cout), jnp.float32)],
        ),
        compiler_params=pltpu.CompilerParams(dimension_semantics=("parallel",)),
    )(xp, w9, b)


def conv3x3_gap_head(xp, w9, b, w_head, b_head, *, H, W):
    """Fused conv2 + GAP + head. Returns padded logits [B, 1, Ncls] f32."""
    B, Hp, Wp, Cin = xp.shape
    Feat = w9.shape[-1]
    Ncls = w_head.shape[-1]
    kernel = functools.partial(conv3x3_gap_head_kernel, H=H, W=W)
    return pl.pallas_call(
        kernel,
        out_shape=jax.ShapeDtypeStruct((B, 1, Ncls), jnp.float32),
        grid_spec=pltpu.PrefetchScalarGridSpec(
            num_scalar_prefetch=0,
            grid=(B,),
            in_specs=[
                pl.BlockSpec((1, Hp, Wp, Cin), lambda b: (b, 0, 0, 0)),
                pl.BlockSpec((9, Cin, Feat), lambda b: (0, 0, 0)),
                pl.BlockSpec((1, Feat), lambda b: (0, 0)),
                pl.BlockSpec((Feat, Ncls), lambda b: (0, 0)),
                pl.BlockSpec((1, Ncls), lambda b: (0, 0)),
            ],
            out_specs=pl.BlockSpec((1, 1, Ncls), lambda b: (b, 0, 0)),
            scratch_shapes=[pltpu.VMEM((H * W, Feat), jnp.float32)],
        ),
        compiler_params=pltpu.CompilerParams(dimension_semantics=("parallel",)),
    )(xp, w9, b, w_head, b_head)


# ----------------------------- Params & packing ----------------------------- #

def init_params(key, in_ch, mid_ch, feat_ch, num_classes):
    k1, k2, k3 = jax.random.split(key, 3)
    return {
        "w1": jax.random.normal(k1, (3, 3, in_ch, mid_ch), jnp.float32) * 0.1,
        "b1": jnp.zeros((mid_ch,), jnp.float32),
        "w2": jax.random.normal(k2, (3, 3, mid_ch, feat_ch), jnp.float32) * 0.05,
        "b2": jnp.zeros((feat_ch,), jnp.float32),
        "w_head": jax.random.normal(k3, (feat_ch, num_classes), jnp.float32) * 0.1,
        "b_head": jnp.zeros((num_classes,), jnp.float32),
    }


def _pack_conv_w(w, cin_pad, cout_pad):
    kh, kw, cin, cout = w.shape
    wp = jnp.zeros((kh, kw, cin_pad, cout_pad), jnp.float32)
    wp = wp.at[:, :, :cin, :cout].set(w)
    return wp.reshape(kh * kw, cin_pad, cout_pad).astype(jnp.bfloat16)


def _pack_bias(b, n_pad):
    return jnp.zeros((1, n_pad), jnp.float32).at[0, :b.shape[0]].set(b)


def pack_params(p):
    """Zero-pad lane dims to 128 and convert conv weights to tap-major bf16."""
    in_ch = p["w1"].shape[2]
    mid = p["w1"].shape[3]
    feat = p["w2"].shape[3]
    ncls = p["w_head"].shape[1]
    mid_pad = _round_up(mid, LANE)
    feat_pad = _round_up(feat, LANE)
    cls_pad = _round_up(ncls, LANE)
    w_head = jnp.zeros((feat_pad, cls_pad), jnp.float32)
    w_head = w_head.at[:feat, :ncls].set(p["w_head"])
    return {
        "w1": _pack_conv_w(p["w1"], in_ch, mid_pad),
        "b1": _pack_bias(p["b1"], mid_pad),
        "w2": _pack_conv_w(p["w2"], mid_pad, feat_pad),
        "b2": _pack_bias(p["b2"], feat_pad),
        "w_head": w_head,
        "b_head": _pack_bias(p["b_head"], cls_pad),
    }


# ------------------------------- Forward pass -------------------------------- #

def custom_timm_model_forward(packed, x_nchw, *, num_classes):
    """Forward pass. x_nchw: [B, C, H, W] (PyTorch layout)."""
    B, C, H, W = x_nchw.shape
    x = jnp.transpose(x_nchw, (0, 2, 3, 1)).astype(jnp.bfloat16)   # NHWC, bf16
    xp = jnp.pad(x, ((0, 0), (1, 1), (1, 1), (0, 0)))              # 'same' zero pad

    # backbone conv1: fused conv + bias + ReLU (no im2col)
    h1 = conv3x3_bias_relu(xp, packed["w1"], packed["b1"], H=H, W=W)  # [B,H*W,128] bf16
    h1 = h1.reshape(B, H, W, -1)
    h1p = jnp.pad(h1, ((0, 0), (1, 1), (1, 1), (0, 0)))

    # backbone conv2 + global-avg-pool + nn.Linear head, fully fused in one kernel
    logits_pad = conv3x3_gap_head(h1p, packed["w2"], packed["b2"],
                                  packed["w_head"], packed["b_head"],
                                  H=H, W=W)                           # [B,1,128] f32
    return logits_pad[:, 0, :num_classes]


# --------------------------- Pure-JAX reference ------------------------------ #

def reference_forward(p, x_nchw):
    bf = lambda a: a.astype(jnp.bfloat16).astype(jnp.float32)

    def conv(x, w, b):
        B, H, W, _ = x.shape
        xp = jnp.pad(x, ((0, 0), (1, 1), (1, 1), (0, 0)))
        acc = jnp.zeros((B, H, W, w.shape[-1]), jnp.float32)
        for di in range(3):
            for dj in range(3):
                acc = acc + jnp.einsum("bhwc,co->bhwo",
                                       xp[:, di:di + H, dj:dj + W, :],
                                       bf(w[di, dj]))
        return jnp.maximum(acc + b, 0.0)

    x = bf(jnp.transpose(x_nchw, (0, 2, 3, 1)))
    h1 = bf(conv(x, p["w1"], p["b1"]))
    h2 = conv(h1, p["w2"], p["b2"])
    feats = jnp.mean(h2, axis=(1, 2))
    return feats @ p["w_head"] + p["b_head"]


# ----------------------------------- main ------------------------------------ #

if __name__ == "__main__":
    key = jax.random.PRNGKey(0)
    kx, kp = jax.random.split(key)

    # Small shapes consistent with the module's forward (NCHW image input).
    B, C, H, W = 2, 4, 16, 16
    MID_CH, FEAT_CH, NUM_CLASSES = 32, 64, 10

    x = jax.random.normal(kx, (B, C, H, W), jnp.float32)
    params = init_params(kp, C, MID_CH, FEAT_CH, NUM_CLASSES)
    packed = pack_params(params)

    fwd = jax.jit(functools.partial(custom_timm_model_forward,
                                    num_classes=NUM_CLASSES))
    out = jax.block_until_ready(fwd(packed, x))

    assert out.shape == (B, NUM_CLASSES), out.shape
    assert bool(jnp.all(jnp.isfinite(out)))

    ref = reference_forward(params, x)
    assert bool(jnp.allclose(out, ref, rtol=5e-2, atol=5e-2)), \
        float(jnp.max(jnp.abs(out - ref)))

    print("KERNEL_OK")
</pallas_src>

<mosaic_0001>
module attributes {stable_mosaic.version = 11 : i64} {
  func.func @conv3x3_bias_relu_kernel(%arg0: i32, %arg1: memref<1x18x18x4xbf16, #tpu.memory_space<vmem>>, %arg2: memref<9x4x128xbf16, #tpu.memory_space<vmem>>, %arg3: memref<1x128xf32, #tpu.memory_space<vmem>>, %arg4: memref<1x256x128xbf16, #tpu.memory_space<vmem>>, %arg5: memref<256x128xf32, #tpu.memory_space<vmem>>) attributes {dimension_semantics = [#tpu.dimension_semantics<parallel>], iteration_bounds = array<i64: 2>, scalar_prefetch = 0 : i64, scratch_operands = 1 : i64, tpu.core_type = #tpu.core_type<tc>, window_params = [{transform_indices = @transform_0, window_bounds = array<i64: 1, 18, 18, 4>}, {pipeline_mode = #tpu.pipeline_mode<synchronous>, transform_indices = @transform_1, window_bounds = array<i64: 9, 4, 128>}, {pipeline_mode = #tpu.pipeline_mode<synchronous>, transform_indices = @transform_2, window_bounds = array<i64: 1, 128>}, {transform_indices = @transform_3, window_bounds = array<i64: 1, 256, 128>}]} {
    %cst = arith.constant 0.000000e+00 : f32
    %0 = vector.broadcast %cst : f32 to vector<256x128xf32>
    %c0 = arith.constant 0 : index
    %c0_0 = arith.constant 0 : index
    %1 = vector.load %arg5[%c0, %c0_0] : memref<256x128xf32, #tpu.memory_space<vmem>>, vector<256x128xf32>
    tpu.vector_store %arg5[%c0, %c0_0], %0 {strides = array<i32>} : memref<256x128xf32, #tpu.memory_space<vmem>>, vector<256x128xf32>,
    %c0_1 = arith.constant 0 : index
    %c0_2 = arith.constant 0 : index
    %c0_3 = arith.constant 0 : index
    %c0_4 = arith.constant 0 : index
    %2 = vector.load %arg1[%c0_1, %c0_2, %c0_3, %c0_4] : memref<1x18x18x4xbf16, #tpu.memory_space<vmem>>, vector<1x16x16x4xbf16>
    %3 = vector.shape_cast %2 : vector<1x16x16x4xbf16> to vector<16x16x4xbf16>
    %4 = vector.shape_cast %3 : vector<16x16x4xbf16> to vector<256x4xbf16>
    %c0_5 = arith.constant 0 : index
    %c0_6 = arith.constant 0 : index
    %5 = vector.load %arg5[%c0_5, %c0_6] : memref<256x128xf32, #tpu.memory_space<vmem>>, vector<256x128xf32>
    %c0_7 = arith.constant 0 : index
    %c0_8 = arith.constant 0 : index
    %c0_9 = arith.constant 0 : index
    %6 = vector.load %arg2[%c0_7, %c0_8, %c0_9] : memref<9x4x128xbf16, #tpu.memory_space<vmem>>, vector<1x4x128xbf16>
    %7 = vector.shape_cast %6 : vector<1x4x128xbf16> to vector<4x128xbf16>
    %cst_10 = arith.constant dense<0.000000e+00> : vector<256x128xf32>
    %8 = tpu.matmul %4, %7, %cst_10 {dimension_numbers = #tpu.dot_dimension_numbers<[1], [0], [0], [1], [0, 0, 1, 1], [], []>} : vector<256x4xbf16>, vector<4x128xbf16>, vector<256x128xf32> -> vector<256x128xf32>
    %9 = arith.addf %5, %8 : vector<256x128xf32>
    %c0_11 = arith.constant 0 : index
    %c0_12 = arith.constant 0 : index
    %10 = vector.load %arg5[%c0_11, %c0_12] : memref<256x128xf32, #tpu.memory_space<vmem>>, vector<256x128xf32>
    tpu.vector_store %arg5[%c0_11, %c0_12], %9 {strides = array<i32>} : memref<256x128xf32, #tpu.memory_space<vmem>>, vector<256x128xf32>,
    %c0_13 = arith.constant 0 : index
    %c0_14 = arith.constant 0 : index
    %c1 = arith.constant 1 : index
    %c0_15 = arith.constant 0 : index
    %11 = vector.load %arg1[%c0_13, %c0_14, %c1, %c0_15] : memref<1x18x18x4xbf16, #tpu.memory_space<vmem>>, vector<1x16x16x4xbf16>
    %12 = vector.shape_cast %11 : vector<1x16x16x4xbf16> to vector<16x16x4xbf16>
    %13 = vector.shape_cast %12 : vector<16x16x4xbf16> to vector<256x4xbf16>
    %c0_16 = arith.constant 0 : index
    %c0_17 = arith.constant 0 : index
    %14 = vector.load %arg5[%c0_16, %c0_17] : memref<256x128xf32, #tpu.memory_space<vmem>>, vector<256x128xf32>
    %c1_18 = arith.constant 1 : index
    %c0_19 = arith.constant 0 : index
    %c0_20 = arith.constant 0 : index
    %15 = vector.load %arg2[%c1_18, %c0_19, %c0_20] : memref<9x4x128xbf16, #tpu.memory_space<vmem>>, vector<1x4x128xbf16>
    %16 = vector.shape_cast %15 : vector<1x4x128xbf16> to vector<4x128xbf16>
    %cst_21 = arith.constant dense<0.000000e+00> : vector<256x128xf32>
    %17 = tpu.matmul %13, %16, %cst_21 {dimension_numbers = #tpu.dot_dimension_numbers<[1], [0], [0], [1], [0, 0, 1, 1], [], []>} : vector<256x4xbf16>, vector<4x128xbf16>, vector<256x128xf32> -> vector<256x128xf32>
    %18 = arith.addf %14, %17 : vector<256x128xf32>
    %c0_22 = arith.constant 0 : index
    %c0_23 = arith.constant 0 : index
    %19 = vector.load %arg5[%c0_22, %c0_23] : memref<256x128xf32, #tpu.memory_space<vmem>>, vector<256x128xf32>
    tpu.vector_store %arg5[%c0_22, %c0_23], %18 {strides = array<i32>} : memref<256x128xf32, #tpu.memory_space<vmem>>, vector<256x128xf32>,
    %c0_24 = arith.constant 0 : index
    %c0_25 = arith.constant 0 : index
    %c2 = arith.constant 2 : index
    %c0_26 = arith.constant 0 : index
    %20 = vector.load %arg1[%c0_24, %c0_25, %c2, %c0_26] : memref<1x18x18x4xbf16, #tpu.memory_space<vmem>>, vector<1x16x16x4xbf16>
    %21 = vector.shape_cast %20 : vector<1x16x16x4xbf16> to vector<16x16x4xbf16>
    %22 = vector.shape_cast %21 : vector<16x16x4xbf16> to vector<256x4xbf16>
    %c0_27 = arith.constant 0 : index
    %c0_28 = arith.constant 0 : index
    %23 = vector.load %arg5[%c0_27, %c0_28] : memref<256x128xf32, #tpu.memory_space<vmem>>, vector<256x128xf32>
    %c2_29 = arith.constant 2 : index
    %c0_30 = arith.constant 0 : index
    %c0_31 = arith.constant 0 : index
    %24 = vector.load %arg2[%c2_29, %c0_30, %c0_31] : memref<9x4x128xbf16, #tpu.memory_space<vmem>>, vector<1x4x128xbf16>
    %25 = vector.shape_cast %24 : vector<1x4x128xbf16> to vector<4x128xbf16>
    %cst_32 = arith.constant dense<0.000000e+00> : vector<256x128xf32>
    %26 = tpu.matmul %22, %25, %cst_32 {dimension_numbers = #tpu.dot_dimension_numbers<[1], [0], [0], [1], [0, 0, 1, 1], [], []>} : vector<256x4xbf16>, vector<4x128xbf16>, vector<256x128xf32> -> vector<256x128xf32>
    %27 = arith.addf %23, %26 : vector<256x128xf32>
    %c0_33 = arith.constant 0 : index
    %c0_34 = arith.constant 0 : index
    %28 = vector.load %arg5[%c0_33, %c0_34] : memref<256x128xf32, #tpu.memory_space<vmem>>, vector<256x128xf32>
    tpu.vector_store %arg5[%c0_33, %c0_34], %27 {strides = array<i32>} : memref<256x128xf32, #tpu.memory_space<vmem>>, vector<256x128xf32>,
    %c0_35 = arith.constant 0 : index
    %c1_36 = arith.constant 1 : index
    %c0_37 = arith.constant 0 : index
    %c0_38 = arith.constant 0 : index
    %29 = vector.load %arg1[%c0_35, %c1_36, %c0_37, %c0_38] : memref<1x18x18x4xbf16, #tpu.memory_space<vmem>>, vector<1x16x16x4xbf16>
    %30 = vector.shape_cast %29 : vector<1x16x16x4xbf16> to vector<16x16x4xbf16>
    %31 = vector.shape_cast %30 : vector<16x16x4xbf16> to vector<256x4xbf16>
    %c0_39 = arith.constant 0 : index
    %c0_40 = arith.constant 0 : index
    %32 = vector.load %arg5[%c0_39, %c0_40] : memref<256x128xf32, #tpu.memory_space<vmem>>, vector<256x128xf32>
    %c3 = arith.constant 3 : index
    %c0_41 = arith.constant 0 : index
    %c0_42 = arith.constant 0 : index
    %33 = vector.load %arg2[%c3, %c0_41, %c0_42] : memref<9x4x128xbf16, #tpu.memory_space<vmem>>, vector<1x4x128xbf16>
    %34 = vector.shape_cast %33 : vector<1x4x128xbf16> to vector<4x128xbf16>
    %cst_43 = arith.constant dense<0.000000e+00> : vector<256x128xf32>
    %35 = tpu.matmul %31, %34, %cst_43 {dimension_numbers = #tpu.dot_dimension_numbers<[1], [0], [0], [1], [0, 0, 1, 1], [], []>} : vector<256x4xbf16>, vector<4x128xbf16>, vector<256x128xf32> -> vector<256x128xf32>
    %36 = arith.addf %32, %35 : vector<256x128xf32>
    %c0_44 = arith.constant 0 : index
    %c0_45 = arith.constant 0 : index
    %37 = vector.load %arg5[%c0_44, %c0_45] : memref<256x128xf32, #tpu.memory_space<vmem>>, vector<256x128xf32>
    tpu.vector_store %arg5[%c0_44, %c0_45], %36 {strides = array<i32>} : memref<256x128xf32, #tpu.memory_space<vmem>>, vector<256x128xf32>,
    %c0_46 = arith.constant 0 : index
    %c1_47 = arith.constant 1 : index
    %c1_48 = arith.constant 1 : index
    %c0_49 = arith.constant 0 : index
    %38 = vector.load %arg1[%c0_46, %c1_47, %c1_48, %c0_49] : memref<1x18x18x4xbf16, #tpu.memory_space<vmem>>, vector<1x16x16x4xbf16>
    %39 = vector.shape_cast %38 : vector<1x16x16x4xbf16> to vector<16x16x4xbf16>
    %40 = vector.shape_cast %39 : vector<16x16x4xbf16> to vector<256x4xbf16>
    %c0_50 = arith.constant 0 : index
    %c0_51 = arith.constant 0 : index
    %41 = vector.load %arg5[%c0_50, %c0_51] : memref<256x128xf32, #tpu.memory_space<vmem>>, vector<256x128xf32>
    %c4 = arith.constant 4 : index
    %c0_52 = arith.constant 0 : index
    %c0_53 = arith.constant 0 : index
    %42 = vector.load %arg2[%c4, %c0_52, %c0_53] : memref<9x4x128xbf16, #tpu.memory_space<vmem>>, vector<1x4x128xbf16>
    %43 = vector.shape_cast %42 : vector<1x4x128xbf16> to vector<4x128xbf16>
    %cst_54 = arith.constant dense<0.000000e+00> : vector<256x128xf32>
    %44 = tpu.matmul %40, %43, %cst_54 {dimension_numbers = #tpu.dot_dimension_numbers<[1], [0], [0], [1], [0, 0, 1, 1], [], []>} : vector<256x4xbf16>, vector<4x128xbf16>, vector<256x128xf32> -> vector<256x128xf32>
    %45 = arith.addf %41, %44 : vector<256x128xf32>
    %c0_55 = arith.constant 0 : index
    %c0_56 = arith.constant 0 : index
    %46 = vector.load %arg5[%c0_55, %c0_56] : memref<256x128xf32, #tpu.memory_space<vmem>>, vector<256x128xf32>
    tpu.vector_store %arg5[%c0_55, %c0_56], %45 {strides = array<i32>} : memref<256x128xf32, #tpu.memory_space<vmem>>, vector<256x128xf32>,
    %c0_57 = arith.constant 0 : index
    %c1_58 = arith.constant 1 : index
    %c2_59 = arith.constant 2 : index
    %c0_60 = arith.constant 0 : index
    %47 = vector.load %arg1[%c0_57, %c1_58, %c2_59, %c0_60] : memref<1x18x18x4xbf16, #tpu.memory_space<vmem>>, vector<1x16x16x4xbf16>
    %48 = vector.shape_cast %47 : vector<1x16x16x4xbf16> to vector<16x16x4xbf16>
    %49 = vector.shape_cast %48 : vector<16x16x4xbf16> to vector<256x4xbf16>
    %c0_61 = arith.constant 0 : index
    %c0_62 = arith.constant 0 : index
    %50 = vector.load %arg5[%c0_61, %c0_62] : memref<256x128xf32, #tpu.memory_space<vmem>>, vector<256x128xf32>
    %c5 = arith.constant 5 : index
    %c0_63 = arith.constant 0 : index
    %c0_64 = arith.constant 0 : index
    %51 = vector.load %arg2[%c5, %c0_63, %c0_64] : memref<9x4x128xbf16, #tpu.memory_space<vmem>>, vector<1x4x128xbf16>
    %52 = vector.shape_cast %51 : vector<1x4x128xbf16> to vector<4x128xbf16>
    %cst_65 = arith.constant dense<0.000000e+00> : vector<256x128xf32>
    %53 = tpu.matmul %49, %52, %cst_65 {dimension_numbers = #tpu.dot_dimension_numbers<[1], [0], [0], [1], [0, 0, 1, 1], [], []>} : vector<256x4xbf16>, vector<4x128xbf16>, vector<256x128xf32> -> vector<256x128xf32>
    %54 = arith.addf %50, %53 : vector<256x128xf32>
    %c0_66 = arith.constant 0 : index
    %c0_67 = arith.constant 0 : index
    %55 = vector.load %arg5[%c0_66, %c0_67] : memref<256x128xf32, #tpu.memory_space<vmem>>, vector<256x128xf32>
    tpu.vector_store %arg5[%c0_66, %c0_67], %54 {strides = array<i32>} : memref<256x128xf32, #tpu.memory_space<vmem>>, vector<256x128xf32>,
    %c0_68 = arith.constant 0 : index
    %c2_69 = arith.constant 2 : index
    %c0_70 = arith.constant 0 : index
    %c0_71 = arith.constant 0 : index
    %56 = vector.load %arg1[%c0_68, %c2_69, %c0_70, %c0_71] : memref<1x18x18x4xbf16, #tpu.memory_space<vmem>>, vector<1x16x16x4xbf16>
    %57 = vector.shape_cast %56 : vector<1x16x16x4xbf16> to vector<16x16x4xbf16>
    %58 = vector.shape_cast %57 : vector<16x16x4xbf16> to vector<256x4xbf16>
    %c0_72 = arith.constant 0 : index
    %c0_73 = arith.constant 0 : index
    %59 = vector.load %arg5[%c0_72, %c0_73] : memref<256x128xf32, #tpu.memory_space<vmem>>, vector<256x128xf32>
    %c6 = arith.constant 6 : index
    %c0_74 = arith.constant 0 : index
    %c0_75 = arith.constant 0 : index
    %60 = vector.load %arg2[%c6, %c0_74, %c0_75] : memref<9x4x128xbf16, #tpu.memory_space<vmem>>, vector<1x4x128xbf16>
    %61 = vector.shape_cast %60 : vector<1x4x128xbf16> to vector<4x128xbf16>
    %cst_76 = arith.constant dense<0.000000e+00> : vector<256x128xf32>
    %62 = tpu.matmul %58, %61, %cst_76 {dimension_numbers = #tpu.dot_dimension_numbers<[1], [0], [0], [1], [0, 0, 1, 1], [], []>} : vector<256x4xbf16>, vector<4x128xbf16>, vector<256x128xf32> -> vector<256x128xf32>
    %63 = arith.addf %59, %62 : vector<256x128xf32>
    %c0_77 = arith.constant 0 : index
    %c0_78 = arith.constant 0 : index
    %64 = vector.load %arg5[%c0_77, %c0_78] : memref<256x128xf32, #tpu.memory_space<vmem>>, vector<256x128xf32>
    tpu.vector_store %arg5[%c0_77, %c0_78], %63 {strides = array<i32>} : memref<256x128xf32, #tpu.memory_space<vmem>>, vector<256x128xf32>,
    %c0_79 = arith.constant 0 : index
    %c2_80 = arith.constant 2 : index
    %c1_81 = arith.constant 1 : index
    %c0_82 = arith.constant 0 : index
    %65 = vector.load %arg1[%c0_79, %c2_80, %c1_81, %c0_82] : memref<1x18x18x4xbf16, #tpu.memory_space<vmem>>, vector<1x16x16x4xbf16>
    %66 = vector.shape_cast %65 : vector<1x16x16x4xbf16> to vector<16x16x4xbf16>
    %67 = vector.shape_cast %66 : vector<16x16x4xbf16> to vector<256x4xbf16>
    %c0_83 = arith.constant 0 : index
    %c0_84 = arith.constant 0 : index
    %68 = vector.load %arg5[%c0_83, %c0_84] : memref<256x128xf32, #tpu.memory_space<vmem>>, vector<256x128xf32>
    %c7 = arith.constant 7 : index
    %c0_85 = arith.constant 0 : index
    %c0_86 = arith.constant 0 : index
    %69 = vector.load %arg2[%c7, %c0_85, %c0_86] : memref<9x4x128xbf16, #tpu.memory_space<vmem>>, vector<1x4x128xbf16>
    %70 = vector.shape_cast %69 : vector<1x4x128xbf16> to vector<4x128xbf16>
    %cst_87 = arith.constant dense<0.000000e+00> : vector<256x128xf32>
    %71 = tpu.matmul %67, %70, %cst_87 {dimension_numbers = #tpu.dot_dimension_numbers<[1], [0], [0], [1], [0, 0, 1, 1], [], []>} : vector<256x4xbf16>, vector<4x128xbf16>, vector<256x128xf32> -> vector<256x128xf32>
    %72 = arith.addf %68, %71 : vector<256x128xf32>
    %c0_88 = arith.constant 0 : index
    %c0_89 = arith.constant 0 : index
    %73 = vector.load %arg5[%c0_88, %c0_89] : memref<256x128xf32, #tpu.memory_space<vmem>>, vector<256x128xf32>
    tpu.vector_store %arg5[%c0_88, %c0_89], %72 {strides = array<i32>} : memref<256x128xf32, #tpu.memory_space<vmem>>, vector<256x128xf32>,
    %c0_90 = arith.constant 0 : index
    %c2_91 = arith.constant 2 : index
    %c2_92 = arith.constant 2 : index
    %c0_93 = arith.constant 0 : index
    %74 = vector.load %arg1[%c0_90, %c2_91, %c2_92, %c0_93] : memref<1x18x18x4xbf16, #tpu.memory_space<vmem>>, vector<1x16x16x4xbf16>
    %75 = vector.shape_cast %74 : vector<1x16x16x4xbf16> to vector<16x16x4xbf16>
    %76 = vector.shape_cast %75 : vector<16x16x4xbf16> to vector<256x4xbf16>
    %c0_94 = arith.constant 0 : index
    %c0_95 = arith.constant 0 : index
    %77 = vector.load %arg5[%c0_94, %c0_95] : memref<256x128xf32, #tpu.memory_space<vmem>>, vector<256x128xf32>
    %c8 = arith.constant 8 : index
    %c0_96 = arith.constant 0 : index
    %c0_97 = arith.constant 0 : index
    %78 = vector.load %arg2[%c8, %c0_96, %c0_97] : memref<9x4x128xbf16, #tpu.memory_space<vmem>>, vector<1x4x128xbf16>
    %79 = vector.shape_cast %78 : vector<1x4x128xbf16> to vector<4x128xbf16>
    %cst_98 = arith.constant dense<0.000000e+00> : vector<256x128xf32>
    %80 = tpu.matmul %76, %79, %cst_98 {dimension_numbers = #tpu.dot_dimension_numbers<[1], [0], [0], [1], [0, 0, 1, 1], [], []>} : vector<256x4xbf16>, vector<4x128xbf16>, vector<256x128xf32> -> vector<256x128xf32>
    %81 = arith.addf %77, %80 : vector<256x128xf32>
    %c0_99 = arith.constant 0 : index
    %c0_100 = arith.constant 0 : index
    %82 = vector.load %arg5[%c0_99, %c0_100] : memref<256x128xf32, #tpu.memory_space<vmem>>, vector<256x128xf32>
    tpu.vector_store %arg5[%c0_99, %c0_100], %81 {strides = array<i32>} : memref<256x128xf32, #tpu.memory_space<vmem>>, vector<256x128xf32>,
    %c0_101 = arith.constant 0 : index
    %c0_102 = arith.constant 0 : index
    %83 = vector.load %arg5[%c0_101, %c0_102] : memref<256x128xf32, #tpu.memory_space<vmem>>, vector<256x128xf32>
    %c0_103 = arith.constant 0 : index
    %c0_104 = arith.constant 0 : index
    %84 = vector.load %arg3[%c0_103, %c0_104] : memref<1x128xf32, #tpu.memory_space<vmem>>, vector<1x128xf32>
    %85 = vector.broadcast %84 : vector<1x128xf32> to vector<256x128xf32>
    %86 = arith.addf %83, %85 : vector<256x128xf32>
    %cst_105 = arith.constant 0.000000e+00 : f32
    %87 = vector.broadcast %cst_105 : f32 to vector<256x128xf32>
    %88 = arith.maximumf %86, %87 : vector<256x128xf32>
    %89 = arith.truncf %88 : vector<256x128xf32> to vector<256x128xbf16>
    %c0_106 = arith.constant 0 : index
    %c0_107 = arith.constant 0 : index
    %c0_108 = arith.constant 0 : index
    %90 = vector.load %arg4[%c0_106, %c0_107, %c0_108] : memref<1x256x128xbf16, #tpu.memory_space<vmem>>, vector<1x256x128xbf16>
    %91 = vector.shape_cast %90 : vector<1x256x128xbf16> to vector<256x128xbf16>
    %92 = vector.shape_cast %89 : vector<256x128xbf16> to vector<1x256x128xbf16>
    tpu.vector_store %arg4[%c0_106, %c0_107, %c0_108], %92 {strides = array<i32>} : memref<1x256x128xbf16, #tpu.memory_space<vmem>>, vector<1x256x128xbf16>,
    return
  }
  func.func @transform_0(%arg0: i32) -> (i32, i32, i32, i32) {
    %c0_i32 = arith.constant 0 : i32
    %c0_i32_0 = arith.constant 0 : i32
    %c0_i32_1 = arith.constant 0 : i32
    %c0_i32_2 = arith.constant 0 : i32
    return %arg0, %c0_i32, %c0_i32_0, %c0_i32_1 : i32, i32, i32, i32
  }
  func.func @transform_1(%arg0: i32) -> (i32, i32, i32) {
    %c0_i32 = arith.constant 0 : i32
    %c0_i32_0 = arith.constant 0 : i32
    %c0_i32_1 = arith.constant 0 : i32
    %c0_i32_2 = arith.constant 0 : i32
    return %c0_i32, %c0_i32_0, %c0_i32_1 : i32, i32, i32
  }
  func.func @transform_2(%arg0: i32) -> (i32, i32) {
    %c0_i32 = arith.constant 0 : i32
    %c0_i32_0 = arith.constant 0 : i32
    %c0_i32_1 = arith.constant 0 : i32
    return %c0_i32, %c0_i32_0 : i32, i32
  }
  func.func @transform_3(%arg0: i32) -> (i32, i32, i32) {
    %c0_i32 = arith.constant 0 : i32
    %c0_i32_0 = arith.constant 0 : i32
    %c0_i32_1 = arith.constant 0 : i32
    return %arg0, %c0_i32, %c0_i32_0 : i32, i32, i32
  }
}

module attributes {stable_mosaic.version = 11 : i64} {
  func.func @conv3x3_gap_head_kernel(%arg0: i32, %arg1: memref<1x18x18x128xbf16, #tpu.memory_space<vmem>>, %arg2: memref<9x128x128xbf16, #tpu.memory_space<vmem>>, %arg3: memref<1x128xf32, #tpu.memory_space<vmem>>, %arg4: memref<128x128xf32, #tpu.memory_space<vmem>>, %arg5: memref<1x128xf32, #tpu.memory_space<vmem>>, %arg6: memref<1x1x128xf32, #tpu.memory_space<vmem>>, %arg7: memref<256x128xf32, #tpu.memory_space<vmem>>) attributes {dimension_semantics = [#tpu.dimension_semantics<parallel>], iteration_bounds = array<i64: 2>, scalar_prefetch = 0 : i64, scratch_operands = 1 : i64, tpu.core_type = #tpu.core_type<tc>, window_params = [{transform_indices = @transform_0, window_bounds = array<i64: 1, 18, 18, 128>}, {pipeline_mode = #tpu.pipeline_mode<synchronous>, transform_indices = @transform_1, window_bounds = array<i64: 9, 128, 128>}, {pipeline_mode = #tpu.pipeline_mode<synchronous>, transform_indices = @transform_2, window_bounds = array<i64: 1, 128>}, {pipeline_mode = #tpu.pipeline_mode<synchronous>, transform_indices = @transform_3, window_bounds = array<i64: 128, 128>}, {pipeline_mode = #tpu.pipeline_mode<synchronous>, transform_indices = @transform_4, window_bounds = array<i64: 1, 128>}, {transform_indices = @transform_5, window_bounds = array<i64: 1, 1, 128>}]} {
    %cst = arith.constant 0.000000e+00 : f32
    %0 = vector.broadcast %cst : f32 to vector<256x128xf32>
    %c0 = arith.constant 0 : index
    %c0_0 = arith.constant 0 : index
    %1 = vector.load %arg7[%c0, %c0_0] : memref<256x128xf32, #tpu.memory_space<vmem>>, vector<256x128xf32>
    tpu.vector_store %arg7[%c0, %c0_0], %0 {strides = array<i32>} : memref<256x128xf32, #tpu.memory_space<vmem>>, vector<256x128xf32>,
    %c0_1 = arith.constant 0 : index
    %c0_2 = arith.constant 0 : index
    %c0_3 = arith.constant 0 : index
    %c0_4 = arith.constant 0 : index
    %2 = vector.load %arg1[%c0_1, %c0_2, %c0_3, %c0_4] : memref<1x18x18x128xbf16, #tpu.memory_space<vmem>>, vector<1x16x16x128xbf16>
    %3 = vector.shape_cast %2 : vector<1x16x16x128xbf16> to vector<16x16x128xbf16>
    %4 = vector.shape_cast %3 : vector<16x16x128xbf16> to vector<256x128xbf16>
    %c0_5 = arith.constant 0 : index
    %c0_6 = arith.constant 0 : index
    %5 = vector.load %arg7[%c0_5, %c0_6] : memref<256x128xf32, #tpu.memory_space<vmem>>, vector<256x128xf32>
    %c0_7 = arith.constant 0 : index
    %c0_8 = arith.constant 0 : index
    %c0_9 = arith.constant 0 : index
    %6 = vector.load %arg2[%c0_7, %c0_8, %c0_9] : memref<9x128x128xbf16, #tpu.memory_space<vmem>>, vector<1x128x128xbf16>
    %7 = vector.shape_cast %6 : vector<1x128x128xbf16> to vector<128x128xbf16>
    %cst_10 = arith.constant dense<0.000000e+00> : vector<256x128xf32>
    %8 = tpu.matmul %4, %7, %cst_10 {dimension_numbers = #tpu.dot_dimension_numbers<[1], [0], [0], [1], [0, 0, 1, 1], [], []>} : vector<256x128xbf16>, vector<128x128xbf16>, vector<256x128xf32> -> vector<256x128xf32>
    %9 = arith.addf %5, %8 : vector<256x128xf32>
    %c0_11 = arith.constant 0 : index
    %c0_12 = arith.constant 0 : index
    %10 = vector.load %arg7[%c0_11, %c0_12] : memref<256x128xf32, #tpu.memory_space<vmem>>, vector<256x128xf32>
    tpu.vector_store %arg7[%c0_11, %c0_12], %9 {strides = array<i32>} : memref<256x128xf32, #tpu.memory_space<vmem>>, vector<256x128xf32>,
    %c0_13 = arith.constant 0 : index
    %c0_14 = arith.constant 0 : index
    %c1 = arith.constant 1 : index
    %c0_15 = arith.constant 0 : index
    %11 = vector.load %arg1[%c0_13, %c0_14, %c1, %c0_15] : memref<1x18x18x128xbf16, #tpu.memory_space<vmem>>, vector<1x16x16x128xbf16>
    %12 = vector.shape_cast %11 : vector<1x16x16x128xbf16> to vector<16x16x128xbf16>
    %13 = vector.shape_cast %12 : vector<16x16x128xbf16> to vector<256x128xbf16>
    %c0_16 = arith.constant 0 : index
    %c0_17 = arith.constant 0 : index
    %14 = vector.load %arg7[%c0_16, %c0_17] : memref<256x128xf32, #tpu.memory_space<vmem>>, vector<256x128xf32>
    %c1_18 = arith.constant 1 : index
    %c0_19 = arith.constant 0 : index
    %c0_20 = arith.constant 0 : index
    %15 = vector.load %arg2[%c1_18, %c0_19, %c0_20] : memref<9x128x128xbf16, #tpu.memory_space<vmem>>, vector<1x128x128xbf16>
    %16 = vector.shape_cast %15 : vector<1x128x128xbf16> to vector<128x128xbf16>
    %cst_21 = arith.constant dense<0.000000e+00> : vector<256x128xf32>
    %17 = tpu.matmul %13, %16, %cst_21 {dimension_numbers = #tpu.dot_dimension_numbers<[1], [0], [0], [1], [0, 0, 1, 1], [], []>} : vector<256x128xbf16>, vector<128x128xbf16>, vector<256x128xf32> -> vector<256x128xf32>
    %18 = arith.addf %14, %17 : vector<256x128xf32>
    %c0_22 = arith.constant 0 : index
    %c0_23 = arith.constant 0 : index
    %19 = vector.load %arg7[%c0_22, %c0_23] : memref<256x128xf32, #tpu.memory_space<vmem>>, vector<256x128xf32>
    tpu.vector_store %arg7[%c0_22, %c0_23], %18 {strides = array<i32>} : memref<256x128xf32, #tpu.memory_space<vmem>>, vector<256x128xf32>,
    %c0_24 = arith.constant 0 : index
    %c0_25 = arith.constant 0 : index
    %c2 = arith.constant 2 : index
    %c0_26 = arith.constant 0 : index
    %20 = vector.load %arg1[%c0_24, %c0_25, %c2, %c0_26] : memref<1x18x18x128xbf16, #tpu.memory_space<vmem>>, vector<1x16x16x128xbf16>
    %21 = vector.shape_cast %20 : vector<1x16x16x128xbf16> to vector<16x16x128xbf16>
    %22 = vector.shape_cast %21 : vector<16x16x128xbf16> to vector<256x128xbf16>
    %c0_27 = arith.constant 0 : index
    %c0_28 = arith.constant 0 : index
    %23 = vector.load %arg7[%c0_27, %c0_28] : memref<256x128xf32, #tpu.memory_space<vmem>>, vector<256x128xf32>
    %c2_29 = arith.constant 2 : index
    %c0_30 = arith.constant 0 : index
    %c0_31 = arith.constant 0 : index
    %24 = vector.load %arg2[%c2_29, %c0_30, %c0_31] : memref<9x128x128xbf16, #tpu.memory_space<vmem>>, vector<1x128x128xbf16>
    %25 = vector.shape_cast %24 : vector<1x128x128xbf16> to vector<128x128xbf16>
    %cst_32 = arith.constant dense<0.000000e+00> : vector<256x128xf32>
    %26 = tpu.matmul %22, %25, %cst_32 {dimension_numbers = #tpu.dot_dimension_numbers<[1], [0], [0], [1], [0, 0, 1, 1], [], []>} : vector<256x128xbf16>, vector<128x128xbf16>, vector<256x128xf32> -> vector<256x128xf32>
    %27 = arith.addf %23, %26 : vector<256x128xf32>
    %c0_33 = arith.constant 0 : index
    %c0_34 = arith.constant 0 : index
    %28 = vector.load %arg7[%c0_33, %c0_34] : memref<256x128xf32, #tpu.memory_space<vmem>>, vector<256x128xf32>
    tpu.vector_store %arg7[%c0_33, %c0_34], %27 {strides = array<i32>} : memref<256x128xf32, #tpu.memory_space<vmem>>, vector<256x128xf32>,
    %c0_35 = arith.constant 0 : index
    %c1_36 = arith.constant 1 : index
    %c0_37 = arith.constant 0 : index
    %c0_38 = arith.constant 0 : index
    %29 = vector.load %arg1[%c0_35, %c1_36, %c0_37, %c0_38] : memref<1x18x18x128xbf16, #tpu.memory_space<vmem>>, vector<1x16x16x128xbf16>
    %30 = vector.shape_cast %29 : vector<1x16x16x128xbf16> to vector<16x16x128xbf16>
    %31 = vector.shape_cast %30 : vector<16x16x128xbf16> to vector<256x128xbf16>
    %c0_39 = arith.constant 0 : index
    %c0_40 = arith.constant 0 : index
    %32 = vector.load %arg7[%c0_39, %c0_40] : memref<256x128xf32, #tpu.memory_space<vmem>>, vector<256x128xf32>
    %c3 = arith.constant 3 : index
    %c0_41 = arith.constant 0 : index
    %c0_42 = arith.constant 0 : index
    %33 = vector.load %arg2[%c3, %c0_41, %c0_42] : memref<9x128x128xbf16, #tpu.memory_space<vmem>>, vector<1x128x128xbf16>
    %34 = vector.shape_cast %33 : vector<1x128x128xbf16> to vector<128x128xbf16>
    %cst_43 = arith.constant dense<0.000000e+00> : vector<256x128xf32>
    %35 = tpu.matmul %31, %34, %cst_43 {dimension_numbers = #tpu.dot_dimension_numbers<[1], [0], [0], [1], [0, 0, 1, 1], [], []>} : vector<256x128xbf16>, vector<128x128xbf16>, vector<256x128xf32> -> vector<256x128xf32>
    %36 = arith.addf %32, %35 : vector<256x128xf32>
    %c0_44 = arith.constant 0 : index
    %c0_45 = arith.constant 0 : index
    %37 = vector.load %arg7[%c0_44, %c0_45] : memref<256x128xf32, #tpu.memory_space<vmem>>, vector<256x128xf32>
    tpu.vector_store %arg7[%c0_44, %c0_45], %36 {strides = array<i32>} : memref<256x128xf32, #tpu.memory_space<vmem>>, vector<256x128xf32>,
    %c0_46 = arith.constant 0 : index
    %c1_47 = arith.constant 1 : index
    %c1_48 = arith.constant 1 : index
    %c0_49 = arith.constant 0 : index
    %38 = vector.load %arg1[%c0_46, %c1_47, %c1_48, %c0_49] : memref<1x18x18x128xbf16, #tpu.memory_space<vmem>>, vector<1x16x16x128xbf16>
    %39 = vector.shape_cast %38 : vector<1x16x16x128xbf16> to vector<16x16x128xbf16>
    %40 = vector.shape_cast %39 : vector<16x16x128xbf16> to vector<256x128xbf16>
    %c0_50 = arith.constant 0 : index
    %c0_51 = arith.constant 0 : index
    %41 = vector.load %arg7[%c0_50, %c0_51] : memref<256x128xf32, #tpu.memory_space<vmem>>, vector<256x128xf32>
    %c4 = arith.constant 4 : index
    %c0_52 = arith.constant 0 : index
    %c0_53 = arith.constant 0 : index
    %42 = vector.load %arg2[%c4, %c0_52, %c0_53] : memref<9x128x128xbf16, #tpu.memory_space<vmem>>, vector<1x128x128xbf16>
    %43 = vector.shape_cast %42 : vector<1x128x128xbf16> to vector<128x128xbf16>
    %cst_54 = arith.constant dense<0.000000e+00> : vector<256x128xf32>
    %44 = tpu.matmul %40, %43, %cst_54 {dimension_numbers = #tpu.dot_dimension_numbers<[1], [0], [0], [1], [0, 0, 1, 1], [], []>} : vector<256x128xbf16>, vector<128x128xbf16>, vector<256x128xf32> -> vector<256x128xf32>
    %45 = arith.addf %41, %44 : vector<256x128xf32>
    %c0_55 = arith.constant 0 : index
    %c0_56 = arith.constant 0 : index
    %46 = vector.load %arg7[%c0_55, %c0_56] : memref<256x128xf32, #tpu.memory_space<vmem>>, vector<256x128xf32>
    tpu.vector_store %arg7[%c0_55, %c0_56], %45 {strides = array<i32>} : memref<256x128xf32, #tpu.memory_space<vmem>>, vector<256x128xf32>,
    %c0_57 = arith.constant 0 : index
    %c1_58 = arith.constant 1 : index
    %c2_59 = arith.constant 2 : index
    %c0_60 = arith.constant 0 : index
    %47 = vector.load %arg1[%c0_57, %c1_58, %c2_59, %c0_60] : memref<1x18x18x128xbf16, #tpu.memory_space<vmem>>, vector<1x16x16x128xbf16>
    %48 = vector.shape_cast %47 : vector<1x16x16x128xbf16> to vector<16x16x128xbf16>
    %49 = vector.shape_cast %48 : vector<16x16x128xbf16> to vector<256x128xbf16>
    %c0_61 = arith.constant 0 : index
    %c0_62 = arith.constant 0 : index
    %50 = vector.load %arg7[%c0_61, %c0_62] : memref<256x128xf32, #tpu.memory_space<vmem>>, vector<256x128xf32>
    %c5 = arith.constant 5 : index
    %c0_63 = arith.constant 0 : index
    %c0_64 = arith.constant 0 : index
    %51 = vector.load %arg2[%c5, %c0_63, %c0_64] : memref<9x128x128xbf16, #tpu.memory_space<vmem>>, vector<1x128x128xbf16>
    %52 = vector.shape_cast %51 : vector<1x128x128xbf16> to vector<128x128xbf16>
    %cst_65 = arith.constant dense<0.000000e+00> : vector<256x128xf32>
    %53 = tpu.matmul %49, %52, %cst_65 {dimension_numbers = #tpu.dot_dimension_numbers<[1], [0], [0], [1], [0, 0, 1, 1], [], []>} : vector<256x128xbf16>, vector<128x128xbf16>, vector<256x128xf32> -> vector<256x128xf32>
    %54 = arith.addf %50, %53 : vector<256x128xf32>
    %c0_66 = arith.constant 0 : index
    %c0_67 = arith.constant 0 : index
    %55 = vector.load %arg7[%c0_66, %c0_67] : memref<256x128xf32, #tpu.memory_space<vmem>>, vector<256x128xf32>
    tpu.vector_store %arg7[%c0_66, %c0_67], %54 {strides = array<i32>} : memref<256x128xf32, #tpu.memory_space<vmem>>, vector<256x128xf32>,
    %c0_68 = arith.constant 0 : index
    %c2_69 = arith.constant 2 : index
    %c0_70 = arith.constant 0 : index
    %c0_71 = arith.constant 0 : index
    %56 = vector.load %arg1[%c0_68, %c2_69, %c0_70, %c0_71] : memref<1x18x18x128xbf16, #tpu.memory_space<vmem>>, vector<1x16x16x128xbf16>
    %57 = vector.shape_cast %56 : vector<1x16x16x128xbf16> to vector<16x16x128xbf16>
    %58 = vector.shape_cast %57 : vector<16x16x128xbf16> to vector<256x128xbf16>
    %c0_72 = arith.constant 0 : index
    %c0_73 = arith.constant 0 : index
    %59 = vector.load %arg7[%c0_72, %c0_73] : memref<256x128xf32, #tpu.memory_space<vmem>>, vector<256x128xf32>
    %c6 = arith.constant 6 : index
    %c0_74 = arith.constant 0 : index
    %c0_75 = arith.constant 0 : index
    %60 = vector.load %arg2[%c6, %c0_74, %c0_75] : memref<9x128x128xbf16, #tpu.memory_space<vmem>>, vector<1x128x128xbf16>
    %61 = vector.shape_cast %60 : vector<1x128x128xbf16> to vector<128x128xbf16>
    %cst_76 = arith.constant dense<0.000000e+00> : vector<256x128xf32>
    %62 = tpu.matmul %58, %61, %cst_76 {dimension_numbers = #tpu.dot_dimension_numbers<[1], [0], [0], [1], [0, 0, 1, 1], [], []>} : vector<256x128xbf16>, vector<128x128xbf16>, vector<256x128xf32> -> vector<256x128xf32>
    %63 = arith.addf %59, %62 : vector<256x128xf32>
    %c0_77 = arith.constant 0 : index
    %c0_78 = arith.constant 0 : index
    %64 = vector.load %arg7[%c0_77, %c0_78] : memref<256x128xf32, #tpu.memory_space<vmem>>, vector<256x128xf32>
    tpu.vector_store %arg7[%c0_77, %c0_78], %63 {strides = array<i32>} : memref<256x128xf32, #tpu.memory_space<vmem>>, vector<256x128xf32>,
    %c0_79 = arith.constant 0 : index
    %c2_80 = arith.constant 2 : index
    %c1_81 = arith.constant 1 : index
    %c0_82 = arith.constant 0 : index
    %65 = vector.load %arg1[%c0_79, %c2_80, %c1_81, %c0_82] : memref<1x18x18x128xbf16, #tpu.memory_space<vmem>>, vector<1x16x16x128xbf16>
    %66 = vector.shape_cast %65 : vector<1x16x16x128xbf16> to vector<16x16x128xbf16>
    %67 = vector.shape_cast %66 : vector<16x16x128xbf16> to vector<256x128xbf16>
    %c0_83 = arith.constant 0 : index
    %c0_84 = arith.constant 0 : index
    %68 = vector.load %arg7[%c0_83, %c0_84] : memref<256x128xf32, #tpu.memory_space<vmem>>, vector<256x128xf32>
    %c7 = arith.constant 7 : index
    %c0_85 = arith.constant 0 : index
    %c0_86 = arith.constant 0 : index
    %69 = vector.load %arg2[%c7, %c0_85, %c0_86] : memref<9x128x128xbf16, #tpu.memory_space<vmem>>, vector<1x128x128xbf16>
    %70 = vector.shape_cast %69 : vector<1x128x128xbf16> to vector<128x128xbf16>
    %cst_87 = arith.constant dense<0.000000e+00> : vector<256x128xf32>
    %71 = tpu.matmul %67, %70, %cst_87 {dimension_numbers = #tpu.dot_dimension_numbers<[1], [0], [0], [1], [0, 0, 1, 1], [], []>} : vector<256x128xbf16>, vector<128x128xbf16>, vector<256x128xf32> -> vector<256x128xf32>
    %72 = arith.addf %68, %71 : vector<256x128xf32>
    %c0_88 = arith.constant 0 : index
    %c0_89 = arith.constant 0 : index
    %73 = vector.load %arg7[%c0_88, %c0_89] : memref<256x128xf32, #tpu.memory_space<vmem>>, vector<256x128xf32>
    tpu.vector_store %arg7[%c0_88, %c0_89], %72 {strides = array<i32>} : memref<256x128xf32, #tpu.memory_space<vmem>>, vector<256x128xf32>,
    %c0_90 = arith.constant 0 : index
    %c2_91 = arith.constant 2 : index
    %c2_92 = arith.constant 2 : index
    %c0_93 = arith.constant 0 : index
    %74 = vector.load %arg1[%c0_90, %c2_91, %c2_92, %c0_93] : memref<1x18x18x128xbf16, #tpu.memory_space<vmem>>, vector<1x16x16x128xbf16>
    %75 = vector.shape_cast %74 : vector<1x16x16x128xbf16> to vector<16x16x128xbf16>
    %76 = vector.shape_cast %75 : vector<16x16x128xbf16> to vector<256x128xbf16>
    %c0_94 = arith.constant 0 : index
    %c0_95 = arith.constant 0 : index
    %77 = vector.load %arg7[%c0_94, %c0_95] : memref<256x128xf32, #tpu.memory_space<vmem>>, vector<256x128xf32>
    %c8 = arith.constant 8 : index
    %c0_96 = arith.constant 0 : index
    %c0_97 = arith.constant 0 : index
    %78 = vector.load %arg2[%c8, %c0_96, %c0_97] : memref<9x128x128xbf16, #tpu.memory_space<vmem>>, vector<1x128x128xbf16>
    %79 = vector.shape_cast %78 : vector<1x128x128xbf16> to vector<128x128xbf16>
    %cst_98 = arith.constant dense<0.000000e+00> : vector<256x128xf32>
    %80 = tpu.matmul %76, %79, %cst_98 {dimension_numbers = #tpu.dot_dimension_numbers<[1], [0], [0], [1], [0, 0, 1, 1], [], []>} : vector<256x128xbf16>, vector<128x128xbf16>, vector<256x128xf32> -> vector<256x128xf32>
    %81 = arith.addf %77, %80 : vector<256x128xf32>
    %c0_99 = arith.constant 0 : index
    %c0_100 = arith.constant 0 : index
    %82 = vector.load %arg7[%c0_99, %c0_100] : memref<256x128xf32, #tpu.memory_space<vmem>>, vector<256x128xf32>
    tpu.vector_store %arg7[%c0_99, %c0_100], %81 {strides = array<i32>} : memref<256x128xf32, #tpu.memory_space<vmem>>, vector<256x128xf32>,
    %c0_101 = arith.constant 0 : index
    %c0_102 = arith.constant 0 : index
    %83 = vector.load %arg7[%c0_101, %c0_102] : memref<256x128xf32, #tpu.memory_space<vmem>>, vector<256x128xf32>
    %c0_103 = arith.constant 0 : index
    %c0_104 = arith.constant 0 : index
    %84 = vector.load %arg3[%c0_103, %c0_104] : memref<1x128xf32, #tpu.memory_space<vmem>>, vector<1x128xf32>
    %85 = vector.broadcast %84 : vector<1x128xf32> to vector<256x128xf32>
    %86 = arith.addf %83, %85 : vector<256x128xf32>
    %cst_105 = arith.constant 0.000000e+00 : f32
    %87 = vector.broadcast %cst_105 : f32 to vector<256x128xf32>
    %88 = arith.maximumf %86, %87 : vector<256x128xf32>
    %cst_106 = arith.constant dense<0.000000e+00> : vector<128xf32>
    %89 = vector.multi_reduction <add>, %88, %cst_106 [0] : vector<256x128xf32> to vector<128xf32>
    %90 = vector.shape_cast %89 : vector<128xf32> to vector<1x128xf32>
    %cst_107 = arith.constant 3.906250e-03 : f32
    %91 = vector.broadcast %cst_107 : f32 to vector<1x128xf32>
    %92 = arith.mulf %90, %91 : vector<1x128xf32>
    %c0_108 = arith.constant 0 : index
    %c0_109 = arith.constant 0 : index
    %93 = vector.load %arg4[%c0_108, %c0_109] : memref<128x128xf32, #tpu.memory_space<vmem>>, vector<128x128xf32>
    %cst_110 = arith.constant dense<0.000000e+00> : vector<1x128xf32>
    %94 = tpu.matmul %92, %93, %cst_110 {dimension_numbers = #tpu.dot_dimension_numbers<[1], [0], [0], [1], [0, 0, 1, 1], [], []>} : vector<1x128xf32>, vector<128x128xf32>, vector<1x128xf32> -> vector<1x128xf32>
    %c0_111 = arith.constant 0 : index
    %c0_112 = arith.constant 0 : index
    %95 = vector.load %arg5[%c0_111, %c0_112] : memref<1x128xf32, #tpu.memory_space<vmem>>, vector<1x128xf32>
    %96 = arith.addf %94, %95 : vector<1x128xf32>
    %c0_113 = arith.constant 0 : index
    %c0_114 = arith.constant 0 : index
    %c0_115 = arith.constant 0 : index
    %97 = vector.load %arg6[%c0_113, %c0_114, %c0_115] : memref<1x1x128xf32, #tpu.memory_space<vmem>>, vector<1x1x128xf32>
    %98 = vector.shape_cast %97 : vector<1x1x128xf32> to vector<1x128xf32>
    %99 = vector.shape_cast %96 : vector<1x128xf32> to vector<1x1x128xf32>
    tpu.vector_store %arg6[%c0_113, %c0_114, %c0_115], %99 {strides = array<i32>} : memref<1x1x128xf32, #tpu.memory_space<vmem>>, vector<1x1x128xf32>,
    return
  }
  func.func @transform_0(%arg0: i32) -> (i32, i32, i32, i32) {
    %c0_i32 = arith.constant 0 : i32
    %c0_i32_0 = arith.constant 0 : i32
    %c0_i32_1 = arith.constant 0 : i32
    %c0_i32_2 = arith.constant 0 : i32
    return %arg0, %c0_i32, %c0_i32_0, %c0_i32_1 : i32, i32, i32, i32
  }
  func.func @transform_1(%arg0: i32) -> (i32, i32, i32) {
    %c0_i32 = arith.constant 0 : i32
    %c0_i32_0 = arith.constant 0 : i32
    %c0_i32_1 = arith.constant 0 : i32
    %c0_i32_2 = arith.constant 0 : i32
    return %c0_i32, %c0_i32_0, %c0_i32_1 : i32, i32, i32
  }
  func.func @transform_2(%arg0: i32) -> (i32, i32) {
    %c0_i32 = arith.constant 0 : i32
    %c0_i32_0 = arith.constant 0 : i32
    %c0_i32_1 = arith.constant 0 : i32
    return %c0_i32, %c0_i32_0 : i32, i32
  }
  func.func @transform_3(%arg0: i32) -> (i32, i32) {
    %c0_i32 = arith.constant 0 : i32
    %c0_i32_0 = arith.constant 0 : i32
    %c0_i32_1 = arith.constant 0 : i32
    return %c0_i32, %c0_i32_0 : i32, i32
  }
  func.func @transform_4(%arg0: i32) -> (i32, i32) {
    %c0_i32 = arith.constant 0 : i32
    %c0_i32_0 = arith.constant 0 : i32
    %c0_i32_1 = arith.constant 0 : i32
    return %c0_i32, %c0_i32_0 : i32, i32
  }
  func.func @transform_5(%arg0: i32) -> (i32, i32, i32) {
    %c0_i32 = arith.constant 0 : i32
    %c0_i32_0 = arith.constant 0 : i32
    %c0_i32_1 = arith.constant 0 : i32
    return %arg0, %c0_i32, %c0_i32_0 : i32, i32, i32
  }
}

</mosaic_0001>

<llo_original>
// kernel: custom_timm_model_forward.2
$region0: #{custom_timm_model_forward.2}
  #allocation0 [shape = 'u32[]', space=smem, size = 0x4, offset = 0x4, fixed_abs, tag = 'smem constant byte address 0x4 - core index']
  #allocation1 [shape = 'u32[72,128]{1,0:T(1,128)}', space=vmem, size = 0x9000, scoped, tag = 'internal scratch']
  #allocation2 [shape = 'f32[256,128]{1,0:T(8,128)}', space=vmem, size = 0x20000, scoped, tag = 'scratch operand']
  %s0 = inlined_call_operand.vmem [shape: bf16[2,18,18,4], index: 0, kind: input, shape index: {}]
  %s1 = inlined_call_operand.vmem [shape: bf16[9,4,128], index: 1, kind: input, shape index: {}]
  %s2 = inlined_call_operand.vmem [shape: f32[1,128], index: 2, kind: input, shape index: {}]
  %s3 = inlined_call_operand.vmem [shape: bf16[2,256,128], index: 3, kind: output, shape index: {}]
  %s4 = sld [smem:[#allocation0]]
  $region45: #{custom_timm_model_forward.2} parent=0
    _
  %s6 = ssub.s32 1, %s4
  %s7 = scalar_select 0, %s6, %s4
  loop: start=0, step=1, limit=4
  $region2: #{custom_timm_model_forward.2} parent=0 // loop_pre_header
    _
  $region3: #{custom_timm_model_forward.2} parent=0 // loop_header
    %s9 = sphi 0, %s13
    %p10 = scmp.ge.s32.totalorder %s9, 4
    %s19 = sphi 0, %s21
    %s22 = sphi 0, %s19
    %s23 = sphi 0, %s22
    %s39 = sphi 0, %s23
    %s43 = sphi 0, %s43
    %s45 = sphi 0, %s43
    %s46 = sphi 0, %s45
    %s60 = sphi 0, %s46
    %s64 = sphi 0, %s64
    %s66 = sphi 0, %s64
    %s67 = sphi 0, %s66
    %s81 = sphi 0, %s67
    %s87 = sphi 0, %s89
    %s90 = sphi 0, %s87
    %s91 = sphi 0, %s90
    %s107 = sphi 0, %s91
  $region4: #{custom_timm_model_forward.2} parent=0 // loop_header_branch
    %12 = sbr.rel (%p10) target = $region8
  $region5: #{custom_timm_model_forward.2} parent=0 // loop_body
    %s14 = ssub.s32 %s9, 1
    %s15 = ssub.s32 %s9, 2
    %s16 = sadd.s32 %s9, 1
    %s17 = ssub.s32 %s9, %s16
    %p18 = scmp.eq.s32.totalorder %s17, 0
    %s20 = sadd.s32 %s19, 1
    %s21 = scalar_select %p18, %s19, %s20
    %p24 = pneg %p18
    %p25 = scmp.eq.s32.totalorder %s9, 1
    %p26 = por %p24, %p25
    %p27 = scmp.ne.s32.totalorder %s19, %s22
    %p28 = scmp.eq.s32.totalorder %s9, 0
    %p29 = por %p27, %p28
    %p30 = scmp.ne.s32.totalorder %s19, %s22
    %p31 = scmp.eq.s32.totalorder %s14, 1
    %p32 = por %p30, %p31
    %p33 = scmp.ne.s32.totalorder %s22, %s23
    %p34 = scmp.eq.s32.totalorder %s14, 0
    %p35 = por %p33, %p34
    %p36 = scmp.ne.s32.totalorder %s22, %s23
    %p37 = scmp.eq.s32.totalorder %s15, 1
    %p38 = por %p36, %p37
    %p40 = scmp.ne.s32.totalorder %s23, %s39
    %p41 = scmp.eq.s32.totalorder %s15, 0
    %p42 = por %p40, %p41
    %s44 = sadd.s32 %s43, 1
    %p47 = scmp.eq.s32.totalorder %s9, 1
    %p48 = scmp.ne.s32.totalorder %s43, %s45
    %p49 = scmp.eq.s32.totalorder %s9, 0
    %p50 = por %p48, %p49
    %p51 = scmp.ne.s32.totalorder %s43, %s45
    %p52 = scmp.eq.s32.totalorder %s14, 1
    %p53 = por %p51, %p52
    %p54 = scmp.ne.s32.totalorder %s45, %s46
    %p55 = scmp.eq.s32.totalorder %s14, 0
    %p56 = por %p54, %p55
    %p57 = scmp.ne.s32.totalorder %s45, %s46
    %p58 = scmp.eq.s32.totalorder %s15, 1
    %p59 = por %p57, %p58
    %p61 = scmp.ne.s32.totalorder %s46, %s60
    %p62 = scmp.eq.s32.totalorder %s15, 0
    %p63 = por %p61, %p62
    %s65 = sadd.s32 %s64, 1
    %p68 = scmp.eq.s32.totalorder %s9, 1
    %p69 = scmp.ne.s32.totalorder %s64, %s66
    %p70 = scmp.eq.s32.totalorder %s9, 0
    %p71 = por %p69, %p70
    %p72 = scmp.ne.s32.totalorder %s64, %s66
    %p73 = scmp.eq.s32.totalorder %s14, 1
    %p74 = por %p72, %p73
    %p75 = scmp.ne.s32.totalorder %s66, %s67
    %p76 = scmp.eq.s32.totalorder %s14, 0
    %p77 = por %p75, %p76
    %p78 = scmp.ne.s32.totalorder %s66, %s67
    %p79 = scmp.eq.s32.totalorder %s15, 1
    %p80 = por %p78, %p79
    %p82 = scmp.ne.s32.totalorder %s67, %s81
    %p83 = scmp.eq.s32.totalorder %s15, 0
    %p84 = por %p82, %p83
    %s85 = ssub.s32 %s9, %s16
    %p86 = scmp.eq.s32.totalorder %s85, 0
    %s88 = sadd.s32 %s87, 1
    %s89 = scalar_select %p86, %s87, %s88
    %p92 = pneg %p86
    %p93 = scmp.eq.s32.totalorder %s9, 1
    %p94 = por %p92, %p93
    %p95 = scmp.ne.s32.totalorder %s87, %s90
    %p96 = scmp.eq.s32.totalorder %s9, 0
    %p97 = por %p95, %p96
    %p98 = scmp.ne.s32.totalorder %s87, %s90
    %p99 = scmp.eq.s32.totalorder %s14, 1
    %p100 = por %p98, %p99
    %p101 = scmp.ne.s32.totalorder %s90, %s91
    %p102 = scmp.eq.s32.totalorder %s14, 0
    %p103 = por %p101, %p102
    %p104 = scmp.ne.s32.totalorder %s90, %s91
    %p105 = scmp.eq.s32.totalorder %s15, 1
    %p106 = por %p104, %p105
    %p108 = scmp.ne.s32.totalorder %s91, %s107
    %p109 = scmp.eq.s32.totalorder %s15, 0
    %p110 = por %p108, %p109
    %p111 = scmp.le.s32.totalorder 1, %s9
    %p112 = scmp.lt.s32.totalorder %s9, 3
    %p113 = pnand %p111, %p112
    %p114 = pneg %p113
    // Predicated region
    $region9: #{custom_timm_model_forward.2} parent=5 // pred_check
      _
    $region10: #{custom_timm_model_forward.2} parent=5 // pred_check_branch
      %116 = sbr.rel (%p113) target = $region12
    $region11: #{custom_timm_model_forward.2} parent=5 // pred_region
      %s117 = ssub.s32 %s9, 1
      // Predicated region
      $region13: #{custom_timm_model_forward.2} parent=11 // pred_check
        %p118 = pneg %p56
      $region14: #{custom_timm_model_forward.2} parent=11 // pred_check_branch
        %120 = sbr.rel (%p118) target = $region16
      $region15: #{custom_timm_model_forward.2} parent=11 // pred_region
        _
      $region16: #{custom_timm_model_forward.2} parent=11 // pred_fallthru
        _
      // Predicated region
      $region17: #{custom_timm_model_forward.2} parent=11 // pred_check
        %p121 = pneg %p77
      $region18: #{custom_timm_model_forward.2} parent=11 // pred_check_branch
        %123 = sbr.rel (%p121) target = $region20
      $region19: #{custom_timm_model_forward.2} parent=11 // pred_region
        _
      $region20: #{custom_timm_model_forward.2} parent=11 // pred_fallthru
        _
    $region12: #{custom_timm_model_forward.2} parent=5 // pred_fallthru
      _
    %p124 = scmp.lt.s32.totalorder %s9, 2
    // Predicated region
    $region21: #{custom_timm_model_forward.2} parent=5 // pred_check
      %p125 = pneg %p124
    $region22: #{custom_timm_model_forward.2} parent=5 // pred_check_branch
      %127 = sbr.rel (%p125) target = $region24
    $region23: #{custom_timm_model_forward.2} parent=5 // pred_region
      // Predicated region
      $region25: #{custom_timm_model_forward.2} parent=23 // pred_check
        %p128 = pneg %p29
      $region26: #{custom_timm_model_forward.2} parent=23 // pred_check_branch
        %130 = sbr.rel (%p128) target = $region28
      $region27: #{custom_timm_model_forward.2} parent=23 // pred_region
        %p131 = scmp.lt.s32.totalorder %s9, 1
        %s132 = scalar_select %p131, %s9, 1
        %s133 = smul.addr %s132, 54
        %s134 = smul.addr %s133, 4
        %s135 = scalar_lea.vmem %s0, %s134
      $region28: #{custom_timm_model_forward.2} parent=23 // pred_fallthru
        _
    $region24: #{custom_timm_model_forward.2} parent=5 // pred_fallthru
      _
    %p136 = scmp.le.s32.totalorder 1, %s9
    %p137 = scmp.lt.s32.totalorder %s9, 3
    %p138 = pnand %p136, %p137
    %p139 = pneg %p138
    // Predicated region
    $region29: #{custom_timm_model_forward.2} parent=5 // pred_check
      _
    $region30: #{custom_timm_model_forward.2} parent=5 // pred_check_branch
      %141 = sbr.rel (%p138) target = $region32
    $region31: #{custom_timm_model_forward.2} parent=5 // pred_region
      %s142 = ssub.s32 %s9, 1
      %p143 = scmp.lt.s32.totalorder %s14, 1
      %s144 = scalar_select %p143, %s14, 1
      %s145 = smul.addr %s144, 54
      %s146 = smul.addr %s145, 4
      %s147 = scalar_lea.vmem %s0, %s146
      %p148 = pneg %p35
      %p149 = pneg %p32
      %p150 = pneg %p56
      %p151 = pneg %p53
      %p152 = pneg %p77
      %p153 = pneg %p74
      %p154 = pneg %p103
      %p155 = pneg %p100
      %p156 = scmp.lt.s32.totalorder %s14, 1
      %s157 = scalar_select %p156, %s14, 1
      %s158 = smul.addr %s157, 32
      %s159 = smul.addr %s158, 4
      %s160 = scalar_lea.vmem %s3, %s159
      %p161 = scmp.lt.s32.totalorder %s14, 1
      %s162 = scalar_select %p161, %s14, 1
      %s163 = smul.addr %s162, 54
      %s164 = smul.addr %s163, 4
      %s165 = scalar_lea.vmem %s0, %s164
      %p166 = scmp.lt.s32.totalorder %s14, 1
      %s167 = scalar_select %p166, %s14, 1
      %s168 = smul.addr %s167, 32
      %s169 = smul.addr %s168, 4
      %s170 = scalar_lea.vmem %s3, %s169
      %172 = vst [vmem:[#allocation2] sm:$0xff] 0.0
      %173 = vst [vmem:[#allocation2 + $0x8] sm:$0xff] 0.0
      %174 = vst [vmem:[#allocation2 + $0x10] sm:$0xff] 0.0
      %175 = vst [vmem:[#allocation2 + $0x18] sm:$0xff] 0.0
      %176 = vst [vmem:[#allocation2 + $0x20] sm:$0xff] 0.0
      %177 = vst [vmem:[#allocation2 + $0x28] sm:$0xff] 0.0
      %178 = vst [vmem:[#allocation2 + $0x30] sm:$0xff] 0.0
      %179 = vst [vmem:[#allocation2 + $0x38] sm:$0xff] 0.0
      %180 = vst [vmem:[#allocation2 + $0x40] sm:$0xff] 0.0
      %181 = vst [vmem:[#allocation2 + $0x48] sm:$0xff] 0.0
      %182 = vst [vmem:[#allocation2 + $0x50] sm:$0xff] 0.0
      %183 = vst [vmem:[#allocation2 + $0x58] sm:$0xff] 0.0
      %184 = vst [vmem:[#allocation2 + $0x60] sm:$0xff] 0.0
      %185 = vst [vmem:[#allocation2 + $0x68] sm:$0xff] 0.0
      %186 = vst [vmem:[#allocation2 + $0x70] sm:$0xff] 0.0
      %187 = vst [vmem:[#allocation2 + $0x78] sm:$0xff] 0.0
      %188 = vst [vmem:[#allocation2 + $0x80] sm:$0xff] 0.0
      %189 = vst [vmem:[#allocation2 + $0x88] sm:$0xff] 0.0
      %190 = vst [vmem:[#allocation2 + $0x90] sm:$0xff] 0.0
      %191 = vst [vmem:[#allocation2 + $0x98] sm:$0xff] 0.0
      %192 = vst [vmem:[#allocation2 + $0xa0] sm:$0xff] 0.0
      %193 = vst [vmem:[#allocation2 + $0xa8] sm:$0xff] 0.0
      %194 = vst [vmem:[#allocation2 + $0xb0] sm:$0xff] 0.0
      %195 = vst [vmem:[#allocation2 + $0xb8] sm:$0xff] 0.0
      %196 = vst [vmem:[#allocation2 + $0xc0] sm:$0xff] 0.0
      %197 = vst [vmem:[#allocation2 + $0xc8] sm:$0xff] 0.0
      %198 = vst [vmem:[#allocation2 + $0xd0] sm:$0xff] 0.0
      %199 = vst [vmem:[#allocation2 + $0xd8] sm:$0xff] 0.0
      %200 = vst [vmem:[#allocation2 + $0xe0] sm:$0xff] 0.0
      %201 = vst [vmem:[#allocation2 + $0xe8] sm:$0xff] 0.0
      %202 = vst [vmem:[#allocation2 + $0xf0] sm:$0xff] 0.0
      %203 = vst [vmem:[#allocation2 + $0xf8] sm:$0xff] 0.0
      %v204 = vld [vmem:[%s165] sm:$0xf]
      %v205 = vld [vmem:[%s165 + $0x4] sm:$0xf]
      %v206 = vld [vmem:[%s165 + $0xc] sm:$0xf]
      %v207 = vld [vmem:[%s165 + $0x10] sm:$0xf]
      %v208 = vld [vmem:[%s165 + $0x18] sm:$0xf]
      %v209 = vld [vmem:[%s165 + $0x1c] sm:$0xf]
      %v210 = vld [vmem:[%s165 + $0x24] sm:$0xf]
      %v211 = vld [vmem:[%s165 + $0x28] sm:$0xf]
      %v212 = vld [vmem:[%s165 + $0x30] sm:$0xf]
      %v213 = vld [vmem:[%s165 + $0x34] sm:$0xf]
      %v214 = vld [vmem:[%s165 + $0x3c] sm:$0xf]
      %v215 = vld [vmem:[%s165 + $0x40] sm:$0xf]
      %v216 = vld [vmem:[%s165 + $0x48] sm:$0xf]
      %v217 = vld [vmem:[%s165 + $0x4c] sm:$0xf]
      %v218 = vld [vmem:[%s165 + $0x54] sm:$0xf]
      %v219 = vld [vmem:[%s165 + $0x58] sm:$0xf]
      %v220 = vld [vmem:[%s165 + $0x60] sm:$0xf]
      %v221 = vld [vmem:[%s165 + $0x64] sm:$0xf]
      %v222 = vld [vmem:[%s165 + $0x6c] sm:$0xf]
      %v223 = vld [vmem:[%s165 + $0x70] sm:$0xf]
      %v224 = vld [vmem:[%s165 + $0x78] sm:$0xf]
      %v225 = vld [vmem:[%s165 + $0x7c] sm:$0xf]
      %v226 = vld [vmem:[%s165 + $0x84] sm:$0xf]
      %v227 = vld [vmem:[%s165 + $0x88] sm:$0xf]
      %v228 = vld [vmem:[%s165 + $0x90] sm:$0xf]
      %v229 = vld [vmem:[%s165 + $0x94] sm:$0xf]
      %v230 = vld [vmem:[%s165 + $0x9c] sm:$0xf]
      %v231 = vld [vmem:[%s165 + $0xa0] sm:$0xf]
      %v232 = vld [vmem:[%s165 + $0xa8] sm:$0xf]
      %v233 = vld [vmem:[%s165 + $0xac] sm:$0xf]
      %v234 = vld [vmem:[%s165 + $0xb4] sm:$0xf]
      %v235 = vld [vmem:[%s165 + $0xb8] sm:$0xf]
      %v236 = vld [vmem:[#allocation2] sm:$0xff]
      %v237 = vld [vmem:[#allocation2 + $0x8] sm:$0xff]
      %v238 = vld [vmem:[#allocation2 + $0x10] sm:$0xff]
      %v239 = vld [vmem:[#allocation2 + $0x18] sm:$0xff]
      %v240 = vld [vmem:[#allocation2 + $0x20] sm:$0xff]
      %v241 = vld [vmem:[#allocation2 + $0x28] sm:$0xff]
      %v242 = vld [vmem:[#allocation2 + $0x30] sm:$0xff]
      %v243 = vld [vmem:[#allocation2 + $0x38] sm:$0xff]
      %v244 = vld [vmem:[#allocation2 + $0x40] sm:$0xff]
      %v245 = vld [vmem:[#allocation2 + $0x48] sm:$0xff]
      %v246 = vld [vmem:[#allocation2 + $0x50] sm:$0xff]
      %v247 = vld [vmem:[#allocation2 + $0x58] sm:$0xff]
      %v248 = vld [vmem:[#allocation2 + $0x60] sm:$0xff]
      %v249 = vld [vmem:[#allocation2 + $0x68] sm:$0xff]
      %v250 = vld [vmem:[#allocation2 + $0x70] sm:$0xff]
      %v251 = vld [vmem:[#allocation2 + $0x78] sm:$0xff]
      %v252 = vld [vmem:[#allocation2 + $0x80] sm:$0xff]
      %v253 = vld [vmem:[#allocation2 + $0x88] sm:$0xff]
      %v254 = vld [vmem:[#allocation2 + $0x90] sm:$0xff]
      %v255 = vld [vmem:[#allocation2 + $0x98] sm:$0xff]
      %v256 = vld [vmem:[#allocation2 + $0xa0] sm:$0xff]
      %v257 = vld [vmem:[#allocation2 + $0xa8] sm:$0xff]
      %v258 = vld [vmem:[#allocation2 + $0xb0] sm:$0xff]
      %v259 = vld [vmem:[#allocation2 + $0xb8] sm:$0xff]
      %v260 = vld [vmem:[#allocation2 + $0xc0] sm:$0xff]
      %v261 = vld [vmem:[#allocation2 + $0xc8] sm:$0xff]
      %v262 = vld [vmem:[#allocation2 + $0xd0] sm:$0xff]
      %v263 = vld [vmem:[#allocation2 + $0xd8] sm:$0xff]
      %v264 = vld [vmem:[#allocation2 + $0xe0] sm:$0xff]
      %v265 = vld [vmem:[#allocation2 + $0xe8] sm:$0xff]
      %v266 = vld [vmem:[#allocation2 + $0xf0] sm:$0xff]
      %v267 = vld [vmem:[#allocation2 + $0xf8] sm:$0xff]
      %v268 = vld [vmem:[%s1] sm:$0x3]
      %v301 = vunpack.c.l.b16 %v204
      %v302 = vunpack.c.l.b16 %v205
      %v303 = vunpack.c.l.b16 %v206
      %v304 = vunpack.c.l.b16 %v207
      %v305 = vunpack.c.l.b16 %v208
      %v306 = vunpack.c.l.b16 %v209
      %v307 = vunpack.c.l.b16 %v210
      %v308 = vunpack.c.l.b16 %v211
      %v309 = vunpack.c.l.b16 %v212
      %v310 = vunpack.c.l.b16 %v213
      %v311 = vunpack.c.l.b16 %v214
      %v312 = vunpack.c.l.b16 %v215
      %v313 = vunpack.c.l.b16 %v216
      %v314 = vunpack.c.l.b16 %v217
      %v315 = vunpack.c.l.b16 %v218
      %v316 = vunpack.c.l.b16 %v219
      %v317 = vunpack.c.l.b16 %v220
      %v318 = vunpack.c.l.b16 %v221
      %v319 = vunpack.c.l.b16 %v222
      %v320 = vunpack.c.l.b16 %v223
      %v321 = vunpack.c.l.b16 %v224
      %v322 = vunpack.c.l.b16 %v225
      %v323 = vunpack.c.l.b16 %v226
      %v324 = vunpack.c.l.b16 %v227
      %v325 = vunpack.c.l.b16 %v228
      %v326 = vunpack.c.l.b16 %v229
      %v327 = vunpack.c.l.b16 %v230
      %v328 = vunpack.c.l.b16 %v231
      %v329 = vunpack.c.l.b16 %v232
      %v330 = vunpack.c.l.b16 %v233
      %v331 = vunpack.c.l.b16 %v234
      %v332 = vunpack.c.l.b16 %v235
      %v333 = vpack.c.b16 %v302, %v301
      %v334 = vpack.c.b16 %v304, %v303
      %v335 = vpack.c.b16 %v306, %v305
      %v336 = vpack.c.b16 %v308, %v307
      %v337 = vpack.c.b16 %v310, %v309
      %v338 = vpack.c.b16 %v312, %v311
      %v339 = vpack.c.b16 %v314, %v313
      %v340 = vpack.c.b16 %v316, %v315
      %v341 = vpack.c.b16 %v318, %v317
      %v342 = vpack.c.b16 %v320, %v319
      %v343 = vpack.c.b16 %v322, %v321
      %v344 = vpack.c.b16 %v324, %v323
      %v345 = vpack.c.b16 %v326, %v325
      %v346 = vpack.c.b16 %v328, %v327
      %v347 = vpack.c.b16 %v330, %v329
      %v348 = vpack.c.b16 %v332, %v331
      %vm349 = vcmask 31744
      %v351 = vsel %vm349, %v333, 0
      %v354 = vsel %vm349, %v334, 0
      %v357 = vsel %vm349, %v335, 0
      %v360 = vsel %vm349, %v336, 0
      %v363 = vsel %vm349, %v337, 0
      %v366 = vsel %vm349, %v338, 0
      %v369 = vsel %vm349, %v339, 0
      %v372 = vsel %vm349, %v340, 0
      %v375 = vsel %vm349, %v341, 0
      %v378 = vsel %vm349, %v342, 0
      %v381 = vsel %vm349, %v343, 0
      %v384 = vsel %vm349, %v344, 0
      %v387 = vsel %vm349, %v345, 0
      %v390 = vsel %vm349, %v346, 0
      %v393 = vsel %vm349, %v347, 0
      %v396 = vsel %vm349, %v348, 0
      %vm398 = vcmask 1041408
      %v400 = vsel %vm398, %v268, 0
      %402 = vmatpush.bf16.msra.mxu0 0
      %403 = vmatpush.bf16.msra.mxu0 0
      %404 = vmatpush.bf16.msra.mxu0 0
      %405 = vmatpush.bf16.msra.mxu0 0
      %406 = vmatpush.bf16.msra.mxu0 0
      %407 = vmatpush.bf16.msra.mxu0 0
      %408 = vmatpush.bf16.msra.mxu0 0
      %409 = vmatpush.bf16.msra.mxu0 %v400
      %410 = vmatmul.bf16.gmra.mxu0 %v351
      %v411 = vpop.f32.mrf.mxu0
      %v412 = vadd.f32 0.0, %v411
      %v413 = vpop.f32.mrf.mxu0
      %v414 = vadd.f32 0.0, %v413
      %415 = vmatmul.bf16.gmra.mxu0 %v354
      %v416 = vpop.f32.mrf.mxu0
      %v417 = vadd.f32 0.0, %v416
      %v418 = vpop.f32.mrf.mxu0
      %v419 = vadd.f32 0.0, %v418
      %420 = vmatmul.bf16.gmra.mxu0 %v357
      %v421 = vpop.f32.mrf.mxu0
      %v422 = vadd.f32 0.0, %v421
      %v423 = vpop.f32.mrf.mxu0
      %v424 = vadd.f32 0.0, %v423
      %425 = vmatmul.bf16.gmra.mxu0 %v360
      %v426 = vpop.f32.mrf.mxu0
      %v427 = vadd.f32 0.0, %v426
      %v428 = vpop.f32.mrf.mxu0
      %v429 = vadd.f32 0.0, %v428
      %430 = vmatmul.bf16.gmra.mxu0 %v363
      %v431 = vpop.f32.mrf.mxu0
      %v432 = vadd.f32 0.0, %v431
      %v433 = vpop.f32.mrf.mxu0
      %v434 = vadd.f32 0.0, %v433
      %435 = vmatmul.bf16.gmra.mxu0 %v366
      %v436 = vpop.f32.mrf.mxu0
      %v437 = vadd.f32 0.0, %v436
      %v438 = vpop.f32.mrf.mxu0
      %v439 = vadd.f32 0.0, %v438
      %440 = vmatmul.bf16.gmra.mxu0 %v369
      %v441 = vpop.f32.mrf.mxu0
      %v442 = vadd.f32 0.0, %v441
      %v443 = vpop.f32.mrf.mxu0
      %v444 = vadd.f32 0.0, %v443
      %445 = vmatmul.bf16.gmra.mxu0 %v372
      %v446 = vpop.f32.mrf.mxu0
      %v447 = vadd.f32 0.0, %v446
      %v448 = vpop.f32.mrf.mxu0
      %v449 = vadd.f32 0.0, %v448
      %450 = vmatmul.bf16.gmra.mxu0 %v375
      %v451 = vpop.f32.mrf.mxu0
      %v452 = vadd.f32 0.0, %v451
      %v453 = vpop.f32.mrf.mxu0
      %v454 = vadd.f32 0.0, %v453
      %455 = vmatmul.bf16.gmra.mxu0 %v378
      %v456 = vpop.f32.mrf.mxu0
      %v457 = vadd.f32 0.0, %v456
      %v458 = vpop.f32.mrf.mxu0
      %v459 = vadd.f32 0.0, %v458
      %460 = vmatmul.bf16.gmra.mxu0 %v381
      %v461 = vpop.f32.mrf.mxu0
      %v462 = vadd.f32 0.0, %v461
      %v463 = vpop.f32.mrf.mxu0
      %v464 = vadd.f32 0.0, %v463
      %465 = vmatmul.bf16.gmra.mxu0 %v384
      %v466 = vpop.f32.mrf.mxu0
      %v467 = vadd.f32 0.0, %v466
      %v468 = vpop.f32.mrf.mxu0
      %v469 = vadd.f32 0.0, %v468
      %470 = vmatmul.bf16.gmra.mxu0 %v387
      %v471 = vpop.f32.mrf.mxu0
      %v472 = vadd.f32 0.0, %v471
      %v473 = vpop.f32.mrf.mxu0
      %v474 = vadd.f32 0.0, %v473
      %475 = vmatmul.bf16.gmra.mxu0 %v390
      %v476 = vpop.f32.mrf.mxu0
      %v477 = vadd.f32 0.0, %v476
      %v478 = vpop.f32.mrf.mxu0
      %v479 = vadd.f32 0.0, %v478
      %480 = vmatmul.bf16.gmra.mxu0 %v393
      %v481 = vpop.f32.mrf.mxu0
      %v482 = vadd.f32 0.0, %v481
      %v483 = vpop.f32.mrf.mxu0
      %v484 = vadd.f32 0.0, %v483
      %485 = vmatmul.bf16.gmra.mxu0 %v396
      %v486 = vpop.f32.mrf.mxu0
      %v487 = vadd.f32 0.0, %v486
      %v488 = vpop.f32.mrf.mxu0
      %v489 = vadd.f32 0.0, %v488
      %490 = vdwg.mxu0
      %v491 = vadd.f32 %v236, %v412
      %v492 = vadd.f32 %v237, %v414
      %v493 = vadd.f32 %v238, %v417
      %v494 = vadd.f32 %v239, %v419
      %v495 = vadd.f32 %v240, %v422
      %v496 = vadd.f32 %v241, %v424
      %v497 = vadd.f32 %v242, %v427
      %v498 = vadd.f32 %v243, %v429
      %v499 = vadd.f32 %v244, %v432
      %v500 = vadd.f32 %v245, %v434
      %v501 = vadd.f32 %v246, %v437
      %v502 = vadd.f32 %v247, %v439
      %v503 = vadd.f32 %v248, %v442
      %v504 = vadd.f32 %v249, %v444
      %v505 = vadd.f32 %v250, %v447
      %v506 = vadd.f32 %v251, %v449
      %v507 = vadd.f32 %v252, %v452
      %v508 = vadd.f32 %v253, %v454
      %v509 = vadd.f32 %v254, %v457
      %v510 = vadd.f32 %v255, %v459
      %v511 = vadd.f32 %v256, %v462
      %v512 = vadd.f32 %v257, %v464
      %v513 = vadd.f32 %v258, %v467
      %v514 = vadd.f32 %v259, %v469
      %v515 = vadd.f32 %v260, %v472
      %v516 = vadd.f32 %v261, %v474
      %v517 = vadd.f32 %v262, %v477
      %v518 = vadd.f32 %v263, %v479
      %v519 = vadd.f32 %v264, %v482
      %v520 = vadd.f32 %v265, %v484
      %v521 = vadd.f32 %v266, %v487
      %v522 = vadd.f32 %v267, %v489
      %523 = vst [vmem:[#allocation2] sm:$0xff] %v491
      %524 = vst [vmem:[#allocation2 + $0x8] sm:$0xff] %v492
      %525 = vst [vmem:[#allocation2 + $0x10] sm:$0xff] %v493
      %526 = vst [vmem:[#allocation2 + $0x18] sm:$0xff] %v494
      %527 = vst [vmem:[#allocation2 + $0x20] sm:$0xff] %v495
      %528 = vst [vmem:[#allocation2 + $0x28] sm:$0xff] %v496
      %529 = vst [vmem:[#allocation2 + $0x30] sm:$0xff] %v497
      %530 = vst [vmem:[#allocation2 + $0x38] sm:$0xff] %v498
      %531 = vst [vmem:[#allocation2 + $0x40] sm:$0xff] %v499
      %532 = vst [vmem:[#allocation2 + $0x48] sm:$0xff] %v500
      %533 = vst [vmem:[#allocation2 + $0x50] sm:$0xff] %v501
      %534 = vst [vmem:[#allocation2 + $0x58] sm:$0xff] %v502
      %535 = vst [vmem:[#allocation2 + $0x60] sm:$0xff] %v503
      %536 = vst [vmem:[#allocation2 + $0x68] sm:$0xff] %v504
      %537 = vst [vmem:[#allocation2 + $0x70] sm:$0xff] %v505
      %538 = vst [vmem:[#allocation2 + $0x78] sm:$0xff] %v506
      %539 = vst [vmem:[#allocation2 + $0x80] sm:$0xff] %v507
      %540 = vst [vmem:[#allocation2 + $0x88] sm:$0xff] %v508
      %541 = vst [vmem:[#allocation2 + $0x90] sm:$0xff] %v509
      %542 = vst [vmem:[#allocation2 + $0x98] sm:$0xff] %v510
      %543 = vst [vmem:[#allocation2 + $0xa0] sm:$0xff] %v511
      %544 = vst [vmem:[#allocation2 + $0xa8] sm:$0xff] %v512
      %545 = vst [vmem:[#allocation2 + $0xb0] sm:$0xff] %v513
      %546 = vst [vmem:[#allocation2 + $0xb8] sm:$0xff] %v514
      %547 = vst [vmem:[#allocation2 + $0xc0] sm:$0xff] %v515
      %548 = vst [vmem:[#allocation2 + $0xc8] sm:$0xff] %v516
      %549 = vst [vmem:[#allocation2 + $0xd0] sm:$0xff] %v517
      %550 = vst [vmem:[#allocation2 + $0xd8] sm:$0xff] %v518
      %551 = vst [vmem:[#allocation2 + $0xe0] sm:$0xff] %v519
      %552 = vst [vmem:[#allocation2 + $0xe8] sm:$0xff] %v520
      %553 = vst [vmem:[#allocation2 + $0xf0] sm:$0xff] %v521
      %554 = vst [vmem:[#allocation2 + $0xf8] sm:$0xff] %v522
      %v555 = vld [vmem:[%s165] sm:$0xf]
      %v556 = vld [vmem:[%s165 + $0x4] sm:$0xf]
      %v557 = vld [vmem:[%s165 + $0x8] sm:$0x1]
      %v558 = vld [vmem:[%s165 + $0xc] sm:$0xf]
      %v559 = vld [vmem:[%s165 + $0x10] sm:$0xf]
      %v560 = vld [vmem:[%s165 + $0x14] sm:$0x1]
      %v561 = vld [vmem:[%s165 + $0x18] sm:$0xf]
      %v562 = vld [vmem:[%s165 + $0x1c] sm:$0xf]
      %v563 = vld [vmem:[%s165 + $0x20] sm:$0x1]
      %v564 = vld [vmem:[%s165 + $0x24] sm:$0xf]
      %v565 = vld [vmem:[%s165 + $0x28] sm:$0xf]
      %v566 = vld [vmem:[%s165 + $0x2c] sm:$0x1]
      %v567 = vld [vmem:[%s165 + $0x30] sm:$0xf]
      %v568 = vld [vmem:[%s165 + $0x34] sm:$0xf]
      %v569 = vld [vmem:[%s165 + $0x38] sm:$0x1]
      %v570 = vld [vmem:[%s165 + $0x3c] sm:$0xf]
      %v571 = vld [vmem:[%s165 + $0x40] sm:$0xf]
      %v572 = vld [vmem:[%s165 + $0x44] sm:$0x1]
      %v573 = vld [vmem:[%s165 + $0x48] sm:$0xf]
      %v574 = vld [vmem:[%s165 + $0x4c] sm:$0xf]
      %v575 = vld [vmem:[%s165 + $0x50] sm:$0x1]
      %v576 = vld [vmem:[%s165 + $0x54] sm:$0xf]
      %v577 = vld [vmem:[%s165 + $0x58] sm:$0xf]
      %v578 = vld [vmem:[%s165 + $0x5c] sm:$0x1]
      %v579 = vld [vmem:[%s165 + $0x60] sm:$0xf]
      %v580 = vld [vmem:[%s165 + $0x64] sm:$0xf]
      %v581 = vld [vmem:[%s165 + $0x68] sm:$0x1]
      %v582 = vld [vmem:[%s165 + $0x6c] sm:$0xf]
      %v583 = vld [vmem:[%s165 + $0x70] sm:$0xf]
      %v584 = vld [vmem:[%s165 + $0x74] sm:$0x1]
      %v585 = vld [vmem:[%s165 + $0x78] sm:$0xf]
      %v586 = vld [vmem:[%s165 + $0x7c] sm:$0xf]
      %v587 = vld [vmem:[%s165 + $0x80] sm:$0x1]
      %v588 = vld [vmem:[%s165 + $0x84] sm:$0xf]
      %v589 = vld [vmem:[%s165 + $0x88] sm:$0xf]
      %v590 = vld [vmem:[%s165 + $0x8c] sm:$0x1]
      %v591 = vld [vmem:[%s165 + $0x90] sm:$0xf]
      %v592 = vld [vmem:[%s165 + $0x94] sm:$0xf]
      %v593 = vld [vmem:[%s165 + $0x98] sm:$0x1]
      %v594 = vld [vmem:[%s165 + $0x9c] sm:$0xf]
      %v595 = vld [vmem:[%s165 + $0xa0] sm:$0xf]
      %v596 = vld [vmem:[%s165 + $0xa4] sm:$0x1]
      %v597 = vld [vmem:[%s165 + $0xa8] sm:$0xf]
      %v598 = vld [vmem:[%s165 + $0xac] sm:$0xf]
      %v599 = vld [vmem:[%s165 + $0xb0] sm:$0x1]
      %v600 = vld [vmem:[%s165 + $0xb4] sm:$0xf]
      %v601 = vld [vmem:[%s165 + $0xb8] sm:$0xf]
      %v602 = vld [vmem:[%s165 + $0xbc] sm:$0x1]
      %vm603 = vsmask.f32 3328
      %vm604 = vsmask.f32 7440
      %vm605 = vmor %vm603, %vm604
      %v607 = vshrl.u32 %v555, 16
      %v609 = vrot.slane %v607, 4
      %v610 = vshll.u32 %v555, 16
      %v612 = vrot.slane %v610, 5
      %v613 = vor.u32 %v609, %v612
      %v614 = vrot.slane %v613, 4
      %v616 = vshll.u32 %v556, 16
      %v618 = vrot.slane %v616, 5
      %v619 = vsel %vm605, %v614, %v618
      %v620 = vshrl.u32 %v556, 16
      %v622 = vrot.slane %v620, 4
      %v623 = vor.u32 %v622, %v618
      %v624 = vrot.slane %v623, 4
      %v626 = vshll.u32 %v557, 16
      %v628 = vrot.slane %v626, 5
      %v629 = vsel %vm605, %v624, %v628
      %v631 = vshrl.u32 %v558, 16
      %v633 = vrot.slane %v631, 4
      %v634 = vshll.u32 %v558, 16
      %v636 = vrot.slane %v634, 5
      %v637 = vor.u32 %v633, %v636
      %v638 = vrot.slane %v637, 4
      %v640 = vshll.u32 %v559, 16
      %v642 = vrot.slane %v640, 5
      %v643 = vsel %vm605, %v638, %v642
      %v644 = vshrl.u32 %v559, 16
      %v646 = vrot.slane %v644, 4
      %v647 = vor.u32 %v646, %v642
      %v648 = vrot.slane %v647, 4
      %v650 = vshll.u32 %v560, 16
      %v652 = vrot.slane %v650, 5
      %v653 = vsel %vm605, %v648, %v652
      %v655 = vshrl.u32 %v561, 16
      %v657 = vrot.slane %v655, 4
      %v658 = vshll.u32 %v561, 16
      %v660 = vrot.slane %v658, 5
      %v661 = vor.u32 %v657, %v660
      %v662 = vrot.slane %v661, 4
      %v664 = vshll.u32 %v562, 16
      %v666 = vrot.slane %v664, 5
      %v667 = vsel %vm605, %v662, %v666
      %v668 = vshrl.u32 %v562, 16
      %v670 = vrot.slane %v668, 4
      %v671 = vor.u32 %v670, %v666
      %v672 = vrot.slane %v671, 4
      %v674 = vshll.u32 %v563, 16
      %v676 = vrot.slane %v674, 5
      %v677 = vsel %vm605, %v672, %v676
      %v679 = vshrl.u32 %v564, 16
      %v681 = vrot.slane %v679, 4
      %v682 = vshll.u32 %v564, 16
      %v684 = vrot.slane %v682, 5
      %v685 = vor.u32 %v681, %v684
      %v686 = vrot.slane %v685, 4
      %v688 = vshll.u32 %v565, 16
      %v690 = vrot.slane %v688, 5
      %v691 = vsel %vm605, %v686, %v690
      %v692 = vshrl.u32 %v565, 16
      %v694 = vrot.slane %v692, 4
      %v695 = vor.u32 %v694, %v690
      %v696 = vrot.slane %v695, 4
      %v698 = vshll.u32 %v566, 16
      %v700 = vrot.slane %v698, 5
      %v701 = vsel %vm605, %v696, %v700
      %v703 = vshrl.u32 %v567, 16
      %v705 = vrot.slane %v703, 4
      %v706 = vshll.u32 %v567, 16
      %v708 = vrot.slane %v706, 5
      %v709 = vor.u32 %v705, %v708
      %v710 = vrot.slane %v709, 4
      %v712 = vshll.u32 %v568, 16
      %v714 = vrot.slane %v712, 5
      %v715 = vsel %vm605, %v710, %v714
      %v716 = vshrl.u32 %v568, 16
      %v718 = vrot.slane %v716, 4
      %v719 = vor.u32 %v718, %v714
      %v720 = vrot.slane %v719, 4
      %v722 = vshll.u32 %v569, 16
      %v724 = vrot.slane %v722, 5
      %v725 = vsel %vm605, %v720, %v724
      %v727 = vshrl.u32 %v570, 16
      %v729 = vrot.slane %v727, 4
      %v730 = vshll.u32 %v570, 16
      %v732 = vrot.slane %v730, 5
      %v733 = vor.u32 %v729, %v732
      %v734 = vrot.slane %v733, 4
      %v736 = vshll.u32 %v571, 16
      %v738 = vrot.slane %v736, 5
      %v739 = vsel %vm605, %v734, %v738
      %v740 = vshrl.u32 %v571, 16
      %v742 = vrot.slane %v740, 4
      %v743 = vor.u32 %v742, %v738
      %v744 = vrot.slane %v743, 4
      %v746 = vshll.u32 %v572, 16
      %v748 = vrot.slane %v746, 5
      %v749 = vsel %vm605, %v744, %v748
      %v751 = vshrl.u32 %v573, 16
      %v753 = vrot.slane %v751, 4
      %v754 = vshll.u32 %v573, 16
      %v756 = vrot.slane %v754, 5
      %v757 = vor.u32 %v753, %v756
      %v758 = vrot.slane %v757, 4
      %v760 = vshll.u32 %v574, 16
      %v762 = vrot.slane %v760, 5
      %v763 = vsel %vm605, %v758, %v762
      %v764 = vshrl.u32 %v574, 16
      %v766 = vrot.slane %v764, 4
      %v767 = vor.u32 %v766, %v762
      %v768 = vrot.slane %v767, 4
      %v770 = vshll.u32 %v575, 16
      %v772 = vrot.slane %v770, 5
      %v773 = vsel %vm605, %v768, %v772
      %v775 = vshrl.u32 %v576, 16
      %v777 = vrot.slane %v775, 4
      %v778 = vshll.u32 %v576, 16
      %v780 = vrot.slane %v778, 5
      %v781 = vor.u32 %v777, %v780
      %v782 = vrot.slane %v781, 4
      %v784 = vshll.u32 %v577, 16
      %v786 = vrot.slane %v784, 5
      %v787 = vsel %vm605, %v782, %v786
      %v788 = vshrl.u32 %v577, 16
      %v790 = vrot.slane %v788, 4
      %v791 = vor.u32 %v790, %v786
      %v792 = vrot.slane %v791, 4
      %v794 = vshll.u32 %v578, 16
      %v796 = vrot.slane %v794, 5
      %v797 = vsel %vm605, %v792, %v796
      %v799 = vshrl.u32 %v579, 16
      %v801 = vrot.slane %v799, 4
      %v802 = vshll.u32 %v579, 16
      %v804 = vrot.slane %v802, 5
      %v805 = vor.u32 %v801, %v804
      %v806 = vrot.slane %v805, 4
      %v808 = vshll.u32 %v580, 16
      %v810 = vrot.slane %v808, 5
      %v811 = vsel %vm605, %v806, %v810
      %v812 = vshrl.u32 %v580, 16
      %v814 = vrot.slane %v812, 4
      %v815 = vor.u32 %v814, %v810
      %v816 = vrot.slane %v815, 4
      %v818 = vshll.u32 %v581, 16
      %v820 = vrot.slane %v818, 5
      %v821 = vsel %vm605, %v816, %v820
      %v823 = vshrl.u32 %v582, 16
      %v825 = vrot.slane %v823, 4
      %v826 = vshll.u32 %v582, 16
      %v828 = vrot.slane %v826, 5
      %v829 = vor.u32 %v825, %v828
      %v830 = vrot.slane %v829, 4
      %v832 = vshll.u32 %v583, 16
      %v834 = vrot.slane %v832, 5
      %v835 = vsel %vm605, %v830, %v834
      %v836 = vshrl.u32 %v583, 16
      %v838 = vrot.slane %v836, 4
      %v839 = vor.u32 %v838, %v834
      %v840 = vrot.slane %v839, 4
      %v842 = vshll.u32 %v584, 16
      %v844 = vrot.slane %v842, 5
      %v845 = vsel %vm605, %v840, %v844
      %v847 = vshrl.u32 %v585, 16
      %v849 = vrot.slane %v847, 4
      %v850 = vshll.u32 %v585, 16
      %v852 = vrot.slane %v850, 5
      %v853 = vor.u32 %v849, %v852
      %v854 = vrot.slane %v853, 4
      %v856 = vshll.u32 %v586, 16
      %v858 = vrot.slane %v856, 5
      %v859 = vsel %vm605, %v854, %v858
      %v860 = vshrl.u32 %v586, 16
      %v862 = vrot.slane %v860, 4
      %v863 = vor.u32 %v862, %v858
      %v864 = vrot.slane %v863, 4
      %v866 = vshll.u32 %v587, 16
      %v868 = vrot.slane %v866, 5
      %v869 = vsel %vm605, %v864, %v868
      %v871 = vshrl.u32 %v588, 16
      %v873 = vrot.slane %v871, 4
      %v874 = vshll.u32 %v588, 16
      %v876 = vrot.slane %v874, 5
      %v877 = vor.u32 %v873, %v876
      %v878 = vrot.slane %v877, 4
      %v880 = vshll.u32 %v589, 16
      %v882 = vrot.slane %v880, 5
      %v883 = vsel %vm605, %v878, %v882
      %v884 = vshrl.u32 %v589, 16
      %v886 = vrot.slane %v884, 4
      %v887 = vor.u32 %v886, %v882
      %v888 = vrot.slane %v887, 4
      %v890 = vshll.u32 %v590, 16
      %v892 = vrot.slane %v890, 5
      %v893 = vsel %vm605, %v888, %v892
      %v895 = vshrl.u32 %v591, 16
      %v897 = vrot.slane %v895, 4
      %v898 = vshll.u32 %v591, 16
      %v900 = vrot.slane %v898, 5
      %v901 = vor.u32 %v897, %v900
      %v902 = vrot.slane %v901, 4
      %v904 = vshll.u32 %v592, 16
      %v906 = vrot.slane %v904, 5
      %v907 = vsel %vm605, %v902, %v906
      %v908 = vshrl.u32 %v592, 16
      %v910 = vrot.slane %v908, 4
      %v911 = vor.u32 %v910, %v906
      %v912 = vrot.slane %v911, 4
      %v914 = vshll.u32 %v593, 16
      %v916 = vrot.slane %v914, 5
      %v917 = vsel %vm605, %v912, %v916
      %v919 = vshrl.u32 %v594, 16
      %v921 = vrot.slane %v919, 4
      %v922 = vshll.u32 %v594, 16
      %v924 = vrot.slane %v922, 5
      %v925 = vor.u32 %v921, %v924
      %v926 = vrot.slane %v925, 4
      %v928 = vshll.u32 %v595, 16
      %v930 = vrot.slane %v928, 5
      %v931 = vsel %vm605, %v926, %v930
      %v932 = vshrl.u32 %v595, 16
      %v934 = vrot.slane %v932, 4
      %v935 = vor.u32 %v934, %v930
      %v936 = vrot.slane %v935, 4
      %v938 = vshll.u32 %v596, 16
      %v940 = vrot.slane %v938, 5
      %v941 = vsel %vm605, %v936, %v940
      %v943 = vshrl.u32 %v597, 16
      %v945 = vrot.slane %v943, 4
      %v946 = vshll.u32 %v597, 16
      %v948 = vrot.slane %v946, 5
      %v949 = vor.u32 %v945, %v948
      %v950 = vrot.slane %v949, 4
      %v952 = vshll.u32 %v598, 16
      %v954 = vrot.slane %v952, 5
      %v955 = vsel %vm605, %v950, %v954
      %v956 = vshrl.u32 %v598, 16
      %v958 = vrot.slane %v956, 4
      %v959 = vor.u32 %v958, %v954
      %v960 = vrot.slane %v959, 4
      %v962 = vshll.u32 %v599, 16
      %v964 = vrot.slane %v962, 5
      %v965 = vsel %vm605, %v960, %v964
      %v967 = vshrl.u32 %v600, 16
      %v969 = vrot.slane %v967, 4
      %v970 = vshll.u32 %v600, 16
      %v972 = vrot.slane %v970, 5
      %v973 = vor.u32 %v969, %v972
      %v974 = vrot.slane %v973, 4
      %v976 = vshll.u32 %v601, 16
      %v978 = vrot.slane %v976, 5
      %v979 = vsel %vm605, %v974, %v978
      %v980 = vshrl.u32 %v601, 16
      %v982 = vrot.slane %v980, 4
      %v983 = vor.u32 %v982, %v978
      %v984 = vrot.slane %v983, 4
      %v986 = vshll.u32 %v602, 16
      %v988 = vrot.slane %v986, 5
      %v989 = vsel %vm605, %v984, %v988
      %v990 = vld [vmem:[#allocation2] sm:$0xff]
      %v991 = vld [vmem:[#allocation2 + $0x8] sm:$0xff]
      %v992 = vld [vmem:[#allocation2 + $0x10] sm:$0xff]
      %v993 = vld [vmem:[#allocation2 + $0x18] sm:$0xff]
      %v994 = vld [vmem:[#allocation2 + $0x20] sm:$0xff]
      %v995 = vld [vmem:[#allocation2 + $0x28] sm:$0xff]
      %v996 = vld [vmem:[#allocation2 + $0x30] sm:$0xff]
      %v997 = vld [vmem:[#allocation2 + $0x38] sm:$0xff]
      %v998 = vld [vmem:[#allocation2 + $0x40] sm:$0xff]
      %v999 = vld [vmem:[#allocation2 + $0x48] sm:$0xff]
      %v1000 = vld [vmem:[#allocation2 + $0x50] sm:$0xff]
      %v1001 = vld [vmem:[#allocation2 + $0x58] sm:$0xff]
      %v1002 = vld [vmem:[#allocation2 + $0x60] sm:$0xff]
      %v1003 = vld [vmem:[#allocation2 + $0x68] sm:$0xff]
      %v1004 = vld [vmem:[#allocation2 + $0x70] sm:$0xff]
      %v1005 = vld [vmem:[#allocation2 + $0x78] sm:$0xff]
      %v1006 = vld [vmem:[#allocation2 + $0x80] sm:$0xff]
      %v1007 = vld [vmem:[#allocation2 + $0x88] sm:$0xff]
      %v1008 = vld [vmem:[#allocation2 + $0x90] sm:$0xff]
      %v1009 = vld [vmem:[#allocation2 + $0x98] sm:$0xff]
      %v1010 = vld [vmem:[#allocation2 + $0xa0] sm:$0xff]
      %v1011 = vld [vmem:[#allocation2 + $0xa8] sm:$0xff]
      %v1012 = vld [vmem:[#allocation2 + $0xb0] sm:$0xff]
      %v1013 = vld [vmem:[#allocation2 + $0xb8] sm:$0xff]
      %v1014 = vld [vmem:[#allocation2 + $0xc0] sm:$0xff]
      %v1015 = vld [vmem:[#allocation2 + $0xc8] sm:$0xff]
      %v1016 = vld [vmem:[#allocation2 + $0xd0] sm:$0xff]
      %v1017 = vld [vmem:[#allocation2 + $0xd8] sm:$0xff]
      %v1018 = vld [vmem:[#allocation2 + $0xe0] sm:$0xff]
      %v1019 = vld [vmem:[#allocation2 + $0xe8] sm:$0xff]
      %v1020 = vld [vmem:[#allocation2 + $0xf0] sm:$0xff]
      %v1021 = vld [vmem:[#allocation2 + $0xf8] sm:$0xff]
      %s1022 = scalar_lea.vmem %s1, 2
      %v1023 = vld [vmem:[%s1022] sm:$0x3]
      %v1024 = vunpack.c.l.b16 %v619
      %v1025 = vunpack.c.l.b16 %v629
      %v1026 = vunpack.c.l.b16 %v643
      %v1027 = vunpack.c.l.b16 %v653
      %v1028 = vunpack.c.l.b16 %v667
      %v1029 = vunpack.c.l.b16 %v677
      %v1030 = vunpack.c.l.b16 %v691
      %v1031 = vunpack.c.l.b16 %v701
      %v1032 = vunpack.c.l.b16 %v715
      %v1033 = vunpack.c.l.b16 %v725
      %v1034 = vunpack.c.l.b16 %v739
      %v1035 = vunpack.c.l.b16 %v749
      %v1036 = vunpack.c.l.b16 %v763
      %v1037 = vunpack.c.l.b16 %v773
      %v1038 = vunpack.c.l.b16 %v787
      %v1039 = vunpack.c.l.b16 %v797
      %v1040 = vunpack.c.l.b16 %v811
      %v1041 = vunpack.c.l.b16 %v821
      %v1042 = vunpack.c.l.b16 %v835
      %v1043 = vunpack.c.l.b16 %v845
      %v1044 = vunpack.c.l.b16 %v859
      %v1045 = vunpack.c.l.b16 %v869
      %v1046 = vunpack.c.l.b16 %v883
      %v1047 = vunpack.c.l.b16 %v893
      %v1048 = vunpack.c.l.b16 %v907
      %v1049 = vunpack.c.l.b16 %v917
      %v1050 = vunpack.c.l.b16 %v931
      %v1051 = vunpack.c.l.b16 %v941
      %v1052 = vunpack.c.l.b16 %v955
      %v1053 = vunpack.c.l.b16 %v965
      %v1054 = vunpack.c.l.b16 %v979
      %v1055 = vunpack.c.l.b16 %v989
      %v1056 = vpack.c.b16 %v1025, %v1024
      %v1057 = vpack.c.b16 %v1027, %v1026
      %v1058 = vpack.c.b16 %v1029, %v1028
      %v1059 = vpack.c.b16 %v1031, %v1030
      %v1060 = vpack.c.b16 %v1033, %v1032
      %v1061 = vpack.c.b16 %v1035, %v1034
      %v1062 = vpack.c.b16 %v1037, %v1036
      %v1063 = vpack.c.b16 %v1039, %v1038
      %v1064 = vpack.c.b16 %v1041, %v1040
      %v1065 = vpack.c.b16 %v1043, %v1042
      %v1066 = vpack.c.b16 %v1045, %v1044
      %v1067 = vpack.c.b16 %v1047, %v1046
      %v1068 = vpack.c.b16 %v1049, %v1048
      %v1069 = vpack.c.b16 %v1051, %v1050
      %v1070 = vpack.c.b16 %v1053, %v1052
      %v1071 = vpack.c.b16 %v1055, %v1054
      %v1073 = vsel %vm349, %v1056, 0
      %v1076 = vsel %vm349, %v1057, 0
      %v1079 = vsel %vm349, %v1058, 0
      %v1082 = vsel %vm349, %v1059, 0
      %v1085 = vsel %vm349, %v1060, 0
      %v1088 = vsel %vm349, %v1061, 0
      %v1091 = vsel %vm349, %v1062, 0
      %v1094 = vsel %vm349, %v1063, 0
      %v1097 = vsel %vm349, %v1064, 0
      %v1100 = vsel %vm349, %v1065, 0
      %v1103 = vsel %vm349, %v1066, 0
      %v1106 = vsel %vm349, %v1067, 0
      %v1109 = vsel %vm349, %v1068, 0
      %v1112 = vsel %vm349, %v1069, 0
      %v1115 = vsel %vm349, %v1070, 0
      %v1118 = vsel %vm349, %v1071, 0
      %v1121 = vsel %vm398, %v1023, 0
      %1123 = vmatpush.bf16.msra.mxu0 0
      %1124 = vmatpush.bf16.msra.mxu0 0
      %1125 = vmatpush.bf16.msra.mxu0 0
      %1126 = vmatpush.bf16.msra.mxu0 0
      %1127 = vmatpush.bf16.msra.mxu0 0
      %1128 = vmatpush.bf16.msra.mxu0 0
      %1129 = vmatpush.bf16.msra.mxu0 0
      %1130 = vmatpush.bf16.msra.mxu0 %v1121
      %1131 = vmatmul.bf16.gmra.mxu0 %v1073
      %v1132 = vpop.f32.mrf.mxu0
      %v1133 = vadd.f32 0.0, %v1132
      %v1134 = vpop.f32.mrf.mxu0
      %v1135 = vadd.f32 0.0, %v1134
      %1136 = vmatmul.bf16.gmra.mxu0 %v1076
      %v1137 = vpop.f32.mrf.mxu0
      %v1138 = vadd.f32 0.0, %v1137
      %v1139 = vpop.f32.mrf.mxu0
      %v1140 = vadd.f32 0.0, %v1139
      %1141 = vmatmul.bf16.gmra.mxu0 %v1079
      %v1142 = vpop.f32.mrf.mxu0
      %v1143 = vadd.f32 0.0, %v1142
      %v1144 = vpop.f32.mrf.mxu0
      %v1145 = vadd.f32 0.0, %v1144
      %1146 = vmatmul.bf16.gmra.mxu0 %v1082
      %v1147 = vpop.f32.mrf.mxu0
      %v1148 = vadd.f32 0.0, %v1147
      %v1149 = vpop.f32.mrf.mxu0
      %v1150 = vadd.f32 0.0, %v1149
      %1151 = vmatmul.bf16.gmra.mxu0 %v1085
      %v1152 = vpop.f32.mrf.mxu0
      %v1153 = vadd.f32 0.0, %v1152
      %v1154 = vpop.f32.mrf.mxu0
      %v1155 = vadd.f32 0.0, %v1154
      %1156 = vmatmul.bf16.gmra.mxu0 %v1088
      %v1157 = vpop.f32.mrf.mxu0
      %v1158 = vadd.f32 0.0, %v1157
      %v1159 = vpop.f32.mrf.mxu0
      %v1160 = vadd.f32 0.0, %v1159
      %1161 = vmatmul.bf16.gmra.mxu0 %v1091
      %v1162 = vpop.f32.mrf.mxu0
      %v1163 = vadd.f32 0.0, %v1162
      %v1164 = vpop.f32.mrf.mxu0
      %v1165 = vadd.f32 0.0, %v1164
      %1166 = vmatmul.bf16.gmra.mxu0 %v1094
      %v1167 = vpop.f32.mrf.mxu0
      %v1168 = vadd.f32 0.0, %v1167
      %v1169 = vpop.f32.mrf.mxu0
      %v1170 = vadd.f32 0.0, %v1169
      %1171 = vmatmul.bf16.gmra.mxu0 %v1097
      %v1172 = vpop.f32.mrf.mxu0
      %v1173 = vadd.f32 0.0, %v1172
      %v1174 = vpop.f32.mrf.mxu0
      %v1175 = vadd.f32 0.0, %v1174
      %1176 = vmatmul.bf16.gmra.mxu0 %v1100
      %v1177 = vpop.f32.mrf.mxu0
      %v1178 = vadd.f32 0.0, %v1177
      %v1179 = vpop.f32.mrf.mxu0
      %v1180 = vadd.f32 0.0, %v1179
      %1181 = vmatmul.bf16.gmra.mxu0 %v1103
      %v1182 = vpop.f32.mrf.mxu0
      %v1183 = vadd.f32 0.0, %v1182
      %v1184 = vpop.f32.mrf.mxu0
      %v1185 = vadd.f32 0.0, %v1184
      %1186 = vmatmul.bf16.gmra.mxu0 %v1106
      %v1187 = vpop.f32.mrf.mxu0
      %v1188 = vadd.f32 0.0, %v1187
      %v1189 = vpop.f32.mrf.mxu0
      %v1190 = vadd.f32 0.0, %v1189
      %1191 = vmatmul.bf16.gmra.mxu0 %v1109
      %v1192 = vpop.f32.mrf.mxu0
      %v1193 = vadd.f32 0.0, %v1192
      %v1194 = vpop.f32.mrf.mxu0
      %v1195 = vadd.f32 0.0, %v1194
      %1196 = vmatmul.bf16.gmra.mxu0 %v1112
      %v1197 = vpop.f32.mrf.mxu0
      %v1198 = vadd.f32 0.0, %v1197
      %v1199 = vpop.f32.mrf.mxu0
      %v1200 = vadd.f32 0.0, %v1199
      %1201 = vmatmul.bf16.gmra.mxu0 %v1115
      %v1202 = vpop.f32.mrf.mxu0
      %v1203 = vadd.f32 0.0, %v1202
      %v1204 = vpop.f32.mrf.mxu0
      %v1205 = vadd.f32 0.0, %v1204
      %1206 = vmatmul.bf16.gmra.mxu0 %v1118
      %v1207 = vpop.f32.mrf.mxu0
      %v1208 = vadd.f32 0.0, %v1207
      %v1209 = vpop.f32.mrf.mxu0
      %v1210 = vadd.f32 0.0, %v1209
      %1211 = vdwg.mxu0
      %v1212 = vadd.f32 %v990, %v1133
      %v1213 = vadd.f32 %v991, %v1135
      %v1214 = vadd.f32 %v992, %v1138
      %v1215 = vadd.f32 %v993, %v1140
      %v1216 = vadd.f32 %v994, %v1143
      %v1217 = vadd.f32 %v995, %v1145
      %v1218 = vadd.f32 %v996, %v1148
      %v1219 = vadd.f32 %v997, %v1150
      %v1220 = vadd.f32 %v998, %v1153
      %v1221 = vadd.f32 %v999, %v1155
      %v1222 = vadd.f32 %v1000, %v1158
      %v1223 = vadd.f32 %v1001, %v1160
      %v1224 = vadd.f32 %v1002, %v1163
      %v1225 = vadd.f32 %v1003, %v1165
      %v1226 = vadd.f32 %v1004, %v1168
      %v1227 = vadd.f32 %v1005, %v1170
      %v1228 = vadd.f32 %v1006, %v1173
      %v1229 = vadd.f32 %v1007, %v1175
      %v1230 = vadd.f32 %v1008, %v1178
      %v1231 = vadd.f32 %v1009, %v1180
      %v1232 = vadd.f32 %v1010, %v1183
      %v1233 = vadd.f32 %v1011, %v1185
      %v1234 = vadd.f32 %v1012, %v1188
      %v1235 = vadd.f32 %v1013, %v1190
      %v1236 = vadd.f32 %v1014, %v1193
      %v1237 = vadd.f32 %v1015, %v1195
      %v1238 = vadd.f32 %v1016, %v1198
      %v1239 = vadd.f32 %v1017, %v1200
      %v1240 = vadd.f32 %v1018, %v1203
      %v1241 = vadd.f32 %v1019, %v1205
      %v1242 = vadd.f32 %v1020, %v1208
      %v1243 = vadd.f32 %v1021, %v1210
      %1244 = vst [vmem:[#allocation2] sm:$0xff] %v1212
      %1245 = vst [vmem:[#allocation2 + $0x8] sm:$0xff] %v1213
      %1246 = vst [vmem:[#allocation2 + $0x10] sm:$0xff] %v1214
      %1247 = vst [vmem:[#allocation2 + $0x18] sm:$0xff] %v1215
      %1248 = vst [vmem:[#allocation2 + $0x20] sm:$0xff] %v1216
      %1249 = vst [vmem:[#allocation2 + $0x28] sm:$0xff] %v1217
      %1250 = vst [vmem:[#allocation2 + $0x30] sm:$0xff] %v1218
      %1251 = vst [vmem:[#allocation2 + $0x38] sm:$0xff] %v1219
      %1252 = vst [vmem:[#allocation2 + $0x40] sm:$0xff] %v1220
      %1253 = vst [vmem:[#allocation2 + $0x48] sm:$0xff] %v1221
      %1254 = vst [vmem:[#allocation2 + $0x50] sm:$0xff] %v1222
      %1255 = vst [vmem:[#allocation2 + $0x58] sm:$0xff] %v1223
      %1256 = vst [vmem:[#allocation2 + $0x60] sm:$0xff] %v1224
      %1257 = vst [vmem:[#allocation2 + $0x68] sm:$0xff] %v1225
      %1258 = vst [vmem:[#allocation2 + $0x70] sm:$0xff] %v1226
      %1259 = vst [vmem:[#allocation2 + $0x78] sm:$0xff] %v1227
      %1260 = vst [vmem:[#allocation2 + $0x80] sm:$0xff] %v1228
      %1261 = vst [vmem:[#allocation2 + $0x88] sm:$0xff] %v1229
      %1262 = vst [vmem:[#allocation2 + $0x90] sm:$0xff] %v1230
      %1263 = vst [vmem:[#allocation2 + $0x98] sm:$0xff] %v1231
      %1264 = vst [vmem:[#allocation2 + $0xa0] sm:$0xff] %v1232
      %1265 = vst [vmem:[#allocation2 + $0xa8] sm:$0xff] %v1233
      %1266 = vst [vmem:[#allocation2 + $0xb0] sm:$0xff] %v1234
      %1267 = vst [vmem:[#allocation2 + $0xb8] sm:$0xff] %v1235
      %1268 = vst [vmem:[#allocation2 + $0xc0] sm:$0xff] %v1236
      %1269 = vst [vmem:[#allocation2 + $0xc8] sm:$0xff] %v1237
      %1270 = vst [vmem:[#allocation2 + $0xd0] sm:$0xff] %v1238
      %1271 = vst [vmem:[#allocation2 + $0xd8] sm:$0xff] %v1239
      %1272 = vst [vmem:[#allocation2 + $0xe0] sm:$0xff] %v1240
      %1273 = vst [vmem:[#allocation2 + $0xe8] sm:$0xff] %v1241
      %1274 = vst [vmem:[#allocation2 + $0xf0] sm:$0xff] %v1242
      %1275 = vst [vmem:[#allocation2 + $0xf8] sm:$0xff] %v1243
      %v1276 = vld [vmem:[%s165] sm:$0xe]
      %v1277 = vld [vmem:[%s165 + $0x4] sm:$0xf]
      %v1278 = vld [vmem:[%s165 + $0x8] sm:$0x1]
      %v1279 = vld [vmem:[%s165 + $0xc] sm:$0xe]
      %v1280 = vld [vmem:[%s165 + $0x10] sm:$0xf]
      %v1281 = vld [vmem:[%s165 + $0x14] sm:$0x1]
      %v1282 = vld [vmem:[%s165 + $0x18] sm:$0xe]
      %v1283 = vld [vmem:[%s165 + $0x1c] sm:$0xf]
      %v1284 = vld [vmem:[%s165 + $0x20] sm:$0x1]
      %v1285 = vld [vmem:[%s165 + $0x24] sm:$0xe]
      %v1286 = vld [vmem:[%s165 + $0x28] sm:$0xf]
      %v1287 = vld [vmem:[%s165 + $0x2c] sm:$0x1]
      %v1288 = vld [vmem:[%s165 + $0x30] sm:$0xe]
      %v1289 = vld [vmem:[%s165 + $0x34] sm:$0xf]
      %v1290 = vld [vmem:[%s165 + $0x38] sm:$0x1]
      %v1291 = vld [vmem:[%s165 + $0x3c] sm:$0xe]
      %v1292 = vld [vmem:[%s165 + $0x40] sm:$0xf]
      %v1293 = vld [vmem:[%s165 + $0x44] sm:$0x1]
      %v1294 = vld [vmem:[%s165 + $0x48] sm:$0xe]
      %v1295 = vld [vmem:[%s165 + $0x4c] sm:$0xf]
      %v1296 = vld [vmem:[%s165 + $0x50] sm:$0x1]
      %v1297 = vld [vmem:[%s165 + $0x54] sm:$0xe]
      %v1298 = vld [vmem:[%s165 + $0x58] sm:$0xf]
      %v1299 = vld [vmem:[%s165 + $0x5c] sm:$0x1]
      %v1300 = vld [vmem:[%s165 + $0x60] sm:$0xe]
      %v1301 = vld [vmem:[%s165 + $0x64] sm:$0xf]
      %v1302 = vld [vmem:[%s165 + $0x68] sm:$0x1]
      %v1303 = vld [vmem:[%s165 + $0x6c] sm:$0xe]
      %v1304 = vld [vmem:[%s165 + $0x70] sm:$0xf]
      %v1305 = vld [vmem:[%s165 + $0x74] sm:$0x1]
      %v1306 = vld [vmem:[%s165 + $0x78] sm:$0xe]
      %v1307 = vld [vmem:[%s165 + $0x7c] sm:$0xf]
      %v1308 = vld [vmem:[%s165 + $0x80] sm:$0x1]
      %v1309 = vld [vmem:[%s165 + $0x84] sm:$0xe]
      %v1310 = vld [vmem:[%s165 + $0x88] sm:$0xf]
      %v1311 = vld [vmem:[%s165 + $0x8c] sm:$0x1]
      %v1312 = vld [vmem:[%s165 + $0x90] sm:$0xe]
      %v1313 = vld [vmem:[%s165 + $0x94] sm:$0xf]
      %v1314 = vld [vmem:[%s165 + $0x98] sm:$0x1]
      %v1315 = vld [vmem:[%s165 + $0x9c] sm:$0xe]
      %v1316 = vld [vmem:[%s165 + $0xa0] sm:$0xf]
      %v1317 = vld [vmem:[%s165 + $0xa4] sm:$0x1]
      %v1318 = vld [vmem:[%s165 + $0xa8] sm:$0xe]
      %v1319 = vld [vmem:[%s165 + $0xac] sm:$0xf]
      %v1320 = vld [vmem:[%s165 + $0xb0] sm:$0x1]
      %v1321 = vld [vmem:[%s165 + $0xb4] sm:$0xe]
      %v1322 = vld [vmem:[%s165 + $0xb8] sm:$0xf]
      %v1323 = vld [vmem:[%s165 + $0xbc] sm:$0x1]
      %vm1372 = vcmask 1042432
      %vm1373 = vcmask 1046532
      %vm1374 = vmor %vm1372, %vm1373
      %v1375 = vrot.slane %v1276, 5
      %v1376 = vrot.slane %v1375, 4
      %v1377 = vrot.slane %v1277, 5
      %v1378 = vsel %vm1374, %v1376, %v1377
      %v1379 = vrot.slane %v1377, 4
      %v1380 = vrot.slane %v1278, 5
      %v1381 = vsel %vm1374, %v1379, %v1380
      %v1382 = vrot.slane %v1279, 5
      %v1383 = vrot.slane %v1382, 4
      %v1384 = vrot.slane %v1280, 5
      %v1385 = vsel %vm1374, %v1383, %v1384
      %v1386 = vrot.slane %v1384, 4
      %v1387 = vrot.slane %v1281, 5
      %v1388 = vsel %vm1374, %v1386, %v1387
      %v1389 = vrot.slane %v1282, 5
      %v1390 = vrot.slane %v1389, 4
      %v1391 = vrot.slane %v1283, 5
      %v1392 = vsel %vm1374, %v1390, %v1391
      %v1393 = vrot.slane %v1391, 4
      %v1394 = vrot.slane %v1284, 5
      %v1395 = vsel %vm1374, %v1393, %v1394
      %v1396 = vrot.slane %v1285, 5
      %v1397 = vrot.slane %v1396, 4
      %v1398 = vrot.slane %v1286, 5
      %v1399 = vsel %vm1374, %v1397, %v1398
      %v1400 = vrot.slane %v1398, 4
      %v1401 = vrot.slane %v1287, 5
      %v1402 = vsel %vm1374, %v1400, %v1401
      %v1403 = vrot.slane %v1288, 5
      %v1404 = vrot.slane %v1403, 4
      %v1405 = vrot.slane %v1289, 5
      %v1406 = vsel %vm1374, %v1404, %v1405
      %v1407 = vrot.slane %v1405, 4
      %v1408 = vrot.slane %v1290, 5
      %v1409 = vsel %vm1374, %v1407, %v1408
      %v1410 = vrot.slane %v1291, 5
      %v1411 = vrot.slane %v1410, 4
      %v1412 = vrot.slane %v1292, 5
      %v1413 = vsel %vm1374, %v1411, %v1412
      %v1414 = vrot.slane %v1412, 4
      %v1415 = vrot.slane %v1293, 5
      %v1416 = vsel %vm1374, %v1414, %v1415
      %v1417 = vrot.slane %v1294, 5
      %v1418 = vrot.slane %v1417, 4
      %v1419 = vrot.slane %v1295, 5
      %v1420 = vsel %vm1374, %v1418, %v1419
      %v1421 = vrot.slane %v1419, 4
      %v1422 = vrot.slane %v1296, 5
      %v1423 = vsel %vm1374, %v1421, %v1422
      %v1424 = vrot.slane %v1297, 5
      %v1425 = vrot.slane %v1424, 4
      %v1426 = vrot.slane %v1298, 5
      %v1427 = vsel %vm1374, %v1425, %v1426
      %v1428 = vrot.slane %v1426, 4
      %v1429 = vrot.slane %v1299, 5
      %v1430 = vsel %vm1374, %v1428, %v1429
      %v1431 = vrot.slane %v1300, 5
      %v1432 = vrot.slane %v1431, 4
      %v1433 = vrot.slane %v1301, 5
      %v1434 = vsel %vm1374, %v1432, %v1433
      %v1435 = vrot.slane %v1433, 4
      %v1436 = vrot.slane %v1302, 5
      %v1437 = vsel %vm1374, %v1435, %v1436
      %v1438 = vrot.slane %v1303, 5
      %v1439 = vrot.slane %v1438, 4
      %v1440 = vrot.slane %v1304, 5
      %v1441 = vsel %vm1374, %v1439, %v1440
      %v1442 = vrot.slane %v1440, 4
      %v1443 = vrot.slane %v1305, 5
      %v1444 = vsel %vm1374, %v1442, %v1443
      %v1445 = vrot.slane %v1306, 5
      %v1446 = vrot.slane %v1445, 4
      %v1447 = vrot.slane %v1307, 5
      %v1448 = vsel %vm1374, %v1446, %v1447
      %v1449 = vrot.slane %v1447, 4
      %v1450 = vrot.slane %v1308, 5
      %v1451 = vsel %vm1374, %v1449, %v1450
      %v1452 = vrot.slane %v1309, 5
      %v1453 = vrot.slane %v1452, 4
      %v1454 = vrot.slane %v1310, 5
      %v1455 = vsel %vm1374, %v1453, %v1454
      %v1456 = vrot.slane %v1454, 4
      %v1457 = vrot.slane %v1311, 5
      %v1458 = vsel %vm1374, %v1456, %v1457
      %v1459 = vrot.slane %v1312, 5
      %v1460 = vrot.slane %v1459, 4
      %v1461 = vrot.slane %v1313, 5
      %v1462 = vsel %vm1374, %v1460, %v1461
      %v1463 = vrot.slane %v1461, 4
      %v1464 = vrot.slane %v1314, 5
      %v1465 = vsel %vm1374, %v1463, %v1464
      %v1466 = vrot.slane %v1315, 5
      %v1467 = vrot.slane %v1466, 4
      %v1468 = vrot.slane %v1316, 5
      %v1469 = vsel %vm1374, %v1467, %v1468
      %v1470 = vrot.slane %v1468, 4
      %v1471 = vrot.slane %v1317, 5
      %v1472 = vsel %vm1374, %v1470, %v1471
      %v1473 = vrot.slane %v1318, 5
      %v1474 = vrot.slane %v1473, 4
      %v1475 = vrot.slane %v1319, 5
      %v1476 = vsel %vm1374, %v1474, %v1475
      %v1477 = vrot.slane %v1475, 4
      %v1478 = vrot.slane %v1320, 5
      %v1479 = vsel %vm1374, %v1477, %v1478
      %v1480 = vrot.slane %v1321, 5
      %v1481 = vrot.slane %v1480, 4
      %v1482 = vrot.slane %v1322, 5
      %v1483 = vsel %vm1374, %v1481, %v1482
      %v1484 = vrot.slane %v1482, 4
      %v1485 = vrot.slane %v1323, 5
      %v1486 = vsel %vm1374, %v1484, %v1485
      %v1487 = vld [vmem:[#allocation2] sm:$0xff]
      %v1488 = vld [vmem:[#allocation2 + $0x8] sm:$0xff]
      %v1489 = vld [vmem:[#allocation2 + $0x10] sm:$0xff]
      %v1490 = vld [vmem:[#allocation2 + $0x18] sm:$0xff]
      %v1491 = vld [vmem:[#allocation2 + $0x20] sm:$0xff]
      %v1492 = vld [vmem:[#allocation2 + $0x28] sm:$0xff]
      %v1493 = vld [vmem:[#allocation2 + $0x30] sm:$0xff]
      %v1494 = vld [vmem:[#allocation2 + $0x38] sm:$0xff]
      %v1495 = vld [vmem:[#allocation2 + $0x40] sm:$0xff]
      %v1496 = vld [vmem:[#allocation2 + $0x48] sm:$0xff]
      %v1497 = vld [vmem:[#allocation2 + $0x50] sm:$0xff]
      %v1498 = vld [vmem:[#allocation2 + $0x58] sm:$0xff]
      %v1499 = vld [vmem:[#allocation2 + $0x60] sm:$0xff]
      %v1500 = vld [vmem:[#allocation2 + $0x68] sm:$0xff]
      %v1501 = vld [vmem:[#allocation2 + $0x70] sm:$0xff]
      %v1502 = vld [vmem:[#allocation2 + $0x78] sm:$0xff]
      %v1503 = vld [vmem:[#allocation2 + $0x80] sm:$0xff]
      %v1504 = vld [vmem:[#allocation2 + $0x88] sm:$0xff]
      %v1505 = vld [vmem:[#allocation2 + $0x90] sm:$0xff]
      %v1506 = vld [vmem:[#allocation2 + $0x98] sm:$0xff]
      %v1507 = vld [vmem:[#allocation2 + $0xa0] sm:$0xff]
      %v1508 = vld [vmem:[#allocation2 + $0xa8] sm:$0xff]
      %v1509 = vld [vmem:[#allocation2 + $0xb0] sm:$0xff]
      %v1510 = vld [vmem:[#allocation2 + $0xb8] sm:$0xff]
      %v1511 = vld [vmem:[#allocation2 + $0xc0] sm:$0xff]
      %v1512 = vld [vmem:[#allocation2 + $0xc8] sm:$0xff]
      %v1513 = vld [vmem:[#allocation2 + $0xd0] sm:$0xff]
      %v1514 = vld [vmem:[#allocation2 + $0xd8] sm:$0xff]
      %v1515 = vld [vmem:[#allocation2 + $0xe0] sm:$0xff]
      %v1516 = vld [vmem:[#allocation2 + $0xe8] sm:$0xff]
      %v1517 = vld [vmem:[#allocation2 + $0xf0] sm:$0xff]
      %v1518 = vld [vmem:[#allocation2 + $0xf8] sm:$0xff]
      %s1519 = scalar_lea.vmem %s1, 4
      %v1520 = vld [vmem:[%s1519] sm:$0x3]
      %v1521 = vunpack.c.l.b16 %v1378
      %v1522 = vunpack.c.l.b16 %v1381
      %v1523 = vunpack.c.l.b16 %v1385
      %v1524 = vunpack.c.l.b16 %v1388
      %v1525 = vunpack.c.l.b16 %v1392
      %v1526 = vunpack.c.l.b16 %v1395
      %v1527 = vunpack.c.l.b16 %v1399
      %v1528 = vunpack.c.l.b16 %v1402
      %v1529 = vunpack.c.l.b16 %v1406
      %v1530 = vunpack.c.l.b16 %v1409
      %v1531 = vunpack.c.l.b16 %v1413
      %v1532 = vunpack.c.l.b16 %v1416
      %v1533 = vunpack.c.l.b16 %v1420
      %v1534 = vunpack.c.l.b16 %v1423
      %v1535 = vunpack.c.l.b16 %v1427
      %v1536 = vunpack.c.l.b16 %v1430
      %v1537 = vunpack.c.l.b16 %v1434
      %v1538 = vunpack.c.l.b16 %v1437
      %v1539 = vunpack.c.l.b16 %v1441
      %v1540 = vunpack.c.l.b16 %v1444
      %v1541 = vunpack.c.l.b16 %v1448
      %v1542 = vunpack.c.l.b16 %v1451
      %v1543 = vunpack.c.l.b16 %v1455
      %v1544 = vunpack.c.l.b16 %v1458
      %v1545 = vunpack.c.l.b16 %v1462
      %v1546 = vunpack.c.l.b16 %v1465
      %v1547 = vunpack.c.l.b16 %v1469
      %v1548 = vunpack.c.l.b16 %v1472
      %v1549 = vunpack.c.l.b16 %v1476
      %v1550 = vunpack.c.l.b16 %v1479
      %v1551 = vunpack.c.l.b16 %v1483
      %v1552 = vunpack.c.l.b16 %v1486
      %v1553 = vpack.c.b16 %v1522, %v1521
      %v1554 = vpack.c.b16 %v1524, %v1523
      %v1555 = vpack.c.b16 %v1526, %v1525
      %v1556 = vpack.c.b16 %v1528, %v1527
      %v1557 = vpack.c.b16 %v1530, %v1529
      %v1558 = vpack.c.b16 %v1532, %v1531
      %v1559 = vpack.c.b16 %v1534, %v1533
      %v1560 = vpack.c.b16 %v1536, %v1535
      %v1561 = vpack.c.b16 %v1538, %v1537
      %v1562 = vpack.c.b16 %v1540, %v1539
      %v1563 = vpack.c.b16 %v1542, %v1541
      %v1564 = vpack.c.b16 %v1544, %v1543
      %v1565 = vpack.c.b16 %v1546, %v1545
      %v1566 = vpack.c.b16 %v1548, %v1547
      %v1567 = vpack.c.b16 %v1550, %v1549
      %v1568 = vpack.c.b16 %v1552, %v1551
      %v1570 = vsel %vm349, %v1553, 0
      %v1573 = vsel %vm349, %v1554, 0
      %v1576 = vsel %vm349, %v1555, 0
      %v1579 = vsel %vm349, %v1556, 0
      %v1582 = vsel %vm349, %v1557, 0
      %v1585 = vsel %vm349, %v1558, 0
      %v1588 = vsel %vm349, %v1559, 0
      %v1591 = vsel %vm349, %v1560, 0
      %v1594 = vsel %vm349, %v1561, 0
      %v1597 = vsel %vm349, %v1562, 0
      %v1600 = vsel %vm349, %v1563, 0
      %v1603 = vsel %vm349, %v1564, 0
      %v1606 = vsel %vm349, %v1565, 0
      %v1609 = vsel %vm349, %v1566, 0
      %v1612 = vsel %vm349, %v1567, 0
      %v1615 = vsel %vm349, %v1568, 0
      %v1618 = vsel %vm398, %v1520, 0
      %1620 = vmatpush.bf16.msra.mxu0 0
      %1621 = vmatpush.bf16.msra.mxu0 0
      %1622 = vmatpush.bf16.msra.mxu0 0
      %1623 = vmatpush.bf16.msra.mxu0 0
      %1624 = vmatpush.bf16.msra.mxu0 0
      %1625 = vmatpush.bf16.msra.mxu0 0
      %1626 = vmatpush.bf16.msra.mxu0 0
      %1627 = vmatpush.bf16.msra.mxu0 %v1618
      %1628 = vmatmul.bf16.gmra.mxu0 %v1570
      %v1629 = vpop.f32.mrf.mxu0
      %v1630 = vadd.f32 0.0, %v1629
      %v1631 = vpop.f32.mrf.mxu0
      %v1632 = vadd.f32 0.0, %v1631
      %1633 = vmatmul.bf16.gmra.mxu0 %v1573
      %v1634 = vpop.f32.mrf.mxu0
      %v1635 = vadd.f32 0.0, %v1634
      %v1636 = vpop.f32.mrf.mxu0
      %v1637 = vadd.f32 0.0, %v1636
      %1638 = vmatmul.bf16.gmra.mxu0 %v1576
      %v1639 = vpop.f32.mrf.mxu0
      %v1640 = vadd.f32 0.0, %v1639
      %v1641 = vpop.f32.mrf.mxu0
      %v1642 = vadd.f32 0.0, %v1641
      %1643 = vmatmul.bf16.gmra.mxu0 %v1579
      %v1644 = vpop.f32.mrf.mxu0
      %v1645 = vadd.f32 0.0, %v1644
      %v1646 = vpop.f32.mrf.mxu0
      %v1647 = vadd.f32 0.0, %v1646
      %1648 = vmatmul.bf16.gmra.mxu0 %v1582
      %v1649 = vpop.f32.mrf.mxu0
      %v1650 = vadd.f32 0.0, %v1649
      %v1651 = vpop.f32.mrf.mxu0
      %v1652 = vadd.f32 0.0, %v1651
      %1653 = vmatmul.bf16.gmra.mxu0 %v1585
      %v1654 = vpop.f32.mrf.mxu0
      %v1655 = vadd.f32 0.0, %v1654
      %v1656 = vpop.f32.mrf.mxu0
      %v1657 = vadd.f32 0.0, %v1656
      %1658 = vmatmul.bf16.gmra.mxu0 %v1588
      %v1659 = vpop.f32.mrf.mxu0
      %v1660 = vadd.f32 0.0, %v1659
      %v1661 = vpop.f32.mrf.mxu0
      %v1662 = vadd.f32 0.0, %v1661
      %1663 = vmatmul.bf16.gmra.mxu0 %v1591
      %v1664 = vpop.f32.mrf.mxu0
      %v1665 = vadd.f32 0.0, %v1664
      %v1666 = vpop.f32.mrf.mxu0
      %v1667 = vadd.f32 0.0, %v1666
      %1668 = vmatmul.bf16.gmra.mxu0 %v1594
      %v1669 = vpop.f32.mrf.mxu0
      %v1670 = vadd.f32 0.0, %v1669
      %v1671 = vpop.f32.mrf.mxu0
      %v1672 = vadd.f32 0.0, %v1671
      %1673 = vmatmul.bf16.gmra.mxu0 %v1597
      %v1674 = vpop.f32.mrf.mxu0
      %v1675 = vadd.f32 0.0, %v1674
      %v1676 = vpop.f32.mrf.mxu0
      %v1677 = vadd.f32 0.0, %v1676
      %1678 = vmatmul.bf16.gmra.mxu0 %v1600
      %v1679 = vpop.f32.mrf.mxu0
      %v1680 = vadd.f32 0.0, %v1679
      %v1681 = vpop.f32.mrf.mxu0
      %v1682 = vadd.f32 0.0, %v1681
      %1683 = vmatmul.bf16.gmra.mxu0 %v1603
      %v1684 = vpop.f32.mrf.mxu0
      %v1685 = vadd.f32 0.0, %v1684
      %v1686 = vpop.f32.mrf.mxu0
      %v1687 = vadd.f32 0.0, %v1686
      %1688 = vmatmul.bf16.gmra.mxu0 %v1606
      %v1689 = vpop.f32.mrf.mxu0
      %v1690 = vadd.f32 0.0, %v1689
      %v1691 = vpop.f32.mrf.mxu0
      %v1692 = vadd.f32 0.0, %v1691
      %1693 = vmatmul.bf16.gmra.mxu0 %v1609
      %v1694 = vpop.f32.mrf.mxu0
      %v1695 = vadd.f32 0.0, %v1694
      %v1696 = vpop.f32.mrf.mxu0
      %v1697 = vadd.f32 0.0, %v1696
      %1698 = vmatmul.bf16.gmra.mxu0 %v1612
      %v1699 = vpop.f32.mrf.mxu0
      %v1700 = vadd.f32 0.0, %v1699
      %v1701 = vpop.f32.mrf.mxu0
      %v1702 = vadd.f32 0.0, %v1701
      %1703 = vmatmul.bf16.gmra.mxu0 %v1615
      %v1704 = vpop.f32.mrf.mxu0
      %v1705 = vadd.f32 0.0, %v1704
      %v1706 = vpop.f32.mrf.mxu0
      %v1707 = vadd.f32 0.0, %v1706
      %1708 = vdwg.mxu0
      %v1709 = vadd.f32 %v1487, %v1630
      %v1710 = vadd.f32 %v1488, %v1632
      %v1711 = vadd.f32 %v1489, %v1635
      %v1712 = vadd.f32 %v1490, %v1637
      %v1713 = vadd.f32 %v1491, %v1640
      %v1714 = vadd.f32 %v1492, %v1642
      %v1715 = vadd.f32 %v1493, %v1645
      %v1716 = vadd.f32 %v1494, %v1647
      %v1717 = vadd.f32 %v1495, %v1650
      %v1718 = vadd.f32 %v1496, %v1652
      %v1719 = vadd.f32 %v1497, %v1655
      %v1720 = vadd.f32 %v1498, %v1657
      %v1721 = vadd.f32 %v1499, %v1660
      %v1722 = vadd.f32 %v1500, %v1662
      %v1723 = vadd.f32 %v1501, %v1665
      %v1724 = vadd.f32 %v1502, %v1667
      %v1725 = vadd.f32 %v1503, %v1670
      %v1726 = vadd.f32 %v1504, %v1672
      %v1727 = vadd.f32 %v1505, %v1675
      %v1728 = vadd.f32 %v1506, %v1677
      %v1729 = vadd.f32 %v1507, %v1680
      %v1730 = vadd.f32 %v1508, %v1682
      %v1731 = vadd.f32 %v1509, %v1685
      %v1732 = vadd.f32 %v1510, %v1687
      %v1733 = vadd.f32 %v1511, %v1690
      %v1734 = vadd.f32 %v1512, %v1692
      %v1735 = vadd.f32 %v1513, %v1695
      %v1736 = vadd.f32 %v1514, %v1697
      %v1737 = vadd.f32 %v1515, %v1700
      %v1738 = vadd.f32 %v1516, %v1702
      %v1739 = vadd.f32 %v1517, %v1705
      %v1740 = vadd.f32 %v1518, %v1707
      %1741 = vst [vmem:[#allocation2] sm:$0xff] %v1709
      %1742 = vst [vmem:[#allocation2 + $0x8] sm:$0xff] %v1710
      %1743 = vst [vmem:[#allocation2 + $0x10] sm:$0xff] %v1711
      %1744 = vst [vmem:[#allocation2 + $0x18] sm:$0xff] %v1712
      %1745 = vst [vmem:[#allocation2 + $0x20] sm:$0xff] %v1713
      %1746 = vst [vmem:[#allocation2 + $0x28] sm:$0xff] %v1714
      %1747 = vst [vmem:[#allocation2 + $0x30] sm:$0xff] %v1715
      %1748 = vst [vmem:[#allocation2 + $0x38] sm:$0xff] %v1716
      %1749 = vst [vmem:[#allocation2 + $0x40] sm:$0xff] %v1717
      %1750 = vst [vmem:[#allocation2 + $0x48] sm:$0xff] %v1718
      %1751 = vst [vmem:[#allocation2 + $0x50] sm:$0xff] %v1719
      %1752 = vst [vmem:[#allocation2 + $0x58] sm:$0xff] %v1720
      %1753 = vst [vmem:[#allocation2 + $0x60] sm:$0xff] %v1721
      %1754 = vst [vmem:[#allocation2 + $0x68] sm:$0xff] %v1722
      %1755 = vst [vmem:[#allocation2 + $0x70] sm:$0xff] %v1723
      %1756 = vst [vmem:[#allocation2 + $0x78] sm:$0xff] %v1724
      %1757 = vst [vmem:[#allocation2 + $0x80] sm:$0xff] %v1725
      %1758 = vst [vmem:[#allocation2 + $0x88] sm:$0xff] %v1726
      %1759 = vst [vmem:[#allocation2 + $0x90] sm:$0xff] %v1727
      %1760 = vst [vmem:[#allocation2 + $0x98] sm:$0xff] %v1728
      %1761 = vst [vmem:[#allocation2 + $0xa0] sm:$0xff] %v1729
      %1762 = vst [vmem:[#allocation2 + $0xa8] sm:$0xff] %v1730
      %1763 = vst [vmem:[#allocation2 + $0xb0] sm:$0xff] %v1731
      %1764 = vst [vmem:[#allocation2 + $0xb8] sm:$0xff] %v1732
      %1765 = vst [vmem:[#allocation2 + $0xc0] sm:$0xff] %v1733
      %1766 = vst [vmem:[#allocation2 + $0xc8] sm:$0xff] %v1734
      %1767 = vst [vmem:[#allocation2 + $0xd0] sm:$0xff] %v1735
      %1768 = vst [vmem:[#allocation2 + $0xd8] sm:$0xff] %v1736
      %1769 = vst [vmem:[#allocation2 + $0xe0] sm:$0xff] %v1737
      %1770 = vst [vmem:[#allocation2 + $0xe8] sm:$0xff] %v1738
      %1771 = vst [vmem:[#allocation2 + $0xf0] sm:$0xff] %v1739
      %1772 = vst [vmem:[#allocation2 + $0xf8] sm:$0xff] %v1740
      %s1773 = scalar_lea.vmem %s165, 12
      %v1774 = vld [vmem:[%s1773] sm:$0xf]
      %v1775 = vld [vmem:[%s1773 + $0x4] sm:$0xf]
      %v1776 = vld [vmem:[%s1773 + $0xc] sm:$0xf]
      %v1777 = vld [vmem:[%s1773 + $0x10] sm:$0xf]
      %v1778 = vld [vmem:[%s1773 + $0x18] sm:$0xf]
      %v1779 = vld [vmem:[%s1773 + $0x1c] sm:$0xf]
      %v1780 = vld [vmem:[%s1773 + $0x24] sm:$0xf]
      %v1781 = vld [vmem:[%s1773 + $0x28] sm:$0xf]
      %v1782 = vld [vmem:[%s1773 + $0x30] sm:$0xf]
      %v1783 = vld [vmem:[%s1773 + $0x34] sm:$0xf]
      %v1784 = vld [vmem:[%s1773 + $0x3c] sm:$0xf]
      %v1785 = vld [vmem:[%s1773 + $0x40] sm:$0xf]
      %v1786 = vld [vmem:[%s1773 + $0x48] sm:$0xf]
      %v1787 = vld [vmem:[%s1773 + $0x4c] sm:$0xf]
      %v1788 = vld [vmem:[%s1773 + $0x54] sm:$0xf]
      %v1789 = vld [vmem:[%s1773 + $0x58] sm:$0xf]
      %v1790 = vld [vmem:[%s1773 + $0x60] sm:$0xf]
      %v1791 = vld [vmem:[%s1773 + $0x64] sm:$0xf]
      %v1792 = vld [vmem:[%s1773 + $0x6c] sm:$0xf]
      %v1793 = vld [vmem:[%s1773 + $0x70] sm:$0xf]
      %v1794 = vld [vmem:[%s1773 + $0x78] sm:$0xf]
      %v1795 = vld [vmem:[%s1773 + $0x7c] sm:$0xf]
      %v1796 = vld [vmem:[%s1773 + $0x84] sm:$0xf]
      %v1797 = vld [vmem:[%s1773 + $0x88] sm:$0xf]
      %v1798 = vld [vmem:[%s1773 + $0x90] sm:$0xf]
      %v1799 = vld [vmem:[%s1773 + $0x94] sm:$0xf]
      %v1800 = vld [vmem:[%s1773 + $0x9c] sm:$0xf]
      %v1801 = vld [vmem:[%s1773 + $0xa0] sm:$0xf]
      %v1802 = vld [vmem:[%s1773 + $0xa8] sm:$0xf]
      %v1803 = vld [vmem:[%s1773 + $0xac] sm:$0xf]
      %v1804 = vld [vmem:[%s1773 + $0xb4] sm:$0xf]
      %v1805 = vld [vmem:[%s1773 + $0xb8] sm:$0xf]
      %v1806 = vld [vmem:[#allocation2] sm:$0xff]
      %v1807 = vld [vmem:[#allocation2 + $0x8] sm:$0xff]
      %v1808 = vld [vmem:[#allocation2 + $0x10] sm:$0xff]
      %v1809 = vld [vmem:[#allocation2 + $0x18] sm:$0xff]
      %v1810 = vld [vmem:[#allocation2 + $0x20] sm:$0xff]
      %v1811 = vld [vmem:[#allocation2 + $0x28] sm:$0xff]
      %v1812 = vld [vmem:[#allocation2 + $0x30] sm:$0xff]
      %v1813 = vld [vmem:[#allocation2 + $0x38] sm:$0xff]
      %v1814 = vld [vmem:[#allocation2 + $0x40] sm:$0xff]
      %v1815 = vld [vmem:[#allocation2 + $0x48] sm:$0xff]
      %v1816 = vld [vmem:[#allocation2 + $0x50] sm:$0xff]
      %v1817 = vld [vmem:[#allocation2 + $0x58] sm:$0xff]
      %v1818 = vld [vmem:[#allocation2 + $0x60] sm:$0xff]
      %v1819 = vld [vmem:[#allocation2 + $0x68] sm:$0xff]
      %v1820 = vld [vmem:[#allocation2 + $0x70] sm:$0xff]
      %v1821 = vld [vmem:[#allocation2 + $0x78] sm:$0xff]
      %v1822 = vld [vmem:[#allocation2 + $0x80] sm:$0xff]
      %v1823 = vld [vmem:[#allocation2 + $0x88] sm:$0xff]
      %v1824 = vld [vmem:[#allocation2 + $0x90] sm:$0xff]
      %v1825 = vld [vmem:[#allocation2 + $0x98] sm:$0xff]
      %v1826 = vld [vmem:[#allocation2 + $0xa0] sm:$0xff]
      %v1827 = vld [vmem:[#allocation2 + $0xa8] sm:$0xff]
      %v1828 = vld [vmem:[#allocation2 + $0xb0] sm:$0xff]
      %v1829 = vld [vmem:[#allocation2 + $0xb8] sm:$0xff]
      %v1830 = vld [vmem:[#allocation2 + $0xc0] sm:$0xff]
      %v1831 = vld [vmem:[#allocation2 + $0xc8] sm:$0xff]
      %v1832 = vld [vmem:[#allocation2 + $0xd0] sm:$0xff]
      %v1833 = vld [vmem:[#allocation2 + $0xd8] sm:$0xff]
      %v1834 = vld [vmem:[#allocation2 + $0xe0] sm:$0xff]
      %v1835 = vld [vmem:[#allocation2 + $0xe8] sm:$0xff]
      %v1836 = vld [vmem:[#allocation2 + $0xf0] sm:$0xff]
      %v1837 = vld [vmem:[#allocation2 + $0xf8] sm:$0xff]
      %s1838 = scalar_lea.vmem %s1, 6
      %v1839 = vld [vmem:[%s1838] sm:$0x3]
      %v1872 = vunpack.c.l.b16 %v1774
      %v1873 = vunpack.c.l.b16 %v1775
      %v1874 = vunpack.c.l.b16 %v1776
      %v1875 = vunpack.c.l.b16 %v1777
      %v1876 = vunpack.c.l.b16 %v1778
      %v1877 = vunpack.c.l.b16 %v1779
      %v1878 = vunpack.c.l.b16 %v1780
      %v1879 = vunpack.c.l.b16 %v1781
      %v1880 = vunpack.c.l.b16 %v1782
      %v1881 = vunpack.c.l.b16 %v1783
      %v1882 = vunpack.c.l.b16 %v1784
      %v1883 = vunpack.c.l.b16 %v1785
      %v1884 = vunpack.c.l.b16 %v1786
      %v1885 = vunpack.c.l.b16 %v1787
      %v1886 = vunpack.c.l.b16 %v1788
      %v1887 = vunpack.c.l.b16 %v1789
      %v1888 = vunpack.c.l.b16 %v1790
      %v1889 = vunpack.c.l.b16 %v1791
      %v1890 = vunpack.c.l.b16 %v1792
      %v1891 = vunpack.c.l.b16 %v1793
      %v1892 = vunpack.c.l.b16 %v1794
      %v1893 = vunpack.c.l.b16 %v1795
      %v1894 = vunpack.c.l.b16 %v1796
      %v1895 = vunpack.c.l.b16 %v1797
      %v1896 = vunpack.c.l.b16 %v1798
      %v1897 = vunpack.c.l.b16 %v1799
      %v1898 = vunpack.c.l.b16 %v1800
      %v1899 = vunpack.c.l.b16 %v1801
      %v1900 = vunpack.c.l.b16 %v1802
      %v1901 = vunpack.c.l.b16 %v1803
      %v1902 = vunpack.c.l.b16 %v1804
      %v1903 = vunpack.c.l.b16 %v1805
      %v1904 = vpack.c.b16 %v1873, %v1872
      %v1905 = vpack.c.b16 %v1875, %v1874
      %v1906 = vpack.c.b16 %v1877, %v1876
      %v1907 = vpack.c.b16 %v1879, %v1878
      %v1908 = vpack.c.b16 %v1881, %v1880
      %v1909 = vpack.c.b16 %v1883, %v1882
      %v1910 = vpack.c.b16 %v1885, %v1884
      %v1911 = vpack.c.b16 %v1887, %v1886
      %v1912 = vpack.c.b16 %v1889, %v1888
      %v1913 = vpack.c.b16 %v1891, %v1890
      %v1914 = vpack.c.b16 %v1893, %v1892
      %v1915 = vpack.c.b16 %v1895, %v1894
      %v1916 = vpack.c.b16 %v1897, %v1896
      %v1917 = vpack.c.b16 %v1899, %v1898
      %v1918 = vpack.c.b16 %v1901, %v1900
      %v1919 = vpack.c.b16 %v1903, %v1902
      %v1921 = vsel %vm349, %v1904, 0
      %v1924 = vsel %vm349, %v1905, 0
      %v1927 = vsel %vm349, %v1906, 0
      %v1930 = vsel %vm349, %v1907, 0
      %v1933 = vsel %vm349, %v1908, 0
      %v1936 = vsel %vm349, %v1909, 0
      %v1939 = vsel %vm349, %v1910, 0
      %v1942 = vsel %vm349, %v1911, 0
      %v1945 = vsel %vm349, %v1912, 0
      %v1948 = vsel %vm349, %v1913, 0
      %v1951 = vsel %vm349, %v1914, 0
      %v1954 = vsel %vm349, %v1915, 0
      %v1957 = vsel %vm349, %v1916, 0
      %v1960 = vsel %vm349, %v1917, 0
      %v1963 = vsel %vm349, %v1918, 0
      %v1966 = vsel %vm349, %v1919, 0
      %v1969 = vsel %vm398, %v1839, 0
      %1971 = vmatpush.bf16.msra.mxu0 0
      %1972 = vmatpush.bf16.msra.mxu0 0
      %1973 = vmatpush.bf16.msra.mxu0 0
      %1974 = vmatpush.bf16.msra.mxu0 0
      %1975 = vmatpush.bf16.msra.mxu0 0
      %1976 = vmatpush.bf16.msra.mxu0 0
      %1977 = vmatpush.bf16.msra.mxu0 0
      %1978 = vmatpush.bf16.msra.mxu0 %v1969
      %1979 = vmatmul.bf16.gmra.mxu0 %v1921
      %v1980 = vpop.f32.mrf.mxu0
      %v1981 = vadd.f32 0.0, %v1980
      %v1982 = vpop.f32.mrf.mxu0
      %v1983 = vadd.f32 0.0, %v1982
      %1984 = vmatmul.bf16.gmra.mxu0 %v1924
      %v1985 = vpop.f32.mrf.mxu0
      %v1986 = vadd.f32 0.0, %v1985
      %v1987 = vpop.f32.mrf.mxu0
      %v1988 = vadd.f32 0.0, %v1987
      %1989 = vmatmul.bf16.gmra.mxu0 %v1927
      %v1990 = vpop.f32.mrf.mxu0
      %v1991 = vadd.f32 0.0, %v1990
      %v1992 = vpop.f32.mrf.mxu0
      %v1993 = vadd.f32 0.0, %v1992
      %1994 = vmatmul.bf16.gmra.mxu0 %v1930
      %v1995 = vpop.f32.mrf.mxu0
      %v1996 = vadd.f32 0.0, %v1995
      %v1997 = vpop.f32.mrf.mxu0
      %v1998 = vadd.f32 0.0, %v1997
      %1999 = vmatmul.bf16.gmra.mxu0 %v1933
      %v2000 = vpop.f32.mrf.mxu0
      %v2001 = vadd.f32 0.0, %v2000
      %v2002 = vpop.f32.mrf.mxu0
      %v2003 = vadd.f32 0.0, %v2002
      %2004 = vmatmul.bf16.gmra.mxu0 %v1936
      %v2005 = vpop.f32.mrf.mxu0
      %v2006 = vadd.f32 0.0, %v2005
      %v2007 = vpop.f32.mrf.mxu0
      %v2008 = vadd.f32 0.0, %v2007
      %2009 = vmatmul.bf16.gmra.mxu0 %v1939
      %v2010 = vpop.f32.mrf.mxu0
      %v2011 = vadd.f32 0.0, %v2010
      %v2012 = vpop.f32.mrf.mxu0
      %v2013 = vadd.f32 0.0, %v2012
      %2014 = vmatmul.bf16.gmra.mxu0 %v1942
      %v2015 = vpop.f32.mrf.mxu0
      %v2016 = vadd.f32 0.0, %v2015
      %v2017 = vpop.f32.mrf.mxu0
      %v2018 = vadd.f32 0.0, %v2017
      %2019 = vmatmul.bf16.gmra.mxu0 %v1945
      %v2020 = vpop.f32.mrf.mxu0
      %v2021 = vadd.f32 0.0, %v2020
      %v2022 = vpop.f32.mrf.mxu0
      %v2023 = vadd.f32 0.0, %v2022
      %2024 = vmatmul.bf16.gmra.mxu0 %v1948
      %v2025 = vpop.f32.mrf.mxu0
      %v2026 = vadd.f32 0.0, %v2025
      %v2027 = vpop.f32.mrf.mxu0
      %v2028 = vadd.f32 0.0, %v2027
      %2029 = vmatmul.bf16.gmra.mxu0 %v1951
      %v2030 = vpop.f32.mrf.mxu0
      %v2031 = vadd.f32 0.0, %v2030
      %v2032 = vpop.f32.mrf.mxu0
      %v2033 = vadd.f32 0.0, %v2032
      %2034 = vmatmul.bf16.gmra.mxu0 %v1954
      %v2035 = vpop.f32.mrf.mxu0
      %v2036 = vadd.f32 0.0, %v2035
      %v2037 = vpop.f32.mrf.mxu0
      %v2038 = vadd.f32 0.0, %v2037
      %2039 = vmatmul.bf16.gmra.mxu0 %v1957
      %v2040 = vpop.f32.mrf.mxu0
      %v2041 = vadd.f32 0.0, %v2040
      %v2042 = vpop.f32.mrf.mxu0
      %v2043 = vadd.f32 0.0, %v2042
      %2044 = vmatmul.bf16.gmra.mxu0 %v1960
      %v2045 = vpop.f32.mrf.mxu0
      %v2046 = vadd.f32 0.0, %v2045
      %v2047 = vpop.f32.mrf.mxu0
      %v2048 = vadd.f32 0.0, %v2047
      %2049 = vmatmul.bf16.gmra.mxu0 %v1963
      %v2050 = vpop.f32.mrf.mxu0
      %v2051 = vadd.f32 0.0, %v2050
      %v2052 = vpop.f32.mrf.mxu0
      %v2053 = vadd.f32 0.0, %v2052
      %2054 = vmatmul.bf16.gmra.mxu0 %v1966
      %v2055 = vpop.f32.mrf.mxu0
      %v2056 = vadd.f32 0.0, %v2055
      %v2057 = vpop.f32.mrf.mxu0
      %v2058 = vadd.f32 0.0, %v2057
      %2059 = vdwg.mxu0
      %v2060 = vadd.f32 %v1806, %v1981
      %v2061 = vadd.f32 %v1807, %v1983
      %v2062 = vadd.f32 %v1808, %v1986
      %v2063 = vadd.f32 %v1809, %v1988
      %v2064 = vadd.f32 %v1810, %v1991
      %v2065 = vadd.f32 %v1811, %v1993
      %v2066 = vadd.f32 %v1812, %v1996
      %v2067 = vadd.f32 %v1813, %v1998
      %v2068 = vadd.f32 %v1814, %v2001
      %v2069 = vadd.f32 %v1815, %v2003
      %v2070 = vadd.f32 %v1816, %v2006
      %v2071 = vadd.f32 %v1817, %v2008
      %v2072 = vadd.f32 %v1818, %v2011
      %v2073 = vadd.f32 %v1819, %v2013
      %v2074 = vadd.f32 %v1820, %v2016
      %v2075 = vadd.f32 %v1821, %v2018
      %v2076 = vadd.f32 %v1822, %v2021
      %v2077 = vadd.f32 %v1823, %v2023
      %v2078 = vadd.f32 %v1824, %v2026
      %v2079 = vadd.f32 %v1825, %v2028
      %v2080 = vadd.f32 %v1826, %v2031
      %v2081 = vadd.f32 %v1827, %v2033
      %v2082 = vadd.f32 %v1828, %v2036
      %v2083 = vadd.f32 %v1829, %v2038
      %v2084 = vadd.f32 %v1830, %v2041
      %v2085 = vadd.f32 %v1831, %v2043
      %v2086 = vadd.f32 %v1832, %v2046
      %v2087 = vadd.f32 %v1833, %v2048
      %v2088 = vadd.f32 %v1834, %v2051
      %v2089 = vadd.f32 %v1835, %v2053
      %v2090 = vadd.f32 %v1836, %v2056
      %v2091 = vadd.f32 %v1837, %v2058
      %2092 = vst [vmem:[#allocation2] sm:$0xff] %v2060
      %2093 = vst [vmem:[#allocation2 + $0x8] sm:$0xff] %v2061
      %2094 = vst [vmem:[#allocation2 + $0x10] sm:$0xff] %v2062
      %2095 = vst [vmem:[#allocation2 + $0x18] sm:$0xff] %v2063
      %2096 = vst [vmem:[#allocation2 + $0x20] sm:$0xff] %v2064
      %2097 = vst [vmem:[#allocation2 + $0x28] sm:$0xff] %v2065
      %2098 = vst [vmem:[#allocation2 + $0x30] sm:$0xff] %v2066
      %2099 = vst [vmem:[#allocation2 + $0x38] sm:$0xff] %v2067
      %2100 = vst [vmem:[#allocation2 + $0x40] sm:$0xff] %v2068
      %2101 = vst [vmem:[#allocation2 + $0x48] sm:$0xff] %v2069
      %2102 = vst [vmem:[#allocation2 + $0x50] sm:$0xff] %v2070
      %2103 = vst [vmem:[#allocation2 + $0x58] sm:$0xff] %v2071
      %2104 = vst [vmem:[#allocation2 + $0x60] sm:$0xff] %v2072
      %2105 = vst [vmem:[#allocation2 + $0x68] sm:$0xff] %v2073
      %2106 = vst [vmem:[#allocation2 + $0x70] sm:$0xff] %v2074
      %2107 = vst [vmem:[#allocation2 + $0x78] sm:$0xff] %v2075
      %2108 = vst [vmem:[#allocation2 + $0x80] sm:$0xff] %v2076
      %2109 = vst [vmem:[#allocation2 + $0x88] sm:$0xff] %v2077
      %2110 = vst [vmem:[#allocation2 + $0x90] sm:$0xff] %v2078
      %2111 = vst [vmem:[#allocation2 + $0x98] sm:$0xff] %v2079
      %2112 = vst [vmem:[#allocation2 + $0xa0] sm:$0xff] %v2080
      %2113 = vst [vmem:[#allocation2 + $0xa8] sm:$0xff] %v2081
      %2114 = vst [vmem:[#allocation2 + $0xb0] sm:$0xff] %v2082
      %2115 = vst [vmem:[#allocation2 + $0xb8] sm:$0xff] %v2083
      %2116 = vst [vmem:[#allocation2 + $0xc0] sm:$0xff] %v2084
      %2117 = vst [vmem:[#allocation2 + $0xc8] sm:$0xff] %v2085
      %2118 = vst [vmem:[#allocation2 + $0xd0] sm:$0xff] %v2086
      %2119 = vst [vmem:[#allocation2 + $0xd8] sm:$0xff] %v2087
      %2120 = vst [vmem:[#allocation2 + $0xe0] sm:$0xff] %v2088
      %2121 = vst [vmem:[#allocation2 + $0xe8] sm:$0xff] %v2089
      %2122 = vst [vmem:[#allocation2 + $0xf0] sm:$0xff] %v2090
      %2123 = vst [vmem:[#allocation2 + $0xf8] sm:$0xff] %v2091
      %v2124 = vld [vmem:[%s1773] sm:$0xf]
      %v2125 = vld [vmem:[%s1773 + $0x4] sm:$0xf]
      %v2126 = vld [vmem:[%s1773 + $0x8] sm:$0x1]
      %v2127 = vld [vmem:[%s1773 + $0xc] sm:$0xf]
      %v2128 = vld [vmem:[%s1773 + $0x10] sm:$0xf]
      %v2129 = vld [vmem:[%s1773 + $0x14] sm:$0x1]
      %v2130 = vld [vmem:[%s1773 + $0x18] sm:$0xf]
      %v2131 = vld [vmem:[%s1773 + $0x1c] sm:$0xf]
      %v2132 = vld [vmem:[%s1773 + $0x20] sm:$0x1]
      %v2133 = vld [vmem:[%s1773 + $0x24] sm:$0xf]
      %v2134 = vld [vmem:[%s1773 + $0x28] sm:$0xf]
      %v2135 = vld [vmem:[%s1773 + $0x2c] sm:$0x1]
      %v2136 = vld [vmem:[%s1773 + $0x30] sm:$0xf]
      %v2137 = vld [vmem:[%s1773 + $0x34] sm:$0xf]
      %v2138 = vld [vmem:[%s1773 + $0x38] sm:$0x1]
      %v2139 = vld [vmem:[%s1773 + $0x3c] sm:$0xf]
      %v2140 = vld [vmem:[%s1773 + $0x40] sm:$0xf]
      %v2141 = vld [vmem:[%s1773 + $0x44] sm:$0x1]
      %v2142 = vld [vmem:[%s1773 + $0x48] sm:$0xf]
      %v2143 = vld [vmem:[%s1773 + $0x4c] sm:$0xf]
      %v2144 = vld [vmem:[%s1773 + $0x50] sm:$0x1]
      %v2145 = vld [vmem:[%s1773 + $0x54] sm:$0xf]
      %v2146 = vld [vmem:[%s1773 + $0x58] sm:$0xf]
      %v2147 = vld [vmem:[%s1773 + $0x5c] sm:$0x1]
      %v2148 = vld [vmem:[%s1773 + $0x60] sm:$0xf]
      %v2149 = vld [vmem:[%s1773 + $0x64] sm:$0xf]
      %v2150 = vld [vmem:[%s1773 + $0x68] sm:$0x1]
      %v2151 = vld [vmem:[%s1773 + $0x6c] sm:$0xf]
      %v2152 = vld [vmem:[%s1773 + $0x70] sm:$0xf]
      %v2153 = vld [vmem:[%s1773 + $0x74] sm:$0x1]
      %v2154 = vld [vmem:[%s1773 + $0x78] sm:$0xf]
      %v2155 = vld [vmem:[%s1773 + $0x7c] sm:$0xf]
      %v2156 = vld [vmem:[%s1773 + $0x80] sm:$0x1]
      %v2157 = vld [vmem:[%s1773 + $0x84] sm:$0xf]
      %v2158 = vld [vmem:[%s1773 + $0x88] sm:$0xf]
      %v2159 = vld [vmem:[%s1773 + $0x8c] sm:$0x1]
      %v2160 = vld [vmem:[%s1773 + $0x90] sm:$0xf]
      %v2161 = vld [vmem:[%s1773 + $0x94] sm:$0xf]
      %v2162 = vld [vmem:[%s1773 + $0x98] sm:$0x1]
      %v2163 = vld [vmem:[%s1773 + $0x9c] sm:$0xf]
      %v2164 = vld [vmem:[%s1773 + $0xa0] sm:$0xf]
      %v2165 = vld [vmem:[%s1773 + $0xa4] sm:$0x1]
      %v2166 = vld [vmem:[%s1773 + $0xa8] sm:$0xf]
      %v2167 = vld [vmem:[%s1773 + $0xac] sm:$0xf]
      %v2168 = vld [vmem:[%s1773 + $0xb0] sm:$0x1]
      %v2169 = vld [vmem:[%s1773 + $0xb4] sm:$0xf]
      %v2170 = vld [vmem:[%s1773 + $0xb8] sm:$0xf]
      %v2171 = vld [vmem:[%s1773 + $0xbc] sm:$0x1]
      %v2173 = vshrl.u32 %v2124, 16
      %v2175 = vrot.slane %v2173, 4
      %v2176 = vshll.u32 %v2124, 16
      %v2178 = vrot.slane %v2176, 5
      %v2179 = vor.u32 %v2175, %v2178
      %v2180 = vrot.slane %v2179, 4
      %v2182 = vshll.u32 %v2125, 16
      %v2184 = vrot.slane %v2182, 5
      %v2185 = vsel %vm605, %v2180, %v2184
      %v2186 = vshrl.u32 %v2125, 16
      %v2188 = vrot.slane %v2186, 4
      %v2189 = vor.u32 %v2188, %v2184
      %v2190 = vrot.slane %v2189, 4
      %v2192 = vshll.u32 %v2126, 16
      %v2194 = vrot.slane %v2192, 5
      %v2195 = vsel %vm605, %v2190, %v2194
      %v2197 = vshrl.u32 %v2127, 16
      %v2199 = vrot.slane %v2197, 4
      %v2200 = vshll.u32 %v2127, 16
      %v2202 = vrot.slane %v2200, 5
      %v2203 = vor.u32 %v2199, %v2202
      %v2204 = vrot.slane %v2203, 4
      %v2206 = vshll.u32 %v2128, 16
      %v2208 = vrot.slane %v2206, 5
      %v2209 = vsel %vm605, %v2204, %v2208
      %v2210 = vshrl.u32 %v2128, 16
      %v2212 = vrot.slane %v2210, 4
      %v2213 = vor.u32 %v2212, %v2208
      %v2214 = vrot.slane %v2213, 4
      %v2216 = vshll.u32 %v2129, 16
      %v2218 = vrot.slane %v2216, 5
      %v2219 = vsel %vm605, %v2214, %v2218
      %v2221 = vshrl.u32 %v2130, 16
      %v2223 = vrot.slane %v2221, 4
      %v2224 = vshll.u32 %v2130, 16
      %v2226 = vrot.slane %v2224, 5
      %v2227 = vor.u32 %v2223, %v2226
      %v2228 = vrot.slane %v2227, 4
      %v2230 = vshll.u32 %v2131, 16
      %v2232 = vrot.slane %v2230, 5
      %v2233 = vsel %vm605, %v2228, %v2232
      %v2234 = vshrl.u32 %v2131, 16
      %v2236 = vrot.slane %v2234, 4
      %v2237 = vor.u32 %v2236, %v2232
      %v2238 = vrot.slane %v2237, 4
      %v2240 = vshll.u32 %v2132, 16
      %v2242 = vrot.slane %v2240, 5
      %v2243 = vsel %vm605, %v2238, %v2242
      %v2245 = vshrl.u32 %v2133, 16
      %v2247 = vrot.slane %v2245, 4
      %v2248 = vshll.u32 %v2133, 16
      %v2250 = vrot.slane %v2248, 5
      %v2251 = vor.u32 %v2247, %v2250
      %v2252 = vrot.slane %v2251, 4
      %v2254 = vshll.u32 %v2134, 16
      %v2256 = vrot.slane %v2254, 5
      %v2257 = vsel %vm605, %v2252, %v2256
      %v2258 = vshrl.u32 %v2134, 16
      %v2260 = vrot.slane %v2258, 4
      %v2261 = vor.u32 %v2260, %v2256
      %v2262 = vrot.slane %v2261, 4
      %v2264 = vshll.u32 %v2135, 16
      %v2266 = vrot.slane %v2264, 5
      %v2267 = vsel %vm605, %v2262, %v2266
      %v2269 = vshrl.u32 %v2136, 16
      %v2271 = vrot.slane %v2269, 4
      %v2272 = vshll.u32 %v2136, 16
      %v2274 = vrot.slane %v2272, 5
      %v2275 = vor.u32 %v2271, %v2274
      %v2276 = vrot.slane %v2275, 4
      %v2278 = vshll.u32 %v2137, 16
      %v2280 = vrot.slane %v2278, 5
      %v2281 = vsel %vm605, %v2276, %v2280
      %v2282 = vshrl.u32 %v2137, 16
      %v2284 = vrot.slane %v2282, 4
      %v2285 = vor.u32 %v2284, %v2280
      %v2286 = vrot.slane %v2285, 4
      %v2288 = vshll.u32 %v2138, 16
      %v2290 = vrot.slane %v2288, 5
      %v2291 = vsel %vm605, %v2286, %v2290
      %v2293 = vshrl.u32 %v2139, 16
      %v2295 = vrot.slane %v2293, 4
      %v2296 = vshll.u32 %v2139, 16
      %v2298 = vrot.slane %v2296, 5
      %v2299 = vor.u32 %v2295, %v2298
      %v2300 = vrot.slane %v2299, 4
      %v2302 = vshll.u32 %v2140, 16
      %v2304 = vrot.slane %v2302, 5
      %v2305 = vsel %vm605, %v2300, %v2304
      %v2306 = vshrl.u32 %v2140, 16
      %v2308 = vrot.slane %v2306, 4
      %v2309 = vor.u32 %v2308, %v2304
      %v2310 = vrot.slane %v2309, 4
      %v2312 = vshll.u32 %v2141, 16
      %v2314 = vrot.slane %v2312, 5
      %v2315 = vsel %vm605, %v2310, %v2314
      %v2317 = vshrl.u32 %v2142, 16
      %v2319 = vrot.slane %v2317, 4
      %v2320 = vshll.u32 %v2142, 16
      %v2322 = vrot.slane %v2320, 5
      %v2323 = vor.u32 %v2319, %v2322
      %v2324 = vrot.slane %v2323, 4
      %v2326 = vshll.u32 %v2143, 16
      %v2328 = vrot.slane %v2326, 5
      %v2329 = vsel %vm605, %v2324, %v2328
      %v2330 = vshrl.u32 %v2143, 16
      %v2332 = vrot.slane %v2330, 4
      %v2333 = vor.u32 %v2332, %v2328
      %v2334 = vrot.slane %v2333, 4
      %v2336 = vshll.u32 %v2144, 16
      %v2338 = vrot.slane %v2336, 5
      %v2339 = vsel %vm605, %v2334, %v2338
      %v2341 = vshrl.u32 %v2145, 16
      %v2343 = vrot.slane %v2341, 4
      %v2344 = vshll.u32 %v2145, 16
      %v2346 = vrot.slane %v2344, 5
      %v2347 = vor.u32 %v2343, %v2346
      %v2348 = vrot.slane %v2347, 4
      %v2350 = vshll.u32 %v2146, 16
      %v2352 = vrot.slane %v2350, 5
      %v2353 = vsel %vm605, %v2348, %v2352
      %v2354 = vshrl.u32 %v2146, 16
      %v2356 = vrot.slane %v2354, 4
      %v2357 = vor.u32 %v2356, %v2352
      %v2358 = vrot.slane %v2357, 4
      %v2360 = vshll.u32 %v2147, 16
      %v2362 = vrot.slane %v2360, 5
      %v2363 = vsel %vm605, %v2358, %v2362
      %v2365 = vshrl.u32 %v2148, 16
      %v2367 = vrot.slane %v2365, 4
      %v2368 = vshll.u32 %v2148, 16
      %v2370 = vrot.slane %v2368, 5
      %v2371 = vor.u32 %v2367, %v2370
      %v2372 = vrot.slane %v2371, 4
      %v2374 = vshll.u32 %v2149, 16
      %v2376 = vrot.slane %v2374, 5
      %v2377 = vsel %vm605, %v2372, %v2376
      %v2378 = vshrl.u32 %v2149, 16
      %v2380 = vrot.slane %v2378, 4
      %v2381 = vor.u32 %v2380, %v2376
      %v2382 = vrot.slane %v2381, 4
      %v2384 = vshll.u32 %v2150, 16
      %v2386 = vrot.slane %v2384, 5
      %v2387 = vsel %vm605, %v2382, %v2386
      %v2389 = vshrl.u32 %v2151, 16
      %v2391 = vrot.slane %v2389, 4
      %v2392 = vshll.u32 %v2151, 16
      %v2394 = vrot.slane %v2392, 5
      %v2395 = vor.u32 %v2391, %v2394
      %v2396 = vrot.slane %v2395, 4
      %v2398 = vshll.u32 %v2152, 16
      %v2400 = vrot.slane %v2398, 5
      %v2401 = vsel %vm605, %v2396, %v2400
      %v2402 = vshrl.u32 %v2152, 16
      %v2404 = vrot.slane %v2402, 4
      %v2405 = vor.u32 %v2404, %v2400
      %v2406 = vrot.slane %v2405, 4
      %v2408 = vshll.u32 %v2153, 16
      %v2410 = vrot.slane %v2408, 5
      %v2411 = vsel %vm605, %v2406, %v2410
      %v2413 = vshrl.u32 %v2154, 16
      %v2415 = vrot.slane %v2413, 4
      %v2416 = vshll.u32 %v2154, 16
      %v2418 = vrot.slane %v2416, 5
      %v2419 = vor.u32 %v2415, %v2418
      %v2420 = vrot.slane %v2419, 4
      %v2422 = vshll.u32 %v2155, 16
      %v2424 = vrot.slane %v2422, 5
      %v2425 = vsel %vm605, %v2420, %v2424
      %v2426 = vshrl.u32 %v2155, 16
      %v2428 = vrot.slane %v2426, 4
      %v2429 = vor.u32 %v2428, %v2424
      %v2430 = vrot.slane %v2429, 4
      %v2432 = vshll.u32 %v2156, 16
      %v2434 = vrot.slane %v2432, 5
      %v2435 = vsel %vm605, %v2430, %v2434
      %v2437 = vshrl.u32 %v2157, 16
      %v2439 = vrot.slane %v2437, 4
      %v2440 = vshll.u32 %v2157, 16
      %v2442 = vrot.slane %v2440, 5
      %v2443 = vor.u32 %v2439, %v2442
      %v2444 = vrot.slane %v2443, 4
      %v2446 = vshll.u32 %v2158, 16
      %v2448 = vrot.slane %v2446, 5
      %v2449 = vsel %vm605, %v2444, %v2448
      %v2450 = vshrl.u32 %v2158, 16
      %v2452 = vrot.slane %v2450, 4
      %v2453 = vor.u32 %v2452, %v2448
      %v2454 = vrot.slane %v2453, 4
      %v2456 = vshll.u32 %v2159, 16
      %v2458 = vrot.slane %v2456, 5
      %v2459 = vsel %vm605, %v2454, %v2458
      %v2461 = vshrl.u32 %v2160, 16
      %v2463 = vrot.slane %v2461, 4
      %v2464 = vshll.u32 %v2160, 16
      %v2466 = vrot.slane %v2464, 5
      %v2467 = vor.u32 %v2463, %v2466
      %v2468 = vrot.slane %v2467, 4
      %v2470 = vshll.u32 %v2161, 16
      %v2472 = vrot.slane %v2470, 5
      %v2473 = vsel %vm605, %v2468, %v2472
      %v2474 = vshrl.u32 %v2161, 16
      %v2476 = vrot.slane %v2474, 4
      %v2477 = vor.u32 %v2476, %v2472
      %v2478 = vrot.slane %v2477, 4
      %v2480 = vshll.u32 %v2162, 16
      %v2482 = vrot.slane %v2480, 5
      %v2483 = vsel %vm605, %v2478, %v2482
      %v2485 = vshrl.u32 %v2163, 16
      %v2487 = vrot.slane %v2485, 4
      %v2488 = vshll.u32 %v2163, 16
      %v2490 = vrot.slane %v2488, 5
      %v2491 = vor.u32 %v2487, %v2490
      %v2492 = vrot.slane %v2491, 4
      %v2494 = vshll.u32 %v2164, 16
      %v2496 = vrot.slane %v2494, 5
      %v2497 = vsel %vm605, %v2492, %v2496
      %v2498 = vshrl.u32 %v2164, 16
      %v2500 = vrot.slane %v2498, 4
      %v2501 = vor.u32 %v2500, %v2496
      %v2502 = vrot.slane %v2501, 4
      %v2504 = vshll.u32 %v2165, 16
      %v2506 = vrot.slane %v2504, 5
      %v2507 = vsel %vm605, %v2502, %v2506
      %v2509 = vshrl.u32 %v2166, 16
      %v2511 = vrot.slane %v2509, 4
      %v2512 = vshll.u32 %v2166, 16
      %v2514 = vrot.slane %v2512, 5
      %v2515 = vor.u32 %v2511, %v2514
      %v2516 = vrot.slane %v2515, 4
      %v2518 = vshll.u32 %v2167, 16
      %v2520 = vrot.slane %v2518, 5
      %v2521 = vsel %vm605, %v2516, %v2520
      %v2522 = vshrl.u32 %v2167, 16
      %v2524 = vrot.slane %v2522, 4
      %v2525 = vor.u32 %v2524, %v2520
      %v2526 = vrot.slane %v2525, 4
      %v2528 = vshll.u32 %v2168, 16
      %v2530 = vrot.slane %v2528, 5
      %v2531 = vsel %vm605, %v2526, %v2530
      %v2533 = vshrl.u32 %v2169, 16
      %v2535 = vrot.slane %v2533, 4
      %v2536 = vshll.u32 %v2169, 16
      %v2538 = vrot.slane %v2536, 5
      %v2539 = vor.u32 %v2535, %v2538
      %v2540 = vrot.slane %v2539, 4
      %v2542 = vshll.u32 %v2170, 16
      %v2544 = vrot.slane %v2542, 5
      %v2545 = vsel %vm605, %v2540, %v2544
      %v2546 = vshrl.u32 %v2170, 16
      %v2548 = vrot.slane %v2546, 4
      %v2549 = vor.u32 %v2548, %v2544
      %v2550 = vrot.slane %v2549, 4
      %v2552 = vshll.u32 %v2171, 16
      %v2554 = vrot.slane %v2552, 5
      %v2555 = vsel %vm605, %v2550, %v2554
      %v2556 = vld [vmem:[#allocation2] sm:$0xff]
      %v2557 = vld [vmem:[#allocation2 + $0x8] sm:$0xff]
      %v2558 = vld [vmem:[#allocation2 + $0x10] sm:$0xff]
      %v2559 = vld [vmem:[#allocation2 + $0x18] sm:$0xff]
      %v2560 = vld [vmem:[#allocation2 + $0x20] sm:$0xff]
      %v2561 = vld [vmem:[#allocation2 + $0x28] sm:$0xff]
      %v2562 = vld [vmem:[#allocation2 + $0x30] sm:$0xff]
      %v2563 = vld [vmem:[#allocation2 + $0x38] sm:$0xff]
      %v2564 = vld [vmem:[#allocation2 + $0x40] sm:$0xff]
      %v2565 = vld [vmem:[#allocation2 + $0x48] sm:$0xff]
      %v2566 = vld [vmem:[#allocation2 + $0x50] sm:$0xff]
      %v2567 = vld [vmem:[#allocation2 + $0x58] sm:$0xff]
      %v2568 = vld [vmem:[#allocation2 + $0x60] sm:$0xff]
      %v2569 = vld [vmem:[#allocation2 + $0x68] sm:$0xff]
      %v2570 = vld [vmem:[#allocation2 + $0x70] sm:$0xff]
      %v2571 = vld [vmem:[#allocation2 + $0x78] sm:$0xff]
      %v2572 = vld [vmem:[#allocation2 + $0x80] sm:$0xff]
      %v2573 = vld [vmem:[#allocation2 + $0x88] sm:$0xff]
      %v2574 = vld [vmem:[#allocation2 + $0x90] sm:$0xff]
      %v2575 = vld [vmem:[#allocation2 + $0x98] sm:$0xff]
      %v2576 = vld [vmem:[#allocation2 + $0xa0] sm:$0xff]
      %v2577 = vld [vmem:[#allocation2 + $0xa8] sm:$0xff]
      %v2578 = vld [vmem:[#allocation2 + $0xb0] sm:$0xff]
      %v2579 = vld [vmem:[#allocation2 + $0xb8] sm:$0xff]
      %v2580 = vld [vmem:[#allocation2 + $0xc0] sm:$0xff]
      %v2581 = vld [vmem:[#allocation2 + $0xc8] sm:$0xff]
      %v2582 = vld [vmem:[#allocation2 + $0xd0] sm:$0xff]
      %v2583 = vld [vmem:[#allocation2 + $0xd8] sm:$0xff]
      %v2584 = vld [vmem:[#allocation2 + $0xe0] sm:$0xff]
      %v2585 = vld [vmem:[#allocation2 + $0xe8] sm:$0xff]
      %v2586 = vld [vmem:[#allocation2 + $0xf0] sm:$0xff]
      %v2587 = vld [vmem:[#allocation2 + $0xf8] sm:$0xff]
      %s2588 = scalar_lea.vmem %s1, 8
      %v2589 = vld [vmem:[%s2588] sm:$0x3]
      %v2590 = vunpack.c.l.b16 %v2185
      %v2591 = vunpack.c.l.b16 %v2195
      %v2592 = vunpack.c.l.b16 %v2209
      %v2593 = vunpack.c.l.b16 %v2219
      %v2594 = vunpack.c.l.b16 %v2233
      %v2595 = vunpack.c.l.b16 %v2243
      %v2596 = vunpack.c.l.b16 %v2257
      %v2597 = vunpack.c.l.b16 %v2267
      %v2598 = vunpack.c.l.b16 %v2281
      %v2599 = vunpack.c.l.b16 %v2291
      %v2600 = vunpack.c.l.b16 %v2305
      %v2601 = vunpack.c.l.b16 %v2315
      %v2602 = vunpack.c.l.b16 %v2329
      %v2603 = vunpack.c.l.b16 %v2339
      %v2604 = vunpack.c.l.b16 %v2353
      %v2605 = vunpack.c.l.b16 %v2363
      %v2606 = vunpack.c.l.b16 %v2377
      %v2607 = vunpack.c.l.b16 %v2387
      %v2608 = vunpack.c.l.b16 %v2401
      %v2609 = vunpack.c.l.b16 %v2411
      %v2610 = vunpack.c.l.b16 %v2425
      %v2611 = vunpack.c.l.b16 %v2435
      %v2612 = vunpack.c.l.b16 %v2449
      %v2613 = vunpack.c.l.b16 %v2459
      %v2614 = vunpack.c.l.b16 %v2473
      %v2615 = vunpack.c.l.b16 %v2483
      %v2616 = vunpack.c.l.b16 %v2497
      %v2617 = vunpack.c.l.b16 %v2507
      %v2618 = vunpack.c.l.b16 %v2521
      %v2619 = vunpack.c.l.b16 %v2531
      %v2620 = vunpack.c.l.b16 %v2545
      %v2621 = vunpack.c.l.b16 %v2555
      %v2622 = vpack.c.b16 %v2591, %v2590
      %v2623 = vpack.c.b16 %v2593, %v2592
      %v2624 = vpack.c.b16 %v2595, %v2594
      %v2625 = vpack.c.b16 %v2597, %v2596
      %v2626 = vpack.c.b16 %v2599, %v2598
      %v2627 = vpack.c.b16 %v2601, %v2600
      %v2628 = vpack.c.b16 %v2603, %v2602
      %v2629 = vpack.c.b16 %v2605, %v2604
      %v2630 = vpack.c.b16 %v2607, %v2606
      %v2631 = vpack.c.b16 %v2609, %v2608
      %v2632 = vpack.c.b16 %v2611, %v2610
      %v2633 = vpack.c.b16 %v2613, %v2612
      %v2634 = vpack.c.b16 %v2615, %v2614
      %v2635 = vpack.c.b16 %v2617, %v2616
      %v2636 = vpack.c.b16 %v2619, %v2618
      %v2637 = vpack.c.b16 %v2621, %v2620
      %v2639 = vsel %vm349, %v2622, 0
      %v2642 = vsel %vm349, %v2623, 0
      %v2645 = vsel %vm349, %v2624, 0
      %v2648 = vsel %vm349, %v2625, 0
      %v2651 = vsel %vm349, %v2626, 0
      %v2654 = vsel %vm349, %v2627, 0
      %v2657 = vsel %vm349, %v2628, 0
      %v2660 = vsel %vm349, %v2629, 0
      %v2663 = vsel %vm349, %v2630, 0
      %v2666 = vsel %vm349, %v2631, 0
      %v2669 = vsel %vm349, %v2632, 0
      %v2672 = vsel %vm349, %v2633, 0
      %v2675 = vsel %vm349, %v2634, 0
      %v2678 = vsel %vm349, %v2635, 0
      %v2681 = vsel %vm349, %v2636, 0
      %v2684 = vsel %vm349, %v2637, 0
      %v2687 = vsel %vm398, %v2589, 0
      %2689 = vmatpush.bf16.msra.mxu0 0
      %2690 = vmatpush.bf16.msra.mxu0 0
      %2691 = vmatpush.bf16.msra.mxu0 0
      %2692 = vmatpush.bf16.msra.mxu0 0
      %2693 = vmatpush.bf16.msra.mxu0 0
      %2694 = vmatpush.bf16.msra.mxu0 0
      %2695 = vmatpush.bf16.msra.mxu0 0
      %2696 = vmatpush.bf16.msra.mxu0 %v2687
      %2697 = vmatmul.bf16.gmra.mxu0 %v2639
      %v2698 = vpop.f32.mrf.mxu0
      %v2699 = vadd.f32 0.0, %v2698
      %v2700 = vpop.f32.mrf.mxu0
      %v2701 = vadd.f32 0.0, %v2700
      %2702 = vmatmul.bf16.gmra.mxu0 %v2642
      %v2703 = vpop.f32.mrf.mxu0
      %v2704 = vadd.f32 0.0, %v2703
      %v2705 = vpop.f32.mrf.mxu0
      %v2706 = vadd.f32 0.0, %v2705
      %2707 = vmatmul.bf16.gmra.mxu0 %v2645
      %v2708 = vpop.f32.mrf.mxu0
      %v2709 = vadd.f32 0.0, %v2708
      %v2710 = vpop.f32.mrf.mxu0
      %v2711 = vadd.f32 0.0, %v2710
      %2712 = vmatmul.bf16.gmra.mxu0 %v2648
      %v2713 = vpop.f32.mrf.mxu0
      %v2714 = vadd.f32 0.0, %v2713
      %v2715 = vpop.f32.mrf.mxu0
      %v2716 = vadd.f32 0.0, %v2715
      %2717 = vmatmul.bf16.gmra.mxu0 %v2651
      %v2718 = vpop.f32.mrf.mxu0
      %v2719 = vadd.f32 0.0, %v2718
      %v2720 = vpop.f32.mrf.mxu0
      %v2721 = vadd.f32 0.0, %v2720
      %2722 = vmatmul.bf16.gmra.mxu0 %v2654
      %v2723 = vpop.f32.mrf.mxu0
      %v2724 = vadd.f32 0.0, %v2723
      %v2725 = vpop.f32.mrf.mxu0
      %v2726 = vadd.f32 0.0, %v2725
      %2727 = vmatmul.bf16.gmra.mxu0 %v2657
      %v2728 = vpop.f32.mrf.mxu0
      %v2729 = vadd.f32 0.0, %v2728
      %v2730 = vpop.f32.mrf.mxu0
      %v2731 = vadd.f32 0.0, %v2730
      %2732 = vmatmul.bf16.gmra.mxu0 %v2660
      %v2733 = vpop.f32.mrf.mxu0
      %v2734 = vadd.f32 0.0, %v2733
      %v2735 = vpop.f32.mrf.mxu0
      %v2736 = vadd.f32 0.0, %v2735
      %2737 = vmatmul.bf16.gmra.mxu0 %v2663
      %v2738 = vpop.f32.mrf.mxu0
      %v2739 = vadd.f32 0.0, %v2738
      %v2740 = vpop.f32.mrf.mxu0
      %v2741 = vadd.f32 0.0, %v2740
      %2742 = vmatmul.bf16.gmra.mxu0 %v2666
      %v2743 = vpop.f32.mrf.mxu0
      %v2744 = vadd.f32 0.0, %v2743
      %v2745 = vpop.f32.mrf.mxu0
      %v2746 = vadd.f32 0.0, %v2745
      %2747 = vmatmul.bf16.gmra.mxu0 %v2669
      %v2748 = vpop.f32.mrf.mxu0
      %v2749 = vadd.f32 0.0, %v2748
      %v2750 = vpop.f32.mrf.mxu0
      %v2751 = vadd.f32 0.0, %v2750
      %2752 = vmatmul.bf16.gmra.mxu0 %v2672
      %v2753 = vpop.f32.mrf.mxu0
      %v2754 = vadd.f32 0.0, %v2753
      %v2755 = vpop.f32.mrf.mxu0
      %v2756 = vadd.f32 0.0, %v2755
      %2757 = vmatmul.bf16.gmra.mxu0 %v2675
      %v2758 = vpop.f32.mrf.mxu0
      %v2759 = vadd.f32 0.0, %v2758
      %v2760 = vpop.f32.mrf.mxu0
      %v2761 = vadd.f32 0.0, %v2760
      %2762 = vmatmul.bf16.gmra.mxu0 %v2678
      %v2763 = vpop.f32.mrf.mxu0
      %v2764 = vadd.f32 0.0, %v2763
      %v2765 = vpop.f32.mrf.mxu0
      %v2766 = vadd.f32 0.0, %v2765
      %2767 = vmatmul.bf16.gmra.mxu0 %v2681
      %v2768 = vpop.f32.mrf.mxu0
      %v2769 = vadd.f32 0.0, %v2768
      %v2770 = vpop.f32.mrf.mxu0
      %v2771 = vadd.f32 0.0, %v2770
      %2772 = vmatmul.bf16.gmra.mxu0 %v2684
      %v2773 = vpop.f32.mrf.mxu0
      %v2774 = vadd.f32 0.0, %v2773
      %v2775 = vpop.f32.mrf.mxu0
      %v2776 = vadd.f32 0.0, %v2775
      %2777 = vdwg.mxu0
      %v2778 = vadd.f32 %v2556, %v2699
      %v2779 = vadd.f32 %v2557, %v2701
      %v2780 = vadd.f32 %v2558, %v2704
      %v2781 = vadd.f32 %v2559, %v2706
      %v2782 = vadd.f32 %v2560, %v2709
      %v2783 = vadd.f32 %v2561, %v2711
      %v2784 = vadd.f32 %v2562, %v2714
      %v2785 = vadd.f32 %v2563, %v2716
      %v2786 = vadd.f32 %v2564, %v2719
      %v2787 = vadd.f32 %v2565, %v2721
      %v2788 = vadd.f32 %v2566, %v2724
      %v2789 = vadd.f32 %v2567, %v2726
      %v2790 = vadd.f32 %v2568, %v2729
      %v2791 = vadd.f32 %v2569, %v2731
      %v2792 = vadd.f32 %v2570, %v2734
      %v2793 = vadd.f32 %v2571, %v2736
      %v2794 = vadd.f32 %v2572, %v2739
      %v2795 = vadd.f32 %v2573, %v2741
      %v2796 = vadd.f32 %v2574, %v2744
      %v2797 = vadd.f32 %v2575, %v2746
      %v2798 = vadd.f32 %v2576, %v2749
      %v2799 = vadd.f32 %v2577, %v2751
      %v2800 = vadd.f32 %v2578, %v2754
      %v2801 = vadd.f32 %v2579, %v2756
      %v2802 = vadd.f32 %v2580, %v2759
      %v2803 = vadd.f32 %v2581, %v2761
      %v2804 = vadd.f32 %v2582, %v2764
      %v2805 = vadd.f32 %v2583, %v2766
      %v2806 = vadd.f32 %v2584, %v2769
      %v2807 = vadd.f32 %v2585, %v2771
      %v2808 = vadd.f32 %v2586, %v2774
      %v2809 = vadd.f32 %v2587, %v2776
      %2810 = vst [vmem:[#allocation2] sm:$0xff] %v2778
      %2811 = vst [vmem:[#allocation2 + $0x8] sm:$0xff] %v2779
      %2812 = vst [vmem:[#allocation2 + $0x10] sm:$0xff] %v2780
      %2813 = vst [vmem:[#allocation2 + $0x18] sm:$0xff] %v2781
      %2814 = vst [vmem:[#allocation2 + $0x20] sm:$0xff] %v2782
      %2815 = vst [vmem:[#allocation2 + $0x28] sm:$0xff] %v2783
      %2816 = vst [vmem:[#allocation2 + $0x30] sm:$0xff] %v2784
      %2817 = vst [vmem:[#allocation2 + $0x38] sm:$0xff] %v2785
      %2818 = vst [vmem:[#allocation2 + $0x40] sm:$0xff] %v2786
      %2819 = vst [vmem:[#allocation2 + $0x48] sm:$0xff] %v2787
      %2820 = vst [vmem:[#allocation2 + $0x50] sm:$0xff] %v2788
      %2821 = vst [vmem:[#allocation2 + $0x58] sm:$0xff] %v2789
      %2822 = vst [vmem:[#allocation2 + $0x60] sm:$0xff] %v2790
      %2823 = vst [vmem:[#allocation2 + $0x68] sm:$0xff] %v2791
      %2824 = vst [vmem:[#allocation2 + $0x70] sm:$0xff] %v2792
      %2825 = vst [vmem:[#allocation2 + $0x78] sm:$0xff] %v2793
      %2826 = vst [vmem:[#allocation2 + $0x80] sm:$0xff] %v2794
      %2827 = vst [vmem:[#allocation2 + $0x88] sm:$0xff] %v2795
      %2828 = vst [vmem:[#allocation2 + $0x90] sm:$0xff] %v2796
      %2829 = vst [vmem:[#allocation2 + $0x98] sm:$0xff] %v2797
      %2830 = vst [vmem:[#allocation2 + $0xa0] sm:$0xff] %v2798
      %2831 = vst [vmem:[#allocation2 + $0xa8] sm:$0xff] %v2799
      %2832 = vst [vmem:[#allocation2 + $0xb0] sm:$0xff] %v2800
      %2833 = vst [vmem:[#allocation2 + $0xb8] sm:$0xff] %v2801
      %2834 = vst [vmem:[#allocation2 + $0xc0] sm:$0xff] %v2802
      %2835 = vst [vmem:[#allocation2 + $0xc8] sm:$0xff] %v2803
      %2836 = vst [vmem:[#allocation2 + $0xd0] sm:$0xff] %v2804
      %2837 = vst [vmem:[#allocation2 + $0xd8] sm:$0xff] %v2805
      %2838 = vst [vmem:[#allocation2 + $0xe0] sm:$0xff] %v2806
      %2839 = vst [vmem:[#allocation2 + $0xe8] sm:$0xff] %v2807
      %2840 = vst [vmem:[#allocation2 + $0xf0] sm:$0xff] %v2808
      %2841 = vst [vmem:[#allocation2 + $0xf8] sm:$0xff] %v2809
      %v2842 = vld [vmem:[%s1773] sm:$0xe]
      %v2843 = vld [vmem:[%s1773 + $0x4] sm:$0xf]
      %v2844 = vld [vmem:[%s1773 + $0x8] sm:$0x1]
      %v2845 = vld [vmem:[%s1773 + $0xc] sm:$0xe]
      %v2846 = vld [vmem:[%s1773 + $0x10] sm:$0xf]
      %v2847 = vld [vmem:[%s1773 + $0x14] sm:$0x1]
      %v2848 = vld [vmem:[%s1773 + $0x18] sm:$0xe]
      %v2849 = vld [vmem:[%s1773 + $0x1c] sm:$0xf]
      %v2850 = vld [vmem:[%s1773 + $0x20] sm:$0x1]
      %v2851 = vld [vmem:[%s1773 + $0x24] sm:$0xe]
      %v2852 = vld [vmem:[%s1773 + $0x28] sm:$0xf]
      %v2853 = vld [vmem:[%s1773 + $0x2c] sm:$0x1]
      %v2854 = vld [vmem:[%s1773 + $0x30] sm:$0xe]
      %v2855 = vld [vmem:[%s1773 + $0x34] sm:$0xf]
      %v2856 = vld [vmem:[%s1773 + $0x38] sm:$0x1]
      %v2857 = vld [vmem:[%s1773 + $0x3c] sm:$0xe]
      %v2858 = vld [vmem:[%s1773 + $0x40] sm:$0xf]
      %v2859 = vld [vmem:[%s1773 + $0x44] sm:$0x1]
      %v2860 = vld [vmem:[%s1773 + $0x48] sm:$0xe]
      %v2861 = vld [vmem:[%s1773 + $0x4c] sm:$0xf]
      %v2862 = vld [vmem:[%s1773 + $0x50] sm:$0x1]
      %v2863 = vld [vmem:[%s1773 + $0x54] sm:$0xe]
      %v2864 = vld [vmem:[%s1773 + $0x58] sm:$0xf]
      %v2865 = vld [vmem:[%s1773 + $0x5c] sm:$0x1]
      %v2866 = vld [vmem:[%s1773 + $0x60] sm:$0xe]
      %v2867 = vld [vmem:[%s1773 + $0x64] sm:$0xf]
      %v2868 = vld [vmem:[%s1773 + $0x68] sm:$0x1]
      %v2869 = vld [vmem:[%s1773 + $0x6c] sm:$0xe]
      %v2870 = vld [vmem:[%s1773 + $0x70] sm:$0xf]
      %v2871 = vld [vmem:[%s1773 + $0x74] sm:$0x1]
      %v2872 = vld [vmem:[%s1773 + $0x78] sm:$0xe]
      %v2873 = vld [vmem:[%s1773 + $0x7c] sm:$0xf]
      %v2874 = vld [vmem:[%s1773 + $0x80] sm:$0x1]
      %v2875 = vld [vmem:[%s1773 + $0x84] sm:$0xe]
      %v2876 = vld [vmem:[%s1773 + $0x88] sm:$0xf]
      %v2877 = vld [vmem:[%s1773 + $0x8c] sm:$0x1]
      %v2878 = vld [vmem:[%s1773 + $0x90] sm:$0xe]
      %v2879 = vld [vmem:[%s1773 + $0x94] sm:$0xf]
      %v2880 = vld [vmem:[%s1773 + $0x98] sm:$0x1]
      %v2881 = vld [vmem:[%s1773 + $0x9c] sm:$0xe]
      %v2882 = vld [vmem:[%s1773 + $0xa0] sm:$0xf]
      %v2883 = vld [vmem:[%s1773 + $0xa4] sm:$0x1]
      %v2884 = vld [vmem:[%s1773 + $0xa8] sm:$0xe]
      %v2885 = vld [vmem:[%s1773 + $0xac] sm:$0xf]
      %v2886 = vld [vmem:[%s1773 + $0xb0] sm:$0x1]
      %v2887 = vld [vmem:[%s1773 + $0xb4] sm:$0xe]
      %v2888 = vld [vmem:[%s1773 + $0xb8] sm:$0xf]
      %v2889 = vld [vmem:[%s1773 + $0xbc] sm:$0x1]
      %v2938 = vrot.slane %v2842, 5
      %v2939 = vrot.slane %v2938, 4
      %v2940 = vrot.slane %v2843, 5
      %v2941 = vsel %vm1374, %v2939, %v2940
      %v2942 = vrot.slane %v2940, 4
      %v2943 = vrot.slane %v2844, 5
      %v2944 = vsel %vm1374, %v2942, %v2943
      %v2945 = vrot.slane %v2845, 5
      %v2946 = vrot.slane %v2945, 4
      %v2947 = vrot.slane %v2846, 5
      %v2948 = vsel %vm1374, %v2946, %v2947
      %v2949 = vrot.slane %v2947, 4
      %v2950 = vrot.slane %v2847, 5
      %v2951 = vsel %vm1374, %v2949, %v2950
      %v2952 = vrot.slane %v2848, 5
      %v2953 = vrot.slane %v2952, 4
      %v2954 = vrot.slane %v2849, 5
      %v2955 = vsel %vm1374, %v2953, %v2954
      %v2956 = vrot.slane %v2954, 4
      %v2957 = vrot.slane %v2850, 5
      %v2958 = vsel %vm1374, %v2956, %v2957
      %v2959 = vrot.slane %v2851, 5
      %v2960 = vrot.slane %v2959, 4
      %v2961 = vrot.slane %v2852, 5
      %v2962 = vsel %vm1374, %v2960, %v2961
      %v2963 = vrot.slane %v2961, 4
      %v2964 = vrot.slane %v2853, 5
      %v2965 = vsel %vm1374, %v2963, %v2964
      %v2966 = vrot.slane %v2854, 5
      %v2967 = vrot.slane %v2966, 4
      %v2968 = vrot.slane %v2855, 5
      %v2969 = vsel %vm1374, %v2967, %v2968
      %v2970 = vrot.slane %v2968, 4
      %v2971 = vrot.slane %v2856, 5
      %v2972 = vsel %vm1374, %v2970, %v2971
      %v2973 = vrot.slane %v2857, 5
      %v2974 = vrot.slane %v2973, 4
      %v2975 = vrot.slane %v2858, 5
      %v2976 = vsel %vm1374, %v2974, %v2975
      %v2977 = vrot.slane %v2975, 4
      %v2978 = vrot.slane %v2859, 5
      %v2979 = vsel %vm1374, %v2977, %v2978
      %v2980 = vrot.slane %v2860, 5
      %v2981 = vrot.slane %v2980, 4
      %v2982 = vrot.slane %v2861, 5
      %v2983 = vsel %vm1374, %v2981, %v2982
      %v2984 = vrot.slane %v2982, 4
      %v2985 = vrot.slane %v2862, 5
      %v2986 = vsel %vm1374, %v2984, %v2985
      %v2987 = vrot.slane %v2863, 5
      %v2988 = vrot.slane %v2987, 4
      %v2989 = vrot.slane %v2864, 5
      %v2990 = vsel %vm1374, %v2988, %v2989
      %v2991 = vrot.slane %v2989, 4
      %v2992 = vrot.slane %v2865, 5
      %v2993 = vsel %vm1374, %v2991, %v2992
      %v2994 = vrot.slane %v2866, 5
      %v2995 = vrot.slane %v2994, 4
      %v2996 = vrot.slane %v2867, 5
      %v2997 = vsel %vm1374, %v2995, %v2996
      %v2998 = vrot.slane %v2996, 4
      %v2999 = vrot.slane %v2868, 5
      %v3000 = vsel %vm1374, %v2998, %v2999
      %v3001 = vrot.slane %v2869, 5
      %v3002 = vrot.slane %v3001, 4
      %v3003 = vrot.slane %v2870, 5
      %v3004 = vsel %vm1374, %v3002, %v3003
      %v3005 = vrot.slane %v3003, 4
      %v3006 = vrot.slane %v2871, 5
      %v3007 = vsel %vm1374, %v3005, %v3006
      %v3008 = vrot.slane %v2872, 5
      %v3009 = vrot.slane %v3008, 4
      %v3010 = vrot.slane %v2873, 5
      %v3011 = vsel %vm1374, %v3009, %v3010
      %v3012 = vrot.slane %v3010, 4
      %v3013 = vrot.slane %v2874, 5
      %v3014 = vsel %vm1374, %v3012, %v3013
      %v3015 = vrot.slane %v2875, 5
      %v3016 = vrot.slane %v3015, 4
      %v3017 = vrot.slane %v2876, 5
      %v3018 = vsel %vm1374, %v3016, %v3017
      %v3019 = vrot.slane %v3017, 4
      %v3020 = vrot.slane %v2877, 5
      %v3021 = vsel %vm1374, %v3019, %v3020
      %v3022 = vrot.slane %v2878, 5
      %v3023 = vrot.slane %v3022, 4
      %v3024 = vrot.slane %v2879, 5
      %v3025 = vsel %vm1374, %v3023, %v3024
      %v3026 = vrot.slane %v3024, 4
      %v3027 = vrot.slane %v2880, 5
      %v3028 = vsel %vm1374, %v3026, %v3027
      %v3029 = vrot.slane %v2881, 5
      %v3030 = vrot.slane %v3029, 4
      %v3031 = vrot.slane %v2882, 5
      %v3032 = vsel %vm1374, %v3030, %v3031
      %v3033 = vrot.slane %v3031, 4
      %v3034 = vrot.slane %v2883, 5
      %v3035 = vsel %vm1374, %v3033, %v3034
      %v3036 = vrot.slane %v2884, 5
      %v3037 = vrot.slane %v3036, 4
      %v3038 = vrot.slane %v2885, 5
      %v3039 = vsel %vm1374, %v3037, %v3038
      %v3040 = vrot.slane %v3038, 4
      %v3041 = vrot.slane %v2886, 5
      %v3042 = vsel %vm1374, %v3040, %v3041
      %v3043 = vrot.slane %v2887, 5
      %v3044 = vrot.slane %v3043, 4
      %v3045 = vrot.slane %v2888, 5
      %v3046 = vsel %vm1374, %v3044, %v3045
      %v3047 = vrot.slane %v3045, 4
      %v3048 = vrot.slane %v2889, 5
      %v3049 = vsel %vm1374, %v3047, %v3048
      %v3050 = vld [vmem:[#allocation2] sm:$0xff]
      %v3051 = vld [vmem:[#allocation2 + $0x8] sm:$0xff]
      %v3052 = vld [vmem:[#allocation2 + $0x10] sm:$0xff]
      %v3053 = vld [vmem:[#allocation2 + $0x18] sm:$0xff]
      %v3054 = vld [vmem:[#allocation2 + $0x20] sm:$0xff]
      %v3055 = vld [vmem:[#allocation2 + $0x28] sm:$0xff]
      %v3056 = vld [vmem:[#allocation2 + $0x30] sm:$0xff]
      %v3057 = vld [vmem:[#allocation2 + $0x38] sm:$0xff]
      %v3058 = vld [vmem:[#allocation2 + $0x40] sm:$0xff]
      %v3059 = vld [vmem:[#allocation2 + $0x48] sm:$0xff]
      %v3060 = vld [vmem:[#allocation2 + $0x50] sm:$0xff]
      %v3061 = vld [vmem:[#allocation2 + $0x58] sm:$0xff]
      %v3062 = vld [vmem:[#allocation2 + $0x60] sm:$0xff]
      %v3063 = vld [vmem:[#allocation2 + $0x68] sm:$0xff]
      %v3064 = vld [vmem:[#allocation2 + $0x70] sm:$0xff]
      %v3065 = vld [vmem:[#allocation2 + $0x78] sm:$0xff]
      %v3066 = vld [vmem:[#allocation2 + $0x80] sm:$0xff]
      %v3067 = vld [vmem:[#allocation2 + $0x88] sm:$0xff]
      %v3068 = vld [vmem:[#allocation2 + $0x90] sm:$0xff]
      %v3069 = vld [vmem:[#allocation2 + $0x98] sm:$0xff]
      %v3070 = vld [vmem:[#allocation2 + $0xa0] sm:$0xff]
      %v3071 = vld [vmem:[#allocation2 + $0xa8] sm:$0xff]
      %v3072 = vld [vmem:[#allocation2 + $0xb0] sm:$0xff]
      %v3073 = vld [vmem:[#allocation2 + $0xb8] sm:$0xff]
      %v3074 = vld [vmem:[#allocation2 + $0xc0] sm:$0xff]
      %v3075 = vld [vmem:[#allocation2 + $0xc8] sm:$0xff]
      %v3076 = vld [vmem:[#allocation2 + $0xd0] sm:$0xff]
      %v3077 = vld [vmem:[#allocation2 + $0xd8] sm:$0xff]
      %v3078 = vld [vmem:[#allocation2 + $0xe0] sm:$0xff]
      %v3079 = vld [vmem:[#allocation2 + $0xe8] sm:$0xff]
      %v3080 = vld [vmem:[#allocation2 + $0xf0] sm:$0xff]
      %v3081 = vld [vmem:[#allocation2 + $0xf8] sm:$0xff]
      %s3082 = scalar_lea.vmem %s1, 10
      %v3083 = vld [vmem:[%s3082] sm:$0x3]
      %v3084 = vunpack.c.l.b16 %v2941
      %v3085 = vunpack.c.l.b16 %v2944
      %v3086 = vunpack.c.l.b16 %v2948
      %v3087 = vunpack.c.l.b16 %v2951
      %v3088 = vunpack.c.l.b16 %v2955
      %v3089 = vunpack.c.l.b16 %v2958
      %v3090 = vunpack.c.l.b16 %v2962
      %v3091 = vunpack.c.l.b16 %v2965
      %v3092 = vunpack.c.l.b16 %v2969
      %v3093 = vunpack.c.l.b16 %v2972
      %v3094 = vunpack.c.l.b16 %v2976
      %v3095 = vunpack.c.l.b16 %v2979
      %v3096 = vunpack.c.l.b16 %v2983
      %v3097 = vunpack.c.l.b16 %v2986
      %v3098 = vunpack.c.l.b16 %v2990
      %v3099 = vunpack.c.l.b16 %v2993
      %v3100 = vunpack.c.l.b16 %v2997
      %v3101 = vunpack.c.l.b16 %v3000
      %v3102 = vunpack.c.l.b16 %v3004
      %v3103 = vunpack.c.l.b16 %v3007
      %v3104 = vunpack.c.l.b16 %v3011
      %v3105 = vunpack.c.l.b16 %v3014
      %v3106 = vunpack.c.l.b16 %v3018
      %v3107 = vunpack.c.l.b16 %v3021
      %v3108 = vunpack.c.l.b16 %v3025
      %v3109 = vunpack.c.l.b16 %v3028
      %v3110 = vunpack.c.l.b16 %v3032
      %v3111 = vunpack.c.l.b16 %v3035
      %v3112 = vunpack.c.l.b16 %v3039
      %v3113 = vunpack.c.l.b16 %v3042
      %v3114 = vunpack.c.l.b16 %v3046
      %v3115 = vunpack.c.l.b16 %v3049
      %v3116 = vpack.c.b16 %v3085, %v3084
      %v3117 = vpack.c.b16 %v3087, %v3086
      %v3118 = vpack.c.b16 %v3089, %v3088
      %v3119 = vpack.c.b16 %v3091, %v3090
      %v3120 = vpack.c.b16 %v3093, %v3092
      %v3121 = vpack.c.b16 %v3095, %v3094
      %v3122 = vpack.c.b16 %v3097, %v3096
      %v3123 = vpack.c.b16 %v3099, %v3098
      %v3124 = vpack.c.b16 %v3101, %v3100
      %v3125 = vpack.c.b16 %v3103, %v3102
      %v3126 = vpack.c.b16 %v3105, %v3104
      %v3127 = vpack.c.b16 %v3107, %v3106
      %v3128 = vpack.c.b16 %v3109, %v3108
      %v3129 = vpack.c.b16 %v3111, %v3110
      %v3130 = vpack.c.b16 %v3113, %v3112
      %v3131 = vpack.c.b16 %v3115, %v3114
      %v3133 = vsel %vm349, %v3116, 0
      %v3136 = vsel %vm349, %v3117, 0
      %v3139 = vsel %vm349, %v3118, 0
      %v3142 = vsel %vm349, %v3119, 0
      %v3145 = vsel %vm349, %v3120, 0
      %v3148 = vsel %vm349, %v3121, 0
      %v3151 = vsel %vm349, %v3122, 0
      %v3154 = vsel %vm349, %v3123, 0
      %v3157 = vsel %vm349, %v3124, 0
      %v3160 = vsel %vm349, %v3125, 0
      %v3163 = vsel %vm349, %v3126, 0
      %v3166 = vsel %vm349, %v3127, 0
      %v3169 = vsel %vm349, %v3128, 0
      %v3172 = vsel %vm349, %v3129, 0
      %v3175 = vsel %vm349, %v3130, 0
      %v3178 = vsel %vm349, %v3131, 0
      %v3181 = vsel %vm398, %v3083, 0
      %3183 = vmatpush.bf16.msra.mxu0 0
      %3184 = vmatpush.bf16.msra.mxu0 0
      %3185 = vmatpush.bf16.msra.mxu0 0
      %3186 = vmatpush.bf16.msra.mxu0 0
      %3187 = vmatpush.bf16.msra.mxu0 0
      %3188 = vmatpush.bf16.msra.mxu0 0
      %3189 = vmatpush.bf16.msra.mxu0 0
      %3190 = vmatpush.bf16.msra.mxu0 %v3181
      %3191 = vmatmul.bf16.gmra.mxu0 %v3133
      %v3192 = vpop.f32.mrf.mxu0
      %v3193 = vadd.f32 0.0, %v3192
      %v3194 = vpop.f32.mrf.mxu0
      %v3195 = vadd.f32 0.0, %v3194
      %3196 = vmatmul.bf16.gmra.mxu0 %v3136
      %v3197 = vpop.f32.mrf.mxu0
      %v3198 = vadd.f32 0.0, %v3197
      %v3199 = vpop.f32.mrf.mxu0
      %v3200 = vadd.f32 0.0, %v3199
      %3201 = vmatmul.bf16.gmra.mxu0 %v3139
      %v3202 = vpop.f32.mrf.mxu0
      %v3203 = vadd.f32 0.0, %v3202
      %v3204 = vpop.f32.mrf.mxu0
      %v3205 = vadd.f32 0.0, %v3204
      %3206 = vmatmul.bf16.gmra.mxu0 %v3142
      %v3207 = vpop.f32.mrf.mxu0
      %v3208 = vadd.f32 0.0, %v3207
      %v3209 = vpop.f32.mrf.mxu0
      %v3210 = vadd.f32 0.0, %v3209
      %3211 = vmatmul.bf16.gmra.mxu0 %v3145
      %v3212 = vpop.f32.mrf.mxu0
      %v3213 = vadd.f32 0.0, %v3212
      %v3214 = vpop.f32.mrf.mxu0
      %v3215 = vadd.f32 0.0, %v3214
      %3216 = vmatmul.bf16.gmra.mxu0 %v3148
      %v3217 = vpop.f32.mrf.mxu0
      %v3218 = vadd.f32 0.0, %v3217
      %v3219 = vpop.f32.mrf.mxu0
      %v3220 = vadd.f32 0.0, %v3219
      %3221 = vmatmul.bf16.gmra.mxu0 %v3151
      %v3222 = vpop.f32.mrf.mxu0
      %v3223 = vadd.f32 0.0, %v3222
      %v3224 = vpop.f32.mrf.mxu0
      %v3225 = vadd.f32 0.0, %v3224
      %3226 = vmatmul.bf16.gmra.mxu0 %v3154
      %v3227 = vpop.f32.mrf.mxu0
      %v3228 = vadd.f32 0.0, %v3227
      %v3229 = vpop.f32.mrf.mxu0
      %v3230 = vadd.f32 0.0, %v3229
      %3231 = vmatmul.bf16.gmra.mxu0 %v3157
      %v3232 = vpop.f32.mrf.mxu0
      %v3233 = vadd.f32 0.0, %v3232
      %v3234 = vpop.f32.mrf.mxu0
      %v3235 = vadd.f32 0.0, %v3234
      %3236 = vmatmul.bf16.gmra.mxu0 %v3160
      %v3237 = vpop.f32.mrf.mxu0
      %v3238 = vadd.f32 0.0, %v3237
      %v3239 = vpop.f32.mrf.mxu0
      %v3240 = vadd.f32 0.0, %v3239
      %3241 = vmatmul.bf16.gmra.mxu0 %v3163
      %v3242 = vpop.f32.mrf.mxu0
      %v3243 = vadd.f32 0.0, %v3242
      %v3244 = vpop.f32.mrf.mxu0
      %v3245 = vadd.f32 0.0, %v3244
      %3246 = vmatmul.bf16.gmra.mxu0 %v3166
      %v3247 = vpop.f32.mrf.mxu0
      %v3248 = vadd.f32 0.0, %v3247
      %v3249 = vpop.f32.mrf.mxu0
      %v3250 = vadd.f32 0.0, %v3249
      %3251 = vmatmul.bf16.gmra.mxu0 %v3169
      %v3252 = vpop.f32.mrf.mxu0
      %v3253 = vadd.f32 0.0, %v3252
      %v3254 = vpop.f32.mrf.mxu0
      %v3255 = vadd.f32 0.0, %v3254
      %3256 = vmatmul.bf16.gmra.mxu0 %v3172
      %v3257 = vpop.f32.mrf.mxu0
      %v3258 = vadd.f32 0.0, %v3257
      %v3259 = vpop.f32.mrf.mxu0
      %v3260 = vadd.f32 0.0, %v3259
      %3261 = vmatmul.bf16.gmra.mxu0 %v3175
      %v3262 = vpop.f32.mrf.mxu0
      %v3263 = vadd.f32 0.0, %v3262
      %v3264 = vpop.f32.mrf.mxu0
      %v3265 = vadd.f32 0.0, %v3264
      %3266 = vmatmul.bf16.gmra.mxu0 %v3178
      %v3267 = vpop.f32.mrf.mxu0
      %v3268 = vadd.f32 0.0, %v3267
      %v3269 = vpop.f32.mrf.mxu0
      %v3270 = vadd.f32 0.0, %v3269
      %3271 = vdwg.mxu0
      %v3272 = vadd.f32 %v3050, %v3193
      %v3273 = vadd.f32 %v3051, %v3195
      %v3274 = vadd.f32 %v3052, %v3198
      %v3275 = vadd.f32 %v3053, %v3200
      %v3276 = vadd.f32 %v3054, %v3203
      %v3277 = vadd.f32 %v3055, %v3205
      %v3278 = vadd.f32 %v3056, %v3208
      %v3279 = vadd.f32 %v3057, %v3210
      %v3280 = vadd.f32 %v3058, %v3213
      %v3281 = vadd.f32 %v3059, %v3215
      %v3282 = vadd.f32 %v3060, %v3218
      %v3283 = vadd.f32 %v3061, %v3220
      %v3284 = vadd.f32 %v3062, %v3223
      %v3285 = vadd.f32 %v3063, %v3225
      %v3286 = vadd.f32 %v3064, %v3228
      %v3287 = vadd.f32 %v3065, %v3230
      %v3288 = vadd.f32 %v3066, %v3233
      %v3289 = vadd.f32 %v3067, %v3235
      %v3290 = vadd.f32 %v3068, %v3238
      %v3291 = vadd.f32 %v3069, %v3240
      %v3292 = vadd.f32 %v3070, %v3243
      %v3293 = vadd.f32 %v3071, %v3245
      %v3294 = vadd.f32 %v3072, %v3248
      %v3295 = vadd.f32 %v3073, %v3250
      %v3296 = vadd.f32 %v3074, %v3253
      %v3297 = vadd.f32 %v3075, %v3255
      %v3298 = vadd.f32 %v3076, %v3258
      %v3299 = vadd.f32 %v3077, %v3260
      %v3300 = vadd.f32 %v3078, %v3263
      %v3301 = vadd.f32 %v3079, %v3265
      %v3302 = vadd.f32 %v3080, %v3268
      %v3303 = vadd.f32 %v3081, %v3270
      %3304 = vst [vmem:[#allocation2] sm:$0xff] %v3272
      %3305 = vst [vmem:[#allocation2 + $0x8] sm:$0xff] %v3273
      %3306 = vst [vmem:[#allocation2 + $0x10] sm:$0xff] %v3274
      %3307 = vst [vmem:[#allocation2 + $0x18] sm:$0xff] %v3275
      %3308 = vst [vmem:[#allocation2 + $0x20] sm:$0xff] %v3276
      %3309 = vst [vmem:[#allocation2 + $0x28] sm:$0xff] %v3277
      %3310 = vst [vmem:[#allocation2 + $0x30] sm:$0xff] %v3278
      %3311 = vst [vmem:[#allocation2 + $0x38] sm:$0xff] %v3279
      %3312 = vst [vmem:[#allocation2 + $0x40] sm:$0xff] %v3280
      %3313 = vst [vmem:[#allocation2 + $0x48] sm:$0xff] %v3281
      %3314 = vst [vmem:[#allocation2 + $0x50] sm:$0xff] %v3282
      %3315 = vst [vmem:[#allocation2 + $0x58] sm:$0xff] %v3283
      %3316 = vst [vmem:[#allocation2 + $0x60] sm:$0xff] %v3284
      %3317 = vst [vmem:[#allocation2 + $0x68] sm:$0xff] %v3285
      %3318 = vst [vmem:[#allocation2 + $0x70] sm:$0xff] %v3286
      %3319 = vst [vmem:[#allocation2 + $0x78] sm:$0xff] %v3287
      %3320 = vst [vmem:[#allocation2 + $0x80] sm:$0xff] %v3288
      %3321 = vst [vmem:[#allocation2 + $0x88] sm:$0xff] %v3289
      %3322 = vst [vmem:[#allocation2 + $0x90] sm:$0xff] %v3290
      %3323 = vst [vmem:[#allocation2 + $0x98] sm:$0xff] %v3291
      %3324 = vst [vmem:[#allocation2 + $0xa0] sm:$0xff] %v3292
      %3325 = vst [vmem:[#allocation2 + $0xa8] sm:$0xff] %v3293
      %3326 = vst [vmem:[#allocation2 + $0xb0] sm:$0xff] %v3294
      %3327 = vst [vmem:[#allocation2 + $0xb8] sm:$0xff] %v3295
      %3328 = vst [vmem:[#allocation2 + $0xc0] sm:$0xff] %v3296
      %3329 = vst [vmem:[#allocation2 + $0xc8] sm:$0xff] %v3297
      %3330 = vst [vmem:[#allocation2 + $0xd0] sm:$0xff] %v3298
      %3331 = vst [vmem:[#allocation2 + $0xd8] sm:$0xff] %v3299
      %3332 = vst [vmem:[#allocation2 + $0xe0] sm:$0xff] %v3300
      %3333 = vst [vmem:[#allocation2 + $0xe8] sm:$0xff] %v3301
      %3334 = vst [vmem:[#allocation2 + $0xf0] sm:$0xff] %v3302
      %3335 = vst [vmem:[#allocation2 + $0xf8] sm:$0xff] %v3303
      %s3336 = scalar_lea.vmem %s165, 24
      %v3337 = vld [vmem:[%s3336] sm:$0xf]
      %v3338 = vld [vmem:[%s3336 + $0x4] sm:$0xf]
      %v3339 = vld [vmem:[%s3336 + $0xc] sm:$0xf]
      %v3340 = vld [vmem:[%s3336 + $0x10] sm:$0xf]
      %v3341 = vld [vmem:[%s3336 + $0x18] sm:$0xf]
      %v3342 = vld [vmem:[%s3336 + $0x1c] sm:$0xf]
      %v3343 = vld [vmem:[%s3336 + $0x24] sm:$0xf]
      %v3344 = vld [vmem:[%s3336 + $0x28] sm:$0xf]
      %v3345 = vld [vmem:[%s3336 + $0x30] sm:$0xf]
      %v3346 = vld [vmem:[%s3336 + $0x34] sm:$0xf]
      %v3347 = vld [vmem:[%s3336 + $0x3c] sm:$0xf]
      %v3348 = vld [vmem:[%s3336 + $0x40] sm:$0xf]
      %v3349 = vld [vmem:[%s3336 + $0x48] sm:$0xf]
      %v3350 = vld [vmem:[%s3336 + $0x4c] sm:$0xf]
      %v3351 = vld [vmem:[%s3336 + $0x54] sm:$0xf]
      %v3352 = vld [vmem:[%s3336 + $0x58] sm:$0xf]
      %v3353 = vld [vmem:[%s3336 + $0x60] sm:$0xf]
      %v3354 = vld [vmem:[%s3336 + $0x64] sm:$0xf]
      %v3355 = vld [vmem:[%s3336 + $0x6c] sm:$0xf]
      %v3356 = vld [vmem:[%s3336 + $0x70] sm:$0xf]
      %v3357 = vld [vmem:[%s3336 + $0x78] sm:$0xf]
      %v3358 = vld [vmem:[%s3336 + $0x7c] sm:$0xf]
      %v3359 = vld [vmem:[%s3336 + $0x84] sm:$0xf]
      %v3360 = vld [vmem:[%s3336 + $0x88] sm:$0xf]
      %v3361 = vld [vmem:[%s3336 + $0x90] sm:$0xf]
      %v3362 = vld [vmem:[%s3336 + $0x94] sm:$0xf]
      %v3363 = vld [vmem:[%s3336 + $0x9c] sm:$0xf]
      %v3364 = vld [vmem:[%s3336 + $0xa0] sm:$0xf]
      %v3365 = vld [vmem:[%s3336 + $0xa8] sm:$0xf]
      %v3366 = vld [vmem:[%s3336 + $0xac] sm:$0xf]
      %v3367 = vld [vmem:[%s3336 + $0xb4] sm:$0xf]
      %v3368 = vld [vmem:[%s3336 + $0xb8] sm:$0xf]
      %v3369 = vld [vmem:[#allocation2] sm:$0xff]
      %v3370 = vld [vmem:[#allocation2 + $0x8] sm:$0xff]
      %v3371 = vld [vmem:[#allocation2 + $0x10] sm:$0xff]
      %v3372 = vld [vmem:[#allocation2 + $0x18] sm:$0xff]
      %v3373 = vld [vmem:[#allocation2 + $0x20] sm:$0xff]
      %v3374 = vld [vmem:[#allocation2 + $0x28] sm:$0xff]
      %v3375 = vld [vmem:[#allocation2 + $0x30] sm:$0xff]
      %v3376 = vld [vmem:[#allocation2 + $0x38] sm:$0xff]
      %v3377 = vld [vmem:[#allocation2 + $0x40] sm:$0xff]
      %v3378 = vld [vmem:[#allocation2 + $0x48] sm:$0xff]
      %v3379 = vld [vmem:[#allocation2 + $0x50] sm:$0xff]
      %v3380 = vld [vmem:[#allocation2 + $0x58] sm:$0xff]
      %v3381 = vld [vmem:[#allocation2 + $0x60] sm:$0xff]
      %v3382 = vld [vmem:[#allocation2 + $0x68] sm:$0xff]
      %v3383 = vld [vmem:[#allocation2 + $0x70] sm:$0xff]
      %v3384 = vld [vmem:[#allocation2 + $0x78] sm:$0xff]
      %v3385 = vld [vmem:[#allocation2 + $0x80] sm:$0xff]
      %v3386 = vld [vmem:[#allocation2 + $0x88] sm:$0xff]
      %v3387 = vld [vmem:[#allocation2 + $0x90] sm:$0xff]
      %v3388 = vld [vmem:[#allocation2 + $0x98] sm:$0xff]
      %v3389 = vld [vmem:[#allocation2 + $0xa0] sm:$0xff]
      %v3390 = vld [vmem:[#allocation2 + $0xa8] sm:$0xff]
      %v3391 = vld [vmem:[#allocation2 + $0xb0] sm:$0xff]
      %v3392 = vld [vmem:[#allocation2 + $0xb8] sm:$0xff]
      %v3393 = vld [vmem:[#allocation2 + $0xc0] sm:$0xff]
      %v3394 = vld [vmem:[#allocation2 + $0xc8] sm:$0xff]
      %v3395 = vld [vmem:[#allocation2 + $0xd0] sm:$0xff]
      %v3396 = vld [vmem:[#allocation2 + $0xd8] sm:$0xff]
      %v3397 = vld [vmem:[#allocation2 + $0xe0] sm:$0xff]
      %v3398 = vld [vmem:[#allocation2 + $0xe8] sm:$0xff]
      %v3399 = vld [vmem:[#allocation2 + $0xf0] sm:$0xff]
      %v3400 = vld [vmem:[#allocation2 + $0xf8] sm:$0xff]
      %s3401 = scalar_lea.vmem %s1, 12
      %v3402 = vld [vmem:[%s3401] sm:$0x3]
      %v3435 = vunpack.c.l.b16 %v3337
      %v3436 = vunpack.c.l.b16 %v3338
      %v3437 = vunpack.c.l.b16 %v3339
      %v3438 = vunpack.c.l.b16 %v3340
      %v3439 = vunpack.c.l.b16 %v3341
      %v3440 = vunpack.c.l.b16 %v3342
      %v3441 = vunpack.c.l.b16 %v3343
      %v3442 = vunpack.c.l.b16 %v3344
      %v3443 = vunpack.c.l.b16 %v3345
      %v3444 = vunpack.c.l.b16 %v3346
      %v3445 = vunpack.c.l.b16 %v3347
      %v3446 = vunpack.c.l.b16 %v3348
      %v3447 = vunpack.c.l.b16 %v3349
      %v3448 = vunpack.c.l.b16 %v3350
      %v3449 = vunpack.c.l.b16 %v3351
      %v3450 = vunpack.c.l.b16 %v3352
      %v3451 = vunpack.c.l.b16 %v3353
      %v3452 = vunpack.c.l.b16 %v3354
      %v3453 = vunpack.c.l.b16 %v3355
      %v3454 = vunpack.c.l.b16 %v3356
      %v3455 = vunpack.c.l.b16 %v3357
      %v3456 = vunpack.c.l.b16 %v3358
      %v3457 = vunpack.c.l.b16 %v3359
      %v3458 = vunpack.c.l.b16 %v3360
      %v3459 = vunpack.c.l.b16 %v3361
      %v3460 = vunpack.c.l.b16 %v3362
      %v3461 = vunpack.c.l.b16 %v3363
      %v3462 = vunpack.c.l.b16 %v3364
      %v3463 = vunpack.c.l.b16 %v3365
      %v3464 = vunpack.c.l.b16 %v3366
      %v3465 = vunpack.c.l.b16 %v3367
      %v3466 = vunpack.c.l.b16 %v3368
      %v3467 = vpack.c.b16 %v3436, %v3435
      %v3468 = vpack.c.b16 %v3438, %v3437
      %v3469 = vpack.c.b16 %v3440, %v3439
      %v3470 = vpack.c.b16 %v3442, %v3441
      %v3471 = vpack.c.b16 %v3444, %v3443
      %v3472 = vpack.c.b16 %v3446, %v3445
      %v3473 = vpack.c.b16 %v3448, %v3447
      %v3474 = vpack.c.b16 %v3450, %v3449
      %v3475 = vpack.c.b16 %v3452, %v3451
      %v3476 = vpack.c.b16 %v3454, %v3453
      %v3477 = vpack.c.b16 %v3456, %v3455
      %v3478 = vpack.c.b16 %v3458, %v3457
      %v3479 = vpack.c.b16 %v3460, %v3459
      %v3480 = vpack.c.b16 %v3462, %v3461
      %v3481 = vpack.c.b16 %v3464, %v3463
      %v3482 = vpack.c.b16 %v3466, %v3465
      %v3484 = vsel %vm349, %v3467, 0
      %v3487 = vsel %vm349, %v3468, 0
      %v3490 = vsel %vm349, %v3469, 0
      %v3493 = vsel %vm349, %v3470, 0
      %v3496 = vsel %vm349, %v3471, 0
      %v3499 = vsel %vm349, %v3472, 0
      %v3502 = vsel %vm349, %v3473, 0
      %v3505 = vsel %vm349, %v3474, 0
      %v3508 = vsel %vm349, %v3475, 0
      %v3511 = vsel %vm349, %v3476, 0
      %v3514 = vsel %vm349, %v3477, 0
      %v3517 = vsel %vm349, %v3478, 0
      %v3520 = vsel %vm349, %v3479, 0
      %v3523 = vsel %vm349, %v3480, 0
      %v3526 = vsel %vm349, %v3481, 0
      %v3529 = vsel %vm349, %v3482, 0
      %v3532 = vsel %vm398, %v3402, 0
      %3534 = vmatpush.bf16.msra.mxu0 0
      %3535 = vmatpush.bf16.msra.mxu0 0
      %3536 = vmatpush.bf16.msra.mxu0 0
      %3537 = vmatpush.bf16.msra.mxu0 0
      %3538 = vmatpush.bf16.msra.mxu0 0
      %3539 = vmatpush.bf16.msra.mxu0 0
      %3540 = vmatpush.bf16.msra.mxu0 0
      %3541 = vmatpush.bf16.msra.mxu0 %v3532
      %3542 = vmatmul.bf16.gmra.mxu0 %v3484
      %v3543 = vpop.f32.mrf.mxu0
      %v3544 = vadd.f32 0.0, %v3543
      %v3545 = vpop.f32.mrf.mxu0
      %v3546 = vadd.f32 0.0, %v3545
      %3547 = vmatmul.bf16.gmra.mxu0 %v3487
      %v3548 = vpop.f32.mrf.mxu0
      %v3549 = vadd.f32 0.0, %v3548
      %v3550 = vpop.f32.mrf.mxu0
      %v3551 = vadd.f32 0.0, %v3550
      %3552 = vmatmul.bf16.gmra.mxu0 %v3490
      %v3553 = vpop.f32.mrf.mxu0
      %v3554 = vadd.f32 0.0, %v3553
      %v3555 = vpop.f32.mrf.mxu0
      %v3556 = vadd.f32 0.0, %v3555
      %3557 = vmatmul.bf16.gmra.mxu0 %v3493
      %v3558 = vpop.f32.mrf.mxu0
      %v3559 = vadd.f32 0.0, %v3558
      %v3560 = vpop.f32.mrf.mxu0
      %v3561 = vadd.f32 0.0, %v3560
      %3562 = vmatmul.bf16.gmra.mxu0 %v3496
      %v3563 = vpop.f32.mrf.mxu0
      %v3564 = vadd.f32 0.0, %v3563
      %v3565 = vpop.f32.mrf.mxu0
      %v3566 = vadd.f32 0.0, %v3565
      %3567 = vmatmul.bf16.gmra.mxu0 %v3499
      %v3568 = vpop.f32.mrf.mxu0
      %v3569 = vadd.f32 0.0, %v3568
      %v3570 = vpop.f32.mrf.mxu0
      %v3571 = vadd.f32 0.0, %v3570
      %3572 = vmatmul.bf16.gmra.mxu0 %v3502
      %v3573 = vpop.f32.mrf.mxu0
      %v3574 = vadd.f32 0.0, %v3573
      %v3575 = vpop.f32.mrf.mxu0
      %v3576 = vadd.f32 0.0, %v3575
      %3577 = vmatmul.bf16.gmra.mxu0 %v3505
      %v3578 = vpop.f32.mrf.mxu0
      %v3579 = vadd.f32 0.0, %v3578
      %v3580 = vpop.f32.mrf.mxu0
      %v3581 = vadd.f32 0.0, %v3580
      %3582 = vmatmul.bf16.gmra.mxu0 %v3508
      %v3583 = vpop.f32.mrf.mxu0
      %v3584 = vadd.f32 0.0, %v3583
      %v3585 = vpop.f32.mrf.mxu0
      %v3586 = vadd.f32 0.0, %v3585
      %3587 = vmatmul.bf16.gmra.mxu0 %v3511
      %v3588 = vpop.f32.mrf.mxu0
      %v3589 = vadd.f32 0.0, %v3588
      %v3590 = vpop.f32.mrf.mxu0
      %v3591 = vadd.f32 0.0, %v3590
      %3592 = vmatmul.bf16.gmra.mxu0 %v3514
      %v3593 = vpop.f32.mrf.mxu0
      %v3594 = vadd.f32 0.0, %v3593
      %v3595 = vpop.f32.mrf.mxu0
      %v3596 = vadd.f32 0.0, %v3595
      %3597 = vmatmul.bf16.gmra.mxu0 %v3517
      %v3598 = vpop.f32.mrf.mxu0
      %v3599 = vadd.f32 0.0, %v3598
      %v3600 = vpop.f32.mrf.mxu0
      %v3601 = vadd.f32 0.0, %v3600
      %3602 = vmatmul.bf16.gmra.mxu0 %v3520
      %v3603 = vpop.f32.mrf.mxu0
      %v3604 = vadd.f32 0.0, %v3603
      %v3605 = vpop.f32.mrf.mxu0
      %v3606 = vadd.f32 0.0, %v3605
      %3607 = vmatmul.bf16.gmra.mxu0 %v3523
      %v3608 = vpop.f32.mrf.mxu0
      %v3609 = vadd.f32 0.0, %v3608
      %v3610 = vpop.f32.mrf.mxu0
      %v3611 = vadd.f32 0.0, %v3610
      %3612 = vmatmul.bf16.gmra.mxu0 %v3526
      %v3613 = vpop.f32.mrf.mxu0
      %v3614 = vadd.f32 0.0, %v3613
      %v3615 = vpop.f32.mrf.mxu0
      %v3616 = vadd.f32 0.0, %v3615
      %3617 = vmatmul.bf16.gmra.mxu0 %v3529
      %v3618 = vpop.f32.mrf.mxu0
      %v3619 = vadd.f32 0.0, %v3618
      %v3620 = vpop.f32.mrf.mxu0
      %v3621 = vadd.f32 0.0, %v3620
      %3622 = vdwg.mxu0
      %v3623 = vadd.f32 %v3369, %v3544
      %v3624 = vadd.f32 %v3370, %v3546
      %v3625 = vadd.f32 %v3371, %v3549
      %v3626 = vadd.f32 %v3372, %v3551
      %v3627 = vadd.f32 %v3373, %v3554
      %v3628 = vadd.f32 %v3374, %v3556
      %v3629 = vadd.f32 %v3375, %v3559
      %v3630 = vadd.f32 %v3376, %v3561
      %v3631 = vadd.f32 %v3377, %v3564
      %v3632 = vadd.f32 %v3378, %v3566
      %v3633 = vadd.f32 %v3379, %v3569
      %v3634 = vadd.f32 %v3380, %v3571
      %v3635 = vadd.f32 %v3381, %v3574
      %v3636 = vadd.f32 %v3382, %v3576
      %v3637 = vadd.f32 %v3383, %v3579
      %v3638 = vadd.f32 %v3384, %v3581
      %v3639 = vadd.f32 %v3385, %v3584
      %v3640 = vadd.f32 %v3386, %v3586
      %v3641 = vadd.f32 %v3387, %v3589
      %v3642 = vadd.f32 %v3388, %v3591
      %v3643 = vadd.f32 %v3389, %v3594
      %v3644 = vadd.f32 %v3390, %v3596
      %v3645 = vadd.f32 %v3391, %v3599
      %v3646 = vadd.f32 %v3392, %v3601
      %v3647 = vadd.f32 %v3393, %v3604
      %v3648 = vadd.f32 %v3394, %v3606
      %v3649 = vadd.f32 %v3395, %v3609
      %v3650 = vadd.f32 %v3396, %v3611
      %v3651 = vadd.f32 %v3397, %v3614
      %v3652 = vadd.f32 %v3398, %v3616
      %v3653 = vadd.f32 %v3399, %v3619
      %v3654 = vadd.f32 %v3400, %v3621
      %3655 = vst [vmem:[#allocation2] sm:$0xff] %v3623
      %3656 = vst [vmem:[#allocation2 + $0x8] sm:$0xff] %v3624
      %3657 = vst [vmem:[#allocation2 + $0x10] sm:$0xff] %v3625
      %3658 = vst [vmem:[#allocation2 + $0x18] sm:$0xff] %v3626
      %3659 = vst [vmem:[#allocation2 + $0x20] sm:$0xff] %v3627
      %3660 = vst [vmem:[#allocation2 + $0x28] sm:$0xff] %v3628
      %3661 = vst [vmem:[#allocation2 + $0x30] sm:$0xff] %v3629
      %3662 = vst [vmem:[#allocation2 + $0x38] sm:$0xff] %v3630
      %3663 = vst [vmem:[#allocation2 + $0x40] sm:$0xff] %v3631
      %3664 = vst [vmem:[#allocation2 + $0x48] sm:$0xff] %v3632
      %3665 = vst [vmem:[#allocation2 + $0x50] sm:$0xff] %v3633
      %3666 = vst [vmem:[#allocation2 + $0x58] sm:$0xff] %v3634
      %3667 = vst [vmem:[#allocation2 + $0x60] sm:$0xff] %v3635
      %3668 = vst [vmem:[#allocation2 + $0x68] sm:$0xff] %v3636
      %3669 = vst [vmem:[#allocation2 + $0x70] sm:$0xff] %v3637
      %3670 = vst [vmem:[#allocation2 + $0x78] sm:$0xff] %v3638
      %3671 = vst [vmem:[#allocation2 + $0x80] sm:$0xff] %v3639
      %3672 = vst [vmem:[#allocation2 + $0x88] sm:$0xff] %v3640
      %3673 = vst [vmem:[#allocation2 + $0x90] sm:$0xff] %v3641
      %3674 = vst [vmem:[#allocation2 + $0x98] sm:$0xff] %v3642
      %3675 = vst [vmem:[#allocation2 + $0xa0] sm:$0xff] %v3643
      %3676 = vst [vmem:[#allocation2 + $0xa8] sm:$0xff] %v3644
      %3677 = vst [vmem:[#allocation2 + $0xb0] sm:$0xff] %v3645
      %3678 = vst [vmem:[#allocation2 + $0xb8] sm:$0xff] %v3646
      %3679 = vst [vmem:[#allocation2 + $0xc0] sm:$0xff] %v3647
      %3680 = vst [vmem:[#allocation2 + $0xc8] sm:$0xff] %v3648
      %3681 = vst [vmem:[#allocation2 + $0xd0] sm:$0xff] %v3649
      %3682 = vst [vmem:[#allocation2 + $0xd8] sm:$0xff] %v3650
      %3683 = vst [vmem:[#allocation2 + $0xe0] sm:$0xff] %v3651
      %3684 = vst [vmem:[#allocation2 + $0xe8] sm:$0xff] %v3652
      %3685 = vst [vmem:[#allocation2 + $0xf0] sm:$0xff] %v3653
      %3686 = vst [vmem:[#allocation2 + $0xf8] sm:$0xff] %v3654
      %v3687 = vld [vmem:[%s3336] sm:$0xf]
      %v3688 = vld [vmem:[%s3336 + $0x4] sm:$0xf]
      %v3689 = vld [vmem:[%s3336 + $0x8] sm:$0x1]
      %v3690 = vld [vmem:[%s3336 + $0xc] sm:$0xf]
      %v3691 = vld [vmem:[%s3336 + $0x10] sm:$0xf]
      %v3692 = vld [vmem:[%s3336 + $0x14] sm:$0x1]
      %v3693 = vld [vmem:[%s3336 + $0x18] sm:$0xf]
      %v3694 = vld [vmem:[%s3336 + $0x1c] sm:$0xf]
      %v3695 = vld [vmem:[%s3336 + $0x20] sm:$0x1]
      %v3696 = vld [vmem:[%s3336 + $0x24] sm:$0xf]
      %v3697 = vld [vmem:[%s3336 + $0x28] sm:$0xf]
      %v3698 = vld [vmem:[%s3336 + $0x2c] sm:$0x1]
      %v3699 = vld [vmem:[%s3336 + $0x30] sm:$0xf]
      %v3700 = vld [vmem:[%s3336 + $0x34] sm:$0xf]
      %v3701 = vld [vmem:[%s3336 + $0x38] sm:$0x1]
      %v3702 = vld [vmem:[%s3336 + $0x3c] sm:$0xf]
      %v3703 = vld [vmem:[%s3336 + $0x40] sm:$0xf]
      %v3704 = vld [vmem:[%s3336 + $0x44] sm:$0x1]
      %v3705 = vld [vmem:[%s3336 + $0x48] sm:$0xf]
      %v3706 = vld [vmem:[%s3336 + $0x4c] sm:$0xf]
      %v3707 = vld [vmem:[%s3336 + $0x50] sm:$0x1]
      %v3708 = vld [vmem:[%s3336 + $0x54] sm:$0xf]
      %v3709 = vld [vmem:[%s3336 + $0x58] sm:$0xf]
      %v3710 = vld [vmem:[%s3336 + $0x5c] sm:$0x1]
      %v3711 = vld [vmem:[%s3336 + $0x60] sm:$0xf]
      %v3712 = vld [vmem:[%s3336 + $0x64] sm:$0xf]
      %v3713 = vld [vmem:[%s3336 + $0x68] sm:$0x1]
      %v3714 = vld [vmem:[%s3336 + $0x6c] sm:$0xf]
      %v3715 = vld [vmem:[%s3336 + $0x70] sm:$0xf]
      %v3716 = vld [vmem:[%s3336 + $0x74] sm:$0x1]
      %v3717 = vld [vmem:[%s3336 + $0x78] sm:$0xf]
      %v3718 = vld [vmem:[%s3336 + $0x7c] sm:$0xf]
      %v3719 = vld [vmem:[%s3336 + $0x80] sm:$0x1]
      %v3720 = vld [vmem:[%s3336 + $0x84] sm:$0xf]
      %v3721 = vld [vmem:[%s3336 + $0x88] sm:$0xf]
      %v3722 = vld [vmem:[%s3336 + $0x8c] sm:$0x1]
      %v3723 = vld [vmem:[%s3336 + $0x90] sm:$0xf]
      %v3724 = vld [vmem:[%s3336 + $0x94] sm:$0xf]
      %v3725 = vld [vmem:[%s3336 + $0x98] sm:$0x1]
      %v3726 = vld [vmem:[%s3336 + $0x9c] sm:$0xf]
      %v3727 = vld [vmem:[%s3336 + $0xa0] sm:$0xf]
      %v3728 = vld [vmem:[%s3336 + $0xa4] sm:$0x1]
      %v3729 = vld [vmem:[%s3336 + $0xa8] sm:$0xf]
      %v3730 = vld [vmem:[%s3336 + $0xac] sm:$0xf]
      %v3731 = vld [vmem:[%s3336 + $0xb0] sm:$0x1]
      %v3732 = vld [vmem:[%s3336 + $0xb4] sm:$0xf]
      %v3733 = vld [vmem:[%s3336 + $0xb8] sm:$0xf]
      %v3734 = vld [vmem:[%s3336 + $0xbc] sm:$0x1]
      %v3736 = vshrl.u32 %v3687, 16
      %v3738 = vrot.slane %v3736, 4
      %v3739 = vshll.u32 %v3687, 16
      %v3741 = vrot.slane %v3739, 5
      %v3742 = vor.u32 %v3738, %v3741
      %v3743 = vrot.slane %v3742, 4
      %v3745 = vshll.u32 %v3688, 16
      %v3747 = vrot.slane %v3745, 5
      %v3748 = vsel %vm605, %v3743, %v3747
      %v3749 = vshrl.u32 %v3688, 16
      %v3751 = vrot.slane %v3749, 4
      %v3752 = vor.u32 %v3751, %v3747
      %v3753 = vrot.slane %v3752, 4
      %v3755 = vshll.u32 %v3689, 16
      %v3757 = vrot.slane %v3755, 5
      %v3758 = vsel %vm605, %v3753, %v3757
      %v3760 = vshrl.u32 %v3690, 16
      %v3762 = vrot.slane %v3760, 4
      %v3763 = vshll.u32 %v3690, 16
      %v3765 = vrot.slane %v3763, 5
      %v3766 = vor.u32 %v3762, %v3765
      %v3767 = vrot.slane %v3766, 4
      %v3769 = vshll.u32 %v3691, 16
      %v3771 = vrot.slane %v3769, 5
      %v3772 = vsel %vm605, %v3767, %v3771
      %v3773 = vshrl.u32 %v3691, 16
      %v3775 = vrot.slane %v3773, 4
      %v3776 = vor.u32 %v3775, %v3771
      %v3777 = vrot.slane %v3776, 4
      %v3779 = vshll.u32 %v3692, 16
      %v3781 = vrot.slane %v3779, 5
      %v3782 = vsel %vm605, %v3777, %v3781
      %v3784 = vshrl.u32 %v3693, 16
      %v3786 = vrot.slane %v3784, 4
      %v3787 = vshll.u32 %v3693, 16
      %v3789 = vrot.slane %v3787, 5
      %v3790 = vor.u32 %v3786, %v3789
      %v3791 = vrot.slane %v3790, 4
      %v3793 = vshll.u32 %v3694, 16
      %v3795 = vrot.slane %v3793, 5
      %v3796 = vsel %vm605, %v3791, %v3795
      %v3797 = vshrl.u32 %v3694, 16
      %v3799 = vrot.slane %v3797, 4
      %v3800 = vor.u32 %v3799, %v3795
      %v3801 = vrot.slane %v3800, 4
      %v3803 = vshll.u32 %v3695, 16
      %v3805 = vrot.slane %v3803, 5
      %v3806 = vsel %vm605, %v3801, %v3805
      %v3808 = vshrl.u32 %v3696, 16
      %v3810 = vrot.slane %v3808, 4
      %v3811 = vshll.u32 %v3696, 16
      %v3813 = vrot.slane %v3811, 5
      %v3814 = vor.u32 %v3810, %v3813
      %v3815 = vrot.slane %v3814, 4
      %v3817 = vshll.u32 %v3697, 16
      %v3819 = vrot.slane %v3817, 5
      %v3820 = vsel %vm605, %v3815, %v3819
      %v3821 = vshrl.u32 %v3697, 16
      %v3823 = vrot.slane %v3821, 4
      %v3824 = vor.u32 %v3823, %v3819
      %v3825 = vrot.slane %v3824, 4
      %v3827 = vshll.u32 %v3698, 16
      %v3829 = vrot.slane %v3827, 5
      %v3830 = vsel %vm605, %v3825, %v3829
      %v3832 = vshrl.u32 %v3699, 16
      %v3834 = vrot.slane %v3832, 4
      %v3835 = vshll.u32 %v3699, 16
      %v3837 = vrot.slane %v3835, 5
      %v3838 = vor.u32 %v3834, %v3837
      %v3839 = vrot.slane %v3838, 4
      %v3841 = vshll.u32 %v3700, 16
      %v3843 = vrot.slane %v3841, 5
      %v3844 = vsel %vm605, %v3839, %v3843
      %v3845 = vshrl.u32 %v3700, 16
      %v3847 = vrot.slane %v3845, 4
      %v3848 = vor.u32 %v3847, %v3843
      %v3849 = vrot.slane %v3848, 4
      %v3851 = vshll.u32 %v3701, 16
      %v3853 = vrot.slane %v3851, 5
      %v3854 = vsel %vm605, %v3849, %v3853
      %v3856 = vshrl.u32 %v3702, 16
      %v3858 = vrot.slane %v3856, 4
      %v3859 = vshll.u32 %v3702, 16
      %v3861 = vrot.slane %v3859, 5
      %v3862 = vor.u32 %v3858, %v3861
      %v3863 = vrot.slane %v3862, 4
      %v3865 = vshll.u32 %v3703, 16
      %v3867 = vrot.slane %v3865, 5
      %v3868 = vsel %vm605, %v3863, %v3867
      %v3869 = vshrl.u32 %v3703, 16
      %v3871 = vrot.slane %v3869, 4
      %v3872 = vor.u32 %v3871, %v3867
      %v3873 = vrot.slane %v3872, 4
      %v3875 = vshll.u32 %v3704, 16
      %v3877 = vrot.slane %v3875, 5
      %v3878 = vsel %vm605, %v3873, %v3877
      %v3880 = vshrl.u32 %v3705, 16
      %v3882 = vrot.slane %v3880, 4
      %v3883 = vshll.u32 %v3705, 16
      %v3885 = vrot.slane %v3883, 5
      %v3886 = vor.u32 %v3882, %v3885
      %v3887 = vrot.slane %v3886, 4
      %v3889 = vshll.u32 %v3706, 16
      %v3891 = vrot.slane %v3889, 5
      %v3892 = vsel %vm605, %v3887, %v3891
      %v3893 = vshrl.u32 %v3706, 16
      %v3895 = vrot.slane %v3893, 4
      %v3896 = vor.u32 %v3895, %v3891
      %v3897 = vrot.slane %v3896, 4
      %v3899 = vshll.u32 %v3707, 16
      %v3901 = vrot.slane %v3899, 5
      %v3902 = vsel %vm605, %v3897, %v3901
      %v3904 = vshrl.u32 %v3708, 16
      %v3906 = vrot.slane %v3904, 4
      %v3907 = vshll.u32 %v3708, 16
      %v3909 = vrot.slane %v3907, 5
      %v3910 = vor.u32 %v3906, %v3909
      %v3911 = vrot.slane %v3910, 4
      %v3913 = vshll.u32 %v3709, 16
      %v3915 = vrot.slane %v3913, 5
      %v3916 = vsel %vm605, %v3911, %v3915
      %v3917 = vshrl.u32 %v3709, 16
      %v3919 = vrot.slane %v3917, 4
      %v3920 = vor.u32 %v3919, %v3915
      %v3921 = vrot.slane %v3920, 4
      %v3923 = vshll.u32 %v3710, 16
      %v3925 = vrot.slane %v3923, 5
      %v3926 = vsel %vm605, %v3921, %v3925
      %v3928 = vshrl.u32 %v3711, 16
      %v3930 = vrot.slane %v3928, 4
      %v3931 = vshll.u32 %v3711, 16
      %v3933 = vrot.slane %v3931, 5
      %v3934 = vor.u32 %v3930, %v3933
      %v3935 = vrot.slane %v3934, 4
      %v3937 = vshll.u32 %v3712, 16
      %v3939 = vrot.slane %v3937, 5
      %v3940 = vsel %vm605, %v3935, %v3939
      %v3941 = vshrl.u32 %v3712, 16
      %v3943 = vrot.slane %v3941, 4
      %v3944 = vor.u32 %v3943, %v3939
      %v3945 = vrot.slane %v3944, 4
      %v3947 = vshll.u32 %v3713, 16
      %v3949 = vrot.slane %v3947, 5
      %v3950 = vsel %vm605, %v3945, %v3949
      %v3952 = vshrl.u32 %v3714, 16
      %v3954 = vrot.slane %v3952, 4
      %v3955 = vshll.u32 %v3714, 16
      %v3957 = vrot.slane %v3955, 5
      %v3958 = vor.u32 %v3954, %v3957
      %v3959 = vrot.slane %v3958, 4
      %v3961 = vshll.u32 %v3715, 16
      %v3963 = vrot.slane %v3961, 5
      %v3964 = vsel %vm605, %v3959, %v3963
      %v3965 = vshrl.u32 %v3715, 16
      %v3967 = vrot.slane %v3965, 4
      %v3968 = vor.u32 %v3967, %v3963
      %v3969 = vrot.slane %v3968, 4
      %v3971 = vshll.u32 %v3716, 16
      %v3973 = vrot.slane %v3971, 5
      %v3974 = vsel %vm605, %v3969, %v3973
      %v3976 = vshrl.u32 %v3717, 16
      %v3978 = vrot.slane %v3976, 4
      %v3979 = vshll.u32 %v3717, 16
      %v3981 = vrot.slane %v3979, 5
      %v3982 = vor.u32 %v3978, %v3981
      %v3983 = vrot.slane %v3982, 4
      %v3985 = vshll.u32 %v3718, 16
      %v3987 = vrot.slane %v3985, 5
      %v3988 = vsel %vm605, %v3983, %v3987
      %v3989 = vshrl.u32 %v3718, 16
      %v3991 = vrot.slane %v3989, 4
      %v3992 = vor.u32 %v3991, %v3987
      %v3993 = vrot.slane %v3992, 4
      %v3995 = vshll.u32 %v3719, 16
      %v3997 = vrot.slane %v3995, 5
      %v3998 = vsel %vm605, %v3993, %v3997
      %v4000 = vshrl.u32 %v3720, 16
      %v4002 = vrot.slane %v4000, 4
      %v4003 = vshll.u32 %v3720, 16
      %v4005 = vrot.slane %v4003, 5
      %v4006 = vor.u32 %v4002, %v4005
      %v4007 = vrot.slane %v4006, 4
      %v4009 = vshll.u32 %v3721, 16
      %v4011 = vrot.slane %v4009, 5
      %v4012 = vsel %vm605, %v4007, %v4011
      %v4013 = vshrl.u32 %v3721, 16
      %v4015 = vrot.slane %v4013, 4
      %v4016 = vor.u32 %v4015, %v4011
      %v4017 = vrot.slane %v4016, 4
      %v4019 = vshll.u32 %v3722, 16
      %v4021 = vrot.slane %v4019, 5
      %v4022 = vsel %vm605, %v4017, %v4021
      %v4024 = vshrl.u32 %v3723, 16
      %v4026 = vrot.slane %v4024, 4
      %v4027 = vshll.u32 %v3723, 16
      %v4029 = vrot.slane %v4027, 5
      %v4030 = vor.u32 %v4026, %v4029
      %v4031 = vrot.slane %v4030, 4
      %v4033 = vshll.u32 %v3724, 16
      %v4035 = vrot.slane %v4033, 5
      %v4036 = vsel %vm605, %v4031, %v4035
      %v4037 = vshrl.u32 %v3724, 16
      %v4039 = vrot.slane %v4037, 4
      %v4040 = vor.u32 %v4039, %v4035
      %v4041 = vrot.slane %v4040, 4
      %v4043 = vshll.u32 %v3725, 16
      %v4045 = vrot.slane %v4043, 5
      %v4046 = vsel %vm605, %v4041, %v4045
      %v4048 = vshrl.u32 %v3726, 16
      %v4050 = vrot.slane %v4048, 4
      %v4051 = vshll.u32 %v3726, 16
      %v4053 = vrot.slane %v4051, 5
      %v4054 = vor.u32 %v4050, %v4053
      %v4055 = vrot.slane %v4054, 4
      %v4057 = vshll.u32 %v3727, 16
      %v4059 = vrot.slane %v4057, 5
      %v4060 = vsel %vm605, %v4055, %v4059
      %v4061 = vshrl.u32 %v3727, 16
      %v4063 = vrot.slane %v4061, 4
      %v4064 = vor.u32 %v4063, %v4059
      %v4065 = vrot.slane %v4064, 4
      %v4067 = vshll.u32 %v3728, 16
      %v4069 = vrot.slane %v4067, 5
      %v4070 = vsel %vm605, %v4065, %v4069
      %v4072 = vshrl.u32 %v3729, 16
      %v4074 = vrot.slane %v4072, 4
      %v4075 = vshll.u32 %v3729, 16
      %v4077 = vrot.slane %v4075, 5
      %v4078 = vor.u32 %v4074, %v4077
      %v4079 = vrot.slane %v4078, 4
      %v4081 = vshll.u32 %v3730, 16
      %v4083 = vrot.slane %v4081, 5
      %v4084 = vsel %vm605, %v4079, %v4083
      %v4085 = vshrl.u32 %v3730, 16
      %v4087 = vrot.slane %v4085, 4
      %v4088 = vor.u32 %v4087, %v4083
      %v4089 = vrot.slane %v4088, 4
      %v4091 = vshll.u32 %v3731, 16
      %v4093 = vrot.slane %v4091, 5
      %v4094 = vsel %vm605, %v4089, %v4093
      %v4096 = vshrl.u32 %v3732, 16
      %v4098 = vrot.slane %v4096, 4
      %v4099 = vshll.u32 %v3732, 16
      %v4101 = vrot.slane %v4099, 5
      %v4102 = vor.u32 %v4098, %v4101
      %v4103 = vrot.slane %v4102, 4
      %v4105 = vshll.u32 %v3733, 16
      %v4107 = vrot.slane %v4105, 5
      %v4108 = vsel %vm605, %v4103, %v4107
      %v4109 = vshrl.u32 %v3733, 16
      %v4111 = vrot.slane %v4109, 4
      %v4112 = vor.u32 %v4111, %v4107
      %v4113 = vrot.slane %v4112, 4
      %v4115 = vshll.u32 %v3734, 16
      %v4117 = vrot.slane %v4115, 5
      %v4118 = vsel %vm605, %v4113, %v4117
      %v4119 = vld [vmem:[#allocation2] sm:$0xff]
      %v4120 = vld [vmem:[#allocation2 + $0x8] sm:$0xff]
      %v4121 = vld [vmem:[#allocation2 + $0x10] sm:$0xff]
      %v4122 = vld [vmem:[#allocation2 + $0x18] sm:$0xff]
      %v4123 = vld [vmem:[#allocation2 + $0x20] sm:$0xff]
      %v4124 = vld [vmem:[#allocation2 + $0x28] sm:$0xff]
      %v4125 = vld [vmem:[#allocation2 + $0x30] sm:$0xff]
      %v4126 = vld [vmem:[#allocation2 + $0x38] sm:$0xff]
      %v4127 = vld [vmem:[#allocation2 + $0x40] sm:$0xff]
      %v4128 = vld [vmem:[#allocation2 + $0x48] sm:$0xff]
      %v4129 = vld [vmem:[#allocation2 + $0x50] sm:$0xff]
      %v4130 = vld [vmem:[#allocation2 + $0x58] sm:$0xff]
      %v4131 = vld [vmem:[#allocation2 + $0x60] sm:$0xff]
      %v4132 = vld [vmem:[#allocation2 + $0x68] sm:$0xff]
      %v4133 = vld [vmem:[#allocation2 + $0x70] sm:$0xff]
      %v4134 = vld [vmem:[#allocation2 + $0x78] sm:$0xff]
      %v4135 = vld [vmem:[#allocation2 + $0x80] sm:$0xff]
      %v4136 = vld [vmem:[#allocation2 + $0x88] sm:$0xff]
      %v4137 = vld [vmem:[#allocation2 + $0x90] sm:$0xff]
      %v4138 = vld [vmem:[#allocation2 + $0x98] sm:$0xff]
      %v4139 = vld [vmem:[#allocation2 + $0xa0] sm:$0xff]
      %v4140 = vld [vmem:[#allocation2 + $0xa8] sm:$0xff]
      %v4141 = vld [vmem:[#allocation2 + $0xb0] sm:$0xff]
      %v4142 = vld [vmem:[#allocation2 + $0xb8] sm:$0xff]
      %v4143 = vld [vmem:[#allocation2 + $0xc0] sm:$0xff]
      %v4144 = vld [vmem:[#allocation2 + $0xc8] sm:$0xff]
      %v4145 = vld [vmem:[#allocation2 + $0xd0] sm:$0xff]
      %v4146 = vld [vmem:[#allocation2 + $0xd8] sm:$0xff]
      %v4147 = vld [vmem:[#allocation2 + $0xe0] sm:$0xff]
      %v4148 = vld [vmem:[#allocation2 + $0xe8] sm:$0xff]
      %v4149 = vld [vmem:[#allocation2 + $0xf0] sm:$0xff]
      %v4150 = vld [vmem:[#allocation2 + $0xf8] sm:$0xff]
      %s4151 = scalar_lea.vmem %s1, 14
      %v4152 = vld [vmem:[%s4151] sm:$0x3]
      %v4153 = vunpack.c.l.b16 %v3748
      %v4154 = vunpack.c.l.b16 %v3758
      %v4155 = vunpack.c.l.b16 %v3772
      %v4156 = vunpack.c.l.b16 %v3782
      %v4157 = vunpack.c.l.b16 %v3796
      %v4158 = vunpack.c.l.b16 %v3806
      %v4159 = vunpack.c.l.b16 %v3820
      %v4160 = vunpack.c.l.b16 %v3830
      %v4161 = vunpack.c.l.b16 %v3844
      %v4162 = vunpack.c.l.b16 %v3854
      %v4163 = vunpack.c.l.b16 %v3868
      %v4164 = vunpack.c.l.b16 %v3878
      %v4165 = vunpack.c.l.b16 %v3892
      %v4166 = vunpack.c.l.b16 %v3902
      %v4167 = vunpack.c.l.b16 %v3916
      %v4168 = vunpack.c.l.b16 %v3926
      %v4169 = vunpack.c.l.b16 %v3940
      %v4170 = vunpack.c.l.b16 %v3950
      %v4171 = vunpack.c.l.b16 %v3964
      %v4172 = vunpack.c.l.b16 %v3974
      %v4173 = vunpack.c.l.b16 %v3988
      %v4174 = vunpack.c.l.b16 %v3998
      %v4175 = vunpack.c.l.b16 %v4012
      %v4176 = vunpack.c.l.b16 %v4022
      %v4177 = vunpack.c.l.b16 %v4036
      %v4178 = vunpack.c.l.b16 %v4046
      %v4179 = vunpack.c.l.b16 %v4060
      %v4180 = vunpack.c.l.b16 %v4070
      %v4181 = vunpack.c.l.b16 %v4084
      %v4182 = vunpack.c.l.b16 %v4094
      %v4183 = vunpack.c.l.b16 %v4108
      %v4184 = vunpack.c.l.b16 %v4118
      %v4185 = vpack.c.b16 %v4154, %v4153
      %v4186 = vpack.c.b16 %v4156, %v4155
      %v4187 = vpack.c.b16 %v4158, %v4157
      %v4188 = vpack.c.b16 %v4160, %v4159
      %v4189 = vpack.c.b16 %v4162, %v4161
      %v4190 = vpack.c.b16 %v4164, %v4163
      %v4191 = vpack.c.b16 %v4166, %v4165
      %v4192 = vpack.c.b16 %v4168, %v4167
      %v4193 = vpack.c.b16 %v4170, %v4169
      %v4194 = vpack.c.b16 %v4172, %v4171
      %v4195 = vpack.c.b16 %v4174, %v4173
      %v4196 = vpack.c.b16 %v4176, %v4175
      %v4197 = vpack.c.b16 %v4178, %v4177
      %v4198 = vpack.c.b16 %v4180, %v4179
      %v4199 = vpack.c.b16 %v4182, %v4181
      %v4200 = vpack.c.b16 %v4184, %v4183
      %v4202 = vsel %vm349, %v4185, 0
      %v4205 = vsel %vm349, %v4186, 0
      %v4208 = vsel %vm349, %v4187, 0
      %v4211 = vsel %vm349, %v4188, 0
      %v4214 = vsel %vm349, %v4189, 0
      %v4217 = vsel %vm349, %v4190, 0
      %v4220 = vsel %vm349, %v4191, 0
      %v4223 = vsel %vm349, %v4192, 0
      %v4226 = vsel %vm349, %v4193, 0
      %v4229 = vsel %vm349, %v4194, 0
      %v4232 = vsel %vm349, %v4195, 0
      %v4235 = vsel %vm349, %v4196, 0
      %v4238 = vsel %vm349, %v4197, 0
      %v4241 = vsel %vm349, %v4198, 0
      %v4244 = vsel %vm349, %v4199, 0
      %v4247 = vsel %vm349, %v4200, 0
      %v4250 = vsel %vm398, %v4152, 0
      %4252 = vmatpush.bf16.msra.mxu0 0
      %4253 = vmatpush.bf16.msra.mxu0 0
      %4254 = vmatpush.bf16.msra.mxu0 0
      %4255 = vmatpush.bf16.msra.mxu0 0
      %4256 = vmatpush.bf16.msra.mxu0 0
      %4257 = vmatpush.bf16.msra.mxu0 0
      %4258 = vmatpush.bf16.msra.mxu0 0
      %4259 = vmatpush.bf16.msra.mxu0 %v4250
      %4260 = vmatmul.bf16.gmra.mxu0 %v4202
      %v4261 = vpop.f32.mrf.mxu0
      %v4262 = vadd.f32 0.0, %v4261
      %v4263 = vpop.f32.mrf.mxu0
      %v4264 = vadd.f32 0.0, %v4263
      %4265 = vmatmul.bf16.gmra.mxu0 %v4205
      %v4266 = vpop.f32.mrf.mxu0
      %v4267 = vadd.f32 0.0, %v4266
      %v4268 = vpop.f32.mrf.mxu0
      %v4269 = vadd.f32 0.0, %v4268
      %4270 = vmatmul.bf16.gmra.mxu0 %v4208
      %v4271 = vpop.f32.mrf.mxu0
      %v4272 = vadd.f32 0.0, %v4271
      %v4273 = vpop.f32.mrf.mxu0
      %v4274 = vadd.f32 0.0, %v4273
      %4275 = vmatmul.bf16.gmra.mxu0 %v4211
      %v4276 = vpop.f32.mrf.mxu0
      %v4277 = vadd.f32 0.0, %v4276
      %v4278 = vpop.f32.mrf.mxu0
      %v4279 = vadd.f32 0.0, %v4278
      %4280 = vmatmul.bf16.gmra.mxu0 %v4214
      %v4281 = vpop.f32.mrf.mxu0
      %v4282 = vadd.f32 0.0, %v4281
      %v4283 = vpop.f32.mrf.mxu0
      %v4284 = vadd.f32 0.0, %v4283
      %4285 = vmatmul.bf16.gmra.mxu0 %v4217
      %v4286 = vpop.f32.mrf.mxu0
      %v4287 = vadd.f32 0.0, %v4286
      %v4288 = vpop.f32.mrf.mxu0
      %v4289 = vadd.f32 0.0, %v4288
      %4290 = vmatmul.bf16.gmra.mxu0 %v4220
      %v4291 = vpop.f32.mrf.mxu0
      %v4292 = vadd.f32 0.0, %v4291
      %v4293 = vpop.f32.mrf.mxu0
      %v4294 = vadd.f32 0.0, %v4293
      %4295 = vmatmul.bf16.gmra.mxu0 %v4223
      %v4296 = vpop.f32.mrf.mxu0
      %v4297 = vadd.f32 0.0, %v4296
      %v4298 = vpop.f32.mrf.mxu0
      %v4299 = vadd.f32 0.0, %v4298
      %4300 = vmatmul.bf16.gmra.mxu0 %v4226
      %v4301 = vpop.f32.mrf.mxu0
      %v4302 = vadd.f32 0.0, %v4301
      %v4303 = vpop.f32.mrf.mxu0
      %v4304 = vadd.f32 0.0, %v4303
      %4305 = vmatmul.bf16.gmra.mxu0 %v4229
      %v4306 = vpop.f32.mrf.mxu0
      %v4307 = vadd.f32 0.0, %v4306
      %v4308 = vpop.f32.mrf.mxu0
      %v4309 = vadd.f32 0.0, %v4308
      %4310 = vmatmul.bf16.gmra.mxu0 %v4232
      %v4311 = vpop.f32.mrf.mxu0
      %v4312 = vadd.f32 0.0, %v4311
      %v4313 = vpop.f32.mrf.mxu0
      %v4314 = vadd.f32 0.0, %v4313
      %4315 = vmatmul.bf16.gmra.mxu0 %v4235
      %v4316 = vpop.f32.mrf.mxu0
      %v4317 = vadd.f32 0.0, %v4316
      %v4318 = vpop.f32.mrf.mxu0
      %v4319 = vadd.f32 0.0, %v4318
      %4320 = vmatmul.bf16.gmra.mxu0 %v4238
      %v4321 = vpop.f32.mrf.mxu0
      %v4322 = vadd.f32 0.0, %v4321
      %v4323 = vpop.f32.mrf.mxu0
      %v4324 = vadd.f32 0.0, %v4323
      %4325 = vmatmul.bf16.gmra.mxu0 %v4241
      %v4326 = vpop.f32.mrf.mxu0
      %v4327 = vadd.f32 0.0, %v4326
      %v4328 = vpop.f32.mrf.mxu0
      %v4329 = vadd.f32 0.0, %v4328
      %4330 = vmatmul.bf16.gmra.mxu0 %v4244
      %v4331 = vpop.f32.mrf.mxu0
      %v4332 = vadd.f32 0.0, %v4331
      %v4333 = vpop.f32.mrf.mxu0
      %v4334 = vadd.f32 0.0, %v4333
      %4335 = vmatmul.bf16.gmra.mxu0 %v4247
      %v4336 = vpop.f32.mrf.mxu0
      %v4337 = vadd.f32 0.0, %v4336
      %v4338 = vpop.f32.mrf.mxu0
      %v4339 = vadd.f32 0.0, %v4338
      %4340 = vdwg.mxu0
      %v4341 = vadd.f32 %v4119, %v4262
      %v4342 = vadd.f32 %v4120, %v4264
      %v4343 = vadd.f32 %v4121, %v4267
      %v4344 = vadd.f32 %v4122, %v4269
      %v4345 = vadd.f32 %v4123, %v4272
      %v4346 = vadd.f32 %v4124, %v4274
      %v4347 = vadd.f32 %v4125, %v4277
      %v4348 = vadd.f32 %v4126, %v4279
      %v4349 = vadd.f32 %v4127, %v4282
      %v4350 = vadd.f32 %v4128, %v4284
      %v4351 = vadd.f32 %v4129, %v4287
      %v4352 = vadd.f32 %v4130, %v4289
      %v4353 = vadd.f32 %v4131, %v4292
      %v4354 = vadd.f32 %v4132, %v4294
      %v4355 = vadd.f32 %v4133, %v4297
      %v4356 = vadd.f32 %v4134, %v4299
      %v4357 = vadd.f32 %v4135, %v4302
      %v4358 = vadd.f32 %v4136, %v4304
      %v4359 = vadd.f32 %v4137, %v4307
      %v4360 = vadd.f32 %v4138, %v4309
      %v4361 = vadd.f32 %v4139, %v4312
      %v4362 = vadd.f32 %v4140, %v4314
      %v4363 = vadd.f32 %v4141, %v4317
      %v4364 = vadd.f32 %v4142, %v4319
      %v4365 = vadd.f32 %v4143, %v4322
      %v4366 = vadd.f32 %v4144, %v4324
      %v4367 = vadd.f32 %v4145, %v4327
      %v4368 = vadd.f32 %v4146, %v4329
      %v4369 = vadd.f32 %v4147, %v4332
      %v4370 = vadd.f32 %v4148, %v4334
      %v4371 = vadd.f32 %v4149, %v4337
      %v4372 = vadd.f32 %v4150, %v4339
      %4373 = vst [vmem:[#allocation2] sm:$0xff] %v4341
      %4374 = vst [vmem:[#allocation2 + $0x8] sm:$0xff] %v4342
      %4375 = vst [vmem:[#allocation2 + $0x10] sm:$0xff] %v4343
      %4376 = vst [vmem:[#allocation2 + $0x18] sm:$0xff] %v4344
      %4377 = vst [vmem:[#allocation2 + $0x20] sm:$0xff] %v4345
      %4378 = vst [vmem:[#allocation2 + $0x28] sm:$0xff] %v4346
      %4379 = vst [vmem:[#allocation2 + $0x30] sm:$0xff] %v4347
      %4380 = vst [vmem:[#allocation2 + $0x38] sm:$0xff] %v4348
      %4381 = vst [vmem:[#allocation2 + $0x40] sm:$0xff] %v4349
      %4382 = vst [vmem:[#allocation2 + $0x48] sm:$0xff] %v4350
      %4383 = vst [vmem:[#allocation2 + $0x50] sm:$0xff] %v4351
      %4384 = vst [vmem:[#allocation2 + $0x58] sm:$0xff] %v4352
      %4385 = vst [vmem:[#allocation2 + $0x60] sm:$0xff] %v4353
      %4386 = vst [vmem:[#allocation2 + $0x68] sm:$0xff] %v4354
      %4387 = vst [vmem:[#allocation2 + $0x70] sm:$0xff] %v4355
      %4388 = vst [vmem:[#allocation2 + $0x78] sm:$0xff] %v4356
      %4389 = vst [vmem:[#allocation2 + $0x80] sm:$0xff] %v4357
      %4390 = vst [vmem:[#allocation2 + $0x88] sm:$0xff] %v4358
      %4391 = vst [vmem:[#allocation2 + $0x90] sm:$0xff] %v4359
      %4392 = vst [vmem:[#allocation2 + $0x98] sm:$0xff] %v4360
      %4393 = vst [vmem:[#allocation2 + $0xa0] sm:$0xff] %v4361
      %4394 = vst [vmem:[#allocation2 + $0xa8] sm:$0xff] %v4362
      %4395 = vst [vmem:[#allocation2 + $0xb0] sm:$0xff] %v4363
      %4396 = vst [vmem:[#allocation2 + $0xb8] sm:$0xff] %v4364
      %4397 = vst [vmem:[#allocation2 + $0xc0] sm:$0xff] %v4365
      %4398 = vst [vmem:[#allocation2 + $0xc8] sm:$0xff] %v4366
      %4399 = vst [vmem:[#allocation2 + $0xd0] sm:$0xff] %v4367
      %4400 = vst [vmem:[#allocation2 + $0xd8] sm:$0xff] %v4368
      %4401 = vst [vmem:[#allocation2 + $0xe0] sm:$0xff] %v4369
      %4402 = vst [vmem:[#allocation2 + $0xe8] sm:$0xff] %v4370
      %4403 = vst [vmem:[#allocation2 + $0xf0] sm:$0xff] %v4371
      %4404 = vst [vmem:[#allocation2 + $0xf8] sm:$0xff] %v4372
      %v4405 = vld [vmem:[%s3336] sm:$0xe]
      %v4406 = vld [vmem:[%s3336 + $0x4] sm:$0xf]
      %v4407 = vld [vmem:[%s3336 + $0x8] sm:$0x1]
      %v4408 = vld [vmem:[%s3336 + $0xc] sm:$0xe]
      %v4409 = vld [vmem:[%s3336 + $0x10] sm:$0xf]
      %v4410 = vld [vmem:[%s3336 + $0x14] sm:$0x1]
      %v4411 = vld [vmem:[%s3336 + $0x18] sm:$0xe]
      %v4412 = vld [vmem:[%s3336 + $0x1c] sm:$0xf]
      %v4413 = vld [vmem:[%s3336 + $0x20] sm:$0x1]
      %v4414 = vld [vmem:[%s3336 + $0x24] sm:$0xe]
      %v4415 = vld [vmem:[%s3336 + $0x28] sm:$0xf]
      %v4416 = vld [vmem:[%s3336 + $0x2c] sm:$0x1]
      %v4417 = vld [vmem:[%s3336 + $0x30] sm:$0xe]
      %v4418 = vld [vmem:[%s3336 + $0x34] sm:$0xf]
      %v4419 = vld [vmem:[%s3336 + $0x38] sm:$0x1]
      %v4420 = vld [vmem:[%s3336 + $0x3c] sm:$0xe]
      %v4421 = vld [vmem:[%s3336 + $0x40] sm:$0xf]
      %v4422 = vld [vmem:[%s3336 + $0x44] sm:$0x1]
      %v4423 = vld [vmem:[%s3336 + $0x48] sm:$0xe]
      %v4424 = vld [vmem:[%s3336 + $0x4c] sm:$0xf]
      %v4425 = vld [vmem:[%s3336 + $0x50] sm:$0x1]
      %v4426 = vld [vmem:[%s3336 + $0x54] sm:$0xe]
      %v4427 = vld [vmem:[%s3336 + $0x58] sm:$0xf]
      %v4428 = vld [vmem:[%s3336 + $0x5c] sm:$0x1]
      %v4429 = vld [vmem:[%s3336 + $0x60] sm:$0xe]
      %v4430 = vld [vmem:[%s3336 + $0x64] sm:$0xf]
      %v4431 = vld [vmem:[%s3336 + $0x68] sm:$0x1]
      %v4432 = vld [vmem:[%s3336 + $0x6c] sm:$0xe]
      %v4433 = vld [vmem:[%s3336 + $0x70] sm:$0xf]
      %v4434 = vld [vmem:[%s3336 + $0x74] sm:$0x1]
      %v4435 = vld [vmem:[%s3336 + $0x78] sm:$0xe]
      %v4436 = vld [vmem:[%s3336 + $0x7c] sm:$0xf]
      %v4437 = vld [vmem:[%s3336 + $0x80] sm:$0x1]
      %v4438 = vld [vmem:[%s3336 + $0x84] sm:$0xe]
      %v4439 = vld [vmem:[%s3336 + $0x88] sm:$0xf]
      %v4440 = vld [vmem:[%s3336 + $0x8c] sm:$0x1]
      %v4441 = vld [vmem:[%s3336 + $0x90] sm:$0xe]
      %v4442 = vld [vmem:[%s3336 + $0x94] sm:$0xf]
      %v4443 = vld [vmem:[%s3336 + $0x98] sm:$0x1]
      %v4444 = vld [vmem:[%s3336 + $0x9c] sm:$0xe]
      %v4445 = vld [vmem:[%s3336 + $0xa0] sm:$0xf]
      %v4446 = vld [vmem:[%s3336 + $0xa4] sm:$0x1]
      %v4447 = vld [vmem:[%s3336 + $0xa8] sm:$0xe]
      %v4448 = vld [vmem:[%s3336 + $0xac] sm:$0xf]
      %v4449 = vld [vmem:[%s3336 + $0xb0] sm:$0x1]
      %v4450 = vld [vmem:[%s3336 + $0xb4] sm:$0xe]
      %v4451 = vld [vmem:[%s3336 + $0xb8] sm:$0xf]
      %v4452 = vld [vmem:[%s3336 + $0xbc] sm:$0x1]
      %v4501 = vrot.slane %v4405, 5
      %v4502 = vrot.slane %v4501, 4
      %v4503 = vrot.slane %v4406, 5
      %v4504 = vsel %vm1374, %v4502, %v4503
      %v4505 = vrot.slane %v4503, 4
      %v4506 = vrot.slane %v4407, 5
      %v4507 = vsel %vm1374, %v4505, %v4506
      %v4508 = vrot.slane %v4408, 5
      %v4509 = vrot.slane %v4508, 4
      %v4510 = vrot.slane %v4409, 5
      %v4511 = vsel %vm1374, %v4509, %v4510
      %v4512 = vrot.slane %v4510, 4
      %v4513 = vrot.slane %v4410, 5
      %v4514 = vsel %vm1374, %v4512, %v4513
      %v4515 = vrot.slane %v4411, 5
      %v4516 = vrot.slane %v4515, 4
      %v4517 = vrot.slane %v4412, 5
      %v4518 = vsel %vm1374, %v4516, %v4517
      %v4519 = vrot.slane %v4517, 4
      %v4520 = vrot.slane %v4413, 5
      %v4521 = vsel %vm1374, %v4519, %v4520
      %v4522 = vrot.slane %v4414, 5
      %v4523 = vrot.slane %v4522, 4
      %v4524 = vrot.slane %v4415, 5
      %v4525 = vsel %vm1374, %v4523, %v4524
      %v4526 = vrot.slane %v4524, 4
      %v4527 = vrot.slane %v4416, 5
      %v4528 = vsel %vm1374, %v4526, %v4527
      %v4529 = vrot.slane %v4417, 5
      %v4530 = vrot.slane %v4529, 4
      %v4531 = vrot.slane %v4418, 5
      %v4532 = vsel %vm1374, %v4530, %v4531
      %v4533 = vrot.slane %v4531, 4
      %v4534 = vrot.slane %v4419, 5
      %v4535 = vsel %vm1374, %v4533, %v4534
      %v4536 = vrot.slane %v4420, 5
      %v4537 = vrot.slane %v4536, 4
      %v4538 = vrot.slane %v4421, 5
      %v4539 = vsel %vm1374, %v4537, %v4538
      %v4540 = vrot.slane %v4538, 4
      %v4541 = vrot.slane %v4422, 5
      %v4542 = vsel %vm1374, %v4540, %v4541
      %v4543 = vrot.slane %v4423, 5
      %v4544 = vrot.slane %v4543, 4
      %v4545 = vrot.slane %v4424, 5
      %v4546 = vsel %vm1374, %v4544, %v4545
      %v4547 = vrot.slane %v4545, 4
      %v4548 = vrot.slane %v4425, 5
      %v4549 = vsel %vm1374, %v4547, %v4548
      %v4550 = vrot.slane %v4426, 5
      %v4551 = vrot.slane %v4550, 4
      %v4552 = vrot.slane %v4427, 5
      %v4553 = vsel %vm1374, %v4551, %v4552
      %v4554 = vrot.slane %v4552, 4
      %v4555 = vrot.slane %v4428, 5
      %v4556 = vsel %vm1374, %v4554, %v4555
      %v4557 = vrot.slane %v4429, 5
      %v4558 = vrot.slane %v4557, 4
      %v4559 = vrot.slane %v4430, 5
      %v4560 = vsel %vm1374, %v4558, %v4559
      %v4561 = vrot.slane %v4559, 4
      %v4562 = vrot.slane %v4431, 5
      %v4563 = vsel %vm1374, %v4561, %v4562
      %v4564 = vrot.slane %v4432, 5
      %v4565 = vrot.slane %v4564, 4
      %v4566 = vrot.slane %v4433, 5
      %v4567 = vsel %vm1374, %v4565, %v4566
      %v4568 = vrot.slane %v4566, 4
      %v4569 = vrot.slane %v4434, 5
      %v4570 = vsel %vm1374, %v4568, %v4569
      %v4571 = vrot.slane %v4435, 5
      %v4572 = vrot.slane %v4571, 4
      %v4573 = vrot.slane %v4436, 5
      %v4574 = vsel %vm1374, %v4572, %v4573
      %v4575 = vrot.slane %v4573, 4
      %v4576 = vrot.slane %v4437, 5
      %v4577 = vsel %vm1374, %v4575, %v4576
      %v4578 = vrot.slane %v4438, 5
      %v4579 = vrot.slane %v4578, 4
      %v4580 = vrot.slane %v4439, 5
      %v4581 = vsel %vm1374, %v4579, %v4580
      %v4582 = vrot.slane %v4580, 4
      %v4583 = vrot.slane %v4440, 5
      %v4584 = vsel %vm1374, %v4582, %v4583
      %v4585 = vrot.slane %v4441, 5
      %v4586 = vrot.slane %v4585, 4
      %v4587 = vrot.slane %v4442, 5
      %v4588 = vsel %vm1374, %v4586, %v4587
      %v4589 = vrot.slane %v4587, 4
      %v4590 = vrot.slane %v4443, 5
      %v4591 = vsel %vm1374, %v4589, %v4590
      %v4592 = vrot.slane %v4444, 5
      %v4593 = vrot.slane %v4592, 4
      %v4594 = vrot.slane %v4445, 5
      %v4595 = vsel %vm1374, %v4593, %v4594
      %v4596 = vrot.slane %v4594, 4
      %v4597 = vrot.slane %v4446, 5
      %v4598 = vsel %vm1374, %v4596, %v4597
      %v4599 = vrot.slane %v4447, 5
      %v4600 = vrot.slane %v4599, 4
      %v4601 = vrot.slane %v4448, 5
      %v4602 = vsel %vm1374, %v4600, %v4601
      %v4603 = vrot.slane %v4601, 4
      %v4604 = vrot.slane %v4449, 5
      %v4605 = vsel %vm1374, %v4603, %v4604
      %v4606 = vrot.slane %v4450, 5
      %v4607 = vrot.slane %v4606, 4
      %v4608 = vrot.slane %v4451, 5
      %v4609 = vsel %vm1374, %v4607, %v4608
      %v4610 = vrot.slane %v4608, 4
      %v4611 = vrot.slane %v4452, 5
      %v4612 = vsel %vm1374, %v4610, %v4611
      %v4613 = vld [vmem:[#allocation2] sm:$0xff]
      %v4614 = vld [vmem:[#allocation2 + $0x8] sm:$0xff]
      %v4615 = vld [vmem:[#allocation2 + $0x10] sm:$0xff]
      %v4616 = vld [vmem:[#allocation2 + $0x18] sm:$0xff]
      %v4617 = vld [vmem:[#allocation2 + $0x20] sm:$0xff]
      %v4618 = vld [vmem:[#allocation2 + $0x28] sm:$0xff]
      %v4619 = vld [vmem:[#allocation2 + $0x30] sm:$0xff]
      %v4620 = vld [vmem:[#allocation2 + $0x38] sm:$0xff]
      %v4621 = vld [vmem:[#allocation2 + $0x40] sm:$0xff]
      %v4622 = vld [vmem:[#allocation2 + $0x48] sm:$0xff]
      %v4623 = vld [vmem:[#allocation2 + $0x50] sm:$0xff]
      %v4624 = vld [vmem:[#allocation2 + $0x58] sm:$0xff]
      %v4625 = vld [vmem:[#allocation2 + $0x60] sm:$0xff]
      %v4626 = vld [vmem:[#allocation2 + $0x68] sm:$0xff]
      %v4627 = vld [vmem:[#allocation2 + $0x70] sm:$0xff]
      %v4628 = vld [vmem:[#allocation2 + $0x78] sm:$0xff]
      %v4629 = vld [vmem:[#allocation2 + $0x80] sm:$0xff]
      %v4630 = vld [vmem:[#allocation2 + $0x88] sm:$0xff]
      %v4631 = vld [vmem:[#allocation2 + $0x90] sm:$0xff]
      %v4632 = vld [vmem:[#allocation2 + $0x98] sm:$0xff]
      %v4633 = vld [vmem:[#allocation2 + $0xa0] sm:$0xff]
      %v4634 = vld [vmem:[#allocation2 + $0xa8] sm:$0xff]
      %v4635 = vld [vmem:[#allocation2 + $0xb0] sm:$0xff]
      %v4636 = vld [vmem:[#allocation2 + $0xb8] sm:$0xff]
      %v4637 = vld [vmem:[#allocation2 + $0xc0] sm:$0xff]
      %v4638 = vld [vmem:[#allocation2 + $0xc8] sm:$0xff]
      %v4639 = vld [vmem:[#allocation2 + $0xd0] sm:$0xff]
      %v4640 = vld [vmem:[#allocation2 + $0xd8] sm:$0xff]
      %v4641 = vld [vmem:[#allocation2 + $0xe0] sm:$0xff]
      %v4642 = vld [vmem:[#allocation2 + $0xe8] sm:$0xff]
      %v4643 = vld [vmem:[#allocation2 + $0xf0] sm:$0xff]
      %v4644 = vld [vmem:[#allocation2 + $0xf8] sm:$0xff]
      %s4645 = scalar_lea.vmem %s1, 16
      %v4646 = vld [vmem:[%s4645] sm:$0x3]
      %v4647 = vunpack.c.l.b16 %v4504
      %v4648 = vunpack.c.l.b16 %v4507
      %v4649 = vunpack.c.l.b16 %v4511
      %v4650 = vunpack.c.l.b16 %v4514
      %v4651 = vunpack.c.l.b16 %v4518
      %v4652 = vunpack.c.l.b16 %v4521
      %v4653 = vunpack.c.l.b16 %v4525
      %v4654 = vunpack.c.l.b16 %v4528
      %v4655 = vunpack.c.l.b16 %v4532
      %v4656 = vunpack.c.l.b16 %v4535
      %v4657 = vunpack.c.l.b16 %v4539
      %v4658 = vunpack.c.l.b16 %v4542
      %v4659 = vunpack.c.l.b16 %v4546
      %v4660 = vunpack.c.l.b16 %v4549
      %v4661 = vunpack.c.l.b16 %v4553
      %v4662 = vunpack.c.l.b16 %v4556
      %v4663 = vunpack.c.l.b16 %v4560
      %v4664 = vunpack.c.l.b16 %v4563
      %v4665 = vunpack.c.l.b16 %v4567
      %v4666 = vunpack.c.l.b16 %v4570
      %v4667 = vunpack.c.l.b16 %v4574
      %v4668 = vunpack.c.l.b16 %v4577
      %v4669 = vunpack.c.l.b16 %v4581
      %v4670 = vunpack.c.l.b16 %v4584
      %v4671 = vunpack.c.l.b16 %v4588
      %v4672 = vunpack.c.l.b16 %v4591
      %v4673 = vunpack.c.l.b16 %v4595
      %v4674 = vunpack.c.l.b16 %v4598
      %v4675 = vunpack.c.l.b16 %v4602
      %v4676 = vunpack.c.l.b16 %v4605
      %v4677 = vunpack.c.l.b16 %v4609
      %v4678 = vunpack.c.l.b16 %v4612
      %v4679 = vpack.c.b16 %v4648, %v4647
      %v4680 = vpack.c.b16 %v4650, %v4649
      %v4681 = vpack.c.b16 %v4652, %v4651
      %v4682 = vpack.c.b16 %v4654, %v4653
      %v4683 = vpack.c.b16 %v4656, %v4655
      %v4684 = vpack.c.b16 %v4658, %v4657
      %v4685 = vpack.c.b16 %v4660, %v4659
      %v4686 = vpack.c.b16 %v4662, %v4661
      %v4687 = vpack.c.b16 %v4664, %v4663
      %v4688 = vpack.c.b16 %v4666, %v4665
      %v4689 = vpack.c.b16 %v4668, %v4667
      %v4690 = vpack.c.b16 %v4670, %v4669
      %v4691 = vpack.c.b16 %v4672, %v4671
      %v4692 = vpack.c.b16 %v4674, %v4673
      %v4693 = vpack.c.b16 %v4676, %v4675
      %v4694 = vpack.c.b16 %v4678, %v4677
      %v4696 = vsel %vm349, %v4679, 0
      %v4699 = vsel %vm349, %v4680, 0
      %v4702 = vsel %vm349, %v4681, 0
      %v4705 = vsel %vm349, %v4682, 0
      %v4708 = vsel %vm349, %v4683, 0
      %v4711 = vsel %vm349, %v4684, 0
      %v4714 = vsel %vm349, %v4685, 0
      %v4717 = vsel %vm349, %v4686, 0
      %v4720 = vsel %vm349, %v4687, 0
      %v4723 = vsel %vm349, %v4688, 0
      %v4726 = vsel %vm349, %v4689, 0
      %v4729 = vsel %vm349, %v4690, 0
      %v4732 = vsel %vm349, %v4691, 0
      %v4735 = vsel %vm349, %v4692, 0
      %v4738 = vsel %vm349, %v4693, 0
      %v4741 = vsel %vm349, %v4694, 0
      %v4744 = vsel %vm398, %v4646, 0
      %4746 = vmatpush.bf16.msra.mxu0 0
      %4747 = vmatpush.bf16.msra.mxu0 0
      %4748 = vmatpush.bf16.msra.mxu0 0
      %4749 = vmatpush.bf16.msra.mxu0 0
      %4750 = vmatpush.bf16.msra.mxu0 0
      %4751 = vmatpush.bf16.msra.mxu0 0
      %4752 = vmatpush.bf16.msra.mxu0 0
      %4753 = vmatpush.bf16.msra.mxu0 %v4744
      %4754 = vmatmul.bf16.gmra.mxu0 %v4696
      %v4755 = vpop.f32.mrf.mxu0
      %v4756 = vadd.f32 0.0, %v4755
      %v4757 = vpop.f32.mrf.mxu0
      %v4758 = vadd.f32 0.0, %v4757
      %4759 = vmatmul.bf16.gmra.mxu0 %v4699
      %v4760 = vpop.f32.mrf.mxu0
      %v4761 = vadd.f32 0.0, %v4760
      %v4762 = vpop.f32.mrf.mxu0
      %v4763 = vadd.f32 0.0, %v4762
      %4764 = vmatmul.bf16.gmra.mxu0 %v4702
      %v4765 = vpop.f32.mrf.mxu0
      %v4766 = vadd.f32 0.0, %v4765
      %v4767 = vpop.f32.mrf.mxu0
      %v4768 = vadd.f32 0.0, %v4767
      %4769 = vmatmul.bf16.gmra.mxu0 %v4705
      %v4770 = vpop.f32.mrf.mxu0
      %v4771 = vadd.f32 0.0, %v4770
      %v4772 = vpop.f32.mrf.mxu0
      %v4773 = vadd.f32 0.0, %v4772
      %4774 = vmatmul.bf16.gmra.mxu0 %v4708
      %v4775 = vpop.f32.mrf.mxu0
      %v4776 = vadd.f32 0.0, %v4775
      %v4777 = vpop.f32.mrf.mxu0
      %v4778 = vadd.f32 0.0, %v4777
      %4779 = vmatmul.bf16.gmra.mxu0 %v4711
      %v4780 = vpop.f32.mrf.mxu0
      %v4781 = vadd.f32 0.0, %v4780
      %v4782 = vpop.f32.mrf.mxu0
      %v4783 = vadd.f32 0.0, %v4782
      %4784 = vmatmul.bf16.gmra.mxu0 %v4714
      %v4785 = vpop.f32.mrf.mxu0
      %v4786 = vadd.f32 0.0, %v4785
      %v4787 = vpop.f32.mrf.mxu0
      %v4788 = vadd.f32 0.0, %v4787
      %4789 = vmatmul.bf16.gmra.mxu0 %v4717
      %v4790 = vpop.f32.mrf.mxu0
      %v4791 = vadd.f32 0.0, %v4790
      %v4792 = vpop.f32.mrf.mxu0
      %v4793 = vadd.f32 0.0, %v4792
      %4794 = vmatmul.bf16.gmra.mxu0 %v4720
      %v4795 = vpop.f32.mrf.mxu0
      %v4796 = vadd.f32 0.0, %v4795
      %v4797 = vpop.f32.mrf.mxu0
      %v4798 = vadd.f32 0.0, %v4797
      %4799 = vmatmul.bf16.gmra.mxu0 %v4723
      %v4800 = vpop.f32.mrf.mxu0
      %v4801 = vadd.f32 0.0, %v4800
      %v4802 = vpop.f32.mrf.mxu0
      %v4803 = vadd.f32 0.0, %v4802
      %4804 = vmatmul.bf16.gmra.mxu0 %v4726
      %v4805 = vpop.f32.mrf.mxu0
      %v4806 = vadd.f32 0.0, %v4805
      %v4807 = vpop.f32.mrf.mxu0
      %v4808 = vadd.f32 0.0, %v4807
      %4809 = vmatmul.bf16.gmra.mxu0 %v4729
      %v4810 = vpop.f32.mrf.mxu0
      %v4811 = vadd.f32 0.0, %v4810
      %v4812 = vpop.f32.mrf.mxu0
      %v4813 = vadd.f32 0.0, %v4812
      %4814 = vmatmul.bf16.gmra.mxu0 %v4732
      %v4815 = vpop.f32.mrf.mxu0
      %v4816 = vadd.f32 0.0, %v4815
      %v4817 = vpop.f32.mrf.mxu0
      %v4818 = vadd.f32 0.0, %v4817
      %4819 = vmatmul.bf16.gmra.mxu0 %v4735
      %v4820 = vpop.f32.mrf.mxu0
      %v4821 = vadd.f32 0.0, %v4820
      %v4822 = vpop.f32.mrf.mxu0
      %v4823 = vadd.f32 0.0, %v4822
      %4824 = vmatmul.bf16.gmra.mxu0 %v4738
      %v4825 = vpop.f32.mrf.mxu0
      %v4826 = vadd.f32 0.0, %v4825
      %v4827 = vpop.f32.mrf.mxu0
      %v4828 = vadd.f32 0.0, %v4827
      %4829 = vmatmul.bf16.gmra.mxu0 %v4741
      %v4830 = vpop.f32.mrf.mxu0
      %v4831 = vadd.f32 0.0, %v4830
      %v4832 = vpop.f32.mrf.mxu0
      %v4833 = vadd.f32 0.0, %v4832
      %4834 = vdwg.mxu0
      %v4835 = vadd.f32 %v4613, %v4756
      %v4836 = vadd.f32 %v4614, %v4758
      %v4837 = vadd.f32 %v4615, %v4761
      %v4838 = vadd.f32 %v4616, %v4763
      %v4839 = vadd.f32 %v4617, %v4766
      %v4840 = vadd.f32 %v4618, %v4768
      %v4841 = vadd.f32 %v4619, %v4771
      %v4842 = vadd.f32 %v4620, %v4773
      %v4843 = vadd.f32 %v4621, %v4776
      %v4844 = vadd.f32 %v4622, %v4778
      %v4845 = vadd.f32 %v4623, %v4781
      %v4846 = vadd.f32 %v4624, %v4783
      %v4847 = vadd.f32 %v4625, %v4786
      %v4848 = vadd.f32 %v4626, %v4788
      %v4849 = vadd.f32 %v4627, %v4791
      %v4850 = vadd.f32 %v4628, %v4793
      %v4851 = vadd.f32 %v4629, %v4796
      %v4852 = vadd.f32 %v4630, %v4798
      %v4853 = vadd.f32 %v4631, %v4801
      %v4854 = vadd.f32 %v4632, %v4803
      %v4855 = vadd.f32 %v4633, %v4806
      %v4856 = vadd.f32 %v4634, %v4808
      %v4857 = vadd.f32 %v4635, %v4811
      %v4858 = vadd.f32 %v4636, %v4813
      %v4859 = vadd.f32 %v4637, %v4816
      %v4860 = vadd.f32 %v4638, %v4818
      %v4861 = vadd.f32 %v4639, %v4821
      %v4862 = vadd.f32 %v4640, %v4823
      %v4863 = vadd.f32 %v4641, %v4826
      %v4864 = vadd.f32 %v4642, %v4828
      %v4865 = vadd.f32 %v4643, %v4831
      %v4866 = vadd.f32 %v4644, %v4833
      %4867 = vst [vmem:[#allocation2] sm:$0xff] %v4835
      %4868 = vst [vmem:[#allocation2 + $0x8] sm:$0xff] %v4836
      %4869 = vst [vmem:[#allocation2 + $0x10] sm:$0xff] %v4837
      %4870 = vst [vmem:[#allocation2 + $0x18] sm:$0xff] %v4838
      %4871 = vst [vmem:[#allocation2 + $0x20] sm:$0xff] %v4839
      %4872 = vst [vmem:[#allocation2 + $0x28] sm:$0xff] %v4840
      %4873 = vst [vmem:[#allocation2 + $0x30] sm:$0xff] %v4841
      %4874 = vst [vmem:[#allocation2 + $0x38] sm:$0xff] %v4842
      %4875 = vst [vmem:[#allocation2 + $0x40] sm:$0xff] %v4843
      %4876 = vst [vmem:[#allocation2 + $0x48] sm:$0xff] %v4844
      %4877 = vst [vmem:[#allocation2 + $0x50] sm:$0xff] %v4845
      %4878 = vst [vmem:[#allocation2 + $0x58] sm:$0xff] %v4846
      %4879 = vst [vmem:[#allocation2 + $0x60] sm:$0xff] %v4847
      %4880 = vst [vmem:[#allocation2 + $0x68] sm:$0xff] %v4848
      %4881 = vst [vmem:[#allocation2 + $0x70] sm:$0xff] %v4849
      %4882 = vst [vmem:[#allocation2 + $0x78] sm:$0xff] %v4850
      %4883 = vst [vmem:[#allocation2 + $0x80] sm:$0xff] %v4851
      %4884 = vst [vmem:[#allocation2 + $0x88] sm:$0xff] %v4852
      %4885 = vst [vmem:[#allocation2 + $0x90] sm:$0xff] %v4853
      %4886 = vst [vmem:[#allocation2 + $0x98] sm:$0xff] %v4854
      %4887 = vst [vmem:[#allocation2 + $0xa0] sm:$0xff] %v4855
      %4888 = vst [vmem:[#allocation2 + $0xa8] sm:$0xff] %v4856
      %4889 = vst [vmem:[#allocation2 + $0xb0] sm:$0xff] %v4857
      %4890 = vst [vmem:[#allocation2 + $0xb8] sm:$0xff] %v4858
      %4891 = vst [vmem:[#allocation2 + $0xc0] sm:$0xff] %v4859
      %4892 = vst [vmem:[#allocation2 + $0xc8] sm:$0xff] %v4860
      %4893 = vst [vmem:[#allocation2 + $0xd0] sm:$0xff] %v4861
      %4894 = vst [vmem:[#allocation2 + $0xd8] sm:$0xff] %v4862
      %4895 = vst [vmem:[#allocation2 + $0xe0] sm:$0xff] %v4863
      %4896 = vst [vmem:[#allocation2 + $0xe8] sm:$0xff] %v4864
      %4897 = vst [vmem:[#allocation2 + $0xf0] sm:$0xff] %v4865
      %4898 = vst [vmem:[#allocation2 + $0xf8] sm:$0xff] %v4866
      %v4899 = vld [vmem:[#allocation2] sm:$0xff]
      %v4900 = vld [vmem:[#allocation2 + $0x8] sm:$0xff]
      %v4901 = vld [vmem:[#allocation2 + $0x10] sm:$0xff]
      %v4902 = vld [vmem:[#allocation2 + $0x18] sm:$0xff]
      %v4903 = vld [vmem:[#allocation2 + $0x20] sm:$0xff]
      %v4904 = vld [vmem:[#allocation2 + $0x28] sm:$0xff]
      %v4905 = vld [vmem:[#allocation2 + $0x30] sm:$0xff]
      %v4906 = vld [vmem:[#allocation2 + $0x38] sm:$0xff]
      %v4907 = vld [vmem:[#allocation2 + $0x40] sm:$0xff]
      %v4908 = vld [vmem:[#allocation2 + $0x48] sm:$0xff]
      %v4909 = vld [vmem:[#allocation2 + $0x50] sm:$0xff]
      %v4910 = vld [vmem:[#allocation2 + $0x58] sm:$0xff]
      %v4911 = vld [vmem:[#allocation2 + $0x60] sm:$0xff]
      %v4912 = vld [vmem:[#allocation2 + $0x68] sm:$0xff]
      %v4913 = vld [vmem:[#allocation2 + $0x70] sm:$0xff]
      %v4914 = vld [vmem:[#allocation2 + $0x78] sm:$0xff]
      %v4915 = vld [vmem:[#allocation2 + $0x80] sm:$0xff]
      %v4916 = vld [vmem:[#allocation2 + $0x88] sm:$0xff]
      %v4917 = vld [vmem:[#allocation2 + $0x90] sm:$0xff]
      %v4918 = vld [vmem:[#allocation2 + $0x98] sm:$0xff]
      %v4919 = vld [vmem:[#allocation2 + $0xa0] sm:$0xff]
      %v4920 = vld [vmem:[#allocation2 + $0xa8] sm:$0xff]
      %v4921 = vld [vmem:[#allocation2 + $0xb0] sm:$0xff]
      %v4922 = vld [vmem:[#allocation2 + $0xb8] sm:$0xff]
      %v4923 = vld [vmem:[#allocation2 + $0xc0] sm:$0xff]
      %v4924 = vld [vmem:[#allocation2 + $0xc8] sm:$0xff]
      %v4925 = vld [vmem:[#allocation2 + $0xd0] sm:$0xff]
      %v4926 = vld [vmem:[#allocation2 + $0xd8] sm:$0xff]
      %v4927 = vld [vmem:[#allocation2 + $0xe0] sm:$0xff]
      %v4928 = vld [vmem:[#allocation2 + $0xe8] sm:$0xff]
      %v4929 = vld [vmem:[#allocation2 + $0xf0] sm:$0xff]
      %v4930 = vld [vmem:[#allocation2 + $0xf8] sm:$0xff]
      %v4931 = vld [vmem:[%s2] sm:$0x1]
      %v4933 = vperm.slane %v4931, 0
      %v4935 = vadd.f32 %v4899, %v4933
      %v4936 = vadd.f32 %v4900, %v4933
      %v4937 = vadd.f32 %v4901, %v4933
      %v4938 = vadd.f32 %v4902, %v4933
      %v4939 = vadd.f32 %v4903, %v4933
      %v4940 = vadd.f32 %v4904, %v4933
      %v4941 = vadd.f32 %v4905, %v4933
      %v4942 = vadd.f32 %v4906, %v4933
      %v4943 = vadd.f32 %v4907, %v4933
      %v4944 = vadd.f32 %v4908, %v4933
      %v4945 = vadd.f32 %v4909, %v4933
      %v4946 = vadd.f32 %v4910, %v4933
      %v4947 = vadd.f32 %v4911, %v4933
      %v4948 = vadd.f32 %v4912, %v4933
      %v4949 = vadd.f32 %v4913, %v4933
      %v4950 = vadd.f32 %v4914, %v4933
      %v4951 = vadd.f32 %v4915, %v4933
      %v4952 = vadd.f32 %v4916, %v4933
      %v4953 = vadd.f32 %v4917, %v4933
      %v4954 = vadd.f32 %v4918, %v4933
      %v4955 = vadd.f32 %v4919, %v4933
      %v4956 = vadd.f32 %v4920, %v4933
      %v4957 = vadd.f32 %v4921, %v4933
      %v4958 = vadd.f32 %v4922, %v4933
      %v4959 = vadd.f32 %v4923, %v4933
      %v4960 = vadd.f32 %v4924, %v4933
      %v4961 = vadd.f32 %v4925, %v4933
      %v4962 = vadd.f32 %v4926, %v4933
      %v4963 = vadd.f32 %v4927, %v4933
      %v4964 = vadd.f32 %v4928, %v4933
      %v4965 = vadd.f32 %v4929, %v4933
      %v4966 = vadd.f32 %v4930, %v4933
      %v4967 = vmax.f32 %v4935, 0.0
      %v4968 = vmax.f32 %v4936, 0.0
      %v4969 = vmax.f32 %v4937, 0.0
      %v4970 = vmax.f32 %v4938, 0.0
      %v4971 = vmax.f32 %v4939, 0.0
      %v4972 = vmax.f32 %v4940, 0.0
      %v4973 = vmax.f32 %v4941, 0.0
      %v4974 = vmax.f32 %v4942, 0.0
      %v4975 = vmax.f32 %v4943, 0.0
      %v4976 = vmax.f32 %v4944, 0.0
      %v4977 = vmax.f32 %v4945, 0.0
      %v4978 = vmax.f32 %v4946, 0.0
      %v4979 = vmax.f32 %v4947, 0.0
      %v4980 = vmax.f32 %v4948, 0.0
      %v4981 = vmax.f32 %v4949, 0.0
      %v4982 = vmax.f32 %v4950, 0.0
      %v4983 = vmax.f32 %v4951, 0.0
      %v4984 = vmax.f32 %v4952, 0.0
      %v4985 = vmax.f32 %v4953, 0.0
      %v4986 = vmax.f32 %v4954, 0.0
      %v4987 = vmax.f32 %v4955, 0.0
      %v4988 = vmax.f32 %v4956, 0.0
      %v4989 = vmax.f32 %v4957, 0.0
      %v4990 = vmax.f32 %v4958, 0.0
      %v4991 = vmax.f32 %v4959, 0.0
      %v4992 = vmax.f32 %v4960, 0.0
      %v4993 = vmax.f32 %v4961, 0.0
      %v4994 = vmax.f32 %v4962, 0.0
      %v4995 = vmax.f32 %v4963, 0.0
      %v4996 = vmax.f32 %v4964, 0.0
      %v4997 = vmax.f32 %v4965, 0.0
      %v4998 = vmax.f32 %v4966, 0.0
      %v4999 = vpack.c.bf16 %v4967, %v4967
      %v5000 = vpack.c.bf16 %v4968, %v4968
      %v5001 = vpack.c.bf16 %v4969, %v4969
      %v5002 = vpack.c.bf16 %v4970, %v4970
      %v5003 = vpack.c.bf16 %v4971, %v4971
      %v5004 = vpack.c.bf16 %v4972, %v4972
      %v5005 = vpack.c.bf16 %v4973, %v4973
      %v5006 = vpack.c.bf16 %v4974, %v4974
      %v5007 = vpack.c.bf16 %v4975, %v4975
      %v5008 = vpack.c.bf16 %v4976, %v4976
      %v5009 = vpack.c.bf16 %v4977, %v4977
      %v5010 = vpack.c.bf16 %v4978, %v4978
      %v5011 = vpack.c.bf16 %v4979, %v4979
      %v5012 = vpack.c.bf16 %v4980, %v4980
      %v5013 = vpack.c.bf16 %v4981, %v4981
      %v5014 = vpack.c.bf16 %v4982, %v4982
      %v5015 = vpack.c.bf16 %v4983, %v4983
      %v5016 = vpack.c.bf16 %v4984, %v4984
      %v5017 = vpack.c.bf16 %v4985, %v4985
      %v5018 = vpack.c.bf16 %v4986, %v4986
      %v5019 = vpack.c.bf16 %v4987, %v4987
      %v5020 = vpack.c.bf16 %v4988, %v4988
      %v5021 = vpack.c.bf16 %v4989, %v4989
      %v5022 = vpack.c.bf16 %v4990, %v4990
      %v5023 = vpack.c.bf16 %v4991, %v4991
      %v5024 = vpack.c.bf16 %v4992, %v4992
      %v5025 = vpack.c.bf16 %v4993, %v4993
      %v5026 = vpack.c.bf16 %v4994, %v4994
      %v5027 = vpack.c.bf16 %v4995, %v4995
      %v5028 = vpack.c.bf16 %v4996, %v4996
      %v5029 = vpack.c.bf16 %v4997, %v4997
      %v5030 = vpack.c.bf16 %v4998, %v4998
      %5031 = vst [vmem:[%s170] sm:$0xf] %v4999
      %5032 = vst [vmem:[%s170 + $0x4] sm:$0xf] %v5000
      %5033 = vst [vmem:[%s170 + $0x8] sm:$0xf] %v5001
      %5034 = vst [vmem:[%s170 + $0xc] sm:$0xf] %v5002
      %5035 = vst [vmem:[%s170 + $0x10] sm:$0xf] %v5003
      %5036 = vst [vmem:[%s170 + $0x14] sm:$0xf] %v5004
      %5037 = vst [vmem:[%s170 + $0x18] sm:$0xf] %v5005
      %5038 = vst [vmem:[%s170 + $0x1c] sm:$0xf] %v5006
      %5039 = vst [vmem:[%s170 + $0x20] sm:$0xf] %v5007
      %5040 = vst [vmem:[%s170 + $0x24] sm:$0xf] %v5008
      %5041 = vst [vmem:[%s170 + $0x28] sm:$0xf] %v5009
      %5042 = vst [vmem:[%s170 + $0x2c] sm:$0xf] %v5010
      %5043 = vst [vmem:[%s170 + $0x30] sm:$0xf] %v5011
      %5044 = vst [vmem:[%s170 + $0x34] sm:$0xf] %v5012
      %5045 = vst [vmem:[%s170 + $0x38] sm:$0xf] %v5013
      %5046 = vst [vmem:[%s170 + $0x3c] sm:$0xf] %v5014
      %5047 = vst [vmem:[%s170 + $0x40] sm:$0xf] %v5015
      %5048 = vst [vmem:[%s170 + $0x44] sm:$0xf] %v5016
      %5049 = vst [vmem:[%s170 + $0x48] sm:$0xf] %v5017
      %5050 = vst [vmem:[%s170 + $0x4c] sm:$0xf] %v5018
      %5051 = vst [vmem:[%s170 + $0x50] sm:$0xf] %v5019
      %5052 = vst [vmem:[%s170 + $0x54] sm:$0xf] %v5020
      %5053 = vst [vmem:[%s170 + $0x58] sm:$0xf] %v5021
      %5054 = vst [vmem:[%s170 + $0x5c] sm:$0xf] %v5022
      %5055 = vst [vmem:[%s170 + $0x60] sm:$0xf] %v5023
      %5056 = vst [vmem:[%s170 + $0x64] sm:$0xf] %v5024
      %5057 = vst [vmem:[%s170 + $0x68] sm:$0xf] %v5025
      %5058 = vst [vmem:[%s170 + $0x6c] sm:$0xf] %v5026
      %5059 = vst [vmem:[%s170 + $0x70] sm:$0xf] %v5027
      %5060 = vst [vmem:[%s170 + $0x74] sm:$0xf] %v5028
      %5061 = vst [vmem:[%s170 + $0x78] sm:$0xf] %v5029
      %5062 = vst [vmem:[%s170 + $0x7c] sm:$0xf] %v5030
      %p5063 = scmp.lt.s32.totalorder %s14, 1
      %s5064 = scalar_select %p5063, %s14, 1
      %s5065 = smul.addr %s5064, 32
      %s5066 = smul.addr %s5065, 4
      %s5067 = scalar_lea.vmem %s3, %s5066
      // Predicated region
      $region33: #{custom_timm_model_forward.2} parent=31 // pred_check
        %p5068 = pneg %p100
      $region34: #{custom_timm_model_forward.2} parent=31 // pred_check_branch
        %5070 = sbr.rel (%p5068) target = $region36
      $region35: #{custom_timm_model_forward.2} parent=31 // pred_region
        _
      $region36: #{custom_timm_model_forward.2} parent=31 // pred_fallthru
        _
    $region32: #{custom_timm_model_forward.2} parent=5 // pred_fallthru
      _
    %p5071 = scmp.le.s32.totalorder 2, %s9
    // Predicated region
    $region37: #{custom_timm_model_forward.2} parent=5 // pred_check
      %p5072 = pneg %p5071
    $region38: #{custom_timm_model_forward.2} parent=5 // pred_check_branch
      %5074 = sbr.rel (%p5072) target = $region40
    $region39: #{custom_timm_model_forward.2} parent=5 // pred_region
      %s5075 = ssub.s32 %s9, 2
      // Predicated region
      $region41: #{custom_timm_model_forward.2} parent=39 // pred_check
        %p5076 = pneg %p106
      $region42: #{custom_timm_model_forward.2} parent=39 // pred_check_branch
        %5078 = sbr.rel (%p5076) target = $region44
      $region43: #{custom_timm_model_forward.2} parent=39 // pred_region
        %p5079 = scmp.lt.s32.totalorder %s15, 1
        %s5080 = scalar_select %p5079, %s15, 1
        %s5081 = smul.addr %s5080, 32
        %s5082 = smul.addr %s5081, 4
        %s5083 = scalar_lea.vmem %s3, %s5082
      $region44: #{custom_timm_model_forward.2} parent=39 // pred_fallthru
        _
    $region40: #{custom_timm_model_forward.2} parent=5 // pred_fallthru
      _
  $region6: #{custom_timm_model_forward.2} parent=0 // loop_footer
    %s13 = sadd.s32 1, %s9
  $region7: #{custom_timm_model_forward.2} parent=0 // loop_footer_branch
    %8 = sbr.rel target = $region3
  $region8: #{custom_timm_model_forward.2} parent=0 // loop_exit
    _

// kernel: custom_timm_model_forward.3
$region0: #{custom_timm_model_forward.3}
  #allocation0 [shape = 'u32[]', space=smem, size = 0x4, offset = 0x4, fixed_abs, tag = 'smem constant byte address 0x4 - core index']
  #allocation1 [shape = 'u32[72,128]{1,0:T(1,128)}', space=vmem, size = 0x9000, scoped, tag = 'internal scratch']
  #allocation2 [shape = 'f32[256,128]{1,0:T(8,128)}', space=vmem, size = 0x20000, scoped, tag = 'scratch operand']
  %s0 = inlined_call_operand.vmem [shape: bf16[2,18,18,128], index: 0, kind: input, shape index: {}]
  %s1 = inlined_call_operand.vmem [shape: bf16[9,128,128], index: 1, kind: input, shape index: {}]
  %s2 = inlined_call_operand.vmem [shape: f32[1,128], index: 2, kind: input, shape index: {}]
  %s3 = inlined_call_operand.vmem [shape: f32[128,128], index: 3, kind: input, shape index: {}]
  %s4 = inlined_call_operand.vmem [shape: f32[1,128], index: 4, kind: input, shape index: {}]
  %s5 = inlined_call_operand.hbm [shape: f32[2,1,128], index: 5, kind: output, shape index: {}]
  %s6 = sld [smem:[#allocation0]]
  $region53: #{custom_timm_model_forward.3} parent=0
    _
  %s8 = ssub.s32 1, %s6
  %s9 = scalar_select 0, %s8, %s6
  $region1: #{custom_timm_model_forward.3} parent=0
    #allocation3 [shape = 'u8[1024]{0}', space=vmem, size = 0x400, scoped, tag = 'output window, operand 0']
    #allocation4 [shape = 's32[2]{0}', space=sflag, size = 0x8, scoped, tag = 'scoped memory for custom_timm_model_forward.3']
    %10 = vsyncpa [#allocation4], 0
    %s11 = scalar_lea.sflag [#allocation4], 1
    %12 = vsyncpa %s11, 0
    loop: start=0, step=1, limit=4
    $region2: #{custom_timm_model_forward.3} parent=1 // loop_pre_header
      _
    $region3: #{custom_timm_model_forward.3} parent=1 // loop_header
      %s14 = sphi 0, %s18
      %p15 = scmp.ge.s32.totalorder %s14, 4
      %s24 = sphi 0, %s26
      %s27 = sphi 0, %s24
      %s28 = sphi 0, %s27
      %s44 = sphi 0, %s28
      %s48 = sphi 0, %s48
      %s50 = sphi 0, %s48
      %s51 = sphi 0, %s50
      %s65 = sphi 0, %s51
      %s69 = sphi 0, %s69
      %s71 = sphi 0, %s69
      %s72 = sphi 0, %s71
      %s86 = sphi 0, %s72
      %s90 = sphi 0, %s90
      %s92 = sphi 0, %s90
      %s93 = sphi 0, %s92
      %s107 = sphi 0, %s93
      %s111 = sphi 0, %s111
      %s113 = sphi 0, %s111
      %s114 = sphi 0, %s113
      %s128 = sphi 0, %s114
      %s134 = sphi 0, %s136
      %s137 = sphi 0, %s134
      %s138 = sphi 0, %s137
      %s154 = sphi 0, %s138
    $region4: #{custom_timm_model_forward.3} parent=1 // loop_header_branch
      %17 = sbr.rel (%p15) target = $region8
    $region5: #{custom_timm_model_forward.3} parent=1 // loop_body
      %s19 = ssub.s32 %s14, 1
      %s20 = ssub.s32 %s14, 2
      %s21 = sadd.s32 %s14, 1
      %s22 = ssub.s32 %s14, %s21
      %p23 = scmp.eq.s32.totalorder %s22, 0
      %s25 = sadd.s32 %s24, 1
      %s26 = scalar_select %p23, %s24, %s25
      %p29 = pneg %p23
      %p30 = scmp.eq.s32.totalorder %s14, 1
      %p31 = por %p29, %p30
      %p32 = scmp.ne.s32.totalorder %s24, %s27
      %p33 = scmp.eq.s32.totalorder %s14, 0
      %p34 = por %p32, %p33
      %p35 = scmp.ne.s32.totalorder %s24, %s27
      %p36 = scmp.eq.s32.totalorder %s19, 1
      %p37 = por %p35, %p36
      %p38 = scmp.ne.s32.totalorder %s27, %s28
      %p39 = scmp.eq.s32.totalorder %s19, 0
      %p40 = por %p38, %p39
      %p41 = scmp.ne.s32.totalorder %s27, %s28
      %p42 = scmp.eq.s32.totalorder %s20, 1
      %p43 = por %p41, %p42
      %p45 = scmp.ne.s32.totalorder %s28, %s44
      %p46 = scmp.eq.s32.totalorder %s20, 0
      %p47 = por %p45, %p46
      %s49 = sadd.s32 %s48, 1
      %p52 = scmp.eq.s32.totalorder %s14, 1
      %p53 = scmp.ne.s32.totalorder %s48, %s50
      %p54 = scmp.eq.s32.totalorder %s14, 0
      %p55 = por %p53, %p54
      %p56 = scmp.ne.s32.totalorder %s48, %s50
      %p57 = scmp.eq.s32.totalorder %s19, 1
      %p58 = por %p56, %p57
      %p59 = scmp.ne.s32.totalorder %s50, %s51
      %p60 = scmp.eq.s32.totalorder %s19, 0
      %p61 = por %p59, %p60
      %p62 = scmp.ne.s32.totalorder %s50, %s51
      %p63 = scmp.eq.s32.totalorder %s20, 1
      %p64 = por %p62, %p63
      %p66 = scmp.ne.s32.totalorder %s51, %s65
      %p67 = scmp.eq.s32.totalorder %s20, 0
      %p68 = por %p66, %p67
      %s70 = sadd.s32 %s69, 1
      %p73 = scmp.eq.s32.totalorder %s14, 1
      %p74 = scmp.ne.s32.totalorder %s69, %s71
      %p75 = scmp.eq.s32.totalorder %s14, 0
      %p76 = por %p74, %p75
      %p77 = scmp.ne.s32.totalorder %s69, %s71
      %p78 = scmp.eq.s32.totalorder %s19, 1
      %p79 = por %p77, %p78
      %p80 = scmp.ne.s32.totalorder %s71, %s72
      %p81 = scmp.eq.s32.totalorder %s19, 0
      %p82 = por %p80, %p81
      %p83 = scmp.ne.s32.totalorder %s71, %s72
      %p84 = scmp.eq.s32.totalorder %s20, 1
      %p85 = por %p83, %p84
      %p87 = scmp.ne.s32.totalorder %s72, %s86
      %p88 = scmp.eq.s32.totalorder %s20, 0
      %p89 = por %p87, %p88
      %s91 = sadd.s32 %s90, 1
      %p94 = scmp.eq.s32.totalorder %s14, 1
      %p95 = scmp.ne.s32.totalorder %s90, %s92
      %p96 = scmp.eq.s32.totalorder %s14, 0
      %p97 = por %p95, %p96
      %p98 = scmp.ne.s32.totalorder %s90, %s92
      %p99 = scmp.eq.s32.totalorder %s19, 1
      %p100 = por %p98, %p99
      %p101 = scmp.ne.s32.totalorder %s92, %s93
      %p102 = scmp.eq.s32.totalorder %s19, 0
      %p103 = por %p101, %p102
      %p104 = scmp.ne.s32.totalorder %s92, %s93
      %p105 = scmp.eq.s32.totalorder %s20, 1
      %p106 = por %p104, %p105
      %p108 = scmp.ne.s32.totalorder %s93, %s107
      %p109 = scmp.eq.s32.totalorder %s20, 0
      %p110 = por %p108, %p109
      %s112 = sadd.s32 %s111, 1
      %p115 = scmp.eq.s32.totalorder %s14, 1
      %p116 = scmp.ne.s32.totalorder %s111, %s113
      %p117 = scmp.eq.s32.totalorder %s14, 0
      %p118 = por %p116, %p117
      %p119 = scmp.ne.s32.totalorder %s111, %s113
      %p120 = scmp.eq.s32.totalorder %s19, 1
      %p121 = por %p119, %p120
      %p122 = scmp.ne.s32.totalorder %s113, %s114
      %p123 = scmp.eq.s32.totalorder %s19, 0
      %p124 = por %p122, %p123
      %p125 = scmp.ne.s32.totalorder %s113, %s114
      %p126 = scmp.eq.s32.totalorder %s20, 1
      %p127 = por %p125, %p126
      %p129 = scmp.ne.s32.totalorder %s114, %s128
      %p130 = scmp.eq.s32.totalorder %s20, 0
      %p131 = por %p129, %p130
      %s132 = ssub.s32 %s14, %s21
      %p133 = scmp.eq.s32.totalorder %s132, 0
      %s135 = sadd.s32 %s134, 1
      %s136 = scalar_select %p133, %s134, %s135
      %p139 = pneg %p133
      %p140 = scmp.eq.s32.totalorder %s14, 1
      %p141 = por %p139, %p140
      %p142 = scmp.ne.s32.totalorder %s134, %s137
      %p143 = scmp.eq.s32.totalorder %s14, 0
      %p144 = por %p142, %p143
      %p145 = scmp.ne.s32.totalorder %s134, %s137
      %p146 = scmp.eq.s32.totalorder %s19, 1
      %p147 = por %p145, %p146
      %p148 = scmp.ne.s32.totalorder %s137, %s138
      %p149 = scmp.eq.s32.totalorder %s19, 0
      %p150 = por %p148, %p149
      %p151 = scmp.ne.s32.totalorder %s137, %s138
      %p152 = scmp.eq.s32.totalorder %s20, 1
      %p153 = por %p151, %p152
      %p155 = scmp.ne.s32.totalorder %s138, %s154
      %p156 = scmp.eq.s32.totalorder %s20, 0
      %p157 = por %p155, %p156
      %p158 = scmp.le.s32.totalorder 1, %s14
      %p159 = scmp.lt.s32.totalorder %s14, 3
      %p160 = pnand %p158, %p159
      %p161 = pneg %p160
      // Predicated region
      $region9: #{custom_timm_model_forward.3} parent=5 // pred_check
        _
      $region10: #{custom_timm_model_forward.3} parent=5 // pred_check_branch
        %163 = sbr.rel (%p160) target = $region12
      $region11: #{custom_timm_model_forward.3} parent=5 // pred_region
        %s164 = ssub.s32 %s14, 1
        // Predicated region
        $region13: #{custom_timm_model_forward.3} parent=11 // pred_check
          %p165 = pneg %p61
        $region14: #{custom_timm_model_forward.3} parent=11 // pred_check_branch
          %167 = sbr.rel (%p165) target = $region16
        $region15: #{custom_timm_model_forward.3} parent=11 // pred_region
          _
        $region16: #{custom_timm_model_forward.3} parent=11 // pred_fallthru
          _
        // Predicated region
        $region17: #{custom_timm_model_forward.3} parent=11 // pred_check
          %p168 = pneg %p82
        $region18: #{custom_timm_model_forward.3} parent=11 // pred_check_branch
          %170 = sbr.rel (%p168) target = $region20
        $region19: #{custom_timm_model_forward.3} parent=11 // pred_region
          _
        $region20: #{custom_timm_model_forward.3} parent=11 // pred_fallthru
          _
        // Predicated region
        $region21: #{custom_timm_model_forward.3} parent=11 // pred_check
          %p171 = pneg %p103
        $region22: #{custom_timm_model_forward.3} parent=11 // pred_check_branch
          %173 = sbr.rel (%p171) target = $region24
        $region23: #{custom_timm_model_forward.3} parent=11 // pred_region
          _
        $region24: #{custom_timm_model_forward.3} parent=11 // pred_fallthru
          _
        // Predicated region
        $region25: #{custom_timm_model_forward.3} parent=11 // pred_check
          %p174 = pneg %p124
        $region26: #{custom_timm_model_forward.3} parent=11 // pred_check_branch
          %176 = sbr.rel (%p174) target = $region28
        $region27: #{custom_timm_model_forward.3} parent=11 // pred_region
          _
        $region28: #{custom_timm_model_forward.3} parent=11 // pred_fallthru
          _
      $region12: #{custom_timm_model_forward.3} parent=5 // pred_fallthru
        _
      %p177 = scmp.lt.s32.totalorder %s14, 2
      // Predicated region
      $region29: #{custom_timm_model_forward.3} parent=5 // pred_check
        %p178 = pneg %p177
      $region30: #{custom_timm_model_forward.3} parent=5 // pred_check_branch
        %180 = sbr.rel (%p178) target = $region32
      $region31: #{custom_timm_model_forward.3} parent=5 // pred_region
        // Predicated region
        $region33: #{custom_timm_model_forward.3} parent=31 // pred_check
          %p181 = pneg %p34
        $region34: #{custom_timm_model_forward.3} parent=31 // pred_check_branch
          %183 = sbr.rel (%p181) target = $region36
        $region35: #{custom_timm_model_forward.3} parent=31 // pred_region
          %p184 = scmp.lt.s32.totalorder %s14, 1
          %s185 = scalar_select %p184, %s14, 1
          %s186 = smul.addr %s185, 54
          %s187 = smul.addr %s186, 4
          %s188 = scalar_lea.vmem %s0, %s187
        $region36: #{custom_timm_model_forward.3} parent=31 // pred_fallthru
          _
      $region32: #{custom_timm_model_forward.3} parent=5 // pred_fallthru
        _
      %p189 = scmp.le.s32.totalorder 1, %s14
      %p190 = scmp.lt.s32.totalorder %s14, 3
      %p191 = pnand %p189, %p190
      %p192 = pneg %p191
      // Predicated region
      $region37: #{custom_timm_model_forward.3} parent=5 // pred_check
        _
      $region38: #{custom_timm_model_forward.3} parent=5 // pred_check_branch
        %194 = sbr.rel (%p191) target = $region40
      $region39: #{custom_timm_model_forward.3} parent=5 // pred_region
        %s195 = ssub.s32 %s14, 1
        %p196 = scmp.lt.s32.totalorder %s19, 1
        %s197 = scalar_select %p196, %s19, 1
        %s198 = smul.addr %s197, 54
        %s199 = smul.addr %s198, 4
        %s200 = scalar_lea.vmem %s0, %s199
        %p201 = pneg %p40
        %p202 = pneg %p37
        %p203 = pneg %p61
        %p204 = pneg %p58
        %p205 = pneg %p82
        %p206 = pneg %p79
        %p207 = pneg %p103
        %p208 = pneg %p100
        %p209 = pneg %p124
        %p210 = pneg %p121
        %p211 = pneg %p150
        %p212 = pneg %p147
        %s213 = sand.u32 %s137, 1
        %s214 = scalar_lea.sflag [#allocation4], %s213
        %s215 = sand.u32 %s137, 1
        %s216 = scalar_lea.vmem [#allocation3], %s215
        %p217 = scmp.lt.s32.totalorder %s19, 1
        %s218 = scalar_select %p217, %s19, 1
        %s219 = smul.addr %s218, 54
        %s220 = smul.addr %s219, 4
        %s221 = scalar_lea.vmem %s0, %s220
        %222 = vst [vmem:[#allocation2] sm:$0xff] 0.0
        %223 = vst [vmem:[#allocation2 + $0x8] sm:$0xff] 0.0
        %224 = vst [vmem:[#allocation2 + $0x10] sm:$0xff] 0.0
        %225 = vst [vmem:[#allocation2 + $0x18] sm:$0xff] 0.0
        %226 = vst [vmem:[#allocation2 + $0x20] sm:$0xff] 0.0
        %227 = vst [vmem:[#allocation2 + $0x28] sm:$0xff] 0.0
        %228 = vst [vmem:[#allocation2 + $0x30] sm:$0xff] 0.0
        %229 = vst [vmem:[#allocation2 + $0x38] sm:$0xff] 0.0
        %230 = vst [vmem:[#allocation2 + $0x40] sm:$0xff] 0.0
        %231 = vst [vmem:[#allocation2 + $0x48] sm:$0xff] 0.0
        %232 = vst [vmem:[#allocation2 + $0x50] sm:$0xff] 0.0
        %233 = vst [vmem:[#allocation2 + $0x58] sm:$0xff] 0.0
        %234 = vst [vmem:[#allocation2 + $0x60] sm:$0xff] 0.0
        %235 = vst [vmem:[#allocation2 + $0x68] sm:$0xff] 0.0
        %236 = vst [vmem:[#allocation2 + $0x70] sm:$0xff] 0.0
        %237 = vst [vmem:[#allocation2 + $0x78] sm:$0xff] 0.0
        %238 = vst [vmem:[#allocation2 + $0x80] sm:$0xff] 0.0
        %239 = vst [vmem:[#allocation2 + $0x88] sm:$0xff] 0.0
        %240 = vst [vmem:[#allocation2 + $0x90] sm:$0xff] 0.0
        %241 = vst [vmem:[#allocation2 + $0x98] sm:$0xff] 0.0
        %242 = vst [vmem:[#allocation2 + $0xa0] sm:$0xff] 0.0
        %243 = vst [vmem:[#allocation2 + $0xa8] sm:$0xff] 0.0
        %244 = vst [vmem:[#allocation2 + $0xb0] sm:$0xff] 0.0
        %245 = vst [vmem:[#allocation2 + $0xb8] sm:$0xff] 0.0
        %246 = vst [vmem:[#allocation2 + $0xc0] sm:$0xff] 0.0
        %247 = vst [vmem:[#allocation2 + $0xc8] sm:$0xff] 0.0
        %248 = vst [vmem:[#allocation2 + $0xd0] sm:$0xff] 0.0
        %249 = vst [vmem:[#allocation2 + $0xd8] sm:$0xff] 0.0
        %250 = vst [vmem:[#allocation2 + $0xe0] sm:$0xff] 0.0
        %251 = vst [vmem:[#allocation2 + $0xe8] sm:$0xff] 0.0
        %252 = vst [vmem:[#allocation2 + $0xf0] sm:$0xff] 0.0
        %253 = vst [vmem:[#allocation2 + $0xf8] sm:$0xff] 0.0
        %v254 = vld [vmem:[%s221] sm:$0xf]
        %v255 = vld [vmem:[%s221 + $0x4] sm:$0xf]
        %v256 = vld [vmem:[%s221 + $0xc] sm:$0xf]
        %v257 = vld [vmem:[%s221 + $0x10] sm:$0xf]
        %v258 = vld [vmem:[%s221 + $0x18] sm:$0xf]
        %v259 = vld [vmem:[%s221 + $0x1c] sm:$0xf]
        %v260 = vld [vmem:[%s221 + $0x24] sm:$0xf]
        %v261 = vld [vmem:[%s221 + $0x28] sm:$0xf]
        %v262 = vld [vmem:[%s221 + $0x30] sm:$0xf]
        %v263 = vld [vmem:[%s221 + $0x34] sm:$0xf]
        %v264 = vld [vmem:[%s221 + $0x3c] sm:$0xf]
        %v265 = vld [vmem:[%s221 + $0x40] sm:$0xf]
        %v266 = vld [vmem:[%s221 + $0x48] sm:$0xf]
        %v267 = vld [vmem:[%s221 + $0x4c] sm:$0xf]
        %v268 = vld [vmem:[%s221 + $0x54] sm:$0xf]
        %v269 = vld [vmem:[%s221 + $0x58] sm:$0xf]
        %v270 = vld [vmem:[%s221 + $0x60] sm:$0xf]
        %v271 = vld [vmem:[%s221 + $0x64] sm:$0xf]
        %v272 = vld [vmem:[%s221 + $0x6c] sm:$0xf]
        %v273 = vld [vmem:[%s221 + $0x70] sm:$0xf]
        %v274 = vld [vmem:[%s221 + $0x78] sm:$0xf]
        %v275 = vld [vmem:[%s221 + $0x7c] sm:$0xf]
        %v276 = vld [vmem:[%s221 + $0x84] sm:$0xf]
        %v277 = vld [vmem:[%s221 + $0x88] sm:$0xf]
        %v278 = vld [vmem:[%s221 + $0x90] sm:$0xf]
        %v279 = vld [vmem:[%s221 + $0x94] sm:$0xf]
        %v280 = vld [vmem:[%s221 + $0x9c] sm:$0xf]
        %v281 = vld [vmem:[%s221 + $0xa0] sm:$0xf]
        %v282 = vld [vmem:[%s221 + $0xa8] sm:$0xf]
        %v283 = vld [vmem:[%s221 + $0xac] sm:$0xf]
        %v284 = vld [vmem:[%s221 + $0xb4] sm:$0xf]
        %v285 = vld [vmem:[%s221 + $0xb8] sm:$0xf]
        %v286 = vld [vmem:[#allocation2] sm:$0xff]
        %v287 = vld [vmem:[#allocation2 + $0x8] sm:$0xff]
        %v288 = vld [vmem:[#allocation2 + $0x10] sm:$0xff]
        %v289 = vld [vmem:[#allocation2 + $0x18] sm:$0xff]
        %v290 = vld [vmem:[#allocation2 + $0x20] sm:$0xff]
        %v291 = vld [vmem:[#allocation2 + $0x28] sm:$0xff]
        %v292 = vld [vmem:[#allocation2 + $0x30] sm:$0xff]
        %v293 = vld [vmem:[#allocation2 + $0x38] sm:$0xff]
        %v294 = vld [vmem:[#allocation2 + $0x40] sm:$0xff]
        %v295 = vld [vmem:[#allocation2 + $0x48] sm:$0xff]
        %v296 = vld [vmem:[#allocation2 + $0x50] sm:$0xff]
        %v297 = vld [vmem:[#allocation2 + $0x58] sm:$0xff]
        %v298 = vld [vmem:[#allocation2 + $0x60] sm:$0xff]
        %v299 = vld [vmem:[#allocation2 + $0x68] sm:$0xff]
        %v300 = vld [vmem:[#allocation2 + $0x70] sm:$0xff]
        %v301 = vld [vmem:[#allocation2 + $0x78] sm:$0xff]
        %v302 = vld [vmem:[#allocation2 + $0x80] sm:$0xff]
        %v303 = vld [vmem:[#allocation2 + $0x88] sm:$0xff]
        %v304 = vld [vmem:[#allocation2 + $0x90] sm:$0xff]
        %v305 = vld [vmem:[#allocation2 + $0x98] sm:$0xff]
        %v306 = vld [vmem:[#allocation2 + $0xa0] sm:$0xff]
        %v307 = vld [vmem:[#allocation2 + $0xa8] sm:$0xff]
        %v308 = vld [vmem:[#allocation2 + $0xb0] sm:$0xff]
        %v309 = vld [vmem:[#allocation2 + $0xb8] sm:$0xff]
        %v310 = vld [vmem:[#allocation2 + $0xc0] sm:$0xff]
        %v311 = vld [vmem:[#allocation2 + $0xc8] sm:$0xff]
        %v312 = vld [vmem:[#allocation2 + $0xd0] sm:$0xff]
        %v313 = vld [vmem:[#allocation2 + $0xd8] sm:$0xff]
        %v314 = vld [vmem:[#allocation2 + $0xe0] sm:$0xff]
        %v315 = vld [vmem:[#allocation2 + $0xe8] sm:$0xff]
        %v316 = vld [vmem:[#allocation2 + $0xf0] sm:$0xff]
        %v317 = vld [vmem:[#allocation2 + $0xf8] sm:$0xff]
        %v318 = vld [vmem:[%s1] sm:$0xf]
        %v319 = vld [vmem:[%s1 + $0x4] sm:$0xf]
        %v320 = vld [vmem:[%s1 + $0x8] sm:$0xf]
        %v321 = vld [vmem:[%s1 + $0xc] sm:$0xf]
        %v322 = vld [vmem:[%s1 + $0x10] sm:$0xf]
        %v323 = vld [vmem:[%s1 + $0x14] sm:$0xf]
        %v324 = vld [vmem:[%s1 + $0x18] sm:$0xf]
        %v325 = vld [vmem:[%s1 + $0x1c] sm:$0xf]
        %v326 = vld [vmem:[%s1 + $0x20] sm:$0xf]
        %v327 = vld [vmem:[%s1 + $0x24] sm:$0xf]
        %v328 = vld [vmem:[%s1 + $0x28] sm:$0xf]
        %v329 = vld [vmem:[%s1 + $0x2c] sm:$0xf]
        %v330 = vld [vmem:[%s1 + $0x30] sm:$0xf]
        %v331 = vld [vmem:[%s1 + $0x34] sm:$0xf]
        %v332 = vld [vmem:[%s1 + $0x38] sm:$0xf]
        %v333 = vld [vmem:[%s1 + $0x3c] sm:$0xf]
        %v366 = vunpack.c.l.b16 %v254
        %v367 = vunpack.c.l.b16 %v255
        %v368 = vunpack.c.l.b16 %v256
        %v369 = vunpack.c.l.b16 %v257
        %v370 = vunpack.c.l.b16 %v258
        %v371 = vunpack.c.l.b16 %v259
        %v372 = vunpack.c.l.b16 %v260
        %v373 = vunpack.c.l.b16 %v261
        %v374 = vunpack.c.l.b16 %v262
        %v375 = vunpack.c.l.b16 %v263
        %v376 = vunpack.c.l.b16 %v264
        %v377 = vunpack.c.l.b16 %v265
        %v378 = vunpack.c.l.b16 %v266
        %v379 = vunpack.c.l.b16 %v267
        %v380 = vunpack.c.l.b16 %v268
        %v381 = vunpack.c.l.b16 %v269
        %v382 = vunpack.c.l.b16 %v270
        %v383 = vunpack.c.l.b16 %v271
        %v384 = vunpack.c.l.b16 %v272
        %v385 = vunpack.c.l.b16 %v273
        %v386 = vunpack.c.l.b16 %v274
        %v387 = vunpack.c.l.b16 %v275
        %v388 = vunpack.c.l.b16 %v276
        %v389 = vunpack.c.l.b16 %v277
        %v390 = vunpack.c.l.b16 %v278
        %v391 = vunpack.c.l.b16 %v279
        %v392 = vunpack.c.l.b16 %v280
        %v393 = vunpack.c.l.b16 %v281
        %v394 = vunpack.c.l.b16 %v282
        %v395 = vunpack.c.l.b16 %v283
        %v396 = vunpack.c.l.b16 %v284
        %v397 = vunpack.c.l.b16 %v285
        %v398 = vpack.c.b16 %v367, %v366
        %v399 = vpack.c.b16 %v369, %v368
        %v400 = vpack.c.b16 %v371, %v370
        %v401 = vpack.c.b16 %v373, %v372
        %v402 = vpack.c.b16 %v375, %v374
        %v403 = vpack.c.b16 %v377, %v376
        %v404 = vpack.c.b16 %v379, %v378
        %v405 = vpack.c.b16 %v381, %v380
        %v406 = vpack.c.b16 %v383, %v382
        %v407 = vpack.c.b16 %v385, %v384
        %v408 = vpack.c.b16 %v387, %v386
        %v409 = vpack.c.b16 %v389, %v388
        %v410 = vpack.c.b16 %v391, %v390
        %v411 = vpack.c.b16 %v393, %v392
        %v412 = vpack.c.b16 %v395, %v394
        %v413 = vpack.c.b16 %v397, %v396
        %v446 = vunpack.c.l.b16 %v318
        %v447 = vunpack.c.l.b16 %v319
        %v448 = vunpack.c.l.b16 %v320
        %v449 = vunpack.c.l.b16 %v321
        %v450 = vunpack.c.l.b16 %v322
        %v451 = vunpack.c.l.b16 %v323
        %v452 = vunpack.c.l.b16 %v324
        %v453 = vunpack.c.l.b16 %v325
        %v454 = vunpack.c.l.b16 %v326
        %v455 = vunpack.c.l.b16 %v327
        %v456 = vunpack.c.l.b16 %v328
        %v457 = vunpack.c.l.b16 %v329
        %v458 = vunpack.c.l.b16 %v330
        %v459 = vunpack.c.l.b16 %v331
        %v460 = vunpack.c.l.b16 %v332
        %v461 = vunpack.c.l.b16 %v333
        %v462 = vpack.c.b16 %v447, %v446
        %v463 = vpack.c.b16 %v449, %v448
        %v464 = vpack.c.b16 %v451, %v450
        %v465 = vpack.c.b16 %v453, %v452
        %v466 = vpack.c.b16 %v455, %v454
        %v467 = vpack.c.b16 %v457, %v456
        %v468 = vpack.c.b16 %v459, %v458
        %v469 = vpack.c.b16 %v461, %v460
        %478 = vmatpush.bf16.msra.mxu0 %v469
        %479 = vmatpush.bf16.msra.mxu0 %v468
        %480 = vmatpush.bf16.msra.mxu0 %v467
        %481 = vmatpush.bf16.msra.mxu0 %v466
        %482 = vmatpush.bf16.msra.mxu0 %v465
        %483 = vmatpush.bf16.msra.mxu0 %v464
        %484 = vmatpush.bf16.msra.mxu0 %v463
        %485 = vmatpush.bf16.msra.mxu0 %v462
        %486 = vmatmul.bf16.gmra.mxu0 %v398
        %v487 = vpop.f32.mrf.mxu0
        %v488 = vadd.f32 0.0, %v487
        %v489 = vpop.f32.mrf.mxu0
        %v490 = vadd.f32 0.0, %v489
        %491 = vmatmul.bf16.gmra.mxu0 %v399
        %v492 = vpop.f32.mrf.mxu0
        %v493 = vadd.f32 0.0, %v492
        %v494 = vpop.f32.mrf.mxu0
        %v495 = vadd.f32 0.0, %v494
        %496 = vmatmul.bf16.gmra.mxu0 %v400
        %v497 = vpop.f32.mrf.mxu0
        %v498 = vadd.f32 0.0, %v497
        %v499 = vpop.f32.mrf.mxu0
        %v500 = vadd.f32 0.0, %v499
        %501 = vmatmul.bf16.gmra.mxu0 %v401
        %v502 = vpop.f32.mrf.mxu0
        %v503 = vadd.f32 0.0, %v502
        %v504 = vpop.f32.mrf.mxu0
        %v505 = vadd.f32 0.0, %v504
        %506 = vmatmul.bf16.gmra.mxu0 %v402
        %v507 = vpop.f32.mrf.mxu0
        %v508 = vadd.f32 0.0, %v507
        %v509 = vpop.f32.mrf.mxu0
        %v510 = vadd.f32 0.0, %v509
        %511 = vmatmul.bf16.gmra.mxu0 %v403
        %v512 = vpop.f32.mrf.mxu0
        %v513 = vadd.f32 0.0, %v512
        %v514 = vpop.f32.mrf.mxu0
        %v515 = vadd.f32 0.0, %v514
        %516 = vmatmul.bf16.gmra.mxu0 %v404
        %v517 = vpop.f32.mrf.mxu0
        %v518 = vadd.f32 0.0, %v517
        %v519 = vpop.f32.mrf.mxu0
        %v520 = vadd.f32 0.0, %v519
        %521 = vmatmul.bf16.gmra.mxu0 %v405
        %v522 = vpop.f32.mrf.mxu0
        %v523 = vadd.f32 0.0, %v522
        %v524 = vpop.f32.mrf.mxu0
        %v525 = vadd.f32 0.0, %v524
        %526 = vmatmul.bf16.gmra.mxu0 %v406
        %v527 = vpop.f32.mrf.mxu0
        %v528 = vadd.f32 0.0, %v527
        %v529 = vpop.f32.mrf.mxu0
        %v530 = vadd.f32 0.0, %v529
        %531 = vmatmul.bf16.gmra.mxu0 %v407
        %v532 = vpop.f32.mrf.mxu0
        %v533 = vadd.f32 0.0, %v532
        %v534 = vpop.f32.mrf.mxu0
        %v535 = vadd.f32 0.0, %v534
        %536 = vmatmul.bf16.gmra.mxu0 %v408
        %v537 = vpop.f32.mrf.mxu0
        %v538 = vadd.f32 0.0, %v537
        %v539 = vpop.f32.mrf.mxu0
        %v540 = vadd.f32 0.0, %v539
        %541 = vmatmul.bf16.gmra.mxu0 %v409
        %v542 = vpop.f32.mrf.mxu0
        %v543 = vadd.f32 0.0, %v542
        %v544 = vpop.f32.mrf.mxu0
        %v545 = vadd.f32 0.0, %v544
        %546 = vmatmul.bf16.gmra.mxu0 %v410
        %v547 = vpop.f32.mrf.mxu0
        %v548 = vadd.f32 0.0, %v547
        %v549 = vpop.f32.mrf.mxu0
        %v550 = vadd.f32 0.0, %v549
        %551 = vmatmul.bf16.gmra.mxu0 %v411
        %v552 = vpop.f32.mrf.mxu0
        %v553 = vadd.f32 0.0, %v552
        %v554 = vpop.f32.mrf.mxu0
        %v555 = vadd.f32 0.0, %v554
        %556 = vmatmul.bf16.gmra.mxu0 %v412
        %v557 = vpop.f32.mrf.mxu0
        %v558 = vadd.f32 0.0, %v557
        %v559 = vpop.f32.mrf.mxu0
        %v560 = vadd.f32 0.0, %v559
        %561 = vmatmul.bf16.gmra.mxu0 %v413
        %v562 = vpop.f32.mrf.mxu0
        %v563 = vadd.f32 0.0, %v562
        %v564 = vpop.f32.mrf.mxu0
        %v565 = vadd.f32 0.0, %v564
        %566 = vdwg.mxu0
        %v567 = vadd.f32 %v286, %v488
        %v568 = vadd.f32 %v287, %v490
        %v569 = vadd.f32 %v288, %v493
        %v570 = vadd.f32 %v289, %v495
        %v571 = vadd.f32 %v290, %v498
        %v572 = vadd.f32 %v291, %v500
        %v573 = vadd.f32 %v292, %v503
        %v574 = vadd.f32 %v293, %v505
        %v575 = vadd.f32 %v294, %v508
        %v576 = vadd.f32 %v295, %v510
        %v577 = vadd.f32 %v296, %v513
        %v578 = vadd.f32 %v297, %v515
        %v579 = vadd.f32 %v298, %v518
        %v580 = vadd.f32 %v299, %v520
        %v581 = vadd.f32 %v300, %v523
        %v582 = vadd.f32 %v301, %v525
        %v583 = vadd.f32 %v302, %v528
        %v584 = vadd.f32 %v303, %v530
        %v585 = vadd.f32 %v304, %v533
        %v586 = vadd.f32 %v305, %v535
        %v587 = vadd.f32 %v306, %v538
        %v588 = vadd.f32 %v307, %v540
        %v589 = vadd.f32 %v308, %v543
        %v590 = vadd.f32 %v309, %v545
        %v591 = vadd.f32 %v310, %v548
        %v592 = vadd.f32 %v311, %v550
        %v593 = vadd.f32 %v312, %v553
        %v594 = vadd.f32 %v313, %v555
        %v595 = vadd.f32 %v314, %v558
        %v596 = vadd.f32 %v315, %v560
        %v597 = vadd.f32 %v316, %v563
        %v598 = vadd.f32 %v317, %v565
        %599 = vst [vmem:[#allocation2] sm:$0xff] %v567
        %600 = vst [vmem:[#allocation2 + $0x8] sm:$0xff] %v568
        %601 = vst [vmem:[#allocation2 + $0x10] sm:$0xff] %v569
        %602 = vst [vmem:[#allocation2 + $0x18] sm:$0xff] %v570
        %603 = vst [vmem:[#allocation2 + $0x20] sm:$0xff] %v571
        %604 = vst [vmem:[#allocation2 + $0x28] sm:$0xff] %v572
        %605 = vst [vmem:[#allocation2 + $0x30] sm:$0xff] %v573
        %606 = vst [vmem:[#allocation2 + $0x38] sm:$0xff] %v574
        %607 = vst [vmem:[#allocation2 + $0x40] sm:$0xff] %v575
        %608 = vst [vmem:[#allocation2 + $0x48] sm:$0xff] %v576
        %609 = vst [vmem:[#allocation2 + $0x50] sm:$0xff] %v577
        %610 = vst [vmem:[#allocation2 + $0x58] sm:$0xff] %v578
        %611 = vst [vmem:[#allocation2 + $0x60] sm:$0xff] %v579
        %612 = vst [vmem:[#allocation2 + $0x68] sm:$0xff] %v580
        %613 = vst [vmem:[#allocation2 + $0x70] sm:$0xff] %v581
        %614 = vst [vmem:[#allocation2 + $0x78] sm:$0xff] %v582
        %615 = vst [vmem:[#allocation2 + $0x80] sm:$0xff] %v583
        %616 = vst [vmem:[#allocation2 + $0x88] sm:$0xff] %v584
        %617 = vst [vmem:[#allocation2 + $0x90] sm:$0xff] %v585
        %618 = vst [vmem:[#allocation2 + $0x98] sm:$0xff] %v586
        %619 = vst [vmem:[#allocation2 + $0xa0] sm:$0xff] %v587
        %620 = vst [vmem:[#allocation2 + $0xa8] sm:$0xff] %v588
        %621 = vst [vmem:[#allocation2 + $0xb0] sm:$0xff] %v589
        %622 = vst [vmem:[#allocation2 + $0xb8] sm:$0xff] %v590
        %623 = vst [vmem:[#allocation2 + $0xc0] sm:$0xff] %v591
        %624 = vst [vmem:[#allocation2 + $0xc8] sm:$0xff] %v592
        %625 = vst [vmem:[#allocation2 + $0xd0] sm:$0xff] %v593
        %626 = vst [vmem:[#allocation2 + $0xd8] sm:$0xff] %v594
        %627 = vst [vmem:[#allocation2 + $0xe0] sm:$0xff] %v595
        %628 = vst [vmem:[#allocation2 + $0xe8] sm:$0xff] %v596
        %629 = vst [vmem:[#allocation2 + $0xf0] sm:$0xff] %v597
        %630 = vst [vmem:[#allocation2 + $0xf8] sm:$0xff] %v598
        %v631 = vld [vmem:[%s221] sm:$0xf]
        %v632 = vld [vmem:[%s221 + $0x4] sm:$0xf]
        %v633 = vld [vmem:[%s221 + $0x8] sm:$0x1]
        %v634 = vld [vmem:[%s221 + $0xc] sm:$0xf]
        %v635 = vld [vmem:[%s221 + $0x10] sm:$0xf]
        %v636 = vld [vmem:[%s221 + $0x14] sm:$0x1]
        %v637 = vld [vmem:[%s221 + $0x18] sm:$0xf]
        %v638 = vld [vmem:[%s221 + $0x1c] sm:$0xf]
        %v639 = vld [vmem:[%s221 + $0x20] sm:$0x1]
        %v640 = vld [vmem:[%s221 + $0x24] sm:$0xf]
        %v641 = vld [vmem:[%s221 + $0x28] sm:$0xf]
        %v642 = vld [vmem:[%s221 + $0x2c] sm:$0x1]
        %v643 = vld [vmem:[%s221 + $0x30] sm:$0xf]
        %v644 = vld [vmem:[%s221 + $0x34] sm:$0xf]
        %v645 = vld [vmem:[%s221 + $0x38] sm:$0x1]
        %v646 = vld [vmem:[%s221 + $0x3c] sm:$0xf]
        %v647 = vld [vmem:[%s221 + $0x40] sm:$0xf]
        %v648 = vld [vmem:[%s221 + $0x44] sm:$0x1]
        %v649 = vld [vmem:[%s221 + $0x48] sm:$0xf]
        %v650 = vld [vmem:[%s221 + $0x4c] sm:$0xf]
        %v651 = vld [vmem:[%s221 + $0x50] sm:$0x1]
        %v652 = vld [vmem:[%s221 + $0x54] sm:$0xf]
        %v653 = vld [vmem:[%s221 + $0x58] sm:$0xf]
        %v654 = vld [vmem:[%s221 + $0x5c] sm:$0x1]
        %v655 = vld [vmem:[%s221 + $0x60] sm:$0xf]
        %v656 = vld [vmem:[%s221 + $0x64] sm:$0xf]
        %v657 = vld [vmem:[%s221 + $0x68] sm:$0x1]
        %v658 = vld [vmem:[%s221 + $0x6c] sm:$0xf]
        %v659 = vld [vmem:[%s221 + $0x70] sm:$0xf]
        %v660 = vld [vmem:[%s221 + $0x74] sm:$0x1]
        %v661 = vld [vmem:[%s221 + $0x78] sm:$0xf]
        %v662 = vld [vmem:[%s221 + $0x7c] sm:$0xf]
        %v663 = vld [vmem:[%s221 + $0x80] sm:$0x1]
        %v664 = vld [vmem:[%s221 + $0x84] sm:$0xf]
        %v665 = vld [vmem:[%s221 + $0x88] sm:$0xf]
        %v666 = vld [vmem:[%s221 + $0x8c] sm:$0x1]
        %v667 = vld [vmem:[%s221 + $0x90] sm:$0xf]
        %v668 = vld [vmem:[%s221 + $0x94] sm:$0xf]
        %v669 = vld [vmem:[%s221 + $0x98] sm:$0x1]
        %v670 = vld [vmem:[%s221 + $0x9c] sm:$0xf]
        %v671 = vld [vmem:[%s221 + $0xa0] sm:$0xf]
        %v672 = vld [vmem:[%s221 + $0xa4] sm:$0x1]
        %v673 = vld [vmem:[%s221 + $0xa8] sm:$0xf]
        %v674 = vld [vmem:[%s221 + $0xac] sm:$0xf]
        %v675 = vld [vmem:[%s221 + $0xb0] sm:$0x1]
        %v676 = vld [vmem:[%s221 + $0xb4] sm:$0xf]
        %v677 = vld [vmem:[%s221 + $0xb8] sm:$0xf]
        %v678 = vld [vmem:[%s221 + $0xbc] sm:$0x1]
        %vm679 = vsmask.f32 3328
        %vm680 = vsmask.f32 7440
        %vm681 = vmor %vm679, %vm680
        %v683 = vshrl.u32 %v631, 16
        %v685 = vrot.slane %v683, 4
        %v686 = vshll.u32 %v631, 16
        %v688 = vrot.slane %v686, 5
        %v689 = vor.u32 %v685, %v688
        %v690 = vrot.slane %v689, 4
        %v692 = vshll.u32 %v632, 16
        %v694 = vrot.slane %v692, 5
        %v695 = vsel %vm681, %v690, %v694
        %v696 = vshrl.u32 %v632, 16
        %v698 = vrot.slane %v696, 4
        %v699 = vor.u32 %v698, %v694
        %v700 = vrot.slane %v699, 4
        %v702 = vshll.u32 %v633, 16
        %v704 = vrot.slane %v702, 5
        %v705 = vsel %vm681, %v700, %v704
        %v707 = vshrl.u32 %v634, 16
        %v709 = vrot.slane %v707, 4
        %v710 = vshll.u32 %v634, 16
        %v712 = vrot.slane %v710, 5
        %v713 = vor.u32 %v709, %v712
        %v714 = vrot.slane %v713, 4
        %v716 = vshll.u32 %v635, 16
        %v718 = vrot.slane %v716, 5
        %v719 = vsel %vm681, %v714, %v718
        %v720 = vshrl.u32 %v635, 16
        %v722 = vrot.slane %v720, 4
        %v723 = vor.u32 %v722, %v718
        %v724 = vrot.slane %v723, 4
        %v726 = vshll.u32 %v636, 16
        %v728 = vrot.slane %v726, 5
        %v729 = vsel %vm681, %v724, %v728
        %v731 = vshrl.u32 %v637, 16
        %v733 = vrot.slane %v731, 4
        %v734 = vshll.u32 %v637, 16
        %v736 = vrot.slane %v734, 5
        %v737 = vor.u32 %v733, %v736
        %v738 = vrot.slane %v737, 4
        %v740 = vshll.u32 %v638, 16
        %v742 = vrot.slane %v740, 5
        %v743 = vsel %vm681, %v738, %v742
        %v744 = vshrl.u32 %v638, 16
        %v746 = vrot.slane %v744, 4
        %v747 = vor.u32 %v746, %v742
        %v748 = vrot.slane %v747, 4
        %v750 = vshll.u32 %v639, 16
        %v752 = vrot.slane %v750, 5
        %v753 = vsel %vm681, %v748, %v752
        %v755 = vshrl.u32 %v640, 16
        %v757 = vrot.slane %v755, 4
        %v758 = vshll.u32 %v640, 16
        %v760 = vrot.slane %v758, 5
        %v761 = vor.u32 %v757, %v760
        %v762 = vrot.slane %v761, 4
        %v764 = vshll.u32 %v641, 16
        %v766 = vrot.slane %v764, 5
        %v767 = vsel %vm681, %v762, %v766
        %v768 = vshrl.u32 %v641, 16
        %v770 = vrot.slane %v768, 4
        %v771 = vor.u32 %v770, %v766
        %v772 = vrot.slane %v771, 4
        %v774 = vshll.u32 %v642, 16
        %v776 = vrot.slane %v774, 5
        %v777 = vsel %vm681, %v772, %v776
        %v779 = vshrl.u32 %v643, 16
        %v781 = vrot.slane %v779, 4
        %v782 = vshll.u32 %v643, 16
        %v784 = vrot.slane %v782, 5
        %v785 = vor.u32 %v781, %v784
        %v786 = vrot.slane %v785, 4
        %v788 = vshll.u32 %v644, 16
        %v790 = vrot.slane %v788, 5
        %v791 = vsel %vm681, %v786, %v790
        %v792 = vshrl.u32 %v644, 16
        %v794 = vrot.slane %v792, 4
        %v795 = vor.u32 %v794, %v790
        %v796 = vrot.slane %v795, 4
        %v798 = vshll.u32 %v645, 16
        %v800 = vrot.slane %v798, 5
        %v801 = vsel %vm681, %v796, %v800
        %v803 = vshrl.u32 %v646, 16
        %v805 = vrot.slane %v803, 4
        %v806 = vshll.u32 %v646, 16
        %v808 = vrot.slane %v806, 5
        %v809 = vor.u32 %v805, %v808
        %v810 = vrot.slane %v809, 4
        %v812 = vshll.u32 %v647, 16
        %v814 = vrot.slane %v812, 5
        %v815 = vsel %vm681, %v810, %v814
        %v816 = vshrl.u32 %v647, 16
        %v818 = vrot.slane %v816, 4
        %v819 = vor.u32 %v818, %v814
        %v820 = vrot.slane %v819, 4
        %v822 = vshll.u32 %v648, 16
        %v824 = vrot.slane %v822, 5
        %v825 = vsel %vm681, %v820, %v824
        %v827 = vshrl.u32 %v649, 16
        %v829 = vrot.slane %v827, 4
        %v830 = vshll.u32 %v649, 16
        %v832 = vrot.slane %v830, 5
        %v833 = vor.u32 %v829, %v832
        %v834 = vrot.slane %v833, 4
        %v836 = vshll.u32 %v650, 16
        %v838 = vrot.slane %v836, 5
        %v839 = vsel %vm681, %v834, %v838
        %v840 = vshrl.u32 %v650, 16
        %v842 = vrot.slane %v840, 4
        %v843 = vor.u32 %v842, %v838
        %v844 = vrot.slane %v843, 4
        %v846 = vshll.u32 %v651, 16
        %v848 = vrot.slane %v846, 5
        %v849 = vsel %vm681, %v844, %v848
        %v851 = vshrl.u32 %v652, 16
        %v853 = vrot.slane %v851, 4
        %v854 = vshll.u32 %v652, 16
        %v856 = vrot.slane %v854, 5
        %v857 = vor.u32 %v853, %v856
        %v858 = vrot.slane %v857, 4
        %v860 = vshll.u32 %v653, 16
        %v862 = vrot.slane %v860, 5
        %v863 = vsel %vm681, %v858, %v862
        %v864 = vshrl.u32 %v653, 16
        %v866 = vrot.slane %v864, 4
        %v867 = vor.u32 %v866, %v862
        %v868 = vrot.slane %v867, 4
        %v870 = vshll.u32 %v654, 16
        %v872 = vrot.slane %v870, 5
        %v873 = vsel %vm681, %v868, %v872
        %v875 = vshrl.u32 %v655, 16
        %v877 = vrot.slane %v875, 4
        %v878 = vshll.u32 %v655, 16
        %v880 = vrot.slane %v878, 5
        %v881 = vor.u32 %v877, %v880
        %v882 = vrot.slane %v881, 4
        %v884 = vshll.u32 %v656, 16
        %v886 = vrot.slane %v884, 5
        %v887 = vsel %vm681, %v882, %v886
        %v888 = vshrl.u32 %v656, 16
        %v890 = vrot.slane %v888, 4
        %v891 = vor.u32 %v890, %v886
        %v892 = vrot.slane %v891, 4
        %v894 = vshll.u32 %v657, 16
        %v896 = vrot.slane %v894, 5
        %v897 = vsel %vm681, %v892, %v896
        %v899 = vshrl.u32 %v658, 16
        %v901 = vrot.slane %v899, 4
        %v902 = vshll.u32 %v658, 16
        %v904 = vrot.slane %v902, 5
        %v905 = vor.u32 %v901, %v904
        %v906 = vrot.slane %v905, 4
        %v908 = vshll.u32 %v659, 16
        %v910 = vrot.slane %v908, 5
        %v911 = vsel %vm681, %v906, %v910
        %v912 = vshrl.u32 %v659, 16
        %v914 = vrot.slane %v912, 4
        %v915 = vor.u32 %v914, %v910
        %v916 = vrot.slane %v915, 4
        %v918 = vshll.u32 %v660, 16
        %v920 = vrot.slane %v918, 5
        %v921 = vsel %vm681, %v916, %v920
        %v923 = vshrl.u32 %v661, 16
        %v925 = vrot.slane %v923, 4
        %v926 = vshll.u32 %v661, 16
        %v928 = vrot.slane %v926, 5
        %v929 = vor.u32 %v925, %v928
        %v930 = vrot.slane %v929, 4
        %v932 = vshll.u32 %v662, 16
        %v934 = vrot.slane %v932, 5
        %v935 = vsel %vm681, %v930, %v934
        %v936 = vshrl.u32 %v662, 16
        %v938 = vrot.slane %v936, 4
        %v939 = vor.u32 %v938, %v934
        %v940 = vrot.slane %v939, 4
        %v942 = vshll.u32 %v663, 16
        %v944 = vrot.slane %v942, 5
        %v945 = vsel %vm681, %v940, %v944
        %v947 = vshrl.u32 %v664, 16
        %v949 = vrot.slane %v947, 4
        %v950 = vshll.u32 %v664, 16
        %v952 = vrot.slane %v950, 5
        %v953 = vor.u32 %v949, %v952
        %v954 = vrot.slane %v953, 4
        %v956 = vshll.u32 %v665, 16
        %v958 = vrot.slane %v956, 5
        %v959 = vsel %vm681, %v954, %v958
        %v960 = vshrl.u32 %v665, 16
        %v962 = vrot.slane %v960, 4
        %v963 = vor.u32 %v962, %v958
        %v964 = vrot.slane %v963, 4
        %v966 = vshll.u32 %v666, 16
        %v968 = vrot.slane %v966, 5
        %v969 = vsel %vm681, %v964, %v968
        %v971 = vshrl.u32 %v667, 16
        %v973 = vrot.slane %v971, 4
        %v974 = vshll.u32 %v667, 16
        %v976 = vrot.slane %v974, 5
        %v977 = vor.u32 %v973, %v976
        %v978 = vrot.slane %v977, 4
        %v980 = vshll.u32 %v668, 16
        %v982 = vrot.slane %v980, 5
        %v983 = vsel %vm681, %v978, %v982
        %v984 = vshrl.u32 %v668, 16
        %v986 = vrot.slane %v984, 4
        %v987 = vor.u32 %v986, %v982
        %v988 = vrot.slane %v987, 4
        %v990 = vshll.u32 %v669, 16
        %v992 = vrot.slane %v990, 5
        %v993 = vsel %vm681, %v988, %v992
        %v995 = vshrl.u32 %v670, 16
        %v997 = vrot.slane %v995, 4
        %v998 = vshll.u32 %v670, 16
        %v1000 = vrot.slane %v998, 5
        %v1001 = vor.u32 %v997, %v1000
        %v1002 = vrot.slane %v1001, 4
        %v1004 = vshll.u32 %v671, 16
        %v1006 = vrot.slane %v1004, 5
        %v1007 = vsel %vm681, %v1002, %v1006
        %v1008 = vshrl.u32 %v671, 16
        %v1010 = vrot.slane %v1008, 4
        %v1011 = vor.u32 %v1010, %v1006
        %v1012 = vrot.slane %v1011, 4
        %v1014 = vshll.u32 %v672, 16
        %v1016 = vrot.slane %v1014, 5
        %v1017 = vsel %vm681, %v1012, %v1016
        %v1019 = vshrl.u32 %v673, 16
        %v1021 = vrot.slane %v1019, 4
        %v1022 = vshll.u32 %v673, 16
        %v1024 = vrot.slane %v1022, 5
        %v1025 = vor.u32 %v1021, %v1024
        %v1026 = vrot.slane %v1025, 4
        %v1028 = vshll.u32 %v674, 16
        %v1030 = vrot.slane %v1028, 5
        %v1031 = vsel %vm681, %v1026, %v1030
        %v1032 = vshrl.u32 %v674, 16
        %v1034 = vrot.slane %v1032, 4
        %v1035 = vor.u32 %v1034, %v1030
        %v1036 = vrot.slane %v1035, 4
        %v1038 = vshll.u32 %v675, 16
        %v1040 = vrot.slane %v1038, 5
        %v1041 = vsel %vm681, %v1036, %v1040
        %v1043 = vshrl.u32 %v676, 16
        %v1045 = vrot.slane %v1043, 4
        %v1046 = vshll.u32 %v676, 16
        %v1048 = vrot.slane %v1046, 5
        %v1049 = vor.u32 %v1045, %v1048
        %v1050 = vrot.slane %v1049, 4
        %v1052 = vshll.u32 %v677, 16
        %v1054 = vrot.slane %v1052, 5
        %v1055 = vsel %vm681, %v1050, %v1054
        %v1056 = vshrl.u32 %v677, 16
        %v1058 = vrot.slane %v1056, 4
        %v1059 = vor.u32 %v1058, %v1054
        %v1060 = vrot.slane %v1059, 4
        %v1062 = vshll.u32 %v678, 16
        %v1064 = vrot.slane %v1062, 5
        %v1065 = vsel %vm681, %v1060, %v1064
        %v1066 = vld [vmem:[#allocation2] sm:$0xff]
        %v1067 = vld [vmem:[#allocation2 + $0x8] sm:$0xff]
        %v1068 = vld [vmem:[#allocation2 + $0x10] sm:$0xff]
        %v1069 = vld [vmem:[#allocation2 + $0x18] sm:$0xff]
        %v1070 = vld [vmem:[#allocation2 + $0x20] sm:$0xff]
        %v1071 = vld [vmem:[#allocation2 + $0x28] sm:$0xff]
        %v1072 = vld [vmem:[#allocation2 + $0x30] sm:$0xff]
        %v1073 = vld [vmem:[#allocation2 + $0x38] sm:$0xff]
        %v1074 = vld [vmem:[#allocation2 + $0x40] sm:$0xff]
        %v1075 = vld [vmem:[#allocation2 + $0x48] sm:$0xff]
        %v1076 = vld [vmem:[#allocation2 + $0x50] sm:$0xff]
        %v1077 = vld [vmem:[#allocation2 + $0x58] sm:$0xff]
        %v1078 = vld [vmem:[#allocation2 + $0x60] sm:$0xff]
        %v1079 = vld [vmem:[#allocation2 + $0x68] sm:$0xff]
        %v1080 = vld [vmem:[#allocation2 + $0x70] sm:$0xff]
        %v1081 = vld [vmem:[#allocation2 + $0x78] sm:$0xff]
        %v1082 = vld [vmem:[#allocation2 + $0x80] sm:$0xff]
        %v1083 = vld [vmem:[#allocation2 + $0x88] sm:$0xff]
        %v1084 = vld [vmem:[#allocation2 + $0x90] sm:$0xff]
        %v1085 = vld [vmem:[#allocation2 + $0x98] sm:$0xff]
        %v1086 = vld [vmem:[#allocation2 + $0xa0] sm:$0xff]
        %v1087 = vld [vmem:[#allocation2 + $0xa8] sm:$0xff]
        %v1088 = vld [vmem:[#allocation2 + $0xb0] sm:$0xff]
        %v1089 = vld [vmem:[#allocation2 + $0xb8] sm:$0xff]
        %v1090 = vld [vmem:[#allocation2 + $0xc0] sm:$0xff]
        %v1091 = vld [vmem:[#allocation2 + $0xc8] sm:$0xff]
        %v1092 = vld [vmem:[#allocation2 + $0xd0] sm:$0xff]
        %v1093 = vld [vmem:[#allocation2 + $0xd8] sm:$0xff]
        %v1094 = vld [vmem:[#allocation2 + $0xe0] sm:$0xff]
        %v1095 = vld [vmem:[#allocation2 + $0xe8] sm:$0xff]
        %v1096 = vld [vmem:[#allocation2 + $0xf0] sm:$0xff]
        %v1097 = vld [vmem:[#allocation2 + $0xf8] sm:$0xff]
        %s1098 = scalar_lea.vmem %s1, 64
        %v1099 = vld [vmem:[%s1098] sm:$0xf]
        %v1100 = vld [vmem:[%s1098 + $0x4] sm:$0xf]
        %v1101 = vld [vmem:[%s1098 + $0x8] sm:$0xf]
        %v1102 = vld [vmem:[%s1098 + $0xc] sm:$0xf]
        %v1103 = vld [vmem:[%s1098 + $0x10] sm:$0xf]
        %v1104 = vld [vmem:[%s1098 + $0x14] sm:$0xf]
        %v1105 = vld [vmem:[%s1098 + $0x18] sm:$0xf]
        %v1106 = vld [vmem:[%s1098 + $0x1c] sm:$0xf]
        %v1107 = vld [vmem:[%s1098 + $0x20] sm:$0xf]
        %v1108 = vld [vmem:[%s1098 + $0x24] sm:$0xf]
        %v1109 = vld [vmem:[%s1098 + $0x28] sm:$0xf]
        %v1110 = vld [vmem:[%s1098 + $0x2c] sm:$0xf]
        %v1111 = vld [vmem:[%s1098 + $0x30] sm:$0xf]
        %v1112 = vld [vmem:[%s1098 + $0x34] sm:$0xf]
        %v1113 = vld [vmem:[%s1098 + $0x38] sm:$0xf]
        %v1114 = vld [vmem:[%s1098 + $0x3c] sm:$0xf]
        %v1115 = vunpack.c.l.b16 %v695
        %v1116 = vunpack.c.l.b16 %v705
        %v1117 = vunpack.c.l.b16 %v719
        %v1118 = vunpack.c.l.b16 %v729
        %v1119 = vunpack.c.l.b16 %v743
        %v1120 = vunpack.c.l.b16 %v753
        %v1121 = vunpack.c.l.b16 %v767
        %v1122 = vunpack.c.l.b16 %v777
        %v1123 = vunpack.c.l.b16 %v791
        %v1124 = vunpack.c.l.b16 %v801
        %v1125 = vunpack.c.l.b16 %v815
        %v1126 = vunpack.c.l.b16 %v825
        %v1127 = vunpack.c.l.b16 %v839
        %v1128 = vunpack.c.l.b16 %v849
        %v1129 = vunpack.c.l.b16 %v863
        %v1130 = vunpack.c.l.b16 %v873
        %v1131 = vunpack.c.l.b16 %v887
        %v1132 = vunpack.c.l.b16 %v897
        %v1133 = vunpack.c.l.b16 %v911
        %v1134 = vunpack.c.l.b16 %v921
        %v1135 = vunpack.c.l.b16 %v935
        %v1136 = vunpack.c.l.b16 %v945
        %v1137 = vunpack.c.l.b16 %v959
        %v1138 = vunpack.c.l.b16 %v969
        %v1139 = vunpack.c.l.b16 %v983
        %v1140 = vunpack.c.l.b16 %v993
        %v1141 = vunpack.c.l.b16 %v1007
        %v1142 = vunpack.c.l.b16 %v1017
        %v1143 = vunpack.c.l.b16 %v1031
        %v1144 = vunpack.c.l.b16 %v1041
        %v1145 = vunpack.c.l.b16 %v1055
        %v1146 = vunpack.c.l.b16 %v1065
        %v1147 = vpack.c.b16 %v1116, %v1115
        %v1148 = vpack.c.b16 %v1118, %v1117
        %v1149 = vpack.c.b16 %v1120, %v1119
        %v1150 = vpack.c.b16 %v1122, %v1121
        %v1151 = vpack.c.b16 %v1124, %v1123
        %v1152 = vpack.c.b16 %v1126, %v1125
        %v1153 = vpack.c.b16 %v1128, %v1127
        %v1154 = vpack.c.b16 %v1130, %v1129
        %v1155 = vpack.c.b16 %v1132, %v1131
        %v1156 = vpack.c.b16 %v1134, %v1133
        %v1157 = vpack.c.b16 %v1136, %v1135
        %v1158 = vpack.c.b16 %v1138, %v1137
        %v1159 = vpack.c.b16 %v1140, %v1139
        %v1160 = vpack.c.b16 %v1142, %v1141
        %v1161 = vpack.c.b16 %v1144, %v1143
        %v1162 = vpack.c.b16 %v1146, %v1145
        %v1195 = vunpack.c.l.b16 %v1099
        %v1196 = vunpack.c.l.b16 %v1100
        %v1197 = vunpack.c.l.b16 %v1101
        %v1198 = vunpack.c.l.b16 %v1102
        %v1199 = vunpack.c.l.b16 %v1103
        %v1200 = vunpack.c.l.b16 %v1104
        %v1201 = vunpack.c.l.b16 %v1105
        %v1202 = vunpack.c.l.b16 %v1106
        %v1203 = vunpack.c.l.b16 %v1107
        %v1204 = vunpack.c.l.b16 %v1108
        %v1205 = vunpack.c.l.b16 %v1109
        %v1206 = vunpack.c.l.b16 %v1110
        %v1207 = vunpack.c.l.b16 %v1111
        %v1208 = vunpack.c.l.b16 %v1112
        %v1209 = vunpack.c.l.b16 %v1113
        %v1210 = vunpack.c.l.b16 %v1114
        %v1211 = vpack.c.b16 %v1196, %v1195
        %v1212 = vpack.c.b16 %v1198, %v1197
        %v1213 = vpack.c.b16 %v1200, %v1199
        %v1214 = vpack.c.b16 %v1202, %v1201
        %v1215 = vpack.c.b16 %v1204, %v1203
        %v1216 = vpack.c.b16 %v1206, %v1205
        %v1217 = vpack.c.b16 %v1208, %v1207
        %v1218 = vpack.c.b16 %v1210, %v1209
        %1227 = vmatpush.bf16.msra.mxu0 %v1218
        %1228 = vmatpush.bf16.msra.mxu0 %v1217
        %1229 = vmatpush.bf16.msra.mxu0 %v1216
        %1230 = vmatpush.bf16.msra.mxu0 %v1215
        %1231 = vmatpush.bf16.msra.mxu0 %v1214
        %1232 = vmatpush.bf16.msra.mxu0 %v1213
        %1233 = vmatpush.bf16.msra.mxu0 %v1212
        %1234 = vmatpush.bf16.msra.mxu0 %v1211
        %1235 = vmatmul.bf16.gmra.mxu0 %v1147
        %v1236 = vpop.f32.mrf.mxu0
        %v1237 = vadd.f32 0.0, %v1236
        %v1238 = vpop.f32.mrf.mxu0
        %v1239 = vadd.f32 0.0, %v1238
        %1240 = vmatmul.bf16.gmra.mxu0 %v1148
        %v1241 = vpop.f32.mrf.mxu0
        %v1242 = vadd.f32 0.0, %v1241
        %v1243 = vpop.f32.mrf.mxu0
        %v1244 = vadd.f32 0.0, %v1243
        %1245 = vmatmul.bf16.gmra.mxu0 %v1149
        %v1246 = vpop.f32.mrf.mxu0
        %v1247 = vadd.f32 0.0, %v1246
        %v1248 = vpop.f32.mrf.mxu0
        %v1249 = vadd.f32 0.0, %v1248
        %1250 = vmatmul.bf16.gmra.mxu0 %v1150
        %v1251 = vpop.f32.mrf.mxu0
        %v1252 = vadd.f32 0.0, %v1251
        %v1253 = vpop.f32.mrf.mxu0
        %v1254 = vadd.f32 0.0, %v1253
        %1255 = vmatmul.bf16.gmra.mxu0 %v1151
        %v1256 = vpop.f32.mrf.mxu0
        %v1257 = vadd.f32 0.0, %v1256
        %v1258 = vpop.f32.mrf.mxu0
        %v1259 = vadd.f32 0.0, %v1258
        %1260 = vmatmul.bf16.gmra.mxu0 %v1152
        %v1261 = vpop.f32.mrf.mxu0
        %v1262 = vadd.f32 0.0, %v1261
        %v1263 = vpop.f32.mrf.mxu0
        %v1264 = vadd.f32 0.0, %v1263
        %1265 = vmatmul.bf16.gmra.mxu0 %v1153
        %v1266 = vpop.f32.mrf.mxu0
        %v1267 = vadd.f32 0.0, %v1266
        %v1268 = vpop.f32.mrf.mxu0
        %v1269 = vadd.f32 0.0, %v1268
        %1270 = vmatmul.bf16.gmra.mxu0 %v1154
        %v1271 = vpop.f32.mrf.mxu0
        %v1272 = vadd.f32 0.0, %v1271
        %v1273 = vpop.f32.mrf.mxu0
        %v1274 = vadd.f32 0.0, %v1273
        %1275 = vmatmul.bf16.gmra.mxu0 %v1155
        %v1276 = vpop.f32.mrf.mxu0
        %v1277 = vadd.f32 0.0, %v1276
        %v1278 = vpop.f32.mrf.mxu0
        %v1279 = vadd.f32 0.0, %v1278
        %1280 = vmatmul.bf16.gmra.mxu0 %v1156
        %v1281 = vpop.f32.mrf.mxu0
        %v1282 = vadd.f32 0.0, %v1281
        %v1283 = vpop.f32.mrf.mxu0
        %v1284 = vadd.f32 0.0, %v1283
        %1285 = vmatmul.bf16.gmra.mxu0 %v1157
        %v1286 = vpop.f32.mrf.mxu0
        %v1287 = vadd.f32 0.0, %v1286
        %v1288 = vpop.f32.mrf.mxu0
        %v1289 = vadd.f32 0.0, %v1288
        %1290 = vmatmul.bf16.gmra.mxu0 %v1158
        %v1291 = vpop.f32.mrf.mxu0
        %v1292 = vadd.f32 0.0, %v1291
        %v1293 = vpop.f32.mrf.mxu0
        %v1294 = vadd.f32 0.0, %v1293
        %1295 = vmatmul.bf16.gmra.mxu0 %v1159
        %v1296 = vpop.f32.mrf.mxu0
        %v1297 = vadd.f32 0.0, %v1296
        %v1298 = vpop.f32.mrf.mxu0
        %v1299 = vadd.f32 0.0, %v1298
        %1300 = vmatmul.bf16.gmra.mxu0 %v1160
        %v1301 = vpop.f32.mrf.mxu0
        %v1302 = vadd.f32 0.0, %v1301
        %v1303 = vpop.f32.mrf.mxu0
        %v1304 = vadd.f32 0.0, %v1303
        %1305 = vmatmul.bf16.gmra.mxu0 %v1161
        %v1306 = vpop.f32.mrf.mxu0
        %v1307 = vadd.f32 0.0, %v1306
        %v1308 = vpop.f32.mrf.mxu0
        %v1309 = vadd.f32 0.0, %v1308
        %1310 = vmatmul.bf16.gmra.mxu0 %v1162
        %v1311 = vpop.f32.mrf.mxu0
        %v1312 = vadd.f32 0.0, %v1311
        %v1313 = vpop.f32.mrf.mxu0
        %v1314 = vadd.f32 0.0, %v1313
        %1315 = vdwg.mxu0
        %v1316 = vadd.f32 %v1066, %v1237
        %v1317 = vadd.f32 %v1067, %v1239
        %v1318 = vadd.f32 %v1068, %v1242
        %v1319 = vadd.f32 %v1069, %v1244
        %v1320 = vadd.f32 %v1070, %v1247
        %v1321 = vadd.f32 %v1071, %v1249
        %v1322 = vadd.f32 %v1072, %v1252
        %v1323 = vadd.f32 %v1073, %v1254
        %v1324 = vadd.f32 %v1074, %v1257
        %v1325 = vadd.f32 %v1075, %v1259
        %v1326 = vadd.f32 %v1076, %v1262
        %v1327 = vadd.f32 %v1077, %v1264
        %v1328 = vadd.f32 %v1078, %v1267
        %v1329 = vadd.f32 %v1079, %v1269
        %v1330 = vadd.f32 %v1080, %v1272
        %v1331 = vadd.f32 %v1081, %v1274
        %v1332 = vadd.f32 %v1082, %v1277
        %v1333 = vadd.f32 %v1083, %v1279
        %v1334 = vadd.f32 %v1084, %v1282
        %v1335 = vadd.f32 %v1085, %v1284
        %v1336 = vadd.f32 %v1086, %v1287
        %v1337 = vadd.f32 %v1087, %v1289
        %v1338 = vadd.f32 %v1088, %v1292
        %v1339 = vadd.f32 %v1089, %v1294
        %v1340 = vadd.f32 %v1090, %v1297
        %v1341 = vadd.f32 %v1091, %v1299
        %v1342 = vadd.f32 %v1092, %v1302
        %v1343 = vadd.f32 %v1093, %v1304
        %v1344 = vadd.f32 %v1094, %v1307
        %v1345 = vadd.f32 %v1095, %v1309
        %v1346 = vadd.f32 %v1096, %v1312
        %v1347 = vadd.f32 %v1097, %v1314
        %1348 = vst [vmem:[#allocation2] sm:$0xff] %v1316
        %1349 = vst [vmem:[#allocation2 + $0x8] sm:$0xff] %v1317
        %1350 = vst [vmem:[#allocation2 + $0x10] sm:$0xff] %v1318
        %1351 = vst [vmem:[#allocation2 + $0x18] sm:$0xff] %v1319
        %1352 = vst [vmem:[#allocation2 + $0x20] sm:$0xff] %v1320
        %1353 = vst [vmem:[#allocation2 + $0x28] sm:$0xff] %v1321
        %1354 = vst [vmem:[#allocation2 + $0x30] sm:$0xff] %v1322
        %1355 = vst [vmem:[#allocation2 + $0x38] sm:$0xff] %v1323
        %1356 = vst [vmem:[#allocation2 + $0x40] sm:$0xff] %v1324
        %1357 = vst [vmem:[#allocation2 + $0x48] sm:$0xff] %v1325
        %1358 = vst [vmem:[#allocation2 + $0x50] sm:$0xff] %v1326
        %1359 = vst [vmem:[#allocation2 + $0x58] sm:$0xff] %v1327
        %1360 = vst [vmem:[#allocation2 + $0x60] sm:$0xff] %v1328
        %1361 = vst [vmem:[#allocation2 + $0x68] sm:$0xff] %v1329
        %1362 = vst [vmem:[#allocation2 + $0x70] sm:$0xff] %v1330
        %1363 = vst [vmem:[#allocation2 + $0x78] sm:$0xff] %v1331
        %1364 = vst [vmem:[#allocation2 + $0x80] sm:$0xff] %v1332
        %1365 = vst [vmem:[#allocation2 + $0x88] sm:$0xff] %v1333
        %1366 = vst [vmem:[#allocation2 + $0x90] sm:$0xff] %v1334
        %1367 = vst [vmem:[#allocation2 + $0x98] sm:$0xff] %v1335
        %1368 = vst [vmem:[#allocation2 + $0xa0] sm:$0xff] %v1336
        %1369 = vst [vmem:[#allocation2 + $0xa8] sm:$0xff] %v1337
        %1370 = vst [vmem:[#allocation2 + $0xb0] sm:$0xff] %v1338
        %1371 = vst [vmem:[#allocation2 + $0xb8] sm:$0xff] %v1339
        %1372 = vst [vmem:[#allocation2 + $0xc0] sm:$0xff] %v1340
        %1373 = vst [vmem:[#allocation2 + $0xc8] sm:$0xff] %v1341
        %1374 = vst [vmem:[#allocation2 + $0xd0] sm:$0xff] %v1342
        %1375 = vst [vmem:[#allocation2 + $0xd8] sm:$0xff] %v1343
        %1376 = vst [vmem:[#allocation2 + $0xe0] sm:$0xff] %v1344
        %1377 = vst [vmem:[#allocation2 + $0xe8] sm:$0xff] %v1345
        %1378 = vst [vmem:[#allocation2 + $0xf0] sm:$0xff] %v1346
        %1379 = vst [vmem:[#allocation2 + $0xf8] sm:$0xff] %v1347
        %v1380 = vld [vmem:[%s221] sm:$0xe]
        %v1381 = vld [vmem:[%s221 + $0x4] sm:$0xf]
        %v1382 = vld [vmem:[%s221 + $0x8] sm:$0x1]
        %v1383 = vld [vmem:[%s221 + $0xc] sm:$0xe]
        %v1384 = vld [vmem:[%s221 + $0x10] sm:$0xf]
        %v1385 = vld [vmem:[%s221 + $0x14] sm:$0x1]
        %v1386 = vld [vmem:[%s221 + $0x18] sm:$0xe]
        %v1387 = vld [vmem:[%s221 + $0x1c] sm:$0xf]
        %v1388 = vld [vmem:[%s221 + $0x20] sm:$0x1]
        %v1389 = vld [vmem:[%s221 + $0x24] sm:$0xe]
        %v1390 = vld [vmem:[%s221 + $0x28] sm:$0xf]
        %v1391 = vld [vmem:[%s221 + $0x2c] sm:$0x1]
        %v1392 = vld [vmem:[%s221 + $0x30] sm:$0xe]
        %v1393 = vld [vmem:[%s221 + $0x34] sm:$0xf]
        %v1394 = vld [vmem:[%s221 + $0x38] sm:$0x1]
        %v1395 = vld [vmem:[%s221 + $0x3c] sm:$0xe]
        %v1396 = vld [vmem:[%s221 + $0x40] sm:$0xf]
        %v1397 = vld [vmem:[%s221 + $0x44] sm:$0x1]
        %v1398 = vld [vmem:[%s221 + $0x48] sm:$0xe]
        %v1399 = vld [vmem:[%s221 + $0x4c] sm:$0xf]
        %v1400 = vld [vmem:[%s221 + $0x50] sm:$0x1]
        %v1401 = vld [vmem:[%s221 + $0x54] sm:$0xe]
        %v1402 = vld [vmem:[%s221 + $0x58] sm:$0xf]
        %v1403 = vld [vmem:[%s221 + $0x5c] sm:$0x1]
        %v1404 = vld [vmem:[%s221 + $0x60] sm:$0xe]
        %v1405 = vld [vmem:[%s221 + $0x64] sm:$0xf]
        %v1406 = vld [vmem:[%s221 + $0x68] sm:$0x1]
        %v1407 = vld [vmem:[%s221 + $0x6c] sm:$0xe]
        %v1408 = vld [vmem:[%s221 + $0x70] sm:$0xf]
        %v1409 = vld [vmem:[%s221 + $0x74] sm:$0x1]
        %v1410 = vld [vmem:[%s221 + $0x78] sm:$0xe]
        %v1411 = vld [vmem:[%s221 + $0x7c] sm:$0xf]
        %v1412 = vld [vmem:[%s221 + $0x80] sm:$0x1]
        %v1413 = vld [vmem:[%s221 + $0x84] sm:$0xe]
        %v1414 = vld [vmem:[%s221 + $0x88] sm:$0xf]
        %v1415 = vld [vmem:[%s221 + $0x8c] sm:$0x1]
        %v1416 = vld [vmem:[%s221 + $0x90] sm:$0xe]
        %v1417 = vld [vmem:[%s221 + $0x94] sm:$0xf]
        %v1418 = vld [vmem:[%s221 + $0x98] sm:$0x1]
        %v1419 = vld [vmem:[%s221 + $0x9c] sm:$0xe]
        %v1420 = vld [vmem:[%s221 + $0xa0] sm:$0xf]
        %v1421 = vld [vmem:[%s221 + $0xa4] sm:$0x1]
        %v1422 = vld [vmem:[%s221 + $0xa8] sm:$0xe]
        %v1423 = vld [vmem:[%s221 + $0xac] sm:$0xf]
        %v1424 = vld [vmem:[%s221 + $0xb0] sm:$0x1]
        %v1425 = vld [vmem:[%s221 + $0xb4] sm:$0xe]
        %v1426 = vld [vmem:[%s221 + $0xb8] sm:$0xf]
        %v1427 = vld [vmem:[%s221 + $0xbc] sm:$0x1]
        %vm1476 = vcmask 1042432
        %vm1477 = vcmask 1046532
        %vm1478 = vmor %vm1476, %vm1477
        %v1479 = vrot.slane %v1380, 5
        %v1480 = vrot.slane %v1479, 4
        %v1481 = vrot.slane %v1381, 5
        %v1482 = vsel %vm1478, %v1480, %v1481
        %v1483 = vrot.slane %v1481, 4
        %v1484 = vrot.slane %v1382, 5
        %v1485 = vsel %vm1478, %v1483, %v1484
        %v1486 = vrot.slane %v1383, 5
        %v1487 = vrot.slane %v1486, 4
        %v1488 = vrot.slane %v1384, 5
        %v1489 = vsel %vm1478, %v1487, %v1488
        %v1490 = vrot.slane %v1488, 4
        %v1491 = vrot.slane %v1385, 5
        %v1492 = vsel %vm1478, %v1490, %v1491
        %v1493 = vrot.slane %v1386, 5
        %v1494 = vrot.slane %v1493, 4
        %v1495 = vrot.slane %v1387, 5
        %v1496 = vsel %vm1478, %v1494, %v1495
        %v1497 = vrot.slane %v1495, 4
        %v1498 = vrot.slane %v1388, 5
        %v1499 = vsel %vm1478, %v1497, %v1498
        %v1500 = vrot.slane %v1389, 5
        %v1501 = vrot.slane %v1500, 4
        %v1502 = vrot.slane %v1390, 5
        %v1503 = vsel %vm1478, %v1501, %v1502
        %v1504 = vrot.slane %v1502, 4
        %v1505 = vrot.slane %v1391, 5
        %v1506 = vsel %vm1478, %v1504, %v1505
        %v1507 = vrot.slane %v1392, 5
        %v1508 = vrot.slane %v1507, 4
        %v1509 = vrot.slane %v1393, 5
        %v1510 = vsel %vm1478, %v1508, %v1509
        %v1511 = vrot.slane %v1509, 4
        %v1512 = vrot.slane %v1394, 5
        %v1513 = vsel %vm1478, %v1511, %v1512
        %v1514 = vrot.slane %v1395, 5
        %v1515 = vrot.slane %v1514, 4
        %v1516 = vrot.slane %v1396, 5
        %v1517 = vsel %vm1478, %v1515, %v1516
        %v1518 = vrot.slane %v1516, 4
        %v1519 = vrot.slane %v1397, 5
        %v1520 = vsel %vm1478, %v1518, %v1519
        %v1521 = vrot.slane %v1398, 5
        %v1522 = vrot.slane %v1521, 4
        %v1523 = vrot.slane %v1399, 5
        %v1524 = vsel %vm1478, %v1522, %v1523
        %v1525 = vrot.slane %v1523, 4
        %v1526 = vrot.slane %v1400, 5
        %v1527 = vsel %vm1478, %v1525, %v1526
        %v1528 = vrot.slane %v1401, 5
        %v1529 = vrot.slane %v1528, 4
        %v1530 = vrot.slane %v1402, 5
        %v1531 = vsel %vm1478, %v1529, %v1530
        %v1532 = vrot.slane %v1530, 4
        %v1533 = vrot.slane %v1403, 5
        %v1534 = vsel %vm1478, %v1532, %v1533
        %v1535 = vrot.slane %v1404, 5
        %v1536 = vrot.slane %v1535, 4
        %v1537 = vrot.slane %v1405, 5
        %v1538 = vsel %vm1478, %v1536, %v1537
        %v1539 = vrot.slane %v1537, 4
        %v1540 = vrot.slane %v1406, 5
        %v1541 = vsel %vm1478, %v1539, %v1540
        %v1542 = vrot.slane %v1407, 5
        %v1543 = vrot.slane %v1542, 4
        %v1544 = vrot.slane %v1408, 5
        %v1545 = vsel %vm1478, %v1543, %v1544
        %v1546 = vrot.slane %v1544, 4
        %v1547 = vrot.slane %v1409, 5
        %v1548 = vsel %vm1478, %v1546, %v1547
        %v1549 = vrot.slane %v1410, 5
        %v1550 = vrot.slane %v1549, 4
        %v1551 = vrot.slane %v1411, 5
        %v1552 = vsel %vm1478, %v1550, %v1551
        %v1553 = vrot.slane %v1551, 4
        %v1554 = vrot.slane %v1412, 5
        %v1555 = vsel %vm1478, %v1553, %v1554
        %v1556 = vrot.slane %v1413, 5
        %v1557 = vrot.slane %v1556, 4
        %v1558 = vrot.slane %v1414, 5
        %v1559 = vsel %vm1478, %v1557, %v1558
        %v1560 = vrot.slane %v1558, 4
        %v1561 = vrot.slane %v1415, 5
        %v1562 = vsel %vm1478, %v1560, %v1561
        %v1563 = vrot.slane %v1416, 5
        %v1564 = vrot.slane %v1563, 4
        %v1565 = vrot.slane %v1417, 5
        %v1566 = vsel %vm1478, %v1564, %v1565
        %v1567 = vrot.slane %v1565, 4
        %v1568 = vrot.slane %v1418, 5
        %v1569 = vsel %vm1478, %v1567, %v1568
        %v1570 = vrot.slane %v1419, 5
        %v1571 = vrot.slane %v1570, 4
        %v1572 = vrot.slane %v1420, 5
        %v1573 = vsel %vm1478, %v1571, %v1572
        %v1574 = vrot.slane %v1572, 4
        %v1575 = vrot.slane %v1421, 5
        %v1576 = vsel %vm1478, %v1574, %v1575
        %v1577 = vrot.slane %v1422, 5
        %v1578 = vrot.slane %v1577, 4
        %v1579 = vrot.slane %v1423, 5
        %v1580 = vsel %vm1478, %v1578, %v1579
        %v1581 = vrot.slane %v1579, 4
        %v1582 = vrot.slane %v1424, 5
        %v1583 = vsel %vm1478, %v1581, %v1582
        %v1584 = vrot.slane %v1425, 5
        %v1585 = vrot.slane %v1584, 4
        %v1586 = vrot.slane %v1426, 5
        %v1587 = vsel %vm1478, %v1585, %v1586
        %v1588 = vrot.slane %v1586, 4
        %v1589 = vrot.slane %v1427, 5
        %v1590 = vsel %vm1478, %v1588, %v1589
        %v1591 = vld [vmem:[#allocation2] sm:$0xff]
        %v1592 = vld [vmem:[#allocation2 + $0x8] sm:$0xff]
        %v1593 = vld [vmem:[#allocation2 + $0x10] sm:$0xff]
        %v1594 = vld [vmem:[#allocation2 + $0x18] sm:$0xff]
        %v1595 = vld [vmem:[#allocation2 + $0x20] sm:$0xff]
        %v1596 = vld [vmem:[#allocation2 + $0x28] sm:$0xff]
        %v1597 = vld [vmem:[#allocation2 + $0x30] sm:$0xff]
        %v1598 = vld [vmem:[#allocation2 + $0x38] sm:$0xff]
        %v1599 = vld [vmem:[#allocation2 + $0x40] sm:$0xff]
        %v1600 = vld [vmem:[#allocation2 + $0x48] sm:$0xff]
        %v1601 = vld [vmem:[#allocation2 + $0x50] sm:$0xff]
        %v1602 = vld [vmem:[#allocation2 + $0x58] sm:$0xff]
        %v1603 = vld [vmem:[#allocation2 + $0x60] sm:$0xff]
        %v1604 = vld [vmem:[#allocation2 + $0x68] sm:$0xff]
        %v1605 = vld [vmem:[#allocation2 + $0x70] sm:$0xff]
        %v1606 = vld [vmem:[#allocation2 + $0x78] sm:$0xff]
        %v1607 = vld [vmem:[#allocation2 + $0x80] sm:$0xff]
        %v1608 = vld [vmem:[#allocation2 + $0x88] sm:$0xff]
        %v1609 = vld [vmem:[#allocation2 + $0x90] sm:$0xff]
        %v1610 = vld [vmem:[#allocation2 + $0x98] sm:$0xff]
        %v1611 = vld [vmem:[#allocation2 + $0xa0] sm:$0xff]
        %v1612 = vld [vmem:[#allocation2 + $0xa8] sm:$0xff]
        %v1613 = vld [vmem:[#allocation2 + $0xb0] sm:$0xff]
        %v1614 = vld [vmem:[#allocation2 + $0xb8] sm:$0xff]
        %v1615 = vld [vmem:[#allocation2 + $0xc0] sm:$0xff]
        %v1616 = vld [vmem:[#allocation2 + $0xc8] sm:$0xff]
        %v1617 = vld [vmem:[#allocation2 + $0xd0] sm:$0xff]
        %v1618 = vld [vmem:[#allocation2 + $0xd8] sm:$0xff]
        %v1619 = vld [vmem:[#allocation2 + $0xe0] sm:$0xff]
        %v1620 = vld [vmem:[#allocation2 + $0xe8] sm:$0xff]
        %v1621 = vld [vmem:[#allocation2 + $0xf0] sm:$0xff]
        %v1622 = vld [vmem:[#allocation2 + $0xf8] sm:$0xff]
        %s1623 = scalar_lea.vmem %s1, 128
        %v1624 = vld [vmem:[%s1623] sm:$0xf]
        %v1625 = vld [vmem:[%s1623 + $0x4] sm:$0xf]
        %v1626 = vld [vmem:[%s1623 + $0x8] sm:$0xf]
        %v1627 = vld [vmem:[%s1623 + $0xc] sm:$0xf]
        %v1628 = vld [vmem:[%s1623 + $0x10] sm:$0xf]
        %v1629 = vld [vmem:[%s1623 + $0x14] sm:$0xf]
        %v1630 = vld [vmem:[%s1623 + $0x18] sm:$0xf]
        %v1631 = vld [vmem:[%s1623 + $0x1c] sm:$0xf]
        %v1632 = vld [vmem:[%s1623 + $0x20] sm:$0xf]
        %v1633 = vld [vmem:[%s1623 + $0x24] sm:$0xf]
        %v1634 = vld [vmem:[%s1623 + $0x28] sm:$0xf]
        %v1635 = vld [vmem:[%s1623 + $0x2c] sm:$0xf]
        %v1636 = vld [vmem:[%s1623 + $0x30] sm:$0xf]
        %v1637 = vld [vmem:[%s1623 + $0x34] sm:$0xf]
        %v1638 = vld [vmem:[%s1623 + $0x38] sm:$0xf]
        %v1639 = vld [vmem:[%s1623 + $0x3c] sm:$0xf]
        %v1640 = vunpack.c.l.b16 %v1482
        %v1641 = vunpack.c.l.b16 %v1485
        %v1642 = vunpack.c.l.b16 %v1489
        %v1643 = vunpack.c.l.b16 %v1492
        %v1644 = vunpack.c.l.b16 %v1496
        %v1645 = vunpack.c.l.b16 %v1499
        %v1646 = vunpack.c.l.b16 %v1503
        %v1647 = vunpack.c.l.b16 %v1506
        %v1648 = vunpack.c.l.b16 %v1510
        %v1649 = vunpack.c.l.b16 %v1513
        %v1650 = vunpack.c.l.b16 %v1517
        %v1651 = vunpack.c.l.b16 %v1520
        %v1652 = vunpack.c.l.b16 %v1524
        %v1653 = vunpack.c.l.b16 %v1527
        %v1654 = vunpack.c.l.b16 %v1531
        %v1655 = vunpack.c.l.b16 %v1534
        %v1656 = vunpack.c.l.b16 %v1538
        %v1657 = vunpack.c.l.b16 %v1541
        %v1658 = vunpack.c.l.b16 %v1545
        %v1659 = vunpack.c.l.b16 %v1548
        %v1660 = vunpack.c.l.b16 %v1552
        %v1661 = vunpack.c.l.b16 %v1555
        %v1662 = vunpack.c.l.b16 %v1559
        %v1663 = vunpack.c.l.b16 %v1562
        %v1664 = vunpack.c.l.b16 %v1566
        %v1665 = vunpack.c.l.b16 %v1569
        %v1666 = vunpack.c.l.b16 %v1573
        %v1667 = vunpack.c.l.b16 %v1576
        %v1668 = vunpack.c.l.b16 %v1580
        %v1669 = vunpack.c.l.b16 %v1583
        %v1670 = vunpack.c.l.b16 %v1587
        %v1671 = vunpack.c.l.b16 %v1590
        %v1672 = vpack.c.b16 %v1641, %v1640
        %v1673 = vpack.c.b16 %v1643, %v1642
        %v1674 = vpack.c.b16 %v1645, %v1644
        %v1675 = vpack.c.b16 %v1647, %v1646
        %v1676 = vpack.c.b16 %v1649, %v1648
        %v1677 = vpack.c.b16 %v1651, %v1650
        %v1678 = vpack.c.b16 %v1653, %v1652
        %v1679 = vpack.c.b16 %v1655, %v1654
        %v1680 = vpack.c.b16 %v1657, %v1656
        %v1681 = vpack.c.b16 %v1659, %v1658
        %v1682 = vpack.c.b16 %v1661, %v1660
        %v1683 = vpack.c.b16 %v1663, %v1662
        %v1684 = vpack.c.b16 %v1665, %v1664
        %v1685 = vpack.c.b16 %v1667, %v1666
        %v1686 = vpack.c.b16 %v1669, %v1668
        %v1687 = vpack.c.b16 %v1671, %v1670
        %v1720 = vunpack.c.l.b16 %v1624
        %v1721 = vunpack.c.l.b16 %v1625
        %v1722 = vunpack.c.l.b16 %v1626
        %v1723 = vunpack.c.l.b16 %v1627
        %v1724 = vunpack.c.l.b16 %v1628
        %v1725 = vunpack.c.l.b16 %v1629
        %v1726 = vunpack.c.l.b16 %v1630
        %v1727 = vunpack.c.l.b16 %v1631
        %v1728 = vunpack.c.l.b16 %v1632
        %v1729 = vunpack.c.l.b16 %v1633
        %v1730 = vunpack.c.l.b16 %v1634
        %v1731 = vunpack.c.l.b16 %v1635
        %v1732 = vunpack.c.l.b16 %v1636
        %v1733 = vunpack.c.l.b16 %v1637
        %v1734 = vunpack.c.l.b16 %v1638
        %v1735 = vunpack.c.l.b16 %v1639
        %v1736 = vpack.c.b16 %v1721, %v1720
        %v1737 = vpack.c.b16 %v1723, %v1722
        %v1738 = vpack.c.b16 %v1725, %v1724
        %v1739 = vpack.c.b16 %v1727, %v1726
        %v1740 = vpack.c.b16 %v1729, %v1728
        %v1741 = vpack.c.b16 %v1731, %v1730
        %v1742 = vpack.c.b16 %v1733, %v1732
        %v1743 = vpack.c.b16 %v1735, %v1734
        %1752 = vmatpush.bf16.msra.mxu0 %v1743
        %1753 = vmatpush.bf16.msra.mxu0 %v1742
        %1754 = vmatpush.bf16.msra.mxu0 %v1741
        %1755 = vmatpush.bf16.msra.mxu0 %v1740
        %1756 = vmatpush.bf16.msra.mxu0 %v1739
        %1757 = vmatpush.bf16.msra.mxu0 %v1738
        %1758 = vmatpush.bf16.msra.mxu0 %v1737
        %1759 = vmatpush.bf16.msra.mxu0 %v1736
        %1760 = vmatmul.bf16.gmra.mxu0 %v1672
        %v1761 = vpop.f32.mrf.mxu0
        %v1762 = vadd.f32 0.0, %v1761
        %v1763 = vpop.f32.mrf.mxu0
        %v1764 = vadd.f32 0.0, %v1763
        %1765 = vmatmul.bf16.gmra.mxu0 %v1673
        %v1766 = vpop.f32.mrf.mxu0
        %v1767 = vadd.f32 0.0, %v1766
        %v1768 = vpop.f32.mrf.mxu0
        %v1769 = vadd.f32 0.0, %v1768
        %1770 = vmatmul.bf16.gmra.mxu0 %v1674
        %v1771 = vpop.f32.mrf.mxu0
        %v1772 = vadd.f32 0.0, %v1771
        %v1773 = vpop.f32.mrf.mxu0
        %v1774 = vadd.f32 0.0, %v1773
        %1775 = vmatmul.bf16.gmra.mxu0 %v1675
        %v1776 = vpop.f32.mrf.mxu0
        %v1777 = vadd.f32 0.0, %v1776
        %v1778 = vpop.f32.mrf.mxu0
        %v1779 = vadd.f32 0.0, %v1778
        %1780 = vmatmul.bf16.gmra.mxu0 %v1676
        %v1781 = vpop.f32.mrf.mxu0
        %v1782 = vadd.f32 0.0, %v1781
        %v1783 = vpop.f32.mrf.mxu0
        %v1784 = vadd.f32 0.0, %v1783
        %1785 = vmatmul.bf16.gmra.mxu0 %v1677
        %v1786 = vpop.f32.mrf.mxu0
        %v1787 = vadd.f32 0.0, %v1786
        %v1788 = vpop.f32.mrf.mxu0
        %v1789 = vadd.f32 0.0, %v1788
        %1790 = vmatmul.bf16.gmra.mxu0 %v1678
        %v1791 = vpop.f32.mrf.mxu0
        %v1792 = vadd.f32 0.0, %v1791
        %v1793 = vpop.f32.mrf.mxu0
        %v1794 = vadd.f32 0.0, %v1793
        %1795 = vmatmul.bf16.gmra.mxu0 %v1679
        %v1796 = vpop.f32.mrf.mxu0
        %v1797 = vadd.f32 0.0, %v1796
        %v1798 = vpop.f32.mrf.mxu0
        %v1799 = vadd.f32 0.0, %v1798
        %1800 = vmatmul.bf16.gmra.mxu0 %v1680
        %v1801 = vpop.f32.mrf.mxu0
        %v1802 = vadd.f32 0.0, %v1801
        %v1803 = vpop.f32.mrf.mxu0
        %v1804 = vadd.f32 0.0, %v1803
        %1805 = vmatmul.bf16.gmra.mxu0 %v1681
        %v1806 = vpop.f32.mrf.mxu0
        %v1807 = vadd.f32 0.0, %v1806
        %v1808 = vpop.f32.mrf.mxu0
        %v1809 = vadd.f32 0.0, %v1808
        %1810 = vmatmul.bf16.gmra.mxu0 %v1682
        %v1811 = vpop.f32.mrf.mxu0
        %v1812 = vadd.f32 0.0, %v1811
        %v1813 = vpop.f32.mrf.mxu0
        %v1814 = vadd.f32 0.0, %v1813
        %1815 = vmatmul.bf16.gmra.mxu0 %v1683
        %v1816 = vpop.f32.mrf.mxu0
        %v1817 = vadd.f32 0.0, %v1816
        %v1818 = vpop.f32.mrf.mxu0
        %v1819 = vadd.f32 0.0, %v1818
        %1820 = vmatmul.bf16.gmra.mxu0 %v1684
        %v1821 = vpop.f32.mrf.mxu0
        %v1822 = vadd.f32 0.0, %v1821
        %v1823 = vpop.f32.mrf.mxu0
        %v1824 = vadd.f32 0.0, %v1823
        %1825 = vmatmul.bf16.gmra.mxu0 %v1685
        %v1826 = vpop.f32.mrf.mxu0
        %v1827 = vadd.f32 0.0, %v1826
        %v1828 = vpop.f32.mrf.mxu0
        %v1829 = vadd.f32 0.0, %v1828
        %1830 = vmatmul.bf16.gmra.mxu0 %v1686
        %v1831 = vpop.f32.mrf.mxu0
        %v1832 = vadd.f32 0.0, %v1831
        %v1833 = vpop.f32.mrf.mxu0
        %v1834 = vadd.f32 0.0, %v1833
        %1835 = vmatmul.bf16.gmra.mxu0 %v1687
        %v1836 = vpop.f32.mrf.mxu0
        %v1837 = vadd.f32 0.0, %v1836
        %v1838 = vpop.f32.mrf.mxu0
        %v1839 = vadd.f32 0.0, %v1838
        %1840 = vdwg.mxu0
        %v1841 = vadd.f32 %v1591, %v1762
        %v1842 = vadd.f32 %v1592, %v1764
        %v1843 = vadd.f32 %v1593, %v1767
        %v1844 = vadd.f32 %v1594, %v1769
        %v1845 = vadd.f32 %v1595, %v1772
        %v1846 = vadd.f32 %v1596, %v1774
        %v1847 = vadd.f32 %v1597, %v1777
        %v1848 = vadd.f32 %v1598, %v1779
        %v1849 = vadd.f32 %v1599, %v1782
        %v1850 = vadd.f32 %v1600, %v1784
        %v1851 = vadd.f32 %v1601, %v1787
        %v1852 = vadd.f32 %v1602, %v1789
        %v1853 = vadd.f32 %v1603, %v1792
        %v1854 = vadd.f32 %v1604, %v1794
        %v1855 = vadd.f32 %v1605, %v1797
        %v1856 = vadd.f32 %v1606, %v1799
        %v1857 = vadd.f32 %v1607, %v1802
        %v1858 = vadd.f32 %v1608, %v1804
        %v1859 = vadd.f32 %v1609, %v1807
        %v1860 = vadd.f32 %v1610, %v1809
        %v1861 = vadd.f32 %v1611, %v1812
        %v1862 = vadd.f32 %v1612, %v1814
        %v1863 = vadd.f32 %v1613, %v1817
        %v1864 = vadd.f32 %v1614, %v1819
        %v1865 = vadd.f32 %v1615, %v1822
        %v1866 = vadd.f32 %v1616, %v1824
        %v1867 = vadd.f32 %v1617, %v1827
        %v1868 = vadd.f32 %v1618, %v1829
        %v1869 = vadd.f32 %v1619, %v1832
        %v1870 = vadd.f32 %v1620, %v1834
        %v1871 = vadd.f32 %v1621, %v1837
        %v1872 = vadd.f32 %v1622, %v1839
        %1873 = vst [vmem:[#allocation2] sm:$0xff] %v1841
        %1874 = vst [vmem:[#allocation2 + $0x8] sm:$0xff] %v1842
        %1875 = vst [vmem:[#allocation2 + $0x10] sm:$0xff] %v1843
        %1876 = vst [vmem:[#allocation2 + $0x18] sm:$0xff] %v1844
        %1877 = vst [vmem:[#allocation2 + $0x20] sm:$0xff] %v1845
        %1878 = vst [vmem:[#allocation2 + $0x28] sm:$0xff] %v1846
        %1879 = vst [vmem:[#allocation2 + $0x30] sm:$0xff] %v1847
        %1880 = vst [vmem:[#allocation2 + $0x38] sm:$0xff] %v1848
        %1881 = vst [vmem:[#allocation2 + $0x40] sm:$0xff] %v1849
        %1882 = vst [vmem:[#allocation2 + $0x48] sm:$0xff] %v1850
        %1883 = vst [vmem:[#allocation2 + $0x50] sm:$0xff] %v1851
        %1884 = vst [vmem:[#allocation2 + $0x58] sm:$0xff] %v1852
        %1885 = vst [vmem:[#allocation2 + $0x60] sm:$0xff] %v1853
        %1886 = vst [vmem:[#allocation2 + $0x68] sm:$0xff] %v1854
        %1887 = vst [vmem:[#allocation2 + $0x70] sm:$0xff] %v1855
        %1888 = vst [vmem:[#allocation2 + $0x78] sm:$0xff] %v1856
        %1889 = vst [vmem:[#allocation2 + $0x80] sm:$0xff] %v1857
        %1890 = vst [vmem:[#allocation2 + $0x88] sm:$0xff] %v1858
        %1891 = vst [vmem:[#allocation2 + $0x90] sm:$0xff] %v1859
        %1892 = vst [vmem:[#allocation2 + $0x98] sm:$0xff] %v1860
        %1893 = vst [vmem:[#allocation2 + $0xa0] sm:$0xff] %v1861
        %1894 = vst [vmem:[#allocation2 + $0xa8] sm:$0xff] %v1862
        %1895 = vst [vmem:[#allocation2 + $0xb0] sm:$0xff] %v1863
        %1896 = vst [vmem:[#allocation2 + $0xb8] sm:$0xff] %v1864
        %1897 = vst [vmem:[#allocation2 + $0xc0] sm:$0xff] %v1865
        %1898 = vst [vmem:[#allocation2 + $0xc8] sm:$0xff] %v1866
        %1899 = vst [vmem:[#allocation2 + $0xd0] sm:$0xff] %v1867
        %1900 = vst [vmem:[#allocation2 + $0xd8] sm:$0xff] %v1868
        %1901 = vst [vmem:[#allocation2 + $0xe0] sm:$0xff] %v1869
        %1902 = vst [vmem:[#allocation2 + $0xe8] sm:$0xff] %v1870
        %1903 = vst [vmem:[#allocation2 + $0xf0] sm:$0xff] %v1871
        %1904 = vst [vmem:[#allocation2 + $0xf8] sm:$0xff] %v1872
        %s1905 = scalar_lea.vmem %s221, 12
        %v1906 = vld [vmem:[%s1905] sm:$0xf]
        %v1907 = vld [vmem:[%s1905 + $0x4] sm:$0xf]
        %v1908 = vld [vmem:[%s1905 + $0xc] sm:$0xf]
        %v1909 = vld [vmem:[%s1905 + $0x10] sm:$0xf]
        %v1910 = vld [vmem:[%s1905 + $0x18] sm:$0xf]
        %v1911 = vld [vmem:[%s1905 + $0x1c] sm:$0xf]
        %v1912 = vld [vmem:[%s1905 + $0x24] sm:$0xf]
        %v1913 = vld [vmem:[%s1905 + $0x28] sm:$0xf]
        %v1914 = vld [vmem:[%s1905 + $0x30] sm:$0xf]
        %v1915 = vld [vmem:[%s1905 + $0x34] sm:$0xf]
        %v1916 = vld [vmem:[%s1905 + $0x3c] sm:$0xf]
        %v1917 = vld [vmem:[%s1905 + $0x40] sm:$0xf]
        %v1918 = vld [vmem:[%s1905 + $0x48] sm:$0xf]
        %v1919 = vld [vmem:[%s1905 + $0x4c] sm:$0xf]
        %v1920 = vld [vmem:[%s1905 + $0x54] sm:$0xf]
        %v1921 = vld [vmem:[%s1905 + $0x58] sm:$0xf]
        %v1922 = vld [vmem:[%s1905 + $0x60] sm:$0xf]
        %v1923 = vld [vmem:[%s1905 + $0x64] sm:$0xf]
        %v1924 = vld [vmem:[%s1905 + $0x6c] sm:$0xf]
        %v1925 = vld [vmem:[%s1905 + $0x70] sm:$0xf]
        %v1926 = vld [vmem:[%s1905 + $0x78] sm:$0xf]
        %v1927 = vld [vmem:[%s1905 + $0x7c] sm:$0xf]
        %v1928 = vld [vmem:[%s1905 + $0x84] sm:$0xf]
        %v1929 = vld [vmem:[%s1905 + $0x88] sm:$0xf]
        %v1930 = vld [vmem:[%s1905 + $0x90] sm:$0xf]
        %v1931 = vld [vmem:[%s1905 + $0x94] sm:$0xf]
        %v1932 = vld [vmem:[%s1905 + $0x9c] sm:$0xf]
        %v1933 = vld [vmem:[%s1905 + $0xa0] sm:$0xf]
        %v1934 = vld [vmem:[%s1905 + $0xa8] sm:$0xf]
        %v1935 = vld [vmem:[%s1905 + $0xac] sm:$0xf]
        %v1936 = vld [vmem:[%s1905 + $0xb4] sm:$0xf]
        %v1937 = vld [vmem:[%s1905 + $0xb8] sm:$0xf]
        %v1938 = vld [vmem:[#allocation2] sm:$0xff]
        %v1939 = vld [vmem:[#allocation2 + $0x8] sm:$0xff]
        %v1940 = vld [vmem:[#allocation2 + $0x10] sm:$0xff]
        %v1941 = vld [vmem:[#allocation2 + $0x18] sm:$0xff]
        %v1942 = vld [vmem:[#allocation2 + $0x20] sm:$0xff]
        %v1943 = vld [vmem:[#allocation2 + $0x28] sm:$0xff]
        %v1944 = vld [vmem:[#allocation2 + $0x30] sm:$0xff]
        %v1945 = vld [vmem:[#allocation2 + $0x38] sm:$0xff]
        %v1946 = vld [vmem:[#allocation2 + $0x40] sm:$0xff]
        %v1947 = vld [vmem:[#allocation2 + $0x48] sm:$0xff]
        %v1948 = vld [vmem:[#allocation2 + $0x50] sm:$0xff]
        %v1949 = vld [vmem:[#allocation2 + $0x58] sm:$0xff]
        %v1950 = vld [vmem:[#allocation2 + $0x60] sm:$0xff]
        %v1951 = vld [vmem:[#allocation2 + $0x68] sm:$0xff]
        %v1952 = vld [vmem:[#allocation2 + $0x70] sm:$0xff]
        %v1953 = vld [vmem:[#allocation2 + $0x78] sm:$0xff]
        %v1954 = vld [vmem:[#allocation2 + $0x80] sm:$0xff]
        %v1955 = vld [vmem:[#allocation2 + $0x88] sm:$0xff]
        %v1956 = vld [vmem:[#allocation2 + $0x90] sm:$0xff]
        %v1957 = vld [vmem:[#allocation2 + $0x98] sm:$0xff]
        %v1958 = vld [vmem:[#allocation2 + $0xa0] sm:$0xff]
        %v1959 = vld [vmem:[#allocation2 + $0xa8] sm:$0xff]
        %v1960 = vld [vmem:[#allocation2 + $0xb0] sm:$0xff]
        %v1961 = vld [vmem:[#allocation2 + $0xb8] sm:$0xff]
        %v1962 = vld [vmem:[#allocation2 + $0xc0] sm:$0xff]
        %v1963 = vld [vmem:[#allocation2 + $0xc8] sm:$0xff]
        %v1964 = vld [vmem:[#allocation2 + $0xd0] sm:$0xff]
        %v1965 = vld [vmem:[#allocation2 + $0xd8] sm:$0xff]
        %v1966 = vld [vmem:[#allocation2 + $0xe0] sm:$0xff]
        %v1967 = vld [vmem:[#allocation2 + $0xe8] sm:$0xff]
        %v1968 = vld [vmem:[#allocation2 + $0xf0] sm:$0xff]
        %v1969 = vld [vmem:[#allocation2 + $0xf8] sm:$0xff]
        %s1970 = scalar_lea.vmem %s1, 192
        %v1971 = vld [vmem:[%s1970] sm:$0xf]
        %v1972 = vld [vmem:[%s1970 + $0x4] sm:$0xf]
        %v1973 = vld [vmem:[%s1970 + $0x8] sm:$0xf]
        %v1974 = vld [vmem:[%s1970 + $0xc] sm:$0xf]
        %v1975 = vld [vmem:[%s1970 + $0x10] sm:$0xf]
        %v1976 = vld [vmem:[%s1970 + $0x14] sm:$0xf]
        %v1977 = vld [vmem:[%s1970 + $0x18] sm:$0xf]
        %v1978 = vld [vmem:[%s1970 + $0x1c] sm:$0xf]
        %v1979 = vld [vmem:[%s1970 + $0x20] sm:$0xf]
        %v1980 = vld [vmem:[%s1970 + $0x24] sm:$0xf]
        %v1981 = vld [vmem:[%s1970 + $0x28] sm:$0xf]
        %v1982 = vld [vmem:[%s1970 + $0x2c] sm:$0xf]
        %v1983 = vld [vmem:[%s1970 + $0x30] sm:$0xf]
        %v1984 = vld [vmem:[%s1970 + $0x34] sm:$0xf]
        %v1985 = vld [vmem:[%s1970 + $0x38] sm:$0xf]
        %v1986 = vld [vmem:[%s1970 + $0x3c] sm:$0xf]
        %v2019 = vunpack.c.l.b16 %v1906
        %v2020 = vunpack.c.l.b16 %v1907
        %v2021 = vunpack.c.l.b16 %v1908
        %v2022 = vunpack.c.l.b16 %v1909
        %v2023 = vunpack.c.l.b16 %v1910
        %v2024 = vunpack.c.l.b16 %v1911
        %v2025 = vunpack.c.l.b16 %v1912
        %v2026 = vunpack.c.l.b16 %v1913
        %v2027 = vunpack.c.l.b16 %v1914
        %v2028 = vunpack.c.l.b16 %v1915
        %v2029 = vunpack.c.l.b16 %v1916
        %v2030 = vunpack.c.l.b16 %v1917
        %v2031 = vunpack.c.l.b16 %v1918
        %v2032 = vunpack.c.l.b16 %v1919
        %v2033 = vunpack.c.l.b16 %v1920
        %v2034 = vunpack.c.l.b16 %v1921
        %v2035 = vunpack.c.l.b16 %v1922
        %v2036 = vunpack.c.l.b16 %v1923
        %v2037 = vunpack.c.l.b16 %v1924
        %v2038 = vunpack.c.l.b16 %v1925
        %v2039 = vunpack.c.l.b16 %v1926
        %v2040 = vunpack.c.l.b16 %v1927
        %v2041 = vunpack.c.l.b16 %v1928
        %v2042 = vunpack.c.l.b16 %v1929
        %v2043 = vunpack.c.l.b16 %v1930
        %v2044 = vunpack.c.l.b16 %v1931
        %v2045 = vunpack.c.l.b16 %v1932
        %v2046 = vunpack.c.l.b16 %v1933
        %v2047 = vunpack.c.l.b16 %v1934
        %v2048 = vunpack.c.l.b16 %v1935
        %v2049 = vunpack.c.l.b16 %v1936
        %v2050 = vunpack.c.l.b16 %v1937
        %v2051 = vpack.c.b16 %v2020, %v2019
        %v2052 = vpack.c.b16 %v2022, %v2021
        %v2053 = vpack.c.b16 %v2024, %v2023
        %v2054 = vpack.c.b16 %v2026, %v2025
        %v2055 = vpack.c.b16 %v2028, %v2027
        %v2056 = vpack.c.b16 %v2030, %v2029
        %v2057 = vpack.c.b16 %v2032, %v2031
        %v2058 = vpack.c.b16 %v2034, %v2033
        %v2059 = vpack.c.b16 %v2036, %v2035
        %v2060 = vpack.c.b16 %v2038, %v2037
        %v2061 = vpack.c.b16 %v2040, %v2039
        %v2062 = vpack.c.b16 %v2042, %v2041
        %v2063 = vpack.c.b16 %v2044, %v2043
        %v2064 = vpack.c.b16 %v2046, %v2045
        %v2065 = vpack.c.b16 %v2048, %v2047
        %v2066 = vpack.c.b16 %v2050, %v2049
        %v2099 = vunpack.c.l.b16 %v1971
        %v2100 = vunpack.c.l.b16 %v1972
        %v2101 = vunpack.c.l.b16 %v1973
        %v2102 = vunpack.c.l.b16 %v1974
        %v2103 = vunpack.c.l.b16 %v1975
        %v2104 = vunpack.c.l.b16 %v1976
        %v2105 = vunpack.c.l.b16 %v1977
        %v2106 = vunpack.c.l.b16 %v1978
        %v2107 = vunpack.c.l.b16 %v1979
        %v2108 = vunpack.c.l.b16 %v1980
        %v2109 = vunpack.c.l.b16 %v1981
        %v2110 = vunpack.c.l.b16 %v1982
        %v2111 = vunpack.c.l.b16 %v1983
        %v2112 = vunpack.c.l.b16 %v1984
        %v2113 = vunpack.c.l.b16 %v1985
        %v2114 = vunpack.c.l.b16 %v1986
        %v2115 = vpack.c.b16 %v2100, %v2099
        %v2116 = vpack.c.b16 %v2102, %v2101
        %v2117 = vpack.c.b16 %v2104, %v2103
        %v2118 = vpack.c.b16 %v2106, %v2105
        %v2119 = vpack.c.b16 %v2108, %v2107
        %v2120 = vpack.c.b16 %v2110, %v2109
        %v2121 = vpack.c.b16 %v2112, %v2111
        %v2122 = vpack.c.b16 %v2114, %v2113
        %2131 = vmatpush.bf16.msra.mxu0 %v2122
        %2132 = vmatpush.bf16.msra.mxu0 %v2121
        %2133 = vmatpush.bf16.msra.mxu0 %v2120
        %2134 = vmatpush.bf16.msra.mxu0 %v2119
        %2135 = vmatpush.bf16.msra.mxu0 %v2118
        %2136 = vmatpush.bf16.msra.mxu0 %v2117
        %2137 = vmatpush.bf16.msra.mxu0 %v2116
        %2138 = vmatpush.bf16.msra.mxu0 %v2115
        %2139 = vmatmul.bf16.gmra.mxu0 %v2051
        %v2140 = vpop.f32.mrf.mxu0
        %v2141 = vadd.f32 0.0, %v2140
        %v2142 = vpop.f32.mrf.mxu0
        %v2143 = vadd.f32 0.0, %v2142
        %2144 = vmatmul.bf16.gmra.mxu0 %v2052
        %v2145 = vpop.f32.mrf.mxu0
        %v2146 = vadd.f32 0.0, %v2145
        %v2147 = vpop.f32.mrf.mxu0
        %v2148 = vadd.f32 0.0, %v2147
        %2149 = vmatmul.bf16.gmra.mxu0 %v2053
        %v2150 = vpop.f32.mrf.mxu0
        %v2151 = vadd.f32 0.0, %v2150
        %v2152 = vpop.f32.mrf.mxu0
        %v2153 = vadd.f32 0.0, %v2152
        %2154 = vmatmul.bf16.gmra.mxu0 %v2054
        %v2155 = vpop.f32.mrf.mxu0
        %v2156 = vadd.f32 0.0, %v2155
        %v2157 = vpop.f32.mrf.mxu0
        %v2158 = vadd.f32 0.0, %v2157
        %2159 = vmatmul.bf16.gmra.mxu0 %v2055
        %v2160 = vpop.f32.mrf.mxu0
        %v2161 = vadd.f32 0.0, %v2160
        %v2162 = vpop.f32.mrf.mxu0
        %v2163 = vadd.f32 0.0, %v2162
        %2164 = vmatmul.bf16.gmra.mxu0 %v2056
        %v2165 = vpop.f32.mrf.mxu0
        %v2166 = vadd.f32 0.0, %v2165
        %v2167 = vpop.f32.mrf.mxu0
        %v2168 = vadd.f32 0.0, %v2167
        %2169 = vmatmul.bf16.gmra.mxu0 %v2057
        %v2170 = vpop.f32.mrf.mxu0
        %v2171 = vadd.f32 0.0, %v2170
        %v2172 = vpop.f32.mrf.mxu0
        %v2173 = vadd.f32 0.0, %v2172
        %2174 = vmatmul.bf16.gmra.mxu0 %v2058
        %v2175 = vpop.f32.mrf.mxu0
        %v2176 = vadd.f32 0.0, %v2175
        %v2177 = vpop.f32.mrf.mxu0
        %v2178 = vadd.f32 0.0, %v2177
        %2179 = vmatmul.bf16.gmra.mxu0 %v2059
        %v2180 = vpop.f32.mrf.mxu0
        %v2181 = vadd.f32 0.0, %v2180
        %v2182 = vpop.f32.mrf.mxu0
        %v2183 = vadd.f32 0.0, %v2182
        %2184 = vmatmul.bf16.gmra.mxu0 %v2060
        %v2185 = vpop.f32.mrf.mxu0
        %v2186 = vadd.f32 0.0, %v2185
        %v2187 = vpop.f32.mrf.mxu0
        %v2188 = vadd.f32 0.0, %v2187
        %2189 = vmatmul.bf16.gmra.mxu0 %v2061
        %v2190 = vpop.f32.mrf.mxu0
        %v2191 = vadd.f32 0.0, %v2190
        %v2192 = vpop.f32.mrf.mxu0
        %v2193 = vadd.f32 0.0, %v2192
        %2194 = vmatmul.bf16.gmra.mxu0 %v2062
        %v2195 = vpop.f32.mrf.mxu0
        %v2196 = vadd.f32 0.0, %v2195
        %v2197 = vpop.f32.mrf.mxu0
        %v2198 = vadd.f32 0.0, %v2197
        %2199 = vmatmul.bf16.gmra.mxu0 %v2063
        %v2200 = vpop.f32.mrf.mxu0
        %v2201 = vadd.f32 0.0, %v2200
        %v2202 = vpop.f32.mrf.mxu0
        %v2203 = vadd.f32 0.0, %v2202
        %2204 = vmatmul.bf16.gmra.mxu0 %v2064
        %v2205 = vpop.f32.mrf.mxu0
        %v2206 = vadd.f32 0.0, %v2205
        %v2207 = vpop.f32.mrf.mxu0
        %v2208 = vadd.f32 0.0, %v2207
        %2209 = vmatmul.bf16.gmra.mxu0 %v2065
        %v2210 = vpop.f32.mrf.mxu0
        %v2211 = vadd.f32 0.0, %v2210
        %v2212 = vpop.f32.mrf.mxu0
        %v2213 = vadd.f32 0.0, %v2212
        %2214 = vmatmul.bf16.gmra.mxu0 %v2066
        %v2215 = vpop.f32.mrf.mxu0
        %v2216 = vadd.f32 0.0, %v2215
        %v2217 = vpop.f32.mrf.mxu0
        %v2218 = vadd.f32 0.0, %v2217
        %2219 = vdwg.mxu0
        %v2220 = vadd.f32 %v1938, %v2141
        %v2221 = vadd.f32 %v1939, %v2143
        %v2222 = vadd.f32 %v1940, %v2146
        %v2223 = vadd.f32 %v1941, %v2148
        %v2224 = vadd.f32 %v1942, %v2151
        %v2225 = vadd.f32 %v1943, %v2153
        %v2226 = vadd.f32 %v1944, %v2156
        %v2227 = vadd.f32 %v1945, %v2158
        %v2228 = vadd.f32 %v1946, %v2161
        %v2229 = vadd.f32 %v1947, %v2163
        %v2230 = vadd.f32 %v1948, %v2166
        %v2231 = vadd.f32 %v1949, %v2168
        %v2232 = vadd.f32 %v1950, %v2171
        %v2233 = vadd.f32 %v1951, %v2173
        %v2234 = vadd.f32 %v1952, %v2176
        %v2235 = vadd.f32 %v1953, %v2178
        %v2236 = vadd.f32 %v1954, %v2181
        %v2237 = vadd.f32 %v1955, %v2183
        %v2238 = vadd.f32 %v1956, %v2186
        %v2239 = vadd.f32 %v1957, %v2188
        %v2240 = vadd.f32 %v1958, %v2191
        %v2241 = vadd.f32 %v1959, %v2193
        %v2242 = vadd.f32 %v1960, %v2196
        %v2243 = vadd.f32 %v1961, %v2198
        %v2244 = vadd.f32 %v1962, %v2201
        %v2245 = vadd.f32 %v1963, %v2203
        %v2246 = vadd.f32 %v1964, %v2206
        %v2247 = vadd.f32 %v1965, %v2208
        %v2248 = vadd.f32 %v1966, %v2211
        %v2249 = vadd.f32 %v1967, %v2213
        %v2250 = vadd.f32 %v1968, %v2216
        %v2251 = vadd.f32 %v1969, %v2218
        %2252 = vst [vmem:[#allocation2] sm:$0xff] %v2220
        %2253 = vst [vmem:[#allocation2 + $0x8] sm:$0xff] %v2221
        %2254 = vst [vmem:[#allocation2 + $0x10] sm:$0xff] %v2222
        %2255 = vst [vmem:[#allocation2 + $0x18] sm:$0xff] %v2223
        %2256 = vst [vmem:[#allocation2 + $0x20] sm:$0xff] %v2224
        %2257 = vst [vmem:[#allocation2 + $0x28] sm:$0xff] %v2225
        %2258 = vst [vmem:[#allocation2 + $0x30] sm:$0xff] %v2226
        %2259 = vst [vmem:[#allocation2 + $0x38] sm:$0xff] %v2227
        %2260 = vst [vmem:[#allocation2 + $0x40] sm:$0xff] %v2228
        %2261 = vst [vmem:[#allocation2 + $0x48] sm:$0xff] %v2229
        %2262 = vst [vmem:[#allocation2 + $0x50] sm:$0xff] %v2230
        %2263 = vst [vmem:[#allocation2 + $0x58] sm:$0xff] %v2231
        %2264 = vst [vmem:[#allocation2 + $0x60] sm:$0xff] %v2232
        %2265 = vst [vmem:[#allocation2 + $0x68] sm:$0xff] %v2233
        %2266 = vst [vmem:[#allocation2 + $0x70] sm:$0xff] %v2234
        %2267 = vst [vmem:[#allocation2 + $0x78] sm:$0xff] %v2235
        %2268 = vst [vmem:[#allocation2 + $0x80] sm:$0xff] %v2236
        %2269 = vst [vmem:[#allocation2 + $0x88] sm:$0xff] %v2237
        %2270 = vst [vmem:[#allocation2 + $0x90] sm:$0xff] %v2238
        %2271 = vst [vmem:[#allocation2 + $0x98] sm:$0xff] %v2239
        %2272 = vst [vmem:[#allocation2 + $0xa0] sm:$0xff] %v2240
        %2273 = vst [vmem:[#allocation2 + $0xa8] sm:$0xff] %v2241
        %2274 = vst [vmem:[#allocation2 + $0xb0] sm:$0xff] %v2242
        %2275 = vst [vmem:[#allocation2 + $0xb8] sm:$0xff] %v2243
        %2276 = vst [vmem:[#allocation2 + $0xc0] sm:$0xff] %v2244
        %2277 = vst [vmem:[#allocation2 + $0xc8] sm:$0xff] %v2245
        %2278 = vst [vmem:[#allocation2 + $0xd0] sm:$0xff] %v2246
        %2279 = vst [vmem:[#allocation2 + $0xd8] sm:$0xff] %v2247
        %2280 = vst [vmem:[#allocation2 + $0xe0] sm:$0xff] %v2248
        %2281 = vst [vmem:[#allocation2 + $0xe8] sm:$0xff] %v2249
        %2282 = vst [vmem:[#allocation2 + $0xf0] sm:$0xff] %v2250
        %2283 = vst [vmem:[#allocation2 + $0xf8] sm:$0xff] %v2251
        %v2284 = vld [vmem:[%s1905] sm:$0xf]
        %v2285 = vld [vmem:[%s1905 + $0x4] sm:$0xf]
        %v2286 = vld [vmem:[%s1905 + $0x8] sm:$0x1]
        %v2287 = vld [vmem:[%s1905 + $0xc] sm:$0xf]
        %v2288 = vld [vmem:[%s1905 + $0x10] sm:$0xf]
        %v2289 = vld [vmem:[%s1905 + $0x14] sm:$0x1]
        %v2290 = vld [vmem:[%s1905 + $0x18] sm:$0xf]
        %v2291 = vld [vmem:[%s1905 + $0x1c] sm:$0xf]
        %v2292 = vld [vmem:[%s1905 + $0x20] sm:$0x1]
        %v2293 = vld [vmem:[%s1905 + $0x24] sm:$0xf]
        %v2294 = vld [vmem:[%s1905 + $0x28] sm:$0xf]
        %v2295 = vld [vmem:[%s1905 + $0x2c] sm:$0x1]
        %v2296 = vld [vmem:[%s1905 + $0x30] sm:$0xf]
        %v2297 = vld [vmem:[%s1905 + $0x34] sm:$0xf]
        %v2298 = vld [vmem:[%s1905 + $0x38] sm:$0x1]
        %v2299 = vld [vmem:[%s1905 + $0x3c] sm:$0xf]
        %v2300 = vld [vmem:[%s1905 + $0x40] sm:$0xf]
        %v2301 = vld [vmem:[%s1905 + $0x44] sm:$0x1]
        %v2302 = vld [vmem:[%s1905 + $0x48] sm:$0xf]
        %v2303 = vld [vmem:[%s1905 + $0x4c] sm:$0xf]
        %v2304 = vld [vmem:[%s1905 + $0x50] sm:$0x1]
        %v2305 = vld [vmem:[%s1905 + $0x54] sm:$0xf]
        %v2306 = vld [vmem:[%s1905 + $0x58] sm:$0xf]
        %v2307 = vld [vmem:[%s1905 + $0x5c] sm:$0x1]
        %v2308 = vld [vmem:[%s1905 + $0x60] sm:$0xf]
        %v2309 = vld [vmem:[%s1905 + $0x64] sm:$0xf]
        %v2310 = vld [vmem:[%s1905 + $0x68] sm:$0x1]
        %v2311 = vld [vmem:[%s1905 + $0x6c] sm:$0xf]
        %v2312 = vld [vmem:[%s1905 + $0x70] sm:$0xf]
        %v2313 = vld [vmem:[%s1905 + $0x74] sm:$0x1]
        %v2314 = vld [vmem:[%s1905 + $0x78] sm:$0xf]
        %v2315 = vld [vmem:[%s1905 + $0x7c] sm:$0xf]
        %v2316 = vld [vmem:[%s1905 + $0x80] sm:$0x1]
        %v2317 = vld [vmem:[%s1905 + $0x84] sm:$0xf]
        %v2318 = vld [vmem:[%s1905 + $0x88] sm:$0xf]
        %v2319 = vld [vmem:[%s1905 + $0x8c] sm:$0x1]
        %v2320 = vld [vmem:[%s1905 + $0x90] sm:$0xf]
        %v2321 = vld [vmem:[%s1905 + $0x94] sm:$0xf]
        %v2322 = vld [vmem:[%s1905 + $0x98] sm:$0x1]
        %v2323 = vld [vmem:[%s1905 + $0x9c] sm:$0xf]
        %v2324 = vld [vmem:[%s1905 + $0xa0] sm:$0xf]
        %v2325 = vld [vmem:[%s1905 + $0xa4] sm:$0x1]
        %v2326 = vld [vmem:[%s1905 + $0xa8] sm:$0xf]
        %v2327 = vld [vmem:[%s1905 + $0xac] sm:$0xf]
        %v2328 = vld [vmem:[%s1905 + $0xb0] sm:$0x1]
        %v2329 = vld [vmem:[%s1905 + $0xb4] sm:$0xf]
        %v2330 = vld [vmem:[%s1905 + $0xb8] sm:$0xf]
        %v2331 = vld [vmem:[%s1905 + $0xbc] sm:$0x1]
        %v2333 = vshrl.u32 %v2284, 16
        %v2335 = vrot.slane %v2333, 4
        %v2336 = vshll.u32 %v2284, 16
        %v2338 = vrot.slane %v2336, 5
        %v2339 = vor.u32 %v2335, %v2338
        %v2340 = vrot.slane %v2339, 4
        %v2342 = vshll.u32 %v2285, 16
        %v2344 = vrot.slane %v2342, 5
        %v2345 = vsel %vm681, %v2340, %v2344
        %v2346 = vshrl.u32 %v2285, 16
        %v2348 = vrot.slane %v2346, 4
        %v2349 = vor.u32 %v2348, %v2344
        %v2350 = vrot.slane %v2349, 4
        %v2352 = vshll.u32 %v2286, 16
        %v2354 = vrot.slane %v2352, 5
        %v2355 = vsel %vm681, %v2350, %v2354
        %v2357 = vshrl.u32 %v2287, 16
        %v2359 = vrot.slane %v2357, 4
        %v2360 = vshll.u32 %v2287, 16
        %v2362 = vrot.slane %v2360, 5
        %v2363 = vor.u32 %v2359, %v2362
        %v2364 = vrot.slane %v2363, 4
        %v2366 = vshll.u32 %v2288, 16
        %v2368 = vrot.slane %v2366, 5
        %v2369 = vsel %vm681, %v2364, %v2368
        %v2370 = vshrl.u32 %v2288, 16
        %v2372 = vrot.slane %v2370, 4
        %v2373 = vor.u32 %v2372, %v2368
        %v2374 = vrot.slane %v2373, 4
        %v2376 = vshll.u32 %v2289, 16
        %v2378 = vrot.slane %v2376, 5
        %v2379 = vsel %vm681, %v2374, %v2378
        %v2381 = vshrl.u32 %v2290, 16
        %v2383 = vrot.slane %v2381, 4
        %v2384 = vshll.u32 %v2290, 16
        %v2386 = vrot.slane %v2384, 5
        %v2387 = vor.u32 %v2383, %v2386
        %v2388 = vrot.slane %v2387, 4
        %v2390 = vshll.u32 %v2291, 16
        %v2392 = vrot.slane %v2390, 5
        %v2393 = vsel %vm681, %v2388, %v2392
        %v2394 = vshrl.u32 %v2291, 16
        %v2396 = vrot.slane %v2394, 4
        %v2397 = vor.u32 %v2396, %v2392
        %v2398 = vrot.slane %v2397, 4
        %v2400 = vshll.u32 %v2292, 16
        %v2402 = vrot.slane %v2400, 5
        %v2403 = vsel %vm681, %v2398, %v2402
        %v2405 = vshrl.u32 %v2293, 16
        %v2407 = vrot.slane %v2405, 4
        %v2408 = vshll.u32 %v2293, 16
        %v2410 = vrot.slane %v2408, 5
        %v2411 = vor.u32 %v2407, %v2410
        %v2412 = vrot.slane %v2411, 4
        %v2414 = vshll.u32 %v2294, 16
        %v2416 = vrot.slane %v2414, 5
        %v2417 = vsel %vm681, %v2412, %v2416
        %v2418 = vshrl.u32 %v2294, 16
        %v2420 = vrot.slane %v2418, 4
        %v2421 = vor.u32 %v2420, %v2416
        %v2422 = vrot.slane %v2421, 4
        %v2424 = vshll.u32 %v2295, 16
        %v2426 = vrot.slane %v2424, 5
        %v2427 = vsel %vm681, %v2422, %v2426
        %v2429 = vshrl.u32 %v2296, 16
        %v2431 = vrot.slane %v2429, 4
        %v2432 = vshll.u32 %v2296, 16
        %v2434 = vrot.slane %v2432, 5
        %v2435 = vor.u32 %v2431, %v2434
        %v2436 = vrot.slane %v2435, 4
        %v2438 = vshll.u32 %v2297, 16
        %v2440 = vrot.slane %v2438, 5
        %v2441 = vsel %vm681, %v2436, %v2440
        %v2442 = vshrl.u32 %v2297, 16
        %v2444 = vrot.slane %v2442, 4
        %v2445 = vor.u32 %v2444, %v2440
        %v2446 = vrot.slane %v2445, 4
        %v2448 = vshll.u32 %v2298, 16
        %v2450 = vrot.slane %v2448, 5
        %v2451 = vsel %vm681, %v2446, %v2450
        %v2453 = vshrl.u32 %v2299, 16
        %v2455 = vrot.slane %v2453, 4
        %v2456 = vshll.u32 %v2299, 16
        %v2458 = vrot.slane %v2456, 5
        %v2459 = vor.u32 %v2455, %v2458
        %v2460 = vrot.slane %v2459, 4
        %v2462 = vshll.u32 %v2300, 16
        %v2464 = vrot.slane %v2462, 5
        %v2465 = vsel %vm681, %v2460, %v2464
        %v2466 = vshrl.u32 %v2300, 16
        %v2468 = vrot.slane %v2466, 4
        %v2469 = vor.u32 %v2468, %v2464
        %v2470 = vrot.slane %v2469, 4
        %v2472 = vshll.u32 %v2301, 16
        %v2474 = vrot.slane %v2472, 5
        %v2475 = vsel %vm681, %v2470, %v2474
        %v2477 = vshrl.u32 %v2302, 16
        %v2479 = vrot.slane %v2477, 4
        %v2480 = vshll.u32 %v2302, 16
        %v2482 = vrot.slane %v2480, 5
        %v2483 = vor.u32 %v2479, %v2482
        %v2484 = vrot.slane %v2483, 4
        %v2486 = vshll.u32 %v2303, 16
        %v2488 = vrot.slane %v2486, 5
        %v2489 = vsel %vm681, %v2484, %v2488
        %v2490 = vshrl.u32 %v2303, 16
        %v2492 = vrot.slane %v2490, 4
        %v2493 = vor.u32 %v2492, %v2488
        %v2494 = vrot.slane %v2493, 4
        %v2496 = vshll.u32 %v2304, 16
        %v2498 = vrot.slane %v2496, 5
        %v2499 = vsel %vm681, %v2494, %v2498
        %v2501 = vshrl.u32 %v2305, 16
        %v2503 = vrot.slane %v2501, 4
        %v2504 = vshll.u32 %v2305, 16
        %v2506 = vrot.slane %v2504, 5
        %v2507 = vor.u32 %v2503, %v2506
        %v2508 = vrot.slane %v2507, 4
        %v2510 = vshll.u32 %v2306, 16
        %v2512 = vrot.slane %v2510, 5
        %v2513 = vsel %vm681, %v2508, %v2512
        %v2514 = vshrl.u32 %v2306, 16
        %v2516 = vrot.slane %v2514, 4
        %v2517 = vor.u32 %v2516, %v2512
        %v2518 = vrot.slane %v2517, 4
        %v2520 = vshll.u32 %v2307, 16
        %v2522 = vrot.slane %v2520, 5
        %v2523 = vsel %vm681, %v2518, %v2522
        %v2525 = vshrl.u32 %v2308, 16
        %v2527 = vrot.slane %v2525, 4
        %v2528 = vshll.u32 %v2308, 16
        %v2530 = vrot.slane %v2528, 5
        %v2531 = vor.u32 %v2527, %v2530
        %v2532 = vrot.slane %v2531, 4
        %v2534 = vshll.u32 %v2309, 16
        %v2536 = vrot.slane %v2534, 5
        %v2537 = vsel %vm681, %v2532, %v2536
        %v2538 = vshrl.u32 %v2309, 16
        %v2540 = vrot.slane %v2538, 4
        %v2541 = vor.u32 %v2540, %v2536
        %v2542 = vrot.slane %v2541, 4
        %v2544 = vshll.u32 %v2310, 16
        %v2546 = vrot.slane %v2544, 5
        %v2547 = vsel %vm681, %v2542, %v2546
        %v2549 = vshrl.u32 %v2311, 16
        %v2551 = vrot.slane %v2549, 4
        %v2552 = vshll.u32 %v2311, 16
        %v2554 = vrot.slane %v2552, 5
        %v2555 = vor.u32 %v2551, %v2554
        %v2556 = vrot.slane %v2555, 4
        %v2558 = vshll.u32 %v2312, 16
        %v2560 = vrot.slane %v2558, 5
        %v2561 = vsel %vm681, %v2556, %v2560
        %v2562 = vshrl.u32 %v2312, 16
        %v2564 = vrot.slane %v2562, 4
        %v2565 = vor.u32 %v2564, %v2560
        %v2566 = vrot.slane %v2565, 4
        %v2568 = vshll.u32 %v2313, 16
        %v2570 = vrot.slane %v2568, 5
        %v2571 = vsel %vm681, %v2566, %v2570
        %v2573 = vshrl.u32 %v2314, 16
        %v2575 = vrot.slane %v2573, 4
        %v2576 = vshll.u32 %v2314, 16
        %v2578 = vrot.slane %v2576, 5
        %v2579 = vor.u32 %v2575, %v2578
        %v2580 = vrot.slane %v2579, 4
        %v2582 = vshll.u32 %v2315, 16
        %v2584 = vrot.slane %v2582, 5
        %v2585 = vsel %vm681, %v2580, %v2584
        %v2586 = vshrl.u32 %v2315, 16
        %v2588 = vrot.slane %v2586, 4
        %v2589 = vor.u32 %v2588, %v2584
        %v2590 = vrot.slane %v2589, 4
        %v2592 = vshll.u32 %v2316, 16
        %v2594 = vrot.slane %v2592, 5
        %v2595 = vsel %vm681, %v2590, %v2594
        %v2597 = vshrl.u32 %v2317, 16
        %v2599 = vrot.slane %v2597, 4
        %v2600 = vshll.u32 %v2317, 16
        %v2602 = vrot.slane %v2600, 5
        %v2603 = vor.u32 %v2599, %v2602
        %v2604 = vrot.slane %v2603, 4
        %v2606 = vshll.u32 %v2318, 16
        %v2608 = vrot.slane %v2606, 5
        %v2609 = vsel %vm681, %v2604, %v2608
        %v2610 = vshrl.u32 %v2318, 16
        %v2612 = vrot.slane %v2610, 4
        %v2613 = vor.u32 %v2612, %v2608
        %v2614 = vrot.slane %v2613, 4
        %v2616 = vshll.u32 %v2319, 16
        %v2618 = vrot.slane %v2616, 5
        %v2619 = vsel %vm681, %v2614, %v2618
        %v2621 = vshrl.u32 %v2320, 16
        %v2623 = vrot.slane %v2621, 4
        %v2624 = vshll.u32 %v2320, 16
        %v2626 = vrot.slane %v2624, 5
        %v2627 = vor.u32 %v2623, %v2626
        %v2628 = vrot.slane %v2627, 4
        %v2630 = vshll.u32 %v2321, 16
        %v2632 = vrot.slane %v2630, 5
        %v2633 = vsel %vm681, %v2628, %v2632
        %v2634 = vshrl.u32 %v2321, 16
        %v2636 = vrot.slane %v2634, 4
        %v2637 = vor.u32 %v2636, %v2632
        %v2638 = vrot.slane %v2637, 4
        %v2640 = vshll.u32 %v2322, 16
        %v2642 = vrot.slane %v2640, 5
        %v2643 = vsel %vm681, %v2638, %v2642
        %v2645 = vshrl.u32 %v2323, 16
        %v2647 = vrot.slane %v2645, 4
        %v2648 = vshll.u32 %v2323, 16
        %v2650 = vrot.slane %v2648, 5
        %v2651 = vor.u32 %v2647, %v2650
        %v2652 = vrot.slane %v2651, 4
        %v2654 = vshll.u32 %v2324, 16
        %v2656 = vrot.slane %v2654, 5
        %v2657 = vsel %vm681, %v2652, %v2656
        %v2658 = vshrl.u32 %v2324, 16
        %v2660 = vrot.slane %v2658, 4
        %v2661 = vor.u32 %v2660, %v2656
        %v2662 = vrot.slane %v2661, 4
        %v2664 = vshll.u32 %v2325, 16
        %v2666 = vrot.slane %v2664, 5
        %v2667 = vsel %vm681, %v2662, %v2666
        %v2669 = vshrl.u32 %v2326, 16
        %v2671 = vrot.slane %v2669, 4
        %v2672 = vshll.u32 %v2326, 16
        %v2674 = vrot.slane %v2672, 5
        %v2675 = vor.u32 %v2671, %v2674
        %v2676 = vrot.slane %v2675, 4
        %v2678 = vshll.u32 %v2327, 16
        %v2680 = vrot.slane %v2678, 5
        %v2681 = vsel %vm681, %v2676, %v2680
        %v2682 = vshrl.u32 %v2327, 16
        %v2684 = vrot.slane %v2682, 4
        %v2685 = vor.u32 %v2684, %v2680
        %v2686 = vrot.slane %v2685, 4
        %v2688 = vshll.u32 %v2328, 16
        %v2690 = vrot.slane %v2688, 5
        %v2691 = vsel %vm681, %v2686, %v2690
        %v2693 = vshrl.u32 %v2329, 16
        %v2695 = vrot.slane %v2693, 4
        %v2696 = vshll.u32 %v2329, 16
        %v2698 = vrot.slane %v2696, 5
        %v2699 = vor.u32 %v2695, %v2698
        %v2700 = vrot.slane %v2699, 4
        %v2702 = vshll.u32 %v2330, 16
        %v2704 = vrot.slane %v2702, 5
        %v2705 = vsel %vm681, %v2700, %v2704
        %v2706 = vshrl.u32 %v2330, 16
        %v2708 = vrot.slane %v2706, 4
        %v2709 = vor.u32 %v2708, %v2704
        %v2710 = vrot.slane %v2709, 4
        %v2712 = vshll.u32 %v2331, 16
        %v2714 = vrot.slane %v2712, 5
        %v2715 = vsel %vm681, %v2710, %v2714
        %v2716 = vld [vmem:[#allocation2] sm:$0xff]
        %v2717 = vld [vmem:[#allocation2 + $0x8] sm:$0xff]
        %v2718 = vld [vmem:[#allocation2 + $0x10] sm:$0xff]
        %v2719 = vld [vmem:[#allocation2 + $0x18] sm:$0xff]
        %v2720 = vld [vmem:[#allocation2 + $0x20] sm:$0xff]
        %v2721 = vld [vmem:[#allocation2 + $0x28] sm:$0xff]
        %v2722 = vld [vmem:[#allocation2 + $0x30] sm:$0xff]
        %v2723 = vld [vmem:[#allocation2 + $0x38] sm:$0xff]
        %v2724 = vld [vmem:[#allocation2 + $0x40] sm:$0xff]
        %v2725 = vld [vmem:[#allocation2 + $0x48] sm:$0xff]
        %v2726 = vld [vmem:[#allocation2 + $0x50] sm:$0xff]
        %v2727 = vld [vmem:[#allocation2 + $0x58] sm:$0xff]
        %v2728 = vld [vmem:[#allocation2 + $0x60] sm:$0xff]
        %v2729 = vld [vmem:[#allocation2 + $0x68] sm:$0xff]
        %v2730 = vld [vmem:[#allocation2 + $0x70] sm:$0xff]
        %v2731 = vld [vmem:[#allocation2 + $0x78] sm:$0xff]
        %v2732 = vld [vmem:[#allocation2 + $0x80] sm:$0xff]
        %v2733 = vld [vmem:[#allocation2 + $0x88] sm:$0xff]
        %v2734 = vld [vmem:[#allocation2 + $0x90] sm:$0xff]
        %v2735 = vld [vmem:[#allocation2 + $0x98] sm:$0xff]
        %v2736 = vld [vmem:[#allocation2 + $0xa0] sm:$0xff]
        %v2737 = vld [vmem:[#allocation2 + $0xa8] sm:$0xff]
        %v2738 = vld [vmem:[#allocation2 + $0xb0] sm:$0xff]
        %v2739 = vld [vmem:[#allocation2 + $0xb8] sm:$0xff]
        %v2740 = vld [vmem:[#allocation2 + $0xc0] sm:$0xff]
        %v2741 = vld [vmem:[#allocation2 + $0xc8] sm:$0xff]
        %v2742 = vld [vmem:[#allocation2 + $0xd0] sm:$0xff]
        %v2743 = vld [vmem:[#allocation2 + $0xd8] sm:$0xff]
        %v2744 = vld [vmem:[#allocation2 + $0xe0] sm:$0xff]
        %v2745 = vld [vmem:[#allocation2 + $0xe8] sm:$0xff]
        %v2746 = vld [vmem:[#allocation2 + $0xf0] sm:$0xff]
        %v2747 = vld [vmem:[#allocation2 + $0xf8] sm:$0xff]
        %s2748 = scalar_lea.vmem %s1, 256
        %v2749 = vld [vmem:[%s2748] sm:$0xf]
        %v2750 = vld [vmem:[%s2748 + $0x4] sm:$0xf]
        %v2751 = vld [vmem:[%s2748 + $0x8] sm:$0xf]
        %v2752 = vld [vmem:[%s2748 + $0xc] sm:$0xf]
        %v2753 = vld [vmem:[%s2748 + $0x10] sm:$0xf]
        %v2754 = vld [vmem:[%s2748 + $0x14] sm:$0xf]
        %v2755 = vld [vmem:[%s2748 + $0x18] sm:$0xf]
        %v2756 = vld [vmem:[%s2748 + $0x1c] sm:$0xf]
        %v2757 = vld [vmem:[%s2748 + $0x20] sm:$0xf]
        %v2758 = vld [vmem:[%s2748 + $0x24] sm:$0xf]
        %v2759 = vld [vmem:[%s2748 + $0x28] sm:$0xf]
        %v2760 = vld [vmem:[%s2748 + $0x2c] sm:$0xf]
        %v2761 = vld [vmem:[%s2748 + $0x30] sm:$0xf]
        %v2762 = vld [vmem:[%s2748 + $0x34] sm:$0xf]
        %v2763 = vld [vmem:[%s2748 + $0x38] sm:$0xf]
        %v2764 = vld [vmem:[%s2748 + $0x3c] sm:$0xf]
        %v2765 = vunpack.c.l.b16 %v2345
        %v2766 = vunpack.c.l.b16 %v2355
        %v2767 = vunpack.c.l.b16 %v2369
        %v2768 = vunpack.c.l.b16 %v2379
        %v2769 = vunpack.c.l.b16 %v2393
        %v2770 = vunpack.c.l.b16 %v2403
        %v2771 = vunpack.c.l.b16 %v2417
        %v2772 = vunpack.c.l.b16 %v2427
        %v2773 = vunpack.c.l.b16 %v2441
        %v2774 = vunpack.c.l.b16 %v2451
        %v2775 = vunpack.c.l.b16 %v2465
        %v2776 = vunpack.c.l.b16 %v2475
        %v2777 = vunpack.c.l.b16 %v2489
        %v2778 = vunpack.c.l.b16 %v2499
        %v2779 = vunpack.c.l.b16 %v2513
        %v2780 = vunpack.c.l.b16 %v2523
        %v2781 = vunpack.c.l.b16 %v2537
        %v2782 = vunpack.c.l.b16 %v2547
        %v2783 = vunpack.c.l.b16 %v2561
        %v2784 = vunpack.c.l.b16 %v2571
        %v2785 = vunpack.c.l.b16 %v2585
        %v2786 = vunpack.c.l.b16 %v2595
        %v2787 = vunpack.c.l.b16 %v2609
        %v2788 = vunpack.c.l.b16 %v2619
        %v2789 = vunpack.c.l.b16 %v2633
        %v2790 = vunpack.c.l.b16 %v2643
        %v2791 = vunpack.c.l.b16 %v2657
        %v2792 = vunpack.c.l.b16 %v2667
        %v2793 = vunpack.c.l.b16 %v2681
        %v2794 = vunpack.c.l.b16 %v2691
        %v2795 = vunpack.c.l.b16 %v2705
        %v2796 = vunpack.c.l.b16 %v2715
        %v2797 = vpack.c.b16 %v2766, %v2765
        %v2798 = vpack.c.b16 %v2768, %v2767
        %v2799 = vpack.c.b16 %v2770, %v2769
        %v2800 = vpack.c.b16 %v2772, %v2771
        %v2801 = vpack.c.b16 %v2774, %v2773
        %v2802 = vpack.c.b16 %v2776, %v2775
        %v2803 = vpack.c.b16 %v2778, %v2777
        %v2804 = vpack.c.b16 %v2780, %v2779
        %v2805 = vpack.c.b16 %v2782, %v2781
        %v2806 = vpack.c.b16 %v2784, %v2783
        %v2807 = vpack.c.b16 %v2786, %v2785
        %v2808 = vpack.c.b16 %v2788, %v2787
        %v2809 = vpack.c.b16 %v2790, %v2789
        %v2810 = vpack.c.b16 %v2792, %v2791
        %v2811 = vpack.c.b16 %v2794, %v2793
        %v2812 = vpack.c.b16 %v2796, %v2795
        %v2845 = vunpack.c.l.b16 %v2749
        %v2846 = vunpack.c.l.b16 %v2750
        %v2847 = vunpack.c.l.b16 %v2751
        %v2848 = vunpack.c.l.b16 %v2752
        %v2849 = vunpack.c.l.b16 %v2753
        %v2850 = vunpack.c.l.b16 %v2754
        %v2851 = vunpack.c.l.b16 %v2755
        %v2852 = vunpack.c.l.b16 %v2756
        %v2853 = vunpack.c.l.b16 %v2757
        %v2854 = vunpack.c.l.b16 %v2758
        %v2855 = vunpack.c.l.b16 %v2759
        %v2856 = vunpack.c.l.b16 %v2760
        %v2857 = vunpack.c.l.b16 %v2761
        %v2858 = vunpack.c.l.b16 %v2762
        %v2859 = vunpack.c.l.b16 %v2763
        %v2860 = vunpack.c.l.b16 %v2764
        %v2861 = vpack.c.b16 %v2846, %v2845
        %v2862 = vpack.c.b16 %v2848, %v2847
        %v2863 = vpack.c.b16 %v2850, %v2849
        %v2864 = vpack.c.b16 %v2852, %v2851
        %v2865 = vpack.c.b16 %v2854, %v2853
        %v2866 = vpack.c.b16 %v2856, %v2855
        %v2867 = vpack.c.b16 %v2858, %v2857
        %v2868 = vpack.c.b16 %v2860, %v2859
        %2877 = vmatpush.bf16.msra.mxu0 %v2868
        %2878 = vmatpush.bf16.msra.mxu0 %v2867
        %2879 = vmatpush.bf16.msra.mxu0 %v2866
        %2880 = vmatpush.bf16.msra.mxu0 %v2865
        %2881 = vmatpush.bf16.msra.mxu0 %v2864
        %2882 = vmatpush.bf16.msra.mxu0 %v2863
        %2883 = vmatpush.bf16.msra.mxu0 %v2862
        %2884 = vmatpush.bf16.msra.mxu0 %v2861
        %2885 = vmatmul.bf16.gmra.mxu0 %v2797
        %v2886 = vpop.f32.mrf.mxu0
        %v2887 = vadd.f32 0.0, %v2886
        %v2888 = vpop.f32.mrf.mxu0
        %v2889 = vadd.f32 0.0, %v2888
        %2890 = vmatmul.bf16.gmra.mxu0 %v2798
        %v2891 = vpop.f32.mrf.mxu0
        %v2892 = vadd.f32 0.0, %v2891
        %v2893 = vpop.f32.mrf.mxu0
        %v2894 = vadd.f32 0.0, %v2893
        %2895 = vmatmul.bf16.gmra.mxu0 %v2799
        %v2896 = vpop.f32.mrf.mxu0
        %v2897 = vadd.f32 0.0, %v2896
        %v2898 = vpop.f32.mrf.mxu0
        %v2899 = vadd.f32 0.0, %v2898
        %2900 = vmatmul.bf16.gmra.mxu0 %v2800
        %v2901 = vpop.f32.mrf.mxu0
        %v2902 = vadd.f32 0.0, %v2901
        %v2903 = vpop.f32.mrf.mxu0
        %v2904 = vadd.f32 0.0, %v2903
        %2905 = vmatmul.bf16.gmra.mxu0 %v2801
        %v2906 = vpop.f32.mrf.mxu0
        %v2907 = vadd.f32 0.0, %v2906
        %v2908 = vpop.f32.mrf.mxu0
        %v2909 = vadd.f32 0.0, %v2908
        %2910 = vmatmul.bf16.gmra.mxu0 %v2802
        %v2911 = vpop.f32.mrf.mxu0
        %v2912 = vadd.f32 0.0, %v2911
        %v2913 = vpop.f32.mrf.mxu0
        %v2914 = vadd.f32 0.0, %v2913
        %2915 = vmatmul.bf16.gmra.mxu0 %v2803
        %v2916 = vpop.f32.mrf.mxu0
        %v2917 = vadd.f32 0.0, %v2916
        %v2918 = vpop.f32.mrf.mxu0
        %v2919 = vadd.f32 0.0, %v2918
        %2920 = vmatmul.bf16.gmra.mxu0 %v2804
        %v2921 = vpop.f32.mrf.mxu0
        %v2922 = vadd.f32 0.0, %v2921
        %v2923 = vpop.f32.mrf.mxu0
        %v2924 = vadd.f32 0.0, %v2923
        %2925 = vmatmul.bf16.gmra.mxu0 %v2805
        %v2926 = vpop.f32.mrf.mxu0
        %v2927 = vadd.f32 0.0, %v2926
        %v2928 = vpop.f32.mrf.mxu0
        %v2929 = vadd.f32 0.0, %v2928
        %2930 = vmatmul.bf16.gmra.mxu0 %v2806
        %v2931 = vpop.f32.mrf.mxu0
        %v2932 = vadd.f32 0.0, %v2931
        %v2933 = vpop.f32.mrf.mxu0
        %v2934 = vadd.f32 0.0, %v2933
        %2935 = vmatmul.bf16.gmra.mxu0 %v2807
        %v2936 = vpop.f32.mrf.mxu0
        %v2937 = vadd.f32 0.0, %v2936
        %v2938 = vpop.f32.mrf.mxu0
        %v2939 = vadd.f32 0.0, %v2938
        %2940 = vmatmul.bf16.gmra.mxu0 %v2808
        %v2941 = vpop.f32.mrf.mxu0
        %v2942 = vadd.f32 0.0, %v2941
        %v2943 = vpop.f32.mrf.mxu0
        %v2944 = vadd.f32 0.0, %v2943
        %2945 = vmatmul.bf16.gmra.mxu0 %v2809
        %v2946 = vpop.f32.mrf.mxu0
        %v2947 = vadd.f32 0.0, %v2946
        %v2948 = vpop.f32.mrf.mxu0
        %v2949 = vadd.f32 0.0, %v2948
        %2950 = vmatmul.bf16.gmra.mxu0 %v2810
        %v2951 = vpop.f32.mrf.mxu0
        %v2952 = vadd.f32 0.0, %v2951
        %v2953 = vpop.f32.mrf.mxu0
        %v2954 = vadd.f32 0.0, %v2953
        %2955 = vmatmul.bf16.gmra.mxu0 %v2811
        %v2956 = vpop.f32.mrf.mxu0
        %v2957 = vadd.f32 0.0, %v2956
        %v2958 = vpop.f32.mrf.mxu0
        %v2959 = vadd.f32 0.0, %v2958
        %2960 = vmatmul.bf16.gmra.mxu0 %v2812
        %v2961 = vpop.f32.mrf.mxu0
        %v2962 = vadd.f32 0.0, %v2961
        %v2963 = vpop.f32.mrf.mxu0
        %v2964 = vadd.f32 0.0, %v2963
        %2965 = vdwg.mxu0
        %v2966 = vadd.f32 %v2716, %v2887
        %v2967 = vadd.f32 %v2717, %v2889
        %v2968 = vadd.f32 %v2718, %v2892
        %v2969 = vadd.f32 %v2719, %v2894
        %v2970 = vadd.f32 %v2720, %v2897
        %v2971 = vadd.f32 %v2721, %v2899
        %v2972 = vadd.f32 %v2722, %v2902
        %v2973 = vadd.f32 %v2723, %v2904
        %v2974 = vadd.f32 %v2724, %v2907
        %v2975 = vadd.f32 %v2725, %v2909
        %v2976 = vadd.f32 %v2726, %v2912
        %v2977 = vadd.f32 %v2727, %v2914
        %v2978 = vadd.f32 %v2728, %v2917
        %v2979 = vadd.f32 %v2729, %v2919
        %v2980 = vadd.f32 %v2730, %v2922
        %v2981 = vadd.f32 %v2731, %v2924
        %v2982 = vadd.f32 %v2732, %v2927
        %v2983 = vadd.f32 %v2733, %v2929
        %v2984 = vadd.f32 %v2734, %v2932
        %v2985 = vadd.f32 %v2735, %v2934
        %v2986 = vadd.f32 %v2736, %v2937
        %v2987 = vadd.f32 %v2737, %v2939
        %v2988 = vadd.f32 %v2738, %v2942
        %v2989 = vadd.f32 %v2739, %v2944
        %v2990 = vadd.f32 %v2740, %v2947
        %v2991 = vadd.f32 %v2741, %v2949
        %v2992 = vadd.f32 %v2742, %v2952
        %v2993 = vadd.f32 %v2743, %v2954
        %v2994 = vadd.f32 %v2744, %v2957
        %v2995 = vadd.f32 %v2745, %v2959
        %v2996 = vadd.f32 %v2746, %v2962
        %v2997 = vadd.f32 %v2747, %v2964
        %2998 = vst [vmem:[#allocation2] sm:$0xff] %v2966
        %2999 = vst [vmem:[#allocation2 + $0x8] sm:$0xff] %v2967
        %3000 = vst [vmem:[#allocation2 + $0x10] sm:$0xff] %v2968
        %3001 = vst [vmem:[#allocation2 + $0x18] sm:$0xff] %v2969
        %3002 = vst [vmem:[#allocation2 + $0x20] sm:$0xff] %v2970
        %3003 = vst [vmem:[#allocation2 + $0x28] sm:$0xff] %v2971
        %3004 = vst [vmem:[#allocation2 + $0x30] sm:$0xff] %v2972
        %3005 = vst [vmem:[#allocation2 + $0x38] sm:$0xff] %v2973
        %3006 = vst [vmem:[#allocation2 + $0x40] sm:$0xff] %v2974
        %3007 = vst [vmem:[#allocation2 + $0x48] sm:$0xff] %v2975
        %3008 = vst [vmem:[#allocation2 + $0x50] sm:$0xff] %v2976
        %3009 = vst [vmem:[#allocation2 + $0x58] sm:$0xff] %v2977
        %3010 = vst [vmem:[#allocation2 + $0x60] sm:$0xff] %v2978
        %3011 = vst [vmem:[#allocation2 + $0x68] sm:$0xff] %v2979
        %3012 = vst [vmem:[#allocation2 + $0x70] sm:$0xff] %v2980
        %3013 = vst [vmem:[#allocation2 + $0x78] sm:$0xff] %v2981
        %3014 = vst [vmem:[#allocation2 + $0x80] sm:$0xff] %v2982
        %3015 = vst [vmem:[#allocation2 + $0x88] sm:$0xff] %v2983
        %3016 = vst [vmem:[#allocation2 + $0x90] sm:$0xff] %v2984
        %3017 = vst [vmem:[#allocation2 + $0x98] sm:$0xff] %v2985
        %3018 = vst [vmem:[#allocation2 + $0xa0] sm:$0xff] %v2986
        %3019 = vst [vmem:[#allocation2 + $0xa8] sm:$0xff] %v2987
        %3020 = vst [vmem:[#allocation2 + $0xb0] sm:$0xff] %v2988
        %3021 = vst [vmem:[#allocation2 + $0xb8] sm:$0xff] %v2989
        %3022 = vst [vmem:[#allocation2 + $0xc0] sm:$0xff] %v2990
        %3023 = vst [vmem:[#allocation2 + $0xc8] sm:$0xff] %v2991
        %3024 = vst [vmem:[#allocation2 + $0xd0] sm:$0xff] %v2992
        %3025 = vst [vmem:[#allocation2 + $0xd8] sm:$0xff] %v2993
        %3026 = vst [vmem:[#allocation2 + $0xe0] sm:$0xff] %v2994
        %3027 = vst [vmem:[#allocation2 + $0xe8] sm:$0xff] %v2995
        %3028 = vst [vmem:[#allocation2 + $0xf0] sm:$0xff] %v2996
        %3029 = vst [vmem:[#allocation2 + $0xf8] sm:$0xff] %v2997
        %v3030 = vld [vmem:[%s1905] sm:$0xe]
        %v3031 = vld [vmem:[%s1905 + $0x4] sm:$0xf]
        %v3032 = vld [vmem:[%s1905 + $0x8] sm:$0x1]
        %v3033 = vld [vmem:[%s1905 + $0xc] sm:$0xe]
        %v3034 = vld [vmem:[%s1905 + $0x10] sm:$0xf]
        %v3035 = vld [vmem:[%s1905 + $0x14] sm:$0x1]
        %v3036 = vld [vmem:[%s1905 + $0x18] sm:$0xe]
        %v3037 = vld [vmem:[%s1905 + $0x1c] sm:$0xf]
        %v3038 = vld [vmem:[%s1905 + $0x20] sm:$0x1]
        %v3039 = vld [vmem:[%s1905 + $0x24] sm:$0xe]
        %v3040 = vld [vmem:[%s1905 + $0x28] sm:$0xf]
        %v3041 = vld [vmem:[%s1905 + $0x2c] sm:$0x1]
        %v3042 = vld [vmem:[%s1905 + $0x30] sm:$0xe]
        %v3043 = vld [vmem:[%s1905 + $0x34] sm:$0xf]
        %v3044 = vld [vmem:[%s1905 + $0x38] sm:$0x1]
        %v3045 = vld [vmem:[%s1905 + $0x3c] sm:$0xe]
        %v3046 = vld [vmem:[%s1905 + $0x40] sm:$0xf]
        %v3047 = vld [vmem:[%s1905 + $0x44] sm:$0x1]
        %v3048 = vld [vmem:[%s1905 + $0x48] sm:$0xe]
        %v3049 = vld [vmem:[%s1905 + $0x4c] sm:$0xf]
        %v3050 = vld [vmem:[%s1905 + $0x50] sm:$0x1]
        %v3051 = vld [vmem:[%s1905 + $0x54] sm:$0xe]
        %v3052 = vld [vmem:[%s1905 + $0x58] sm:$0xf]
        %v3053 = vld [vmem:[%s1905 + $0x5c] sm:$0x1]
        %v3054 = vld [vmem:[%s1905 + $0x60] sm:$0xe]
        %v3055 = vld [vmem:[%s1905 + $0x64] sm:$0xf]
        %v3056 = vld [vmem:[%s1905 + $0x68] sm:$0x1]
        %v3057 = vld [vmem:[%s1905 + $0x6c] sm:$0xe]
        %v3058 = vld [vmem:[%s1905 + $0x70] sm:$0xf]
        %v3059 = vld [vmem:[%s1905 + $0x74] sm:$0x1]
        %v3060 = vld [vmem:[%s1905 + $0x78] sm:$0xe]
        %v3061 = vld [vmem:[%s1905 + $0x7c] sm:$0xf]
        %v3062 = vld [vmem:[%s1905 + $0x80] sm:$0x1]
        %v3063 = vld [vmem:[%s1905 + $0x84] sm:$0xe]
        %v3064 = vld [vmem:[%s1905 + $0x88] sm:$0xf]
        %v3065 = vld [vmem:[%s1905 + $0x8c] sm:$0x1]
        %v3066 = vld [vmem:[%s1905 + $0x90] sm:$0xe]
        %v3067 = vld [vmem:[%s1905 + $0x94] sm:$0xf]
        %v3068 = vld [vmem:[%s1905 + $0x98] sm:$0x1]
        %v3069 = vld [vmem:[%s1905 + $0x9c] sm:$0xe]
        %v3070 = vld [vmem:[%s1905 + $0xa0] sm:$0xf]
        %v3071 = vld [vmem:[%s1905 + $0xa4] sm:$0x1]
        %v3072 = vld [vmem:[%s1905 + $0xa8] sm:$0xe]
        %v3073 = vld [vmem:[%s1905 + $0xac] sm:$0xf]
        %v3074 = vld [vmem:[%s1905 + $0xb0] sm:$0x1]
        %v3075 = vld [vmem:[%s1905 + $0xb4] sm:$0xe]
        %v3076 = vld [vmem:[%s1905 + $0xb8] sm:$0xf]
        %v3077 = vld [vmem:[%s1905 + $0xbc] sm:$0x1]
        %v3126 = vrot.slane %v3030, 5
        %v3127 = vrot.slane %v3126, 4
        %v3128 = vrot.slane %v3031, 5
        %v3129 = vsel %vm1478, %v3127, %v3128
        %v3130 = vrot.slane %v3128, 4
        %v3131 = vrot.slane %v3032, 5
        %v3132 = vsel %vm1478, %v3130, %v3131
        %v3133 = vrot.slane %v3033, 5
        %v3134 = vrot.slane %v3133, 4
        %v3135 = vrot.slane %v3034, 5
        %v3136 = vsel %vm1478, %v3134, %v3135
        %v3137 = vrot.slane %v3135, 4
        %v3138 = vrot.slane %v3035, 5
        %v3139 = vsel %vm1478, %v3137, %v3138
        %v3140 = vrot.slane %v3036, 5
        %v3141 = vrot.slane %v3140, 4
        %v3142 = vrot.slane %v3037, 5
        %v3143 = vsel %vm1478, %v3141, %v3142
        %v3144 = vrot.slane %v3142, 4
        %v3145 = vrot.slane %v3038, 5
        %v3146 = vsel %vm1478, %v3144, %v3145
        %v3147 = vrot.slane %v3039, 5
        %v3148 = vrot.slane %v3147, 4
        %v3149 = vrot.slane %v3040, 5
        %v3150 = vsel %vm1478, %v3148, %v3149
        %v3151 = vrot.slane %v3149, 4
        %v3152 = vrot.slane %v3041, 5
        %v3153 = vsel %vm1478, %v3151, %v3152
        %v3154 = vrot.slane %v3042, 5
        %v3155 = vrot.slane %v3154, 4
        %v3156 = vrot.slane %v3043, 5
        %v3157 = vsel %vm1478, %v3155, %v3156
        %v3158 = vrot.slane %v3156, 4
        %v3159 = vrot.slane %v3044, 5
        %v3160 = vsel %vm1478, %v3158, %v3159
        %v3161 = vrot.slane %v3045, 5
        %v3162 = vrot.slane %v3161, 4
        %v3163 = vrot.slane %v3046, 5
        %v3164 = vsel %vm1478, %v3162, %v3163
        %v3165 = vrot.slane %v3163, 4
        %v3166 = vrot.slane %v3047, 5
        %v3167 = vsel %vm1478, %v3165, %v3166
        %v3168 = vrot.slane %v3048, 5
        %v3169 = vrot.slane %v3168, 4
        %v3170 = vrot.slane %v3049, 5
        %v3171 = vsel %vm1478, %v3169, %v3170
        %v3172 = vrot.slane %v3170, 4
        %v3173 = vrot.slane %v3050, 5
        %v3174 = vsel %vm1478, %v3172, %v3173
        %v3175 = vrot.slane %v3051, 5
        %v3176 = vrot.slane %v3175, 4
        %v3177 = vrot.slane %v3052, 5
        %v3178 = vsel %vm1478, %v3176, %v3177
        %v3179 = vrot.slane %v3177, 4
        %v3180 = vrot.slane %v3053, 5
        %v3181 = vsel %vm1478, %v3179, %v3180
        %v3182 = vrot.slane %v3054, 5
        %v3183 = vrot.slane %v3182, 4
        %v3184 = vrot.slane %v3055, 5
        %v3185 = vsel %vm1478, %v3183, %v3184
        %v3186 = vrot.slane %v3184, 4
        %v3187 = vrot.slane %v3056, 5
        %v3188 = vsel %vm1478, %v3186, %v3187
        %v3189 = vrot.slane %v3057, 5
        %v3190 = vrot.slane %v3189, 4
        %v3191 = vrot.slane %v3058, 5
        %v3192 = vsel %vm1478, %v3190, %v3191
        %v3193 = vrot.slane %v3191, 4
        %v3194 = vrot.slane %v3059, 5
        %v3195 = vsel %vm1478, %v3193, %v3194
        %v3196 = vrot.slane %v3060, 5
        %v3197 = vrot.slane %v3196, 4
        %v3198 = vrot.slane %v3061, 5
        %v3199 = vsel %vm1478, %v3197, %v3198
        %v3200 = vrot.slane %v3198, 4
        %v3201 = vrot.slane %v3062, 5
        %v3202 = vsel %vm1478, %v3200, %v3201
        %v3203 = vrot.slane %v3063, 5
        %v3204 = vrot.slane %v3203, 4
        %v3205 = vrot.slane %v3064, 5
        %v3206 = vsel %vm1478, %v3204, %v3205
        %v3207 = vrot.slane %v3205, 4
        %v3208 = vrot.slane %v3065, 5
        %v3209 = vsel %vm1478, %v3207, %v3208
        %v3210 = vrot.slane %v3066, 5
        %v3211 = vrot.slane %v3210, 4
        %v3212 = vrot.slane %v3067, 5
        %v3213 = vsel %vm1478, %v3211, %v3212
        %v3214 = vrot.slane %v3212, 4
        %v3215 = vrot.slane %v3068, 5
        %v3216 = vsel %vm1478, %v3214, %v3215
        %v3217 = vrot.slane %v3069, 5
        %v3218 = vrot.slane %v3217, 4
        %v3219 = vrot.slane %v3070, 5
        %v3220 = vsel %vm1478, %v3218, %v3219
        %v3221 = vrot.slane %v3219, 4
        %v3222 = vrot.slane %v3071, 5
        %v3223 = vsel %vm1478, %v3221, %v3222
        %v3224 = vrot.slane %v3072, 5
        %v3225 = vrot.slane %v3224, 4
        %v3226 = vrot.slane %v3073, 5
        %v3227 = vsel %vm1478, %v3225, %v3226
        %v3228 = vrot.slane %v3226, 4
        %v3229 = vrot.slane %v3074, 5
        %v3230 = vsel %vm1478, %v3228, %v3229
        %v3231 = vrot.slane %v3075, 5
        %v3232 = vrot.slane %v3231, 4
        %v3233 = vrot.slane %v3076, 5
        %v3234 = vsel %vm1478, %v3232, %v3233
        %v3235 = vrot.slane %v3233, 4
        %v3236 = vrot.slane %v3077, 5
        %v3237 = vsel %vm1478, %v3235, %v3236
        %v3238 = vld [vmem:[#allocation2] sm:$0xff]
        %v3239 = vld [vmem:[#allocation2 + $0x8] sm:$0xff]
        %v3240 = vld [vmem:[#allocation2 + $0x10] sm:$0xff]
        %v3241 = vld [vmem:[#allocation2 + $0x18] sm:$0xff]
        %v3242 = vld [vmem:[#allocation2 + $0x20] sm:$0xff]
        %v3243 = vld [vmem:[#allocation2 + $0x28] sm:$0xff]
        %v3244 = vld [vmem:[#allocation2 + $0x30] sm:$0xff]
        %v3245 = vld [vmem:[#allocation2 + $0x38] sm:$0xff]
        %v3246 = vld [vmem:[#allocation2 + $0x40] sm:$0xff]
        %v3247 = vld [vmem:[#allocation2 + $0x48] sm:$0xff]
        %v3248 = vld [vmem:[#allocation2 + $0x50] sm:$0xff]
        %v3249 = vld [vmem:[#allocation2 + $0x58] sm:$0xff]
        %v3250 = vld [vmem:[#allocation2 + $0x60] sm:$0xff]
        %v3251 = vld [vmem:[#allocation2 + $0x68] sm:$0xff]
        %v3252 = vld [vmem:[#allocation2 + $0x70] sm:$0xff]
        %v3253 = vld [vmem:[#allocation2 + $0x78] sm:$0xff]
        %v3254 = vld [vmem:[#allocation2 + $0x80] sm:$0xff]
        %v3255 = vld [vmem:[#allocation2 + $0x88] sm:$0xff]
        %v3256 = vld [vmem:[#allocation2 + $0x90] sm:$0xff]
        %v3257 = vld [vmem:[#allocation2 + $0x98] sm:$0xff]
        %v3258 = vld [vmem:[#allocation2 + $0xa0] sm:$0xff]
        %v3259 = vld [vmem:[#allocation2 + $0xa8] sm:$0xff]
        %v3260 = vld [vmem:[#allocation2 + $0xb0] sm:$0xff]
        %v3261 = vld [vmem:[#allocation2 + $0xb8] sm:$0xff]
        %v3262 = vld [vmem:[#allocation2 + $0xc0] sm:$0xff]
        %v3263 = vld [vmem:[#allocation2 + $0xc8] sm:$0xff]
        %v3264 = vld [vmem:[#allocation2 + $0xd0] sm:$0xff]
        %v3265 = vld [vmem:[#allocation2 + $0xd8] sm:$0xff]
        %v3266 = vld [vmem:[#allocation2 + $0xe0] sm:$0xff]
        %v3267 = vld [vmem:[#allocation2 + $0xe8] sm:$0xff]
        %v3268 = vld [vmem:[#allocation2 + $0xf0] sm:$0xff]
        %v3269 = vld [vmem:[#allocation2 + $0xf8] sm:$0xff]
        %s3270 = scalar_lea.vmem %s1, 320
        %v3271 = vld [vmem:[%s3270] sm:$0xf]
        %v3272 = vld [vmem:[%s3270 + $0x4] sm:$0xf]
        %v3273 = vld [vmem:[%s3270 + $0x8] sm:$0xf]
        %v3274 = vld [vmem:[%s3270 + $0xc] sm:$0xf]
        %v3275 = vld [vmem:[%s3270 + $0x10] sm:$0xf]
        %v3276 = vld [vmem:[%s3270 + $0x14] sm:$0xf]
        %v3277 = vld [vmem:[%s3270 + $0x18] sm:$0xf]
        %v3278 = vld [vmem:[%s3270 + $0x1c] sm:$0xf]
        %v3279 = vld [vmem:[%s3270 + $0x20] sm:$0xf]
        %v3280 = vld [vmem:[%s3270 + $0x24] sm:$0xf]
        %v3281 = vld [vmem:[%s3270 + $0x28] sm:$0xf]
        %v3282 = vld [vmem:[%s3270 + $0x2c] sm:$0xf]
        %v3283 = vld [vmem:[%s3270 + $0x30] sm:$0xf]
        %v3284 = vld [vmem:[%s3270 + $0x34] sm:$0xf]
        %v3285 = vld [vmem:[%s3270 + $0x38] sm:$0xf]
        %v3286 = vld [vmem:[%s3270 + $0x3c] sm:$0xf]
        %v3287 = vunpack.c.l.b16 %v3129
        %v3288 = vunpack.c.l.b16 %v3132
        %v3289 = vunpack.c.l.b16 %v3136
        %v3290 = vunpack.c.l.b16 %v3139
        %v3291 = vunpack.c.l.b16 %v3143
        %v3292 = vunpack.c.l.b16 %v3146
        %v3293 = vunpack.c.l.b16 %v3150
        %v3294 = vunpack.c.l.b16 %v3153
        %v3295 = vunpack.c.l.b16 %v3157
        %v3296 = vunpack.c.l.b16 %v3160
        %v3297 = vunpack.c.l.b16 %v3164
        %v3298 = vunpack.c.l.b16 %v3167
        %v3299 = vunpack.c.l.b16 %v3171
        %v3300 = vunpack.c.l.b16 %v3174
        %v3301 = vunpack.c.l.b16 %v3178
        %v3302 = vunpack.c.l.b16 %v3181
        %v3303 = vunpack.c.l.b16 %v3185
        %v3304 = vunpack.c.l.b16 %v3188
        %v3305 = vunpack.c.l.b16 %v3192
        %v3306 = vunpack.c.l.b16 %v3195
        %v3307 = vunpack.c.l.b16 %v3199
        %v3308 = vunpack.c.l.b16 %v3202
        %v3309 = vunpack.c.l.b16 %v3206
        %v3310 = vunpack.c.l.b16 %v3209
        %v3311 = vunpack.c.l.b16 %v3213
        %v3312 = vunpack.c.l.b16 %v3216
        %v3313 = vunpack.c.l.b16 %v3220
        %v3314 = vunpack.c.l.b16 %v3223
        %v3315 = vunpack.c.l.b16 %v3227
        %v3316 = vunpack.c.l.b16 %v3230
        %v3317 = vunpack.c.l.b16 %v3234
        %v3318 = vunpack.c.l.b16 %v3237
        %v3319 = vpack.c.b16 %v3288, %v3287
        %v3320 = vpack.c.b16 %v3290, %v3289
        %v3321 = vpack.c.b16 %v3292, %v3291
        %v3322 = vpack.c.b16 %v3294, %v3293
        %v3323 = vpack.c.b16 %v3296, %v3295
        %v3324 = vpack.c.b16 %v3298, %v3297
        %v3325 = vpack.c.b16 %v3300, %v3299
        %v3326 = vpack.c.b16 %v3302, %v3301
        %v3327 = vpack.c.b16 %v3304, %v3303
        %v3328 = vpack.c.b16 %v3306, %v3305
        %v3329 = vpack.c.b16 %v3308, %v3307
        %v3330 = vpack.c.b16 %v3310, %v3309
        %v3331 = vpack.c.b16 %v3312, %v3311
        %v3332 = vpack.c.b16 %v3314, %v3313
        %v3333 = vpack.c.b16 %v3316, %v3315
        %v3334 = vpack.c.b16 %v3318, %v3317
        %v3367 = vunpack.c.l.b16 %v3271
        %v3368 = vunpack.c.l.b16 %v3272
        %v3369 = vunpack.c.l.b16 %v3273
        %v3370 = vunpack.c.l.b16 %v3274
        %v3371 = vunpack.c.l.b16 %v3275
        %v3372 = vunpack.c.l.b16 %v3276
        %v3373 = vunpack.c.l.b16 %v3277
        %v3374 = vunpack.c.l.b16 %v3278
        %v3375 = vunpack.c.l.b16 %v3279
        %v3376 = vunpack.c.l.b16 %v3280
        %v3377 = vunpack.c.l.b16 %v3281
        %v3378 = vunpack.c.l.b16 %v3282
        %v3379 = vunpack.c.l.b16 %v3283
        %v3380 = vunpack.c.l.b16 %v3284
        %v3381 = vunpack.c.l.b16 %v3285
        %v3382 = vunpack.c.l.b16 %v3286
        %v3383 = vpack.c.b16 %v3368, %v3367
        %v3384 = vpack.c.b16 %v3370, %v3369
        %v3385 = vpack.c.b16 %v3372, %v3371
        %v3386 = vpack.c.b16 %v3374, %v3373
        %v3387 = vpack.c.b16 %v3376, %v3375
        %v3388 = vpack.c.b16 %v3378, %v3377
        %v3389 = vpack.c.b16 %v3380, %v3379
        %v3390 = vpack.c.b16 %v3382, %v3381
        %3399 = vmatpush.bf16.msra.mxu0 %v3390
        %3400 = vmatpush.bf16.msra.mxu0 %v3389
        %3401 = vmatpush.bf16.msra.mxu0 %v3388
        %3402 = vmatpush.bf16.msra.mxu0 %v3387
        %3403 = vmatpush.bf16.msra.mxu0 %v3386
        %3404 = vmatpush.bf16.msra.mxu0 %v3385
        %3405 = vmatpush.bf16.msra.mxu0 %v3384
        %3406 = vmatpush.bf16.msra.mxu0 %v3383
        %3407 = vmatmul.bf16.gmra.mxu0 %v3319
        %v3408 = vpop.f32.mrf.mxu0
        %v3409 = vadd.f32 0.0, %v3408
        %v3410 = vpop.f32.mrf.mxu0
        %v3411 = vadd.f32 0.0, %v3410
        %3412 = vmatmul.bf16.gmra.mxu0 %v3320
        %v3413 = vpop.f32.mrf.mxu0
        %v3414 = vadd.f32 0.0, %v3413
        %v3415 = vpop.f32.mrf.mxu0
        %v3416 = vadd.f32 0.0, %v3415
        %3417 = vmatmul.bf16.gmra.mxu0 %v3321
        %v3418 = vpop.f32.mrf.mxu0
        %v3419 = vadd.f32 0.0, %v3418
        %v3420 = vpop.f32.mrf.mxu0
        %v3421 = vadd.f32 0.0, %v3420
        %3422 = vmatmul.bf16.gmra.mxu0 %v3322
        %v3423 = vpop.f32.mrf.mxu0
        %v3424 = vadd.f32 0.0, %v3423
        %v3425 = vpop.f32.mrf.mxu0
        %v3426 = vadd.f32 0.0, %v3425
        %3427 = vmatmul.bf16.gmra.mxu0 %v3323
        %v3428 = vpop.f32.mrf.mxu0
        %v3429 = vadd.f32 0.0, %v3428
        %v3430 = vpop.f32.mrf.mxu0
        %v3431 = vadd.f32 0.0, %v3430
        %3432 = vmatmul.bf16.gmra.mxu0 %v3324
        %v3433 = vpop.f32.mrf.mxu0
        %v3434 = vadd.f32 0.0, %v3433
        %v3435 = vpop.f32.mrf.mxu0
        %v3436 = vadd.f32 0.0, %v3435
        %3437 = vmatmul.bf16.gmra.mxu0 %v3325
        %v3438 = vpop.f32.mrf.mxu0
        %v3439 = vadd.f32 0.0, %v3438
        %v3440 = vpop.f32.mrf.mxu0
        %v3441 = vadd.f32 0.0, %v3440
        %3442 = vmatmul.bf16.gmra.mxu0 %v3326
        %v3443 = vpop.f32.mrf.mxu0
        %v3444 = vadd.f32 0.0, %v3443
        %v3445 = vpop.f32.mrf.mxu0
        %v3446 = vadd.f32 0.0, %v3445
        %3447 = vmatmul.bf16.gmra.mxu0 %v3327
        %v3448 = vpop.f32.mrf.mxu0
        %v3449 = vadd.f32 0.0, %v3448
        %v3450 = vpop.f32.mrf.mxu0
        %v3451 = vadd.f32 0.0, %v3450
        %3452 = vmatmul.bf16.gmra.mxu0 %v3328
        %v3453 = vpop.f32.mrf.mxu0
        %v3454 = vadd.f32 0.0, %v3453
        %v3455 = vpop.f32.mrf.mxu0
        %v3456 = vadd.f32 0.0, %v3455
        %3457 = vmatmul.bf16.gmra.mxu0 %v3329
        %v3458 = vpop.f32.mrf.mxu0
        %v3459 = vadd.f32 0.0, %v3458
        %v3460 = vpop.f32.mrf.mxu0
        %v3461 = vadd.f32 0.0, %v3460
        %3462 = vmatmul.bf16.gmra.mxu0 %v3330
        %v3463 = vpop.f32.mrf.mxu0
        %v3464 = vadd.f32 0.0, %v3463
        %v3465 = vpop.f32.mrf.mxu0
        %v3466 = vadd.f32 0.0, %v3465
        %3467 = vmatmul.bf16.gmra.mxu0 %v3331
        %v3468 = vpop.f32.mrf.mxu0
        %v3469 = vadd.f32 0.0, %v3468
        %v3470 = vpop.f32.mrf.mxu0
        %v3471 = vadd.f32 0.0, %v3470
        %3472 = vmatmul.bf16.gmra.mxu0 %v3332
        %v3473 = vpop.f32.mrf.mxu0
        %v3474 = vadd.f32 0.0, %v3473
        %v3475 = vpop.f32.mrf.mxu0
        %v3476 = vadd.f32 0.0, %v3475
        %3477 = vmatmul.bf16.gmra.mxu0 %v3333
        %v3478 = vpop.f32.mrf.mxu0
        %v3479 = vadd.f32 0.0, %v3478
        %v3480 = vpop.f32.mrf.mxu0
        %v3481 = vadd.f32 0.0, %v3480
        %3482 = vmatmul.bf16.gmra.mxu0 %v3334
        %v3483 = vpop.f32.mrf.mxu0
        %v3484 = vadd.f32 0.0, %v3483
        %v3485 = vpop.f32.mrf.mxu0
        %v3486 = vadd.f32 0.0, %v3485
        %3487 = vdwg.mxu0
        %v3488 = vadd.f32 %v3238, %v3409
        %v3489 = vadd.f32 %v3239, %v3411
        %v3490 = vadd.f32 %v3240, %v3414
        %v3491 = vadd.f32 %v3241, %v3416
        %v3492 = vadd.f32 %v3242, %v3419
        %v3493 = vadd.f32 %v3243, %v3421
        %v3494 = vadd.f32 %v3244, %v3424
        %v3495 = vadd.f32 %v3245, %v3426
        %v3496 = vadd.f32 %v3246, %v3429
        %v3497 = vadd.f32 %v3247, %v3431
        %v3498 = vadd.f32 %v3248, %v3434
        %v3499 = vadd.f32 %v3249, %v3436
        %v3500 = vadd.f32 %v3250, %v3439
        %v3501 = vadd.f32 %v3251, %v3441
        %v3502 = vadd.f32 %v3252, %v3444
        %v3503 = vadd.f32 %v3253, %v3446
        %v3504 = vadd.f32 %v3254, %v3449
        %v3505 = vadd.f32 %v3255, %v3451
        %v3506 = vadd.f32 %v3256, %v3454
        %v3507 = vadd.f32 %v3257, %v3456
        %v3508 = vadd.f32 %v3258, %v3459
        %v3509 = vadd.f32 %v3259, %v3461
        %v3510 = vadd.f32 %v3260, %v3464
        %v3511 = vadd.f32 %v3261, %v3466
        %v3512 = vadd.f32 %v3262, %v3469
        %v3513 = vadd.f32 %v3263, %v3471
        %v3514 = vadd.f32 %v3264, %v3474
        %v3515 = vadd.f32 %v3265, %v3476
        %v3516 = vadd.f32 %v3266, %v3479
        %v3517 = vadd.f32 %v3267, %v3481
        %v3518 = vadd.f32 %v3268, %v3484
        %v3519 = vadd.f32 %v3269, %v3486
        %3520 = vst [vmem:[#allocation2] sm:$0xff] %v3488
        %3521 = vst [vmem:[#allocation2 + $0x8] sm:$0xff] %v3489
        %3522 = vst [vmem:[#allocation2 + $0x10] sm:$0xff] %v3490
        %3523 = vst [vmem:[#allocation2 + $0x18] sm:$0xff] %v3491
        %3524 = vst [vmem:[#allocation2 + $0x20] sm:$0xff] %v3492
        %3525 = vst [vmem:[#allocation2 + $0x28] sm:$0xff] %v3493
        %3526 = vst [vmem:[#allocation2 + $0x30] sm:$0xff] %v3494
        %3527 = vst [vmem:[#allocation2 + $0x38] sm:$0xff] %v3495
        %3528 = vst [vmem:[#allocation2 + $0x40] sm:$0xff] %v3496
        %3529 = vst [vmem:[#allocation2 + $0x48] sm:$0xff] %v3497
        %3530 = vst [vmem:[#allocation2 + $0x50] sm:$0xff] %v3498
        %3531 = vst [vmem:[#allocation2 + $0x58] sm:$0xff] %v3499
        %3532 = vst [vmem:[#allocation2 + $0x60] sm:$0xff] %v3500
        %3533 = vst [vmem:[#allocation2 + $0x68] sm:$0xff] %v3501
        %3534 = vst [vmem:[#allocation2 + $0x70] sm:$0xff] %v3502
        %3535 = vst [vmem:[#allocation2 + $0x78] sm:$0xff] %v3503
        %3536 = vst [vmem:[#allocation2 + $0x80] sm:$0xff] %v3504
        %3537 = vst [vmem:[#allocation2 + $0x88] sm:$0xff] %v3505
        %3538 = vst [vmem:[#allocation2 + $0x90] sm:$0xff] %v3506
        %3539 = vst [vmem:[#allocation2 + $0x98] sm:$0xff] %v3507
        %3540 = vst [vmem:[#allocation2 + $0xa0] sm:$0xff] %v3508
        %3541 = vst [vmem:[#allocation2 + $0xa8] sm:$0xff] %v3509
        %3542 = vst [vmem:[#allocation2 + $0xb0] sm:$0xff] %v3510
        %3543 = vst [vmem:[#allocation2 + $0xb8] sm:$0xff] %v3511
        %3544 = vst [vmem:[#allocation2 + $0xc0] sm:$0xff] %v3512
        %3545 = vst [vmem:[#allocation2 + $0xc8] sm:$0xff] %v3513
        %3546 = vst [vmem:[#allocation2 + $0xd0] sm:$0xff] %v3514
        %3547 = vst [vmem:[#allocation2 + $0xd8] sm:$0xff] %v3515
        %3548 = vst [vmem:[#allocation2 + $0xe0] sm:$0xff] %v3516
        %3549 = vst [vmem:[#allocation2 + $0xe8] sm:$0xff] %v3517
        %3550 = vst [vmem:[#allocation2 + $0xf0] sm:$0xff] %v3518
        %3551 = vst [vmem:[#allocation2 + $0xf8] sm:$0xff] %v3519
        %s3552 = scalar_lea.vmem %s221, 24
        %v3553 = vld [vmem:[%s3552] sm:$0xf]
        %v3554 = vld [vmem:[%s3552 + $0x4] sm:$0xf]
        %v3555 = vld [vmem:[%s3552 + $0xc] sm:$0xf]
        %v3556 = vld [vmem:[%s3552 + $0x10] sm:$0xf]
        %v3557 = vld [vmem:[%s3552 + $0x18] sm:$0xf]
        %v3558 = vld [vmem:[%s3552 + $0x1c] sm:$0xf]
        %v3559 = vld [vmem:[%s3552 + $0x24] sm:$0xf]
        %v3560 = vld [vmem:[%s3552 + $0x28] sm:$0xf]
        %v3561 = vld [vmem:[%s3552 + $0x30] sm:$0xf]
        %v3562 = vld [vmem:[%s3552 + $0x34] sm:$0xf]
        %v3563 = vld [vmem:[%s3552 + $0x3c] sm:$0xf]
        %v3564 = vld [vmem:[%s3552 + $0x40] sm:$0xf]
        %v3565 = vld [vmem:[%s3552 + $0x48] sm:$0xf]
        %v3566 = vld [vmem:[%s3552 + $0x4c] sm:$0xf]
        %v3567 = vld [vmem:[%s3552 + $0x54] sm:$0xf]
        %v3568 = vld [vmem:[%s3552 + $0x58] sm:$0xf]
        %v3569 = vld [vmem:[%s3552 + $0x60] sm:$0xf]
        %v3570 = vld [vmem:[%s3552 + $0x64] sm:$0xf]
        %v3571 = vld [vmem:[%s3552 + $0x6c] sm:$0xf]
        %v3572 = vld [vmem:[%s3552 + $0x70] sm:$0xf]
        %v3573 = vld [vmem:[%s3552 + $0x78] sm:$0xf]
        %v3574 = vld [vmem:[%s3552 + $0x7c] sm:$0xf]
        %v3575 = vld [vmem:[%s3552 + $0x84] sm:$0xf]
        %v3576 = vld [vmem:[%s3552 + $0x88] sm:$0xf]
        %v3577 = vld [vmem:[%s3552 + $0x90] sm:$0xf]
        %v3578 = vld [vmem:[%s3552 + $0x94] sm:$0xf]
        %v3579 = vld [vmem:[%s3552 + $0x9c] sm:$0xf]
        %v3580 = vld [vmem:[%s3552 + $0xa0] sm:$0xf]
        %v3581 = vld [vmem:[%s3552 + $0xa8] sm:$0xf]
        %v3582 = vld [vmem:[%s3552 + $0xac] sm:$0xf]
        %v3583 = vld [vmem:[%s3552 + $0xb4] sm:$0xf]
        %v3584 = vld [vmem:[%s3552 + $0xb8] sm:$0xf]
        %v3585 = vld [vmem:[#allocation2] sm:$0xff]
        %v3586 = vld [vmem:[#allocation2 + $0x8] sm:$0xff]
        %v3587 = vld [vmem:[#allocation2 + $0x10] sm:$0xff]
        %v3588 = vld [vmem:[#allocation2 + $0x18] sm:$0xff]
        %v3589 = vld [vmem:[#allocation2 + $0x20] sm:$0xff]
        %v3590 = vld [vmem:[#allocation2 + $0x28] sm:$0xff]
        %v3591 = vld [vmem:[#allocation2 + $0x30] sm:$0xff]
        %v3592 = vld [vmem:[#allocation2 + $0x38] sm:$0xff]
        %v3593 = vld [vmem:[#allocation2 + $0x40] sm:$0xff]
        %v3594 = vld [vmem:[#allocation2 + $0x48] sm:$0xff]
        %v3595 = vld [vmem:[#allocation2 + $0x50] sm:$0xff]
        %v3596 = vld [vmem:[#allocation2 + $0x58] sm:$0xff]
        %v3597 = vld [vmem:[#allocation2 + $0x60] sm:$0xff]
        %v3598 = vld [vmem:[#allocation2 + $0x68] sm:$0xff]
        %v3599 = vld [vmem:[#allocation2 + $0x70] sm:$0xff]
        %v3600 = vld [vmem:[#allocation2 + $0x78] sm:$0xff]
        %v3601 = vld [vmem:[#allocation2 + $0x80] sm:$0xff]
        %v3602 = vld [vmem:[#allocation2 + $0x88] sm:$0xff]
        %v3603 = vld [vmem:[#allocation2 + $0x90] sm:$0xff]
        %v3604 = vld [vmem:[#allocation2 + $0x98] sm:$0xff]
        %v3605 = vld [vmem:[#allocation2 + $0xa0] sm:$0xff]
        %v3606 = vld [vmem:[#allocation2 + $0xa8] sm:$0xff]
        %v3607 = vld [vmem:[#allocation2 + $0xb0] sm:$0xff]
        %v3608 = vld [vmem:[#allocation2 + $0xb8] sm:$0xff]
        %v3609 = vld [vmem:[#allocation2 + $0xc0] sm:$0xff]
        %v3610 = vld [vmem:[#allocation2 + $0xc8] sm:$0xff]
        %v3611 = vld [vmem:[#allocation2 + $0xd0] sm:$0xff]
        %v3612 = vld [vmem:[#allocation2 + $0xd8] sm:$0xff]
        %v3613 = vld [vmem:[#allocation2 + $0xe0] sm:$0xff]
        %v3614 = vld [vmem:[#allocation2 + $0xe8] sm:$0xff]
        %v3615 = vld [vmem:[#allocation2 + $0xf0] sm:$0xff]
        %v3616 = vld [vmem:[#allocation2 + $0xf8] sm:$0xff]
        %s3617 = scalar_lea.vmem %s1, 384
        %v3618 = vld [vmem:[%s3617] sm:$0xf]
        %v3619 = vld [vmem:[%s3617 + $0x4] sm:$0xf]
        %v3620 = vld [vmem:[%s3617 + $0x8] sm:$0xf]
        %v3621 = vld [vmem:[%s3617 + $0xc] sm:$0xf]
        %v3622 = vld [vmem:[%s3617 + $0x10] sm:$0xf]
        %v3623 = vld [vmem:[%s3617 + $0x14] sm:$0xf]
        %v3624 = vld [vmem:[%s3617 + $0x18] sm:$0xf]
        %v3625 = vld [vmem:[%s3617 + $0x1c] sm:$0xf]
        %v3626 = vld [vmem:[%s3617 + $0x20] sm:$0xf]
        %v3627 = vld [vmem:[%s3617 + $0x24] sm:$0xf]
        %v3628 = vld [vmem:[%s3617 + $0x28] sm:$0xf]
        %v3629 = vld [vmem:[%s3617 + $0x2c] sm:$0xf]
        %v3630 = vld [vmem:[%s3617 + $0x30] sm:$0xf]
        %v3631 = vld [vmem:[%s3617 + $0x34] sm:$0xf]
        %v3632 = vld [vmem:[%s3617 + $0x38] sm:$0xf]
        %v3633 = vld [vmem:[%s3617 + $0x3c] sm:$0xf]
        %v3666 = vunpack.c.l.b16 %v3553
        %v3667 = vunpack.c.l.b16 %v3554
        %v3668 = vunpack.c.l.b16 %v3555
        %v3669 = vunpack.c.l.b16 %v3556
        %v3670 = vunpack.c.l.b16 %v3557
        %v3671 = vunpack.c.l.b16 %v3558
        %v3672 = vunpack.c.l.b16 %v3559
        %v3673 = vunpack.c.l.b16 %v3560
        %v3674 = vunpack.c.l.b16 %v3561
        %v3675 = vunpack.c.l.b16 %v3562
        %v3676 = vunpack.c.l.b16 %v3563
        %v3677 = vunpack.c.l.b16 %v3564
        %v3678 = vunpack.c.l.b16 %v3565
        %v3679 = vunpack.c.l.b16 %v3566
        %v3680 = vunpack.c.l.b16 %v3567
        %v3681 = vunpack.c.l.b16 %v3568
        %v3682 = vunpack.c.l.b16 %v3569
        %v3683 = vunpack.c.l.b16 %v3570
        %v3684 = vunpack.c.l.b16 %v3571
        %v3685 = vunpack.c.l.b16 %v3572
        %v3686 = vunpack.c.l.b16 %v3573
        %v3687 = vunpack.c.l.b16 %v3574
        %v3688 = vunpack.c.l.b16 %v3575
        %v3689 = vunpack.c.l.b16 %v3576
        %v3690 = vunpack.c.l.b16 %v3577
        %v3691 = vunpack.c.l.b16 %v3578
        %v3692 = vunpack.c.l.b16 %v3579
        %v3693 = vunpack.c.l.b16 %v3580
        %v3694 = vunpack.c.l.b16 %v3581
        %v3695 = vunpack.c.l.b16 %v3582
        %v3696 = vunpack.c.l.b16 %v3583
        %v3697 = vunpack.c.l.b16 %v3584
        %v3698 = vpack.c.b16 %v3667, %v3666
        %v3699 = vpack.c.b16 %v3669, %v3668
        %v3700 = vpack.c.b16 %v3671, %v3670
        %v3701 = vpack.c.b16 %v3673, %v3672
        %v3702 = vpack.c.b16 %v3675, %v3674
        %v3703 = vpack.c.b16 %v3677, %v3676
        %v3704 = vpack.c.b16 %v3679, %v3678
        %v3705 = vpack.c.b16 %v3681, %v3680
        %v3706 = vpack.c.b16 %v3683, %v3682
        %v3707 = vpack.c.b16 %v3685, %v3684
        %v3708 = vpack.c.b16 %v3687, %v3686
        %v3709 = vpack.c.b16 %v3689, %v3688
        %v3710 = vpack.c.b16 %v3691, %v3690
        %v3711 = vpack.c.b16 %v3693, %v3692
        %v3712 = vpack.c.b16 %v3695, %v3694
        %v3713 = vpack.c.b16 %v3697, %v3696
        %v3746 = vunpack.c.l.b16 %v3618
        %v3747 = vunpack.c.l.b16 %v3619
        %v3748 = vunpack.c.l.b16 %v3620
        %v3749 = vunpack.c.l.b16 %v3621
        %v3750 = vunpack.c.l.b16 %v3622
        %v3751 = vunpack.c.l.b16 %v3623
        %v3752 = vunpack.c.l.b16 %v3624
        %v3753 = vunpack.c.l.b16 %v3625
        %v3754 = vunpack.c.l.b16 %v3626
        %v3755 = vunpack.c.l.b16 %v3627
        %v3756 = vunpack.c.l.b16 %v3628
        %v3757 = vunpack.c.l.b16 %v3629
        %v3758 = vunpack.c.l.b16 %v3630
        %v3759 = vunpack.c.l.b16 %v3631
        %v3760 = vunpack.c.l.b16 %v3632
        %v3761 = vunpack.c.l.b16 %v3633
        %v3762 = vpack.c.b16 %v3747, %v3746
        %v3763 = vpack.c.b16 %v3749, %v3748
        %v3764 = vpack.c.b16 %v3751, %v3750
        %v3765 = vpack.c.b16 %v3753, %v3752
        %v3766 = vpack.c.b16 %v3755, %v3754
        %v3767 = vpack.c.b16 %v3757, %v3756
        %v3768 = vpack.c.b16 %v3759, %v3758
        %v3769 = vpack.c.b16 %v3761, %v3760
        %3778 = vmatpush.bf16.msra.mxu0 %v3769
        %3779 = vmatpush.bf16.msra.mxu0 %v3768
        %3780 = vmatpush.bf16.msra.mxu0 %v3767
        %3781 = vmatpush.bf16.msra.mxu0 %v3766
        %3782 = vmatpush.bf16.msra.mxu0 %v3765
        %3783 = vmatpush.bf16.msra.mxu0 %v3764
        %3784 = vmatpush.bf16.msra.mxu0 %v3763
        %3785 = vmatpush.bf16.msra.mxu0 %v3762
        %3786 = vmatmul.bf16.gmra.mxu0 %v3698
        %v3787 = vpop.f32.mrf.mxu0
        %v3788 = vadd.f32 0.0, %v3787
        %v3789 = vpop.f32.mrf.mxu0
        %v3790 = vadd.f32 0.0, %v3789
        %3791 = vmatmul.bf16.gmra.mxu0 %v3699
        %v3792 = vpop.f32.mrf.mxu0
        %v3793 = vadd.f32 0.0, %v3792
        %v3794 = vpop.f32.mrf.mxu0
        %v3795 = vadd.f32 0.0, %v3794
        %3796 = vmatmul.bf16.gmra.mxu0 %v3700
        %v3797 = vpop.f32.mrf.mxu0
        %v3798 = vadd.f32 0.0, %v3797
        %v3799 = vpop.f32.mrf.mxu0
        %v3800 = vadd.f32 0.0, %v3799
        %3801 = vmatmul.bf16.gmra.mxu0 %v3701
        %v3802 = vpop.f32.mrf.mxu0
        %v3803 = vadd.f32 0.0, %v3802
        %v3804 = vpop.f32.mrf.mxu0
        %v3805 = vadd.f32 0.0, %v3804
        %3806 = vmatmul.bf16.gmra.mxu0 %v3702
        %v3807 = vpop.f32.mrf.mxu0
        %v3808 = vadd.f32 0.0, %v3807
        %v3809 = vpop.f32.mrf.mxu0
        %v3810 = vadd.f32 0.0, %v3809
        %3811 = vmatmul.bf16.gmra.mxu0 %v3703
        %v3812 = vpop.f32.mrf.mxu0
        %v3813 = vadd.f32 0.0, %v3812
        %v3814 = vpop.f32.mrf.mxu0
        %v3815 = vadd.f32 0.0, %v3814
        %3816 = vmatmul.bf16.gmra.mxu0 %v3704
        %v3817 = vpop.f32.mrf.mxu0
        %v3818 = vadd.f32 0.0, %v3817
        %v3819 = vpop.f32.mrf.mxu0
        %v3820 = vadd.f32 0.0, %v3819
        %3821 = vmatmul.bf16.gmra.mxu0 %v3705
        %v3822 = vpop.f32.mrf.mxu0
        %v3823 = vadd.f32 0.0, %v3822
        %v3824 = vpop.f32.mrf.mxu0
        %v3825 = vadd.f32 0.0, %v3824
        %3826 = vmatmul.bf16.gmra.mxu0 %v3706
        %v3827 = vpop.f32.mrf.mxu0
        %v3828 = vadd.f32 0.0, %v3827
        %v3829 = vpop.f32.mrf.mxu0
        %v3830 = vadd.f32 0.0, %v3829
        %3831 = vmatmul.bf16.gmra.mxu0 %v3707
        %v3832 = vpop.f32.mrf.mxu0
        %v3833 = vadd.f32 0.0, %v3832
        %v3834 = vpop.f32.mrf.mxu0
        %v3835 = vadd.f32 0.0, %v3834
        %3836 = vmatmul.bf16.gmra.mxu0 %v3708
        %v3837 = vpop.f32.mrf.mxu0
        %v3838 = vadd.f32 0.0, %v3837
        %v3839 = vpop.f32.mrf.mxu0
        %v3840 = vadd.f32 0.0, %v3839
        %3841 = vmatmul.bf16.gmra.mxu0 %v3709
        %v3842 = vpop.f32.mrf.mxu0
        %v3843 = vadd.f32 0.0, %v3842
        %v3844 = vpop.f32.mrf.mxu0
        %v3845 = vadd.f32 0.0, %v3844
        %3846 = vmatmul.bf16.gmra.mxu0 %v3710
        %v3847 = vpop.f32.mrf.mxu0
        %v3848 = vadd.f32 0.0, %v3847
        %v3849 = vpop.f32.mrf.mxu0
        %v3850 = vadd.f32 0.0, %v3849
        %3851 = vmatmul.bf16.gmra.mxu0 %v3711
        %v3852 = vpop.f32.mrf.mxu0
        %v3853 = vadd.f32 0.0, %v3852
        %v3854 = vpop.f32.mrf.mxu0
        %v3855 = vadd.f32 0.0, %v3854
        %3856 = vmatmul.bf16.gmra.mxu0 %v3712
        %v3857 = vpop.f32.mrf.mxu0
        %v3858 = vadd.f32 0.0, %v3857
        %v3859 = vpop.f32.mrf.mxu0
        %v3860 = vadd.f32 0.0, %v3859
        %3861 = vmatmul.bf16.gmra.mxu0 %v3713
        %v3862 = vpop.f32.mrf.mxu0
        %v3863 = vadd.f32 0.0, %v3862
        %v3864 = vpop.f32.mrf.mxu0
        %v3865 = vadd.f32 0.0, %v3864
        %3866 = vdwg.mxu0
        %v3867 = vadd.f32 %v3585, %v3788
        %v3868 = vadd.f32 %v3586, %v3790
        %v3869 = vadd.f32 %v3587, %v3793
        %v3870 = vadd.f32 %v3588, %v3795
        %v3871 = vadd.f32 %v3589, %v3798
        %v3872 = vadd.f32 %v3590, %v3800
        %v3873 = vadd.f32 %v3591, %v3803
        %v3874 = vadd.f32 %v3592, %v3805
        %v3875 = vadd.f32 %v3593, %v3808
        %v3876 = vadd.f32 %v3594, %v3810
        %v3877 = vadd.f32 %v3595, %v3813
        %v3878 = vadd.f32 %v3596, %v3815
        %v3879 = vadd.f32 %v3597, %v3818
        %v3880 = vadd.f32 %v3598, %v3820
        %v3881 = vadd.f32 %v3599, %v3823
        %v3882 = vadd.f32 %v3600, %v3825
        %v3883 = vadd.f32 %v3601, %v3828
        %v3884 = vadd.f32 %v3602, %v3830
        %v3885 = vadd.f32 %v3603, %v3833
        %v3886 = vadd.f32 %v3604, %v3835
        %v3887 = vadd.f32 %v3605, %v3838
        %v3888 = vadd.f32 %v3606, %v3840
        %v3889 = vadd.f32 %v3607, %v3843
        %v3890 = vadd.f32 %v3608, %v3845
        %v3891 = vadd.f32 %v3609, %v3848
        %v3892 = vadd.f32 %v3610, %v3850
        %v3893 = vadd.f32 %v3611, %v3853
        %v3894 = vadd.f32 %v3612, %v3855
        %v3895 = vadd.f32 %v3613, %v3858
        %v3896 = vadd.f32 %v3614, %v3860
        %v3897 = vadd.f32 %v3615, %v3863
        %v3898 = vadd.f32 %v3616, %v3865
        %3899 = vst [vmem:[#allocation2] sm:$0xff] %v3867
        %3900 = vst [vmem:[#allocation2 + $0x8] sm:$0xff] %v3868
        %3901 = vst [vmem:[#allocation2 + $0x10] sm:$0xff] %v3869
        %3902 = vst [vmem:[#allocation2 + $0x18] sm:$0xff] %v3870
        %3903 = vst [vmem:[#allocation2 + $0x20] sm:$0xff] %v3871
        %3904 = vst [vmem:[#allocation2 + $0x28] sm:$0xff] %v3872
        %3905 = vst [vmem:[#allocation2 + $0x30] sm:$0xff] %v3873
        %3906 = vst [vmem:[#allocation2 + $0x38] sm:$0xff] %v3874
        %3907 = vst [vmem:[#allocation2 + $0x40] sm:$0xff] %v3875
        %3908 = vst [vmem:[#allocation2 + $0x48] sm:$0xff] %v3876
        %3909 = vst [vmem:[#allocation2 + $0x50] sm:$0xff] %v3877
        %3910 = vst [vmem:[#allocation2 + $0x58] sm:$0xff] %v3878
        %3911 = vst [vmem:[#allocation2 + $0x60] sm:$0xff] %v3879
        %3912 = vst [vmem:[#allocation2 + $0x68] sm:$0xff] %v3880
        %3913 = vst [vmem:[#allocation2 + $0x70] sm:$0xff] %v3881
        %3914 = vst [vmem:[#allocation2 + $0x78] sm:$0xff] %v3882
        %3915 = vst [vmem:[#allocation2 + $0x80] sm:$0xff] %v3883
        %3916 = vst [vmem:[#allocation2 + $0x88] sm:$0xff] %v3884
        %3917 = vst [vmem:[#allocation2 + $0x90] sm:$0xff] %v3885
        %3918 = vst [vmem:[#allocation2 + $0x98] sm:$0xff] %v3886
        %3919 = vst [vmem:[#allocation2 + $0xa0] sm:$0xff] %v3887
        %3920 = vst [vmem:[#allocation2 + $0xa8] sm:$0xff] %v3888
        %3921 = vst [vmem:[#allocation2 + $0xb0] sm:$0xff] %v3889
        %3922 = vst [vmem:[#allocation2 + $0xb8] sm:$0xff] %v3890
        %3923 = vst [vmem:[#allocation2 + $0xc0] sm:$0xff] %v3891
        %3924 = vst [vmem:[#allocation2 + $0xc8] sm:$0xff] %v3892
        %3925 = vst [vmem:[#allocation2 + $0xd0] sm:$0xff] %v3893
        %3926 = vst [vmem:[#allocation2 + $0xd8] sm:$0xff] %v3894
        %3927 = vst [vmem:[#allocation2 + $0xe0] sm:$0xff] %v3895
        %3928 = vst [vmem:[#allocation2 + $0xe8] sm:$0xff] %v3896
        %3929 = vst [vmem:[#allocation2 + $0xf0] sm:$0xff] %v3897
        %3930 = vst [vmem:[#allocation2 + $0xf8] sm:$0xff] %v3898
        %v3931 = vld [vmem:[%s3552] sm:$0xf]
        %v3932 = vld [vmem:[%s3552 + $0x4] sm:$0xf]
        %v3933 = vld [vmem:[%s3552 + $0x8] sm:$0x1]
        %v3934 = vld [vmem:[%s3552 + $0xc] sm:$0xf]
        %v3935 = vld [vmem:[%s3552 + $0x10] sm:$0xf]
        %v3936 = vld [vmem:[%s3552 + $0x14] sm:$0x1]
        %v3937 = vld [vmem:[%s3552 + $0x18] sm:$0xf]
        %v3938 = vld [vmem:[%s3552 + $0x1c] sm:$0xf]
        %v3939 = vld [vmem:[%s3552 + $0x20] sm:$0x1]
        %v3940 = vld [vmem:[%s3552 + $0x24] sm:$0xf]
        %v3941 = vld [vmem:[%s3552 + $0x28] sm:$0xf]
        %v3942 = vld [vmem:[%s3552 + $0x2c] sm:$0x1]
        %v3943 = vld [vmem:[%s3552 + $0x30] sm:$0xf]
        %v3944 = vld [vmem:[%s3552 + $0x34] sm:$0xf]
        %v3945 = vld [vmem:[%s3552 + $0x38] sm:$0x1]
        %v3946 = vld [vmem:[%s3552 + $0x3c] sm:$0xf]
        %v3947 = vld [vmem:[%s3552 + $0x40] sm:$0xf]
        %v3948 = vld [vmem:[%s3552 + $0x44] sm:$0x1]
        %v3949 = vld [vmem:[%s3552 + $0x48] sm:$0xf]
        %v3950 = vld [vmem:[%s3552 + $0x4c] sm:$0xf]
        %v3951 = vld [vmem:[%s3552 + $0x50] sm:$0x1]
        %v3952 = vld [vmem:[%s3552 + $0x54] sm:$0xf]
        %v3953 = vld [vmem:[%s3552 + $0x58] sm:$0xf]
        %v3954 = vld [vmem:[%s3552 + $0x5c] sm:$0x1]
        %v3955 = vld [vmem:[%s3552 + $0x60] sm:$0xf]
        %v3956 = vld [vmem:[%s3552 + $0x64] sm:$0xf]
        %v3957 = vld [vmem:[%s3552 + $0x68] sm:$0x1]
        %v3958 = vld [vmem:[%s3552 + $0x6c] sm:$0xf]
        %v3959 = vld [vmem:[%s3552 + $0x70] sm:$0xf]
        %v3960 = vld [vmem:[%s3552 + $0x74] sm:$0x1]
        %v3961 = vld [vmem:[%s3552 + $0x78] sm:$0xf]
        %v3962 = vld [vmem:[%s3552 + $0x7c] sm:$0xf]
        %v3963 = vld [vmem:[%s3552 + $0x80] sm:$0x1]
        %v3964 = vld [vmem:[%s3552 + $0x84] sm:$0xf]
        %v3965 = vld [vmem:[%s3552 + $0x88] sm:$0xf]
        %v3966 = vld [vmem:[%s3552 + $0x8c] sm:$0x1]
        %v3967 = vld [vmem:[%s3552 + $0x90] sm:$0xf]
        %v3968 = vld [vmem:[%s3552 + $0x94] sm:$0xf]
        %v3969 = vld [vmem:[%s3552 + $0x98] sm:$0x1]
        %v3970 = vld [vmem:[%s3552 + $0x9c] sm:$0xf]
        %v3971 = vld [vmem:[%s3552 + $0xa0] sm:$0xf]
        %v3972 = vld [vmem:[%s3552 + $0xa4] sm:$0x1]
        %v3973 = vld [vmem:[%s3552 + $0xa8] sm:$0xf]
        %v3974 = vld [vmem:[%s3552 + $0xac] sm:$0xf]
        %v3975 = vld [vmem:[%s3552 + $0xb0] sm:$0x1]
        %v3976 = vld [vmem:[%s3552 + $0xb4] sm:$0xf]
        %v3977 = vld [vmem:[%s3552 + $0xb8] sm:$0xf]
        %v3978 = vld [vmem:[%s3552 + $0xbc] sm:$0x1]
        %v3980 = vshrl.u32 %v3931, 16
        %v3982 = vrot.slane %v3980, 4
        %v3983 = vshll.u32 %v3931, 16
        %v3985 = vrot.slane %v3983, 5
        %v3986 = vor.u32 %v3982, %v3985
        %v3987 = vrot.slane %v3986, 4
        %v3989 = vshll.u32 %v3932, 16
        %v3991 = vrot.slane %v3989, 5
        %v3992 = vsel %vm681, %v3987, %v3991
        %v3993 = vshrl.u32 %v3932, 16
        %v3995 = vrot.slane %v3993, 4
        %v3996 = vor.u32 %v3995, %v3991
        %v3997 = vrot.slane %v3996, 4
        %v3999 = vshll.u32 %v3933, 16
        %v4001 = vrot.slane %v3999, 5
        %v4002 = vsel %vm681, %v3997, %v4001
        %v4004 = vshrl.u32 %v3934, 16
        %v4006 = vrot.slane %v4004, 4
        %v4007 = vshll.u32 %v3934, 16
        %v4009 = vrot.slane %v4007, 5
        %v4010 = vor.u32 %v4006, %v4009
        %v4011 = vrot.slane %v4010, 4
        %v4013 = vshll.u32 %v3935, 16
        %v4015 = vrot.slane %v4013, 5
        %v4016 = vsel %vm681, %v4011, %v4015
        %v4017 = vshrl.u32 %v3935, 16
        %v4019 = vrot.slane %v4017, 4
        %v4020 = vor.u32 %v4019, %v4015
        %v4021 = vrot.slane %v4020, 4
        %v4023 = vshll.u32 %v3936, 16
        %v4025 = vrot.slane %v4023, 5
        %v4026 = vsel %vm681, %v4021, %v4025
        %v4028 = vshrl.u32 %v3937, 16
        %v4030 = vrot.slane %v4028, 4
        %v4031 = vshll.u32 %v3937, 16
        %v4033 = vrot.slane %v4031, 5
        %v4034 = vor.u32 %v4030, %v4033
        %v4035 = vrot.slane %v4034, 4
        %v4037 = vshll.u32 %v3938, 16
        %v4039 = vrot.slane %v4037, 5
        %v4040 = vsel %vm681, %v4035, %v4039
        %v4041 = vshrl.u32 %v3938, 16
        %v4043 = vrot.slane %v4041, 4
        %v4044 = vor.u32 %v4043, %v4039
        %v4045 = vrot.slane %v4044, 4
        %v4047 = vshll.u32 %v3939, 16
        %v4049 = vrot.slane %v4047, 5
        %v4050 = vsel %vm681, %v4045, %v4049
        %v4052 = vshrl.u32 %v3940, 16
        %v4054 = vrot.slane %v4052, 4
        %v4055 = vshll.u32 %v3940, 16
        %v4057 = vrot.slane %v4055, 5
        %v4058 = vor.u32 %v4054, %v4057
        %v4059 = vrot.slane %v4058, 4
        %v4061 = vshll.u32 %v3941, 16
        %v4063 = vrot.slane %v4061, 5
        %v4064 = vsel %vm681, %v4059, %v4063
        %v4065 = vshrl.u32 %v3941, 16
        %v4067 = vrot.slane %v4065, 4
        %v4068 = vor.u32 %v4067, %v4063
        %v4069 = vrot.slane %v4068, 4
        %v4071 = vshll.u32 %v3942, 16
        %v4073 = vrot.slane %v4071, 5
        %v4074 = vsel %vm681, %v4069, %v4073
        %v4076 = vshrl.u32 %v3943, 16
        %v4078 = vrot.slane %v4076, 4
        %v4079 = vshll.u32 %v3943, 16
        %v4081 = vrot.slane %v4079, 5
        %v4082 = vor.u32 %v4078, %v4081
        %v4083 = vrot.slane %v4082, 4
        %v4085 = vshll.u32 %v3944, 16
        %v4087 = vrot.slane %v4085, 5
        %v4088 = vsel %vm681, %v4083, %v4087
        %v4089 = vshrl.u32 %v3944, 16
        %v4091 = vrot.slane %v4089, 4
        %v4092 = vor.u32 %v4091, %v4087
        %v4093 = vrot.slane %v4092, 4
        %v4095 = vshll.u32 %v3945, 16
        %v4097 = vrot.slane %v4095, 5
        %v4098 = vsel %vm681, %v4093, %v4097
        %v4100 = vshrl.u32 %v3946, 16
        %v4102 = vrot.slane %v4100, 4
        %v4103 = vshll.u32 %v3946, 16
        %v4105 = vrot.slane %v4103, 5
        %v4106 = vor.u32 %v4102, %v4105
        %v4107 = vrot.slane %v4106, 4
        %v4109 = vshll.u32 %v3947, 16
        %v4111 = vrot.slane %v4109, 5
        %v4112 = vsel %vm681, %v4107, %v4111
        %v4113 = vshrl.u32 %v3947, 16
        %v4115 = vrot.slane %v4113, 4
        %v4116 = vor.u32 %v4115, %v4111
        %v4117 = vrot.slane %v4116, 4
        %v4119 = vshll.u32 %v3948, 16
        %v4121 = vrot.slane %v4119, 5
        %v4122 = vsel %vm681, %v4117, %v4121
        %v4124 = vshrl.u32 %v3949, 16
        %v4126 = vrot.slane %v4124, 4
        %v4127 = vshll.u32 %v3949, 16
        %v4129 = vrot.slane %v4127, 5
        %v4130 = vor.u32 %v4126, %v4129
        %v4131 = vrot.slane %v4130, 4
        %v4133 = vshll.u32 %v3950, 16
        %v4135 = vrot.slane %v4133, 5
        %v4136 = vsel %vm681, %v4131, %v4135
        %v4137 = vshrl.u32 %v3950, 16
        %v4139 = vrot.slane %v4137, 4
        %v4140 = vor.u32 %v4139, %v4135
        %v4141 = vrot.slane %v4140, 4
        %v4143 = vshll.u32 %v3951, 16
        %v4145 = vrot.slane %v4143, 5
        %v4146 = vsel %vm681, %v4141, %v4145
        %v4148 = vshrl.u32 %v3952, 16
        %v4150 = vrot.slane %v4148, 4
        %v4151 = vshll.u32 %v3952, 16
        %v4153 = vrot.slane %v4151, 5
        %v4154 = vor.u32 %v4150, %v4153
        %v4155 = vrot.slane %v4154, 4
        %v4157 = vshll.u32 %v3953, 16
        %v4159 = vrot.slane %v4157, 5
        %v4160 = vsel %vm681, %v4155, %v4159
        %v4161 = vshrl.u32 %v3953, 16
        %v4163 = vrot.slane %v4161, 4
        %v4164 = vor.u32 %v4163, %v4159
        %v4165 = vrot.slane %v4164, 4
        %v4167 = vshll.u32 %v3954, 16
        %v4169 = vrot.slane %v4167, 5
        %v4170 = vsel %vm681, %v4165, %v4169
        %v4172 = vshrl.u32 %v3955, 16
        %v4174 = vrot.slane %v4172, 4
        %v4175 = vshll.u32 %v3955, 16
        %v4177 = vrot.slane %v4175, 5
        %v4178 = vor.u32 %v4174, %v4177
        %v4179 = vrot.slane %v4178, 4
        %v4181 = vshll.u32 %v3956, 16
        %v4183 = vrot.slane %v4181, 5
        %v4184 = vsel %vm681, %v4179, %v4183
        %v4185 = vshrl.u32 %v3956, 16
        %v4187 = vrot.slane %v4185, 4
        %v4188 = vor.u32 %v4187, %v4183
        %v4189 = vrot.slane %v4188, 4
        %v4191 = vshll.u32 %v3957, 16
        %v4193 = vrot.slane %v4191, 5
        %v4194 = vsel %vm681, %v4189, %v4193
        %v4196 = vshrl.u32 %v3958, 16
        %v4198 = vrot.slane %v4196, 4
        %v4199 = vshll.u32 %v3958, 16
        %v4201 = vrot.slane %v4199, 5
        %v4202 = vor.u32 %v4198, %v4201
        %v4203 = vrot.slane %v4202, 4
        %v4205 = vshll.u32 %v3959, 16
        %v4207 = vrot.slane %v4205, 5
        %v4208 = vsel %vm681, %v4203, %v4207
        %v4209 = vshrl.u32 %v3959, 16
        %v4211 = vrot.slane %v4209, 4
        %v4212 = vor.u32 %v4211, %v4207
        %v4213 = vrot.slane %v4212, 4
        %v4215 = vshll.u32 %v3960, 16
        %v4217 = vrot.slane %v4215, 5
        %v4218 = vsel %vm681, %v4213, %v4217
        %v4220 = vshrl.u32 %v3961, 16
        %v4222 = vrot.slane %v4220, 4
        %v4223 = vshll.u32 %v3961, 16
        %v4225 = vrot.slane %v4223, 5
        %v4226 = vor.u32 %v4222, %v4225
        %v4227 = vrot.slane %v4226, 4
        %v4229 = vshll.u32 %v3962, 16
        %v4231 = vrot.slane %v4229, 5
        %v4232 = vsel %vm681, %v4227, %v4231
        %v4233 = vshrl.u32 %v3962, 16
        %v4235 = vrot.slane %v4233, 4
        %v4236 = vor.u32 %v4235, %v4231
        %v4237 = vrot.slane %v4236, 4
        %v4239 = vshll.u32 %v3963, 16
        %v4241 = vrot.slane %v4239, 5
        %v4242 = vsel %vm681, %v4237, %v4241
        %v4244 = vshrl.u32 %v3964, 16
        %v4246 = vrot.slane %v4244, 4
        %v4247 = vshll.u32 %v3964, 16
        %v4249 = vrot.slane %v4247, 5
        %v4250 = vor.u32 %v4246, %v4249
        %v4251 = vrot.slane %v4250, 4
        %v4253 = vshll.u32 %v3965, 16
        %v4255 = vrot.slane %v4253, 5
        %v4256 = vsel %vm681, %v4251, %v4255
        %v4257 = vshrl.u32 %v3965, 16
        %v4259 = vrot.slane %v4257, 4
        %v4260 = vor.u32 %v4259, %v4255
        %v4261 = vrot.slane %v4260, 4
        %v4263 = vshll.u32 %v3966, 16
        %v4265 = vrot.slane %v4263, 5
        %v4266 = vsel %vm681, %v4261, %v4265
        %v4268 = vshrl.u32 %v3967, 16
        %v4270 = vrot.slane %v4268, 4
        %v4271 = vshll.u32 %v3967, 16
        %v4273 = vrot.slane %v4271, 5
        %v4274 = vor.u32 %v4270, %v4273
        %v4275 = vrot.slane %v4274, 4
        %v4277 = vshll.u32 %v3968, 16
        %v4279 = vrot.slane %v4277, 5
        %v4280 = vsel %vm681, %v4275, %v4279
        %v4281 = vshrl.u32 %v3968, 16
        %v4283 = vrot.slane %v4281, 4
        %v4284 = vor.u32 %v4283, %v4279
        %v4285 = vrot.slane %v4284, 4
        %v4287 = vshll.u32 %v3969, 16
        %v4289 = vrot.slane %v4287, 5
        %v4290 = vsel %vm681, %v4285, %v4289
        %v4292 = vshrl.u32 %v3970, 16
        %v4294 = vrot.slane %v4292, 4
        %v4295 = vshll.u32 %v3970, 16
        %v4297 = vrot.slane %v4295, 5
        %v4298 = vor.u32 %v4294, %v4297
        %v4299 = vrot.slane %v4298, 4
        %v4301 = vshll.u32 %v3971, 16
        %v4303 = vrot.slane %v4301, 5
        %v4304 = vsel %vm681, %v4299, %v4303
        %v4305 = vshrl.u32 %v3971, 16
        %v4307 = vrot.slane %v4305, 4
        %v4308 = vor.u32 %v4307, %v4303
        %v4309 = vrot.slane %v4308, 4
        %v4311 = vshll.u32 %v3972, 16
        %v4313 = vrot.slane %v4311, 5
        %v4314 = vsel %vm681, %v4309, %v4313
        %v4316 = vshrl.u32 %v3973, 16
        %v4318 = vrot.slane %v4316, 4
        %v4319 = vshll.u32 %v3973, 16
        %v4321 = vrot.slane %v4319, 5
        %v4322 = vor.u32 %v4318, %v4321
        %v4323 = vrot.slane %v4322, 4
        %v4325 = vshll.u32 %v3974, 16
        %v4327 = vrot.slane %v4325, 5
        %v4328 = vsel %vm681, %v4323, %v4327
        %v4329 = vshrl.u32 %v3974, 16
        %v4331 = vrot.slane %v4329, 4
        %v4332 = vor.u32 %v4331, %v4327
        %v4333 = vrot.slane %v4332, 4
        %v4335 = vshll.u32 %v3975, 16
        %v4337 = vrot.slane %v4335, 5
        %v4338 = vsel %vm681, %v4333, %v4337
        %v4340 = vshrl.u32 %v3976, 16
        %v4342 = vrot.slane %v4340, 4
        %v4343 = vshll.u32 %v3976, 16
        %v4345 = vrot.slane %v4343, 5
        %v4346 = vor.u32 %v4342, %v4345
        %v4347 = vrot.slane %v4346, 4
        %v4349 = vshll.u32 %v3977, 16
        %v4351 = vrot.slane %v4349, 5
        %v4352 = vsel %vm681, %v4347, %v4351
        %v4353 = vshrl.u32 %v3977, 16
        %v4355 = vrot.slane %v4353, 4
        %v4356 = vor.u32 %v4355, %v4351
        %v4357 = vrot.slane %v4356, 4
        %v4359 = vshll.u32 %v3978, 16
        %v4361 = vrot.slane %v4359, 5
        %v4362 = vsel %vm681, %v4357, %v4361
        %v4363 = vld [vmem:[#allocation2] sm:$0xff]
        %v4364 = vld [vmem:[#allocation2 + $0x8] sm:$0xff]
        %v4365 = vld [vmem:[#allocation2 + $0x10] sm:$0xff]
        %v4366 = vld [vmem:[#allocation2 + $0x18] sm:$0xff]
        %v4367 = vld [vmem:[#allocation2 + $0x20] sm:$0xff]
        %v4368 = vld [vmem:[#allocation2 + $0x28] sm:$0xff]
        %v4369 = vld [vmem:[#allocation2 + $0x30] sm:$0xff]
        %v4370 = vld [vmem:[#allocation2 + $0x38] sm:$0xff]
        %v4371 = vld [vmem:[#allocation2 + $0x40] sm:$0xff]
        %v4372 = vld [vmem:[#allocation2 + $0x48] sm:$0xff]
        %v4373 = vld [vmem:[#allocation2 + $0x50] sm:$0xff]
        %v4374 = vld [vmem:[#allocation2 + $0x58] sm:$0xff]
        %v4375 = vld [vmem:[#allocation2 + $0x60] sm:$0xff]
        %v4376 = vld [vmem:[#allocation2 + $0x68] sm:$0xff]
        %v4377 = vld [vmem:[#allocation2 + $0x70] sm:$0xff]
        %v4378 = vld [vmem:[#allocation2 + $0x78] sm:$0xff]
        %v4379 = vld [vmem:[#allocation2 + $0x80] sm:$0xff]
        %v4380 = vld [vmem:[#allocation2 + $0x88] sm:$0xff]
        %v4381 = vld [vmem:[#allocation2 + $0x90] sm:$0xff]
        %v4382 = vld [vmem:[#allocation2 + $0x98] sm:$0xff]
        %v4383 = vld [vmem:[#allocation2 + $0xa0] sm:$0xff]
        %v4384 = vld [vmem:[#allocation2 + $0xa8] sm:$0xff]
        %v4385 = vld [vmem:[#allocation2 + $0xb0] sm:$0xff]
        %v4386 = vld [vmem:[#allocation2 + $0xb8] sm:$0xff]
        %v4387 = vld [vmem:[#allocation2 + $0xc0] sm:$0xff]
        %v4388 = vld [vmem:[#allocation2 + $0xc8] sm:$0xff]
        %v4389 = vld [vmem:[#allocation2 + $0xd0] sm:$0xff]
        %v4390 = vld [vmem:[#allocation2 + $0xd8] sm:$0xff]
        %v4391 = vld [vmem:[#allocation2 + $0xe0] sm:$0xff]
        %v4392 = vld [vmem:[#allocation2 + $0xe8] sm:$0xff]
        %v4393 = vld [vmem:[#allocation2 + $0xf0] sm:$0xff]
        %v4394 = vld [vmem:[#allocation2 + $0xf8] sm:$0xff]
        %s4395 = scalar_lea.vmem %s1, 448
        %v4396 = vld [vmem:[%s4395] sm:$0xf]
        %v4397 = vld [vmem:[%s4395 + $0x4] sm:$0xf]
        %v4398 = vld [vmem:[%s4395 + $0x8] sm:$0xf]
        %v4399 = vld [vmem:[%s4395 + $0xc] sm:$0xf]
        %v4400 = vld [vmem:[%s4395 + $0x10] sm:$0xf]
        %v4401 = vld [vmem:[%s4395 + $0x14] sm:$0xf]
        %v4402 = vld [vmem:[%s4395 + $0x18] sm:$0xf]
        %v4403 = vld [vmem:[%s4395 + $0x1c] sm:$0xf]
        %v4404 = vld [vmem:[%s4395 + $0x20] sm:$0xf]
        %v4405 = vld [vmem:[%s4395 + $0x24] sm:$0xf]
        %v4406 = vld [vmem:[%s4395 + $0x28] sm:$0xf]
        %v4407 = vld [vmem:[%s4395 + $0x2c] sm:$0xf]
        %v4408 = vld [vmem:[%s4395 + $0x30] sm:$0xf]
        %v4409 = vld [vmem:[%s4395 + $0x34] sm:$0xf]
        %v4410 = vld [vmem:[%s4395 + $0x38] sm:$0xf]
        %v4411 = vld [vmem:[%s4395 + $0x3c] sm:$0xf]
        %v4412 = vunpack.c.l.b16 %v3992
        %v4413 = vunpack.c.l.b16 %v4002
        %v4414 = vunpack.c.l.b16 %v4016
        %v4415 = vunpack.c.l.b16 %v4026
        %v4416 = vunpack.c.l.b16 %v4040
        %v4417 = vunpack.c.l.b16 %v4050
        %v4418 = vunpack.c.l.b16 %v4064
        %v4419 = vunpack.c.l.b16 %v4074
        %v4420 = vunpack.c.l.b16 %v4088
        %v4421 = vunpack.c.l.b16 %v4098
        %v4422 = vunpack.c.l.b16 %v4112
        %v4423 = vunpack.c.l.b16 %v4122
        %v4424 = vunpack.c.l.b16 %v4136
        %v4425 = vunpack.c.l.b16 %v4146
        %v4426 = vunpack.c.l.b16 %v4160
        %v4427 = vunpack.c.l.b16 %v4170
        %v4428 = vunpack.c.l.b16 %v4184
        %v4429 = vunpack.c.l.b16 %v4194
        %v4430 = vunpack.c.l.b16 %v4208
        %v4431 = vunpack.c.l.b16 %v4218
        %v4432 = vunpack.c.l.b16 %v4232
        %v4433 = vunpack.c.l.b16 %v4242
        %v4434 = vunpack.c.l.b16 %v4256
        %v4435 = vunpack.c.l.b16 %v4266
        %v4436 = vunpack.c.l.b16 %v4280
        %v4437 = vunpack.c.l.b16 %v4290
        %v4438 = vunpack.c.l.b16 %v4304
        %v4439 = vunpack.c.l.b16 %v4314
        %v4440 = vunpack.c.l.b16 %v4328
        %v4441 = vunpack.c.l.b16 %v4338
        %v4442 = vunpack.c.l.b16 %v4352
        %v4443 = vunpack.c.l.b16 %v4362
        %v4444 = vpack.c.b16 %v4413, %v4412
        %v4445 = vpack.c.b16 %v4415, %v4414
        %v4446 = vpack.c.b16 %v4417, %v4416
        %v4447 = vpack.c.b16 %v4419, %v4418
        %v4448 = vpack.c.b16 %v4421, %v4420
        %v4449 = vpack.c.b16 %v4423, %v4422
        %v4450 = vpack.c.b16 %v4425, %v4424
        %v4451 = vpack.c.b16 %v4427, %v4426
        %v4452 = vpack.c.b16 %v4429, %v4428
        %v4453 = vpack.c.b16 %v4431, %v4430
        %v4454 = vpack.c.b16 %v4433, %v4432
        %v4455 = vpack.c.b16 %v4435, %v4434
        %v4456 = vpack.c.b16 %v4437, %v4436
        %v4457 = vpack.c.b16 %v4439, %v4438
        %v4458 = vpack.c.b16 %v4441, %v4440
        %v4459 = vpack.c.b16 %v4443, %v4442
        %v4492 = vunpack.c.l.b16 %v4396
        %v4493 = vunpack.c.l.b16 %v4397
        %v4494 = vunpack.c.l.b16 %v4398
        %v4495 = vunpack.c.l.b16 %v4399
        %v4496 = vunpack.c.l.b16 %v4400
        %v4497 = vunpack.c.l.b16 %v4401
        %v4498 = vunpack.c.l.b16 %v4402
        %v4499 = vunpack.c.l.b16 %v4403
        %v4500 = vunpack.c.l.b16 %v4404
        %v4501 = vunpack.c.l.b16 %v4405
        %v4502 = vunpack.c.l.b16 %v4406
        %v4503 = vunpack.c.l.b16 %v4407
        %v4504 = vunpack.c.l.b16 %v4408
        %v4505 = vunpack.c.l.b16 %v4409
        %v4506 = vunpack.c.l.b16 %v4410
        %v4507 = vunpack.c.l.b16 %v4411
        %v4508 = vpack.c.b16 %v4493, %v4492
        %v4509 = vpack.c.b16 %v4495, %v4494
        %v4510 = vpack.c.b16 %v4497, %v4496
        %v4511 = vpack.c.b16 %v4499, %v4498
        %v4512 = vpack.c.b16 %v4501, %v4500
        %v4513 = vpack.c.b16 %v4503, %v4502
        %v4514 = vpack.c.b16 %v4505, %v4504
        %v4515 = vpack.c.b16 %v4507, %v4506
        %4524 = vmatpush.bf16.msra.mxu0 %v4515
        %4525 = vmatpush.bf16.msra.mxu0 %v4514
        %4526 = vmatpush.bf16.msra.mxu0 %v4513
        %4527 = vmatpush.bf16.msra.mxu0 %v4512
        %4528 = vmatpush.bf16.msra.mxu0 %v4511
        %4529 = vmatpush.bf16.msra.mxu0 %v4510
        %4530 = vmatpush.bf16.msra.mxu0 %v4509
        %4531 = vmatpush.bf16.msra.mxu0 %v4508
        %4532 = vmatmul.bf16.gmra.mxu0 %v4444
        %v4533 = vpop.f32.mrf.mxu0
        %v4534 = vadd.f32 0.0, %v4533
        %v4535 = vpop.f32.mrf.mxu0
        %v4536 = vadd.f32 0.0, %v4535
        %4537 = vmatmul.bf16.gmra.mxu0 %v4445
        %v4538 = vpop.f32.mrf.mxu0
        %v4539 = vadd.f32 0.0, %v4538
        %v4540 = vpop.f32.mrf.mxu0
        %v4541 = vadd.f32 0.0, %v4540
        %4542 = vmatmul.bf16.gmra.mxu0 %v4446
        %v4543 = vpop.f32.mrf.mxu0
        %v4544 = vadd.f32 0.0, %v4543
        %v4545 = vpop.f32.mrf.mxu0
        %v4546 = vadd.f32 0.0, %v4545
        %4547 = vmatmul.bf16.gmra.mxu0 %v4447
        %v4548 = vpop.f32.mrf.mxu0
        %v4549 = vadd.f32 0.0, %v4548
        %v4550 = vpop.f32.mrf.mxu0
        %v4551 = vadd.f32 0.0, %v4550
        %4552 = vmatmul.bf16.gmra.mxu0 %v4448
        %v4553 = vpop.f32.mrf.mxu0
        %v4554 = vadd.f32 0.0, %v4553
        %v4555 = vpop.f32.mrf.mxu0
        %v4556 = vadd.f32 0.0, %v4555
        %4557 = vmatmul.bf16.gmra.mxu0 %v4449
        %v4558 = vpop.f32.mrf.mxu0
        %v4559 = vadd.f32 0.0, %v4558
        %v4560 = vpop.f32.mrf.mxu0
        %v4561 = vadd.f32 0.0, %v4560
        %4562 = vmatmul.bf16.gmra.mxu0 %v4450
        %v4563 = vpop.f32.mrf.mxu0
        %v4564 = vadd.f32 0.0, %v4563
        %v4565 = vpop.f32.mrf.mxu0
        %v4566 = vadd.f32 0.0, %v4565
        %4567 = vmatmul.bf16.gmra.mxu0 %v4451
        %v4568 = vpop.f32.mrf.mxu0
        %v4569 = vadd.f32 0.0, %v4568
        %v4570 = vpop.f32.mrf.mxu0
        %v4571 = vadd.f32 0.0, %v4570
        %4572 = vmatmul.bf16.gmra.mxu0 %v4452
        %v4573 = vpop.f32.mrf.mxu0
        %v4574 = vadd.f32 0.0, %v4573
        %v4575 = vpop.f32.mrf.mxu0
        %v4576 = vadd.f32 0.0, %v4575
        %4577 = vmatmul.bf16.gmra.mxu0 %v4453
        %v4578 = vpop.f32.mrf.mxu0
        %v4579 = vadd.f32 0.0, %v4578
        %v4580 = vpop.f32.mrf.mxu0
        %v4581 = vadd.f32 0.0, %v4580
        %4582 = vmatmul.bf16.gmra.mxu0 %v4454
        %v4583 = vpop.f32.mrf.mxu0
        %v4584 = vadd.f32 0.0, %v4583
        %v4585 = vpop.f32.mrf.mxu0
        %v4586 = vadd.f32 0.0, %v4585
        %4587 = vmatmul.bf16.gmra.mxu0 %v4455
        %v4588 = vpop.f32.mrf.mxu0
        %v4589 = vadd.f32 0.0, %v4588
        %v4590 = vpop.f32.mrf.mxu0
        %v4591 = vadd.f32 0.0, %v4590
        %4592 = vmatmul.bf16.gmra.mxu0 %v4456
        %v4593 = vpop.f32.mrf.mxu0
        %v4594 = vadd.f32 0.0, %v4593
        %v4595 = vpop.f32.mrf.mxu0
        %v4596 = vadd.f32 0.0, %v4595
        %4597 = vmatmul.bf16.gmra.mxu0 %v4457
        %v4598 = vpop.f32.mrf.mxu0
        %v4599 = vadd.f32 0.0, %v4598
        %v4600 = vpop.f32.mrf.mxu0
        %v4601 = vadd.f32 0.0, %v4600
        %4602 = vmatmul.bf16.gmra.mxu0 %v4458
        %v4603 = vpop.f32.mrf.mxu0
        %v4604 = vadd.f32 0.0, %v4603
        %v4605 = vpop.f32.mrf.mxu0
        %v4606 = vadd.f32 0.0, %v4605
        %4607 = vmatmul.bf16.gmra.mxu0 %v4459
        %v4608 = vpop.f32.mrf.mxu0
        %v4609 = vadd.f32 0.0, %v4608
        %v4610 = vpop.f32.mrf.mxu0
        %v4611 = vadd.f32 0.0, %v4610
        %4612 = vdwg.mxu0
        %v4613 = vadd.f32 %v4363, %v4534
        %v4614 = vadd.f32 %v4364, %v4536
        %v4615 = vadd.f32 %v4365, %v4539
        %v4616 = vadd.f32 %v4366, %v4541
        %v4617 = vadd.f32 %v4367, %v4544
        %v4618 = vadd.f32 %v4368, %v4546
        %v4619 = vadd.f32 %v4369, %v4549
        %v4620 = vadd.f32 %v4370, %v4551
        %v4621 = vadd.f32 %v4371, %v4554
        %v4622 = vadd.f32 %v4372, %v4556
        %v4623 = vadd.f32 %v4373, %v4559
        %v4624 = vadd.f32 %v4374, %v4561
        %v4625 = vadd.f32 %v4375, %v4564
        %v4626 = vadd.f32 %v4376, %v4566
        %v4627 = vadd.f32 %v4377, %v4569
        %v4628 = vadd.f32 %v4378, %v4571
        %v4629 = vadd.f32 %v4379, %v4574
        %v4630 = vadd.f32 %v4380, %v4576
        %v4631 = vadd.f32 %v4381, %v4579
        %v4632 = vadd.f32 %v4382, %v4581
        %v4633 = vadd.f32 %v4383, %v4584
        %v4634 = vadd.f32 %v4384, %v4586
        %v4635 = vadd.f32 %v4385, %v4589
        %v4636 = vadd.f32 %v4386, %v4591
        %v4637 = vadd.f32 %v4387, %v4594
        %v4638 = vadd.f32 %v4388, %v4596
        %v4639 = vadd.f32 %v4389, %v4599
        %v4640 = vadd.f32 %v4390, %v4601
        %v4641 = vadd.f32 %v4391, %v4604
        %v4642 = vadd.f32 %v4392, %v4606
        %v4643 = vadd.f32 %v4393, %v4609
        %v4644 = vadd.f32 %v4394, %v4611
        %4645 = vst [vmem:[#allocation2] sm:$0xff] %v4613
        %4646 = vst [vmem:[#allocation2 + $0x8] sm:$0xff] %v4614
        %4647 = vst [vmem:[#allocation2 + $0x10] sm:$0xff] %v4615
        %4648 = vst [vmem:[#allocation2 + $0x18] sm:$0xff] %v4616
        %4649 = vst [vmem:[#allocation2 + $0x20] sm:$0xff] %v4617
        %4650 = vst [vmem:[#allocation2 + $0x28] sm:$0xff] %v4618
        %4651 = vst [vmem:[#allocation2 + $0x30] sm:$0xff] %v4619
        %4652 = vst [vmem:[#allocation2 + $0x38] sm:$0xff] %v4620
        %4653 = vst [vmem:[#allocation2 + $0x40] sm:$0xff] %v4621
        %4654 = vst [vmem:[#allocation2 + $0x48] sm:$0xff] %v4622
        %4655 = vst [vmem:[#allocation2 + $0x50] sm:$0xff] %v4623
        %4656 = vst [vmem:[#allocation2 + $0x58] sm:$0xff] %v4624
        %4657 = vst [vmem:[#allocation2 + $0x60] sm:$0xff] %v4625
        %4658 = vst [vmem:[#allocation2 + $0x68] sm:$0xff] %v4626
        %4659 = vst [vmem:[#allocation2 + $0x70] sm:$0xff] %v4627
        %4660 = vst [vmem:[#allocation2 + $0x78] sm:$0xff] %v4628
        %4661 = vst [vmem:[#allocation2 + $0x80] sm:$0xff] %v4629
        %4662 = vst [vmem:[#allocation2 + $0x88] sm:$0xff] %v4630
        %4663 = vst [vmem:[#allocation2 + $0x90] sm:$0xff] %v4631
        %4664 = vst [vmem:[#allocation2 + $0x98] sm:$0xff] %v4632
        %4665 = vst [vmem:[#allocation2 + $0xa0] sm:$0xff] %v4633
        %4666 = vst [vmem:[#allocation2 + $0xa8] sm:$0xff] %v4634
        %4667 = vst [vmem:[#allocation2 + $0xb0] sm:$0xff] %v4635
        %4668 = vst [vmem:[#allocation2 + $0xb8] sm:$0xff] %v4636
        %4669 = vst [vmem:[#allocation2 + $0xc0] sm:$0xff] %v4637
        %4670 = vst [vmem:[#allocation2 + $0xc8] sm:$0xff] %v4638
        %4671 = vst [vmem:[#allocation2 + $0xd0] sm:$0xff] %v4639
        %4672 = vst [vmem:[#allocation2 + $0xd8] sm:$0xff] %v4640
        %4673 = vst [vmem:[#allocation2 + $0xe0] sm:$0xff] %v4641
        %4674 = vst [vmem:[#allocation2 + $0xe8] sm:$0xff] %v4642
        %4675 = vst [vmem:[#allocation2 + $0xf0] sm:$0xff] %v4643
        %4676 = vst [vmem:[#allocation2 + $0xf8] sm:$0xff] %v4644
        %v4677 = vld [vmem:[%s3552] sm:$0xe]
        %v4678 = vld [vmem:[%s3552 + $0x4] sm:$0xf]
        %v4679 = vld [vmem:[%s3552 + $0x8] sm:$0x1]
        %v4680 = vld [vmem:[%s3552 + $0xc] sm:$0xe]
        %v4681 = vld [vmem:[%s3552 + $0x10] sm:$0xf]
        %v4682 = vld [vmem:[%s3552 + $0x14] sm:$0x1]
        %v4683 = vld [vmem:[%s3552 + $0x18] sm:$0xe]
        %v4684 = vld [vmem:[%s3552 + $0x1c] sm:$0xf]
        %v4685 = vld [vmem:[%s3552 + $0x20] sm:$0x1]
        %v4686 = vld [vmem:[%s3552 + $0x24] sm:$0xe]
        %v4687 = vld [vmem:[%s3552 + $0x28] sm:$0xf]
        %v4688 = vld [vmem:[%s3552 + $0x2c] sm:$0x1]
        %v4689 = vld [vmem:[%s3552 + $0x30] sm:$0xe]
        %v4690 = vld [vmem:[%s3552 + $0x34] sm:$0xf]
        %v4691 = vld [vmem:[%s3552 + $0x38] sm:$0x1]
        %v4692 = vld [vmem:[%s3552 + $0x3c] sm:$0xe]
        %v4693 = vld [vmem:[%s3552 + $0x40] sm:$0xf]
        %v4694 = vld [vmem:[%s3552 + $0x44] sm:$0x1]
        %v4695 = vld [vmem:[%s3552 + $0x48] sm:$0xe]
        %v4696 = vld [vmem:[%s3552 + $0x4c] sm:$0xf]
        %v4697 = vld [vmem:[%s3552 + $0x50] sm:$0x1]
        %v4698 = vld [vmem:[%s3552 + $0x54] sm:$0xe]
        %v4699 = vld [vmem:[%s3552 + $0x58] sm:$0xf]
        %v4700 = vld [vmem:[%s3552 + $0x5c] sm:$0x1]
        %v4701 = vld [vmem:[%s3552 + $0x60] sm:$0xe]
        %v4702 = vld [vmem:[%s3552 + $0x64] sm:$0xf]
        %v4703 = vld [vmem:[%s3552 + $0x68] sm:$0x1]
        %v4704 = vld [vmem:[%s3552 + $0x6c] sm:$0xe]
        %v4705 = vld [vmem:[%s3552 + $0x70] sm:$0xf]
        %v4706 = vld [vmem:[%s3552 + $0x74] sm:$0x1]
        %v4707 = vld [vmem:[%s3552 + $0x78] sm:$0xe]
        %v4708 = vld [vmem:[%s3552 + $0x7c] sm:$0xf]
        %v4709 = vld [vmem:[%s3552 + $0x80] sm:$0x1]
        %v4710 = vld [vmem:[%s3552 + $0x84] sm:$0xe]
        %v4711 = vld [vmem:[%s3552 + $0x88] sm:$0xf]
        %v4712 = vld [vmem:[%s3552 + $0x8c] sm:$0x1]
        %v4713 = vld [vmem:[%s3552 + $0x90] sm:$0xe]
        %v4714 = vld [vmem:[%s3552 + $0x94] sm:$0xf]
        %v4715 = vld [vmem:[%s3552 + $0x98] sm:$0x1]
        %v4716 = vld [vmem:[%s3552 + $0x9c] sm:$0xe]
        %v4717 = vld [vmem:[%s3552 + $0xa0] sm:$0xf]
        %v4718 = vld [vmem:[%s3552 + $0xa4] sm:$0x1]
        %v4719 = vld [vmem:[%s3552 + $0xa8] sm:$0xe]
        %v4720 = vld [vmem:[%s3552 + $0xac] sm:$0xf]
        %v4721 = vld [vmem:[%s3552 + $0xb0] sm:$0x1]
        %v4722 = vld [vmem:[%s3552 + $0xb4] sm:$0xe]
        %v4723 = vld [vmem:[%s3552 + $0xb8] sm:$0xf]
        %v4724 = vld [vmem:[%s3552 + $0xbc] sm:$0x1]
        %v4773 = vrot.slane %v4677, 5
        %v4774 = vrot.slane %v4773, 4
        %v4775 = vrot.slane %v4678, 5
        %v4776 = vsel %vm1478, %v4774, %v4775
        %v4777 = vrot.slane %v4775, 4
        %v4778 = vrot.slane %v4679, 5
        %v4779 = vsel %vm1478, %v4777, %v4778
        %v4780 = vrot.slane %v4680, 5
        %v4781 = vrot.slane %v4780, 4
        %v4782 = vrot.slane %v4681, 5
        %v4783 = vsel %vm1478, %v4781, %v4782
        %v4784 = vrot.slane %v4782, 4
        %v4785 = vrot.slane %v4682, 5
        %v4786 = vsel %vm1478, %v4784, %v4785
        %v4787 = vrot.slane %v4683, 5
        %v4788 = vrot.slane %v4787, 4
        %v4789 = vrot.slane %v4684, 5
        %v4790 = vsel %vm1478, %v4788, %v4789
        %v4791 = vrot.slane %v4789, 4
        %v4792 = vrot.slane %v4685, 5
        %v4793 = vsel %vm1478, %v4791, %v4792
        %v4794 = vrot.slane %v4686, 5
        %v4795 = vrot.slane %v4794, 4
        %v4796 = vrot.slane %v4687, 5
        %v4797 = vsel %vm1478, %v4795, %v4796
        %v4798 = vrot.slane %v4796, 4
        %v4799 = vrot.slane %v4688, 5
        %v4800 = vsel %vm1478, %v4798, %v4799
        %v4801 = vrot.slane %v4689, 5
        %v4802 = vrot.slane %v4801, 4
        %v4803 = vrot.slane %v4690, 5
        %v4804 = vsel %vm1478, %v4802, %v4803
        %v4805 = vrot.slane %v4803, 4
        %v4806 = vrot.slane %v4691, 5
        %v4807 = vsel %vm1478, %v4805, %v4806
        %v4808 = vrot.slane %v4692, 5
        %v4809 = vrot.slane %v4808, 4
        %v4810 = vrot.slane %v4693, 5
        %v4811 = vsel %vm1478, %v4809, %v4810
        %v4812 = vrot.slane %v4810, 4
        %v4813 = vrot.slane %v4694, 5
        %v4814 = vsel %vm1478, %v4812, %v4813
        %v4815 = vrot.slane %v4695, 5
        %v4816 = vrot.slane %v4815, 4
        %v4817 = vrot.slane %v4696, 5
        %v4818 = vsel %vm1478, %v4816, %v4817
        %v4819 = vrot.slane %v4817, 4
        %v4820 = vrot.slane %v4697, 5
        %v4821 = vsel %vm1478, %v4819, %v4820
        %v4822 = vrot.slane %v4698, 5
        %v4823 = vrot.slane %v4822, 4
        %v4824 = vrot.slane %v4699, 5
        %v4825 = vsel %vm1478, %v4823, %v4824
        %v4826 = vrot.slane %v4824, 4
        %v4827 = vrot.slane %v4700, 5
        %v4828 = vsel %vm1478, %v4826, %v4827
        %v4829 = vrot.slane %v4701, 5
        %v4830 = vrot.slane %v4829, 4
        %v4831 = vrot.slane %v4702, 5
        %v4832 = vsel %vm1478, %v4830, %v4831
        %v4833 = vrot.slane %v4831, 4
        %v4834 = vrot.slane %v4703, 5
        %v4835 = vsel %vm1478, %v4833, %v4834
        %v4836 = vrot.slane %v4704, 5
        %v4837 = vrot.slane %v4836, 4
        %v4838 = vrot.slane %v4705, 5
        %v4839 = vsel %vm1478, %v4837, %v4838
        %v4840 = vrot.slane %v4838, 4
        %v4841 = vrot.slane %v4706, 5
        %v4842 = vsel %vm1478, %v4840, %v4841
        %v4843 = vrot.slane %v4707, 5
        %v4844 = vrot.slane %v4843, 4
        %v4845 = vrot.slane %v4708, 5
        %v4846 = vsel %vm1478, %v4844, %v4845
        %v4847 = vrot.slane %v4845, 4
        %v4848 = vrot.slane %v4709, 5
        %v4849 = vsel %vm1478, %v4847, %v4848
        %v4850 = vrot.slane %v4710, 5
        %v4851 = vrot.slane %v4850, 4
        %v4852 = vrot.slane %v4711, 5
        %v4853 = vsel %vm1478, %v4851, %v4852
        %v4854 = vrot.slane %v4852, 4
        %v4855 = vrot.slane %v4712, 5
        %v4856 = vsel %vm1478, %v4854, %v4855
        %v4857 = vrot.slane %v4713, 5
        %v4858 = vrot.slane %v4857, 4
        %v4859 = vrot.slane %v4714, 5
        %v4860 = vsel %vm1478, %v4858, %v4859
        %v4861 = vrot.slane %v4859, 4
        %v4862 = vrot.slane %v4715, 5
        %v4863 = vsel %vm1478, %v4861, %v4862
        %v4864 = vrot.slane %v4716, 5
        %v4865 = vrot.slane %v4864, 4
        %v4866 = vrot.slane %v4717, 5
        %v4867 = vsel %vm1478, %v4865, %v4866
        %v4868 = vrot.slane %v4866, 4
        %v4869 = vrot.slane %v4718, 5
        %v4870 = vsel %vm1478, %v4868, %v4869
        %v4871 = vrot.slane %v4719, 5
        %v4872 = vrot.slane %v4871, 4
        %v4873 = vrot.slane %v4720, 5
        %v4874 = vsel %vm1478, %v4872, %v4873
        %v4875 = vrot.slane %v4873, 4
        %v4876 = vrot.slane %v4721, 5
        %v4877 = vsel %vm1478, %v4875, %v4876
        %v4878 = vrot.slane %v4722, 5
        %v4879 = vrot.slane %v4878, 4
        %v4880 = vrot.slane %v4723, 5
        %v4881 = vsel %vm1478, %v4879, %v4880
        %v4882 = vrot.slane %v4880, 4
        %v4883 = vrot.slane %v4724, 5
        %v4884 = vsel %vm1478, %v4882, %v4883
        %v4885 = vld [vmem:[#allocation2] sm:$0xff]
        %v4886 = vld [vmem:[#allocation2 + $0x8] sm:$0xff]
        %v4887 = vld [vmem:[#allocation2 + $0x10] sm:$0xff]
        %v4888 = vld [vmem:[#allocation2 + $0x18] sm:$0xff]
        %v4889 = vld [vmem:[#allocation2 + $0x20] sm:$0xff]
        %v4890 = vld [vmem:[#allocation2 + $0x28] sm:$0xff]
        %v4891 = vld [vmem:[#allocation2 + $0x30] sm:$0xff]
        %v4892 = vld [vmem:[#allocation2 + $0x38] sm:$0xff]
        %v4893 = vld [vmem:[#allocation2 + $0x40] sm:$0xff]
        %v4894 = vld [vmem:[#allocation2 + $0x48] sm:$0xff]
        %v4895 = vld [vmem:[#allocation2 + $0x50] sm:$0xff]
        %v4896 = vld [vmem:[#allocation2 + $0x58] sm:$0xff]
        %v4897 = vld [vmem:[#allocation2 + $0x60] sm:$0xff]
        %v4898 = vld [vmem:[#allocation2 + $0x68] sm:$0xff]
        %v4899 = vld [vmem:[#allocation2 + $0x70] sm:$0xff]
        %v4900 = vld [vmem:[#allocation2 + $0x78] sm:$0xff]
        %v4901 = vld [vmem:[#allocation2 + $0x80] sm:$0xff]
        %v4902 = vld [vmem:[#allocation2 + $0x88] sm:$0xff]
        %v4903 = vld [vmem:[#allocation2 + $0x90] sm:$0xff]
        %v4904 = vld [vmem:[#allocation2 + $0x98] sm:$0xff]
        %v4905 = vld [vmem:[#allocation2 + $0xa0] sm:$0xff]
        %v4906 = vld [vmem:[#allocation2 + $0xa8] sm:$0xff]
        %v4907 = vld [vmem:[#allocation2 + $0xb0] sm:$0xff]
        %v4908 = vld [vmem:[#allocation2 + $0xb8] sm:$0xff]
        %v4909 = vld [vmem:[#allocation2 + $0xc0] sm:$0xff]
        %v4910 = vld [vmem:[#allocation2 + $0xc8] sm:$0xff]
        %v4911 = vld [vmem:[#allocation2 + $0xd0] sm:$0xff]
        %v4912 = vld [vmem:[#allocation2 + $0xd8] sm:$0xff]
        %v4913 = vld [vmem:[#allocation2 + $0xe0] sm:$0xff]
        %v4914 = vld [vmem:[#allocation2 + $0xe8] sm:$0xff]
        %v4915 = vld [vmem:[#allocation2 + $0xf0] sm:$0xff]
        %v4916 = vld [vmem:[#allocation2 + $0xf8] sm:$0xff]
        %s4917 = scalar_lea.vmem %s1, 512
        %v4918 = vld [vmem:[%s4917] sm:$0xf]
        %v4919 = vld [vmem:[%s4917 + $0x4] sm:$0xf]
        %v4920 = vld [vmem:[%s4917 + $0x8] sm:$0xf]
        %v4921 = vld [vmem:[%s4917 + $0xc] sm:$0xf]
        %v4922 = vld [vmem:[%s4917 + $0x10] sm:$0xf]
        %v4923 = vld [vmem:[%s4917 + $0x14] sm:$0xf]
        %v4924 = vld [vmem:[%s4917 + $0x18] sm:$0xf]
        %v4925 = vld [vmem:[%s4917 + $0x1c] sm:$0xf]
        %v4926 = vld [vmem:[%s4917 + $0x20] sm:$0xf]
        %v4927 = vld [vmem:[%s4917 + $0x24] sm:$0xf]
        %v4928 = vld [vmem:[%s4917 + $0x28] sm:$0xf]
        %v4929 = vld [vmem:[%s4917 + $0x2c] sm:$0xf]
        %v4930 = vld [vmem:[%s4917 + $0x30] sm:$0xf]
        %v4931 = vld [vmem:[%s4917 + $0x34] sm:$0xf]
        %v4932 = vld [vmem:[%s4917 + $0x38] sm:$0xf]
        %v4933 = vld [vmem:[%s4917 + $0x3c] sm:$0xf]
        %v4934 = vunpack.c.l.b16 %v4776
        %v4935 = vunpack.c.l.b16 %v4779
        %v4936 = vunpack.c.l.b16 %v4783
        %v4937 = vunpack.c.l.b16 %v4786
        %v4938 = vunpack.c.l.b16 %v4790
        %v4939 = vunpack.c.l.b16 %v4793
        %v4940 = vunpack.c.l.b16 %v4797
        %v4941 = vunpack.c.l.b16 %v4800
        %v4942 = vunpack.c.l.b16 %v4804
        %v4943 = vunpack.c.l.b16 %v4807
        %v4944 = vunpack.c.l.b16 %v4811
        %v4945 = vunpack.c.l.b16 %v4814
        %v4946 = vunpack.c.l.b16 %v4818
        %v4947 = vunpack.c.l.b16 %v4821
        %v4948 = vunpack.c.l.b16 %v4825
        %v4949 = vunpack.c.l.b16 %v4828
        %v4950 = vunpack.c.l.b16 %v4832
        %v4951 = vunpack.c.l.b16 %v4835
        %v4952 = vunpack.c.l.b16 %v4839
        %v4953 = vunpack.c.l.b16 %v4842
        %v4954 = vunpack.c.l.b16 %v4846
        %v4955 = vunpack.c.l.b16 %v4849
        %v4956 = vunpack.c.l.b16 %v4853
        %v4957 = vunpack.c.l.b16 %v4856
        %v4958 = vunpack.c.l.b16 %v4860
        %v4959 = vunpack.c.l.b16 %v4863
        %v4960 = vunpack.c.l.b16 %v4867
        %v4961 = vunpack.c.l.b16 %v4870
        %v4962 = vunpack.c.l.b16 %v4874
        %v4963 = vunpack.c.l.b16 %v4877
        %v4964 = vunpack.c.l.b16 %v4881
        %v4965 = vunpack.c.l.b16 %v4884
        %v4966 = vpack.c.b16 %v4935, %v4934
        %v4967 = vpack.c.b16 %v4937, %v4936
        %v4968 = vpack.c.b16 %v4939, %v4938
        %v4969 = vpack.c.b16 %v4941, %v4940
        %v4970 = vpack.c.b16 %v4943, %v4942
        %v4971 = vpack.c.b16 %v4945, %v4944
        %v4972 = vpack.c.b16 %v4947, %v4946
        %v4973 = vpack.c.b16 %v4949, %v4948
        %v4974 = vpack.c.b16 %v4951, %v4950
        %v4975 = vpack.c.b16 %v4953, %v4952
        %v4976 = vpack.c.b16 %v4955, %v4954
        %v4977 = vpack.c.b16 %v4957, %v4956
        %v4978 = vpack.c.b16 %v4959, %v4958
        %v4979 = vpack.c.b16 %v4961, %v4960
        %v4980 = vpack.c.b16 %v4963, %v4962
        %v4981 = vpack.c.b16 %v4965, %v4964
        %v5014 = vunpack.c.l.b16 %v4918
        %v5015 = vunpack.c.l.b16 %v4919
        %v5016 = vunpack.c.l.b16 %v4920
        %v5017 = vunpack.c.l.b16 %v4921
        %v5018 = vunpack.c.l.b16 %v4922
        %v5019 = vunpack.c.l.b16 %v4923
        %v5020 = vunpack.c.l.b16 %v4924
        %v5021 = vunpack.c.l.b16 %v4925
        %v5022 = vunpack.c.l.b16 %v4926
        %v5023 = vunpack.c.l.b16 %v4927
        %v5024 = vunpack.c.l.b16 %v4928
        %v5025 = vunpack.c.l.b16 %v4929
        %v5026 = vunpack.c.l.b16 %v4930
        %v5027 = vunpack.c.l.b16 %v4931
        %v5028 = vunpack.c.l.b16 %v4932
        %v5029 = vunpack.c.l.b16 %v4933
        %v5030 = vpack.c.b16 %v5015, %v5014
        %v5031 = vpack.c.b16 %v5017, %v5016
        %v5032 = vpack.c.b16 %v5019, %v5018
        %v5033 = vpack.c.b16 %v5021, %v5020
        %v5034 = vpack.c.b16 %v5023, %v5022
        %v5035 = vpack.c.b16 %v5025, %v5024
        %v5036 = vpack.c.b16 %v5027, %v5026
        %v5037 = vpack.c.b16 %v5029, %v5028
        %5046 = vmatpush.bf16.msra.mxu0 %v5037
        %5047 = vmatpush.bf16.msra.mxu0 %v5036
        %5048 = vmatpush.bf16.msra.mxu0 %v5035
        %5049 = vmatpush.bf16.msra.mxu0 %v5034
        %5050 = vmatpush.bf16.msra.mxu0 %v5033
        %5051 = vmatpush.bf16.msra.mxu0 %v5032
        %5052 = vmatpush.bf16.msra.mxu0 %v5031
        %5053 = vmatpush.bf16.msra.mxu0 %v5030
        %5054 = vmatmul.bf16.gmra.mxu0 %v4966
        %v5055 = vpop.f32.mrf.mxu0
        %v5056 = vadd.f32 0.0, %v5055
        %v5057 = vpop.f32.mrf.mxu0
        %v5058 = vadd.f32 0.0, %v5057
        %5059 = vmatmul.bf16.gmra.mxu0 %v4967
        %v5060 = vpop.f32.mrf.mxu0
        %v5061 = vadd.f32 0.0, %v5060
        %v5062 = vpop.f32.mrf.mxu0
        %v5063 = vadd.f32 0.0, %v5062
        %5064 = vmatmul.bf16.gmra.mxu0 %v4968
        %v5065 = vpop.f32.mrf.mxu0
        %v5066 = vadd.f32 0.0, %v5065
        %v5067 = vpop.f32.mrf.mxu0
        %v5068 = vadd.f32 0.0, %v5067
        %5069 = vmatmul.bf16.gmra.mxu0 %v4969
        %v5070 = vpop.f32.mrf.mxu0
        %v5071 = vadd.f32 0.0, %v5070
        %v5072 = vpop.f32.mrf.mxu0
        %v5073 = vadd.f32 0.0, %v5072
        %5074 = vmatmul.bf16.gmra.mxu0 %v4970
        %v5075 = vpop.f32.mrf.mxu0
        %v5076 = vadd.f32 0.0, %v5075
        %v5077 = vpop.f32.mrf.mxu0
        %v5078 = vadd.f32 0.0, %v5077
        %5079 = vmatmul.bf16.gmra.mxu0 %v4971
        %v5080 = vpop.f32.mrf.mxu0
        %v5081 = vadd.f32 0.0, %v5080
        %v5082 = vpop.f32.mrf.mxu0
        %v5083 = vadd.f32 0.0, %v5082
        %5084 = vmatmul.bf16.gmra.mxu0 %v4972
        %v5085 = vpop.f32.mrf.mxu0
        %v5086 = vadd.f32 0.0, %v5085
        %v5087 = vpop.f32.mrf.mxu0
        %v5088 = vadd.f32 0.0, %v5087
        %5089 = vmatmul.bf16.gmra.mxu0 %v4973
        %v5090 = vpop.f32.mrf.mxu0
        %v5091 = vadd.f32 0.0, %v5090
        %v5092 = vpop.f32.mrf.mxu0
        %v5093 = vadd.f32 0.0, %v5092
        %5094 = vmatmul.bf16.gmra.mxu0 %v4974
        %v5095 = vpop.f32.mrf.mxu0
        %v5096 = vadd.f32 0.0, %v5095
        %v5097 = vpop.f32.mrf.mxu0
        %v5098 = vadd.f32 0.0, %v5097
        %5099 = vmatmul.bf16.gmra.mxu0 %v4975
        %v5100 = vpop.f32.mrf.mxu0
        %v5101 = vadd.f32 0.0, %v5100
        %v5102 = vpop.f32.mrf.mxu0
        %v5103 = vadd.f32 0.0, %v5102
        %5104 = vmatmul.bf16.gmra.mxu0 %v4976
        %v5105 = vpop.f32.mrf.mxu0
        %v5106 = vadd.f32 0.0, %v5105
        %v5107 = vpop.f32.mrf.mxu0
        %v5108 = vadd.f32 0.0, %v5107
        %5109 = vmatmul.bf16.gmra.mxu0 %v4977
        %v5110 = vpop.f32.mrf.mxu0
        %v5111 = vadd.f32 0.0, %v5110
        %v5112 = vpop.f32.mrf.mxu0
        %v5113 = vadd.f32 0.0, %v5112
        %5114 = vmatmul.bf16.gmra.mxu0 %v4978
        %v5115 = vpop.f32.mrf.mxu0
        %v5116 = vadd.f32 0.0, %v5115
        %v5117 = vpop.f32.mrf.mxu0
        %v5118 = vadd.f32 0.0, %v5117
        %5119 = vmatmul.bf16.gmra.mxu0 %v4979
        %v5120 = vpop.f32.mrf.mxu0
        %v5121 = vadd.f32 0.0, %v5120
        %v5122 = vpop.f32.mrf.mxu0
        %v5123 = vadd.f32 0.0, %v5122
        %5124 = vmatmul.bf16.gmra.mxu0 %v4980
        %v5125 = vpop.f32.mrf.mxu0
        %v5126 = vadd.f32 0.0, %v5125
        %v5127 = vpop.f32.mrf.mxu0
        %v5128 = vadd.f32 0.0, %v5127
        %5129 = vmatmul.bf16.gmra.mxu0 %v4981
        %v5130 = vpop.f32.mrf.mxu0
        %v5131 = vadd.f32 0.0, %v5130
        %v5132 = vpop.f32.mrf.mxu0
        %v5133 = vadd.f32 0.0, %v5132
        %5134 = vdwg.mxu0
        %v5135 = vadd.f32 %v4885, %v5056
        %v5136 = vadd.f32 %v4886, %v5058
        %v5137 = vadd.f32 %v4887, %v5061
        %v5138 = vadd.f32 %v4888, %v5063
        %v5139 = vadd.f32 %v4889, %v5066
        %v5140 = vadd.f32 %v4890, %v5068
        %v5141 = vadd.f32 %v4891, %v5071
        %v5142 = vadd.f32 %v4892, %v5073
        %v5143 = vadd.f32 %v4893, %v5076
        %v5144 = vadd.f32 %v4894, %v5078
        %v5145 = vadd.f32 %v4895, %v5081
        %v5146 = vadd.f32 %v4896, %v5083
        %v5147 = vadd.f32 %v4897, %v5086
        %v5148 = vadd.f32 %v4898, %v5088
        %v5149 = vadd.f32 %v4899, %v5091
        %v5150 = vadd.f32 %v4900, %v5093
        %v5151 = vadd.f32 %v4901, %v5096
        %v5152 = vadd.f32 %v4902, %v5098
        %v5153 = vadd.f32 %v4903, %v5101
        %v5154 = vadd.f32 %v4904, %v5103
        %v5155 = vadd.f32 %v4905, %v5106
        %v5156 = vadd.f32 %v4906, %v5108
        %v5157 = vadd.f32 %v4907, %v5111
        %v5158 = vadd.f32 %v4908, %v5113
        %v5159 = vadd.f32 %v4909, %v5116
        %v5160 = vadd.f32 %v4910, %v5118
        %v5161 = vadd.f32 %v4911, %v5121
        %v5162 = vadd.f32 %v4912, %v5123
        %v5163 = vadd.f32 %v4913, %v5126
        %v5164 = vadd.f32 %v4914, %v5128
        %v5165 = vadd.f32 %v4915, %v5131
        %v5166 = vadd.f32 %v4916, %v5133
        %5167 = vst [vmem:[#allocation2] sm:$0xff] %v5135
        %5168 = vst [vmem:[#allocation2 + $0x8] sm:$0xff] %v5136
        %5169 = vst [vmem:[#allocation2 + $0x10] sm:$0xff] %v5137
        %5170 = vst [vmem:[#allocation2 + $0x18] sm:$0xff] %v5138
        %5171 = vst [vmem:[#allocation2 + $0x20] sm:$0xff] %v5139
        %5172 = vst [vmem:[#allocation2 + $0x28] sm:$0xff] %v5140
        %5173 = vst [vmem:[#allocation2 + $0x30] sm:$0xff] %v5141
        %5174 = vst [vmem:[#allocation2 + $0x38] sm:$0xff] %v5142
        %5175 = vst [vmem:[#allocation2 + $0x40] sm:$0xff] %v5143
        %5176 = vst [vmem:[#allocation2 + $0x48] sm:$0xff] %v5144
        %5177 = vst [vmem:[#allocation2 + $0x50] sm:$0xff] %v5145
        %5178 = vst [vmem:[#allocation2 + $0x58] sm:$0xff] %v5146
        %5179 = vst [vmem:[#allocation2 + $0x60] sm:$0xff] %v5147
        %5180 = vst [vmem:[#allocation2 + $0x68] sm:$0xff] %v5148
        %5181 = vst [vmem:[#allocation2 + $0x70] sm:$0xff] %v5149
        %5182 = vst [vmem:[#allocation2 + $0x78] sm:$0xff] %v5150
        %5183 = vst [vmem:[#allocation2 + $0x80] sm:$0xff] %v5151
        %5184 = vst [vmem:[#allocation2 + $0x88] sm:$0xff] %v5152
        %5185 = vst [vmem:[#allocation2 + $0x90] sm:$0xff] %v5153
        %5186 = vst [vmem:[#allocation2 + $0x98] sm:$0xff] %v5154
        %5187 = vst [vmem:[#allocation2 + $0xa0] sm:$0xff] %v5155
        %5188 = vst [vmem:[#allocation2 + $0xa8] sm:$0xff] %v5156
        %5189 = vst [vmem:[#allocation2 + $0xb0] sm:$0xff] %v5157
        %5190 = vst [vmem:[#allocation2 + $0xb8] sm:$0xff] %v5158
        %5191 = vst [vmem:[#allocation2 + $0xc0] sm:$0xff] %v5159
        %5192 = vst [vmem:[#allocation2 + $0xc8] sm:$0xff] %v5160
        %5193 = vst [vmem:[#allocation2 + $0xd0] sm:$0xff] %v5161
        %5194 = vst [vmem:[#allocation2 + $0xd8] sm:$0xff] %v5162
        %5195 = vst [vmem:[#allocation2 + $0xe0] sm:$0xff] %v5163
        %5196 = vst [vmem:[#allocation2 + $0xe8] sm:$0xff] %v5164
        %5197 = vst [vmem:[#allocation2 + $0xf0] sm:$0xff] %v5165
        %5198 = vst [vmem:[#allocation2 + $0xf8] sm:$0xff] %v5166
        %v5199 = vld [vmem:[#allocation2] sm:$0xff]
        %v5200 = vld [vmem:[#allocation2 + $0x8] sm:$0xff]
        %v5201 = vld [vmem:[#allocation2 + $0x10] sm:$0xff]
        %v5202 = vld [vmem:[#allocation2 + $0x18] sm:$0xff]
        %v5203 = vld [vmem:[#allocation2 + $0x20] sm:$0xff]
        %v5204 = vld [vmem:[#allocation2 + $0x28] sm:$0xff]
        %v5205 = vld [vmem:[#allocation2 + $0x30] sm:$0xff]
        %v5206 = vld [vmem:[#allocation2 + $0x38] sm:$0xff]
        %v5207 = vld [vmem:[#allocation2 + $0x40] sm:$0xff]
        %v5208 = vld [vmem:[#allocation2 + $0x48] sm:$0xff]
        %v5209 = vld [vmem:[#allocation2 + $0x50] sm:$0xff]
        %v5210 = vld [vmem:[#allocation2 + $0x58] sm:$0xff]
        %v5211 = vld [vmem:[#allocation2 + $0x60] sm:$0xff]
        %v5212 = vld [vmem:[#allocation2 + $0x68] sm:$0xff]
        %v5213 = vld [vmem:[#allocation2 + $0x70] sm:$0xff]
        %v5214 = vld [vmem:[#allocation2 + $0x78] sm:$0xff]
        %v5215 = vld [vmem:[#allocation2 + $0x80] sm:$0xff]
        %v5216 = vld [vmem:[#allocation2 + $0x88] sm:$0xff]
        %v5217 = vld [vmem:[#allocation2 + $0x90] sm:$0xff]
        %v5218 = vld [vmem:[#allocation2 + $0x98] sm:$0xff]
        %v5219 = vld [vmem:[#allocation2 + $0xa0] sm:$0xff]
        %v5220 = vld [vmem:[#allocation2 + $0xa8] sm:$0xff]
        %v5221 = vld [vmem:[#allocation2 + $0xb0] sm:$0xff]
        %v5222 = vld [vmem:[#allocation2 + $0xb8] sm:$0xff]
        %v5223 = vld [vmem:[#allocation2 + $0xc0] sm:$0xff]
        %v5224 = vld [vmem:[#allocation2 + $0xc8] sm:$0xff]
        %v5225 = vld [vmem:[#allocation2 + $0xd0] sm:$0xff]
        %v5226 = vld [vmem:[#allocation2 + $0xd8] sm:$0xff]
        %v5227 = vld [vmem:[#allocation2 + $0xe0] sm:$0xff]
        %v5228 = vld [vmem:[#allocation2 + $0xe8] sm:$0xff]
        %v5229 = vld [vmem:[#allocation2 + $0xf0] sm:$0xff]
        %v5230 = vld [vmem:[#allocation2 + $0xf8] sm:$0xff]
        %v5231 = vld [vmem:[%s2] sm:$0x1]
        %v5233 = vperm.slane %v5231, 0
        %v5235 = vadd.f32 %v5199, %v5233
        %v5236 = vadd.f32 %v5200, %v5233
        %v5237 = vadd.f32 %v5201, %v5233
        %v5238 = vadd.f32 %v5202, %v5233
        %v5239 = vadd.f32 %v5203, %v5233
        %v5240 = vadd.f32 %v5204, %v5233
        %v5241 = vadd.f32 %v5205, %v5233
        %v5242 = vadd.f32 %v5206, %v5233
        %v5243 = vadd.f32 %v5207, %v5233
        %v5244 = vadd.f32 %v5208, %v5233
        %v5245 = vadd.f32 %v5209, %v5233
        %v5246 = vadd.f32 %v5210, %v5233
        %v5247 = vadd.f32 %v5211, %v5233
        %v5248 = vadd.f32 %v5212, %v5233
        %v5249 = vadd.f32 %v5213, %v5233
        %v5250 = vadd.f32 %v5214, %v5233
        %v5251 = vadd.f32 %v5215, %v5233
        %v5252 = vadd.f32 %v5216, %v5233
        %v5253 = vadd.f32 %v5217, %v5233
        %v5254 = vadd.f32 %v5218, %v5233
        %v5255 = vadd.f32 %v5219, %v5233
        %v5256 = vadd.f32 %v5220, %v5233
        %v5257 = vadd.f32 %v5221, %v5233
        %v5258 = vadd.f32 %v5222, %v5233
        %v5259 = vadd.f32 %v5223, %v5233
        %v5260 = vadd.f32 %v5224, %v5233
        %v5261 = vadd.f32 %v5225, %v5233
        %v5262 = vadd.f32 %v5226, %v5233
        %v5263 = vadd.f32 %v5227, %v5233
        %v5264 = vadd.f32 %v5228, %v5233
        %v5265 = vadd.f32 %v5229, %v5233
        %v5266 = vadd.f32 %v5230, %v5233
        %v5267 = vmax.f32 %v5235, 0.0
        %v5268 = vmax.f32 %v5236, 0.0
        %v5269 = vmax.f32 %v5237, 0.0
        %v5270 = vmax.f32 %v5238, 0.0
        %v5271 = vmax.f32 %v5239, 0.0
        %v5272 = vmax.f32 %v5240, 0.0
        %v5273 = vmax.f32 %v5241, 0.0
        %v5274 = vmax.f32 %v5242, 0.0
        %v5275 = vmax.f32 %v5243, 0.0
        %v5276 = vmax.f32 %v5244, 0.0
        %v5277 = vmax.f32 %v5245, 0.0
        %v5278 = vmax.f32 %v5246, 0.0
        %v5279 = vmax.f32 %v5247, 0.0
        %v5280 = vmax.f32 %v5248, 0.0
        %v5281 = vmax.f32 %v5249, 0.0
        %v5282 = vmax.f32 %v5250, 0.0
        %v5283 = vmax.f32 %v5251, 0.0
        %v5284 = vmax.f32 %v5252, 0.0
        %v5285 = vmax.f32 %v5253, 0.0
        %v5286 = vmax.f32 %v5254, 0.0
        %v5287 = vmax.f32 %v5255, 0.0
        %v5288 = vmax.f32 %v5256, 0.0
        %v5289 = vmax.f32 %v5257, 0.0
        %v5290 = vmax.f32 %v5258, 0.0
        %v5291 = vmax.f32 %v5259, 0.0
        %v5292 = vmax.f32 %v5260, 0.0
        %v5293 = vmax.f32 %v5261, 0.0
        %v5294 = vmax.f32 %v5262, 0.0
        %v5295 = vmax.f32 %v5263, 0.0
        %v5296 = vmax.f32 %v5264, 0.0
        %v5297 = vmax.f32 %v5265, 0.0
        %v5298 = vmax.f32 %v5266, 0.0
        %v5299 = vadd.f32 %v5267, %v5268
        %v5300 = vadd.f32 %v5299, %v5269
        %v5301 = vadd.f32 %v5300, %v5270
        %v5302 = vadd.f32 %v5301, %v5271
        %v5303 = vadd.f32 %v5302, %v5272
        %v5304 = vadd.f32 %v5303, %v5273
        %v5305 = vadd.f32 %v5304, %v5274
        %v5306 = vadd.f32 %v5305, %v5275
        %v5307 = vadd.f32 %v5306, %v5276
        %v5308 = vadd.f32 %v5307, %v5277
        %v5309 = vadd.f32 %v5308, %v5278
        %v5310 = vadd.f32 %v5309, %v5279
        %v5311 = vadd.f32 %v5310, %v5280
        %v5312 = vadd.f32 %v5311, %v5281
        %v5313 = vadd.f32 %v5312, %v5282
        %v5314 = vadd.f32 %v5313, %v5283
        %v5315 = vadd.f32 %v5314, %v5284
        %v5316 = vadd.f32 %v5315, %v5285
        %v5317 = vadd.f32 %v5316, %v5286
        %v5318 = vadd.f32 %v5317, %v5287
        %v5319 = vadd.f32 %v5318, %v5288
        %v5320 = vadd.f32 %v5319, %v5289
        %v5321 = vadd.f32 %v5320, %v5290
        %v5322 = vadd.f32 %v5321, %v5291
        %v5323 = vadd.f32 %v5322, %v5292
        %v5324 = vadd.f32 %v5323, %v5293
        %v5325 = vadd.f32 %v5324, %v5294
        %v5326 = vadd.f32 %v5325, %v5295
        %v5327 = vadd.f32 %v5326, %v5296
        %v5328 = vadd.f32 %v5327, %v5297
        %v5329 = vadd.f32 %v5328, %v5298
        %v5330 = vrot.slane %v5329, 4
        %v5331 = vadd.f32 %v5329, %v5330
        %v5332 = vrot.slane %v5331, 2
        %v5333 = vadd.f32 %v5331, %v5332
        %v5334 = vrot.slane %v5333, 1
        %v5335 = vadd.f32 %v5333, %v5334
        %v5336 = vmul.f32 %v5335, 0.00390625
        %v5337 = vld [vmem:[%s3] sm:$0xff]
        %v5338 = vld [vmem:[%s3 + $0x8] sm:$0xff]
        %v5339 = vld [vmem:[%s3 + $0x10] sm:$0xff]
        %v5340 = vld [vmem:[%s3 + $0x18] sm:$0xff]
        %v5341 = vld [vmem:[%s3 + $0x20] sm:$0xff]
        %v5342 = vld [vmem:[%s3 + $0x28] sm:$0xff]
        %v5343 = vld [vmem:[%s3 + $0x30] sm:$0xff]
        %v5344 = vld [vmem:[%s3 + $0x38] sm:$0xff]
        %v5345 = vld [vmem:[%s3 + $0x40] sm:$0xff]
        %v5346 = vld [vmem:[%s3 + $0x48] sm:$0xff]
        %v5347 = vld [vmem:[%s3 + $0x50] sm:$0xff]
        %v5348 = vld [vmem:[%s3 + $0x58] sm:$0xff]
        %v5349 = vld [vmem:[%s3 + $0x60] sm:$0xff]
        %v5350 = vld [vmem:[%s3 + $0x68] sm:$0xff]
        %v5351 = vld [vmem:[%s3 + $0x70] sm:$0xff]
        %v5352 = vld [vmem:[%s3 + $0x78] sm:$0xff]
        %v5353 = vld [vmem:[%s4] sm:$0x1]
        %5354 = vmatpush.msra.mxu0 %v5352
        %5355 = vmatpush.msra.mxu0 %v5351
        %5356 = vmatpush.msra.mxu0 %v5350
        %5357 = vmatpush.msra.mxu0 %v5349
        %5358 = vmatpush.msra.mxu0 %v5348
        %5359 = vmatpush.msra.mxu0 %v5347
        %5360 = vmatpush.msra.mxu0 %v5346
        %5361 = vmatpush.msra.mxu0 %v5345
        %5362 = vmatpush.msra.mxu0 %v5344
        %5363 = vmatpush.msra.mxu0 %v5343
        %5364 = vmatpush.msra.mxu0 %v5342
        %5365 = vmatpush.msra.mxu0 %v5341
        %5366 = vmatpush.msra.mxu0 %v5340
        %5367 = vmatpush.msra.mxu0 %v5339
        %5368 = vmatpush.msra.mxu0 %v5338
        %5369 = vmatpush.msra.mxu0 %v5337
        %5370 = vmatmul.f32.gmra.mxu0 %v5336
        %v5371 = vpop.f32.mrf.mxu0
        %v5372 = vadd.f32 %v5353, %v5371
        %5373 = vdwg.mxu0
        %5374 = vst [vmem:[%s216] sm:$0x1] %v5372
        %s5375 = sand.u32 %s137, 1
        %s5376 = scalar_lea.sflag [#allocation4], %s5375
        %s5377 = sand.u32 %s137, 1
        %s5378 = scalar_lea.vmem [#allocation3], %s5377
        // Predicated region
        $region41: #{custom_timm_model_forward.3} parent=39 // pred_check
          %p5379 = pneg %p147
        $region42: #{custom_timm_model_forward.3} parent=39 // pred_check_branch
          %5381 = sbr.rel (%p5379) target = $region44
        $region43: #{custom_timm_model_forward.3} parent=39 // pred_region
          %5383 = vsyncadd %s5376, 0
          %s5384 = scalar_lea.hbm %s5, %s19
          %s5386 = sshll.u32 %s5378, 4
          %s5387 = int_to_ptr.vmem [resolvable:$true] %s5386
          %s5388 = sshll.u32 %s5384, 4
          %s5389 = int_to_ptr.hbm [resolvable:$true] %s5388
          %5391 = dma.vmem_to_hbm [thread:$0]  %s5387, 16, %s5389, %s5376
        $region44: #{custom_timm_model_forward.3} parent=39 // pred_fallthru
          _
      $region40: #{custom_timm_model_forward.3} parent=5 // pred_fallthru
        _
      %p5392 = scmp.le.s32.totalorder 2, %s14
      // Predicated region
      $region45: #{custom_timm_model_forward.3} parent=5 // pred_check
        %p5393 = pneg %p5392
      $region46: #{custom_timm_model_forward.3} parent=5 // pred_check_branch
        %5395 = sbr.rel (%p5393) target = $region48
      $region47: #{custom_timm_model_forward.3} parent=5 // pred_region
        %s5396 = ssub.s32 %s14, 2
        // Predicated region
        $region49: #{custom_timm_model_forward.3} parent=47 // pred_check
          %p5397 = pneg %p153
        $region50: #{custom_timm_model_forward.3} parent=47 // pred_check_branch
          %5399 = sbr.rel (%p5397) target = $region52
        $region51: #{custom_timm_model_forward.3} parent=47 // pred_region
          %s5400 = sand.u32 %s138, 1
          %s5401 = scalar_lea.sflag [#allocation4], %s5400
          %s5402 = sand.u32 %s138, 1
          %s5403 = scalar_lea.vmem [#allocation3], %s5402
          %5405 = dma.done %s5401, 16
        $region52: #{custom_timm_model_forward.3} parent=47 // pred_fallthru
          _
      $region48: #{custom_timm_model_forward.3} parent=5 // pred_fallthru
        _
    $region6: #{custom_timm_model_forward.3} parent=1 // loop_footer
      %s18 = sadd.s32 1, %s14
    $region7: #{custom_timm_model_forward.3} parent=1 // loop_footer_branch
      %13 = sbr.rel target = $region3
    $region8: #{custom_timm_model_forward.3} parent=1 // loop_exit
      _
    %5406 = vsyncpa [#allocation4], 1
    %s5407 = scalar_lea.sflag [#allocation4], 1
    %5408 = vsyncpa %s5407, 1

</llo_original>
